<compile_context>
chip_gen: v6e
topology: v6e:2x2x1
jax: 0.10.0
libtpu: 0.0.40
codegen_flags: <defaults>
</compile_context>

<pallas_src>
import functools

import numpy as np

import jax
import jax.numpy as jnp
from jax.experimental import pallas as pl
from jax.experimental.pallas import tpu as pltpu

BN_EPS = 1e-5
LN_EPS = 1e-5


def _conv_out(v, k, s):
    return (v - k) // s + 1


def _pad128(n):
    return ((n + 127) // 128) * 128


# ----------------------------------------------------------------------------
# Kernel: one grid step == one sample; full forward pass (conv1..3 + duel head).
# ----------------------------------------------------------------------------
def duel_cnn_kernel(p1_ref, u1_ref, sh1_ref,
                    sy2_ref, u2_ref, sh2_ref,
                    sy3_ref, u3_ref, sh3_ref,
                    fsel_ref, w1h_ref, b1h_ref, gam_ref, bet_ref,
                    w2_ref, b2_ref,
                    q_ref):
    f32 = jnp.float32
    bf16 = jnp.bfloat16

    def mm(a, b):
        return jnp.dot(a, b, preferred_element_type=f32)

    # conv1 + folded BN1 + ReLU: single matmul; output layout [oh1, ow1*32].
    a1 = jnp.maximum(mm(p1_ref[0], u1_ref[...]) + sh1_ref[...], 0.0).astype(bf16)

    # conv2: KH tiny row-gathers -> aligned lane concat -> ONE matmul (x-gather
    # + channel mix + BN2 scale all folded into u2).
    t2 = jnp.concatenate(
        [mm(sy2_ref[k], a1).astype(bf16) for k in range(sy2_ref.shape[0])], axis=1)
    a2 = jnp.maximum(mm(t2, u2_ref[...]) + sh2_ref[...], 0.0).astype(bf16)

    # conv3: same structure.
    t3 = jnp.concatenate(
        [mm(sy3_ref[k], a2).astype(bf16) for k in range(sy3_ref.shape[0])], axis=1)
    a3 = jnp.maximum(mm(t3, u3_ref[...]) + sh3_ref[...], 0.0).astype(bf16)

    # Flatten (rows -> lanes via row selections + aligned concat) and the packed
    # A|V first linear (flatten permutation folded into w1h rows).
    f = jnp.concatenate(
        [mm(fsel_ref[r], a3).astype(bf16) for r in range(fsel_ref.shape[0])], axis=1)
    h = mm(f, w1h_ref[...]) + b1h_ref[...]                 # [1, 2*hidden] f32

    hidden = h.shape[-1] // 2
    gam = gam_ref[...]
    bet = bet_ref[...]

    def ln_relu(v, g, b):
        mu = jnp.mean(v, axis=-1, keepdims=True)
        var = jnp.mean((v - mu) ** 2, axis=-1, keepdims=True)
        return jnp.maximum((v - mu) * jax.lax.rsqrt(var + LN_EPS) * g + b, 0.0)

    ha = ln_relu(h[:, :hidden], gam[:, :hidden], bet[:, :hidden])
    hv = ln_relu(h[:, hidden:], gam[:, hidden:], bet[:, hidden:])
    hcat = jnp.concatenate([ha, hv], axis=1).astype(bf16)   # [1, 2*hidden]

    # Fused epilogue: block-diag(wa2, wv2) -> [1, 128] = [A logits | V | zeros].
    q_ref[0] = mm(hcat, w2_ref[...]) + b2_ref[...]


# ----------------------------------------------------------------------------
# Trace-time parameter packing (all batch-independent).
# ----------------------------------------------------------------------------
def prepare_packed(params, h, w):
    f32 = np.float32

    oh1, ow1 = _conv_out(h, 8, 4), _conv_out(w, 8, 4)
    oh2, ow2 = _conv_out(oh1, 4, 2), _conv_out(ow1, 4, 2)
    oh3, ow3 = _conv_out(oh2, 3, 1), _conv_out(ow2, 3, 1)

    def fold(wkey, bkey, bnkey):
        wt = np.asarray(params[wkey], f32)                 # [co, ci, kh, kw]
        b = np.asarray(params[bkey], f32)
        g, bt, rm, rv = [np.asarray(t, f32) for t in params[bnkey]]
        scale = g / np.sqrt(rv + BN_EPS)
        return wt * scale[:, None, None, None], (b - rm) * scale + bt

    w1f, s1 = fold('c1w', 'c1b', 'bn1')
    w2f, s2 = fold('c2w', 'c2b', 'bn2')
    w3f, s3 = fold('c3w', 'c3b', 'bn3')

    def conv_u(wf, in_xblocks, stride, out_w, out_lanes):
        """x-gather + channel-mix weight.  Rows: (ki, x, ci) over the (padded)
        input lane layout; cols: (ox, co), zero-padded to out_lanes."""
        co, ci, kh, kw = wf.shape
        u = np.zeros((kh * in_xblocks * ci, out_lanes), f32)
        for ki in range(kh):
            for kj in range(kw):
                for ox in range(out_w):
                    xx = stride * ox + kj
                    r0 = (ki * in_xblocks + xx) * ci
                    u[r0:r0 + ci, ox * co:(ox + 1) * co] = wf[:, :, ki, kj].T
        return u

    def shift_vec(sv, out_w, out_lanes):
        full = np.zeros((1, out_lanes), f32)
        full[0, :out_w * sv.shape[0]] = np.tile(sv, out_w)
        return full

    def row_sel(kh, stride, oh, ih):
        sel = np.zeros((kh, oh, ih), f32)
        for ki in range(kh):
            for oy in range(oh):
                sel[ki, oy, stride * oy + ki] = 1.0
        return sel

    # Lane widths of each activation, padded to multiples of 128 (lane-dense).
    a1_lanes = _pad128(ow1 * 32)      # 384
    a2_lanes = _pad128(ow2 * 64)      # 320 -> 384
    a3_lanes = _pad128(ow3 * 64)      # 192 -> 256

    u1 = conv_u(w1f, w, 4, ow1, a1_lanes)
    sh1 = shift_vec(s1, ow1, a1_lanes)
    u2 = conv_u(w2f, a1_lanes // 32, 2, ow2, a2_lanes)
    sh2 = shift_vec(s2, ow2, a2_lanes)
    u3 = conv_u(w3f, a2_lanes // 64, 1, ow3, a3_lanes)
    sh3 = shift_vec(s3, ow3, a3_lanes)

    sy2 = row_sel(4, 2, oh2, oh1)                          # [4, oh2, oh1]
    sy3 = row_sel(3, 1, oh3, oh2)                          # [3, oh3, oh2]
    fsel = row_sel(oh3, 1, 1, oh3)                         # [oh3, 1, oh3]

    # Head linear1: A|V packed, NCHW-flatten permutation folded into rows.
    hidden = params['wa1'].shape[1]
    wcat = np.concatenate([np.asarray(params['wa1'], f32),
                           np.asarray(params['wv1'], f32)], axis=1)
    w1h = np.zeros((oh3 * a3_lanes, 2 * hidden), f32)
    nsp = oh3 * ow3
    for r in range(oh3):
        for ox in range(ow3):
            for co in range(64):
                w1h[r * a3_lanes + ox * 64 + co, :] = wcat[co * nsp + r * ow3 + ox, :]
    b1h = np.concatenate([np.asarray(params['ba1'], f32),
                          np.asarray(params['bv1'], f32)])[None, :]
    gam = np.concatenate([np.asarray(params['ga'], f32),
                          np.asarray(params['gv'], f32)])[None, :]
    bet = np.concatenate([np.asarray(params['bta'], f32),
                          np.asarray(params['btv'], f32)])[None, :]

    # Fused (block-diagonal) second linears, padded to 128 output lanes.
    wa2 = np.asarray(params['wa2'], f32)
    wv2 = np.asarray(params['wv2'], f32)
    out_size = wa2.shape[1]
    w2blk = np.zeros((2 * hidden, 128), f32)
    w2blk[:hidden, :out_size] = wa2
    w2blk[hidden:, out_size] = wv2[:, 0]
    b2 = np.zeros((1, 128), f32)
    b2[0, :out_size] = np.asarray(params['ba2'], f32)
    b2[0, out_size] = np.asarray(params['bv2'], f32)[0]

    jb = lambda a: jnp.asarray(a, jnp.bfloat16)
    jf = lambda a: jnp.asarray(a, jnp.float32)
    return dict(u1=jb(u1), sh1=jf(sh1),
                sy2=jb(sy2), u2=jb(u2), sh2=jf(sh2),
                sy3=jb(sy3), u3=jb(u3), sh3=jf(sh3),
                fsel=jb(fsel), w1h=jb(w1h), b1h=jf(b1h), gam=jf(gam), bet=jf(bet),
                w2=jb(w2blk), b2=jf(b2))


# ----------------------------------------------------------------------------
# Forward wrapper: free XLA row-gather for conv1, one pallas_call, tiny combine.
# ----------------------------------------------------------------------------
def duel_cnn_forward(x_nchw, packed, out_size):
    B, C, H, W = x_nchw.shape
    oh1 = _conv_out(H, 8, 4)

    # conv1 stage-1 (y-row gather) done in the wrapper: [B, oh1, 8*W*C] bf16,
    # lane order (ki, x, ci) matching u1's row layout.
    xh = jnp.transpose(x_nchw, (0, 2, 3, 1))                        # NHWC
    rows = 4 * np.arange(oh1)[:, None] + np.arange(8)[None, :]      # [oh1, 8]
    p1 = xh[:, rows, :, :].reshape(B, oh1, 8 * W * C).astype(jnp.bfloat16)

    args = (p1, packed['u1'], packed['sh1'],
            packed['sy2'], packed['u2'], packed['sh2'],
            packed['sy3'], packed['u3'], packed['sh3'],
            packed['fsel'], packed['w1h'], packed['b1h'],
            packed['gam'], packed['bet'],
            packed['w2'], packed['b2'])

    # Weights: full-array blocks with constant index maps -> fetched once,
    # VMEM-resident across all (parallel) grid steps.
    in_specs = [pl.BlockSpec((1, p1.shape[1], p1.shape[2]), lambda b: (b, 0, 0))]
    for a in args[1:]:
        if a.ndim == 3:
            in_specs.append(pl.BlockSpec(a.shape, lambda b: (0, 0, 0)))
        else:
            in_specs.append(pl.BlockSpec(a.shape, lambda b: (0, 0)))

    av = pl.pallas_call(
        duel_cnn_kernel,
        out_shape=jax.ShapeDtypeStruct((B, 1, 128), jnp.float32),
        grid=(B,),
        in_specs=in_specs,
        out_specs=pl.BlockSpec((1, 1, 128), lambda b: (b, 0, 0)),
        compiler_params=pltpu.CompilerParams(
            dimension_semantics=("parallel",)),
    )(*args)

    av = av[:, 0, :]                                   # [B, 128] = [A | V | 0s]
    ax = av[:, :out_size]
    vx = av[:, out_size:out_size + 1]
    # PyTorch: q = Vx + (Ax - Ax.mean())  (mean over batch AND actions) -- done
    # here so the kernel's batch grid stays embarrassingly parallel.
    return vx + (ax - jnp.mean(ax))


# ----------------------------------------------------------------------------
# Pure-JAX reference (module semantics, f32)
# ----------------------------------------------------------------------------
def reference_forward(x_nchw, p):
    def conv_bn_relu(x, w, b, bn, stride):
        g, bt, rm, rv = bn
        y = jax.lax.conv_general_dilated(
            x, w, (stride, stride), 'VALID',
            dimension_numbers=('NCHW', 'OIHW', 'NCHW'))
        y = y + b[None, :, None, None]
        y = (y - rm[None, :, None, None]) / jnp.sqrt(rv[None, :, None, None] + BN_EPS)
        y = y * g[None, :, None, None] + bt[None, :, None, None]
        return jnp.maximum(y, 0.0)

    x = conv_bn_relu(x_nchw, p['c1w'], p['c1b'], p['bn1'], 4)
    x = conv_bn_relu(x, p['c2w'], p['c2b'], p['bn2'], 2)
    x = conv_bn_relu(x, p['c3w'], p['c3b'], p['bn3'], 1)
    x = x.reshape(x.shape[0], -1)

    def lin_ln_relu(h, w, b, g, bt):
        h = h @ w + b
        mu = h.mean(-1, keepdims=True)
        var = ((h - mu) ** 2).mean(-1, keepdims=True)
        h = (h - mu) / jnp.sqrt(var + LN_EPS) * g + bt
        return jnp.maximum(h, 0.0)

    ax = lin_ln_relu(x, p['wa1'], p['ba1'], p['ga'], p['bta']) @ p['wa2'] + p['ba2']
    vx = lin_ln_relu(x, p['wv1'], p['bv1'], p['gv'], p['btv']) @ p['wv2'] + p['bv2']
    return vx + (ax - ax.mean())


# ----------------------------------------------------------------------------
# Deterministic parameter construction (fold_in keygen: cannot run out of keys)
# ----------------------------------------------------------------------------
def make_params(key, h, w, output_size):
    def size_calc(v, k, s):
        return (v - (k - 1) - 1) // s + 1

    ch = size_calc(size_calc(size_calc(h, 8, 4), 4, 2), 3, 1)
    cw = size_calc(size_calc(size_calc(w, 8, 4), 4, 2), 3, 1)
    lin_in = ch * cw * 64

    counter = [0]

    def nk():
        counter[0] += 1
        return jax.random.fold_in(key, counter[0])

    def uni(shape, fan_in):
        bound = 1.0 / jnp.sqrt(jnp.float32(fan_in))
        return jax.random.uniform(nk(), shape, jnp.float32, -bound, bound)

    def bn_params(c):
        g = 1.0 + 0.1 * jax.random.normal(nk(), (c,), jnp.float32)
        bt = 0.1 * jax.random.normal(nk(), (c,), jnp.float32)
        rm = 0.05 * jax.random.normal(nk(), (c,), jnp.float32)
        rv = jax.random.uniform(nk(), (c,), jnp.float32, 0.5, 1.5)
        return (g, bt, rm, rv)

    p = {
        'c1w': uni((32, 4, 8, 8), 4 * 8 * 8), 'c1b': uni((32,), 4 * 8 * 8),
        'bn1': bn_params(32),
        'c2w': uni((64, 32, 4, 4), 32 * 4 * 4), 'c2b': uni((64,), 32 * 4 * 4),
        'bn2': bn_params(64),
        'c3w': uni((64, 64, 3, 3), 64 * 3 * 3), 'c3b': uni((64,), 64 * 3 * 3),
        'bn3': bn_params(64),
        'wa1': uni((lin_in, 512), lin_in), 'ba1': uni((512,), lin_in),
        'ga': 1.0 + 0.1 * jax.random.normal(nk(), (512,), jnp.float32),
        'bta': 0.1 * jax.random.normal(nk(), (512,), jnp.float32),
        'wa2': uni((512, output_size), 512), 'ba2': uni((output_size,), 512),
        'wv1': uni((lin_in, 512), lin_in), 'bv1': uni((512,), lin_in),
        'gv': 1.0 + 0.1 * jax.random.normal(nk(), (512,), jnp.float32),
        'btv': 0.1 * jax.random.normal(nk(), (512,), jnp.float32),
        'wv2': uni((512, 1), 512), 'bv2': uni((1,), 512),
    }
    return p


# ----------------------------------------------------------------------------
if __name__ == "__main__":
    key = jax.random.PRNGKey(0)
    k_x, k_p = jax.random.split(key)

    B, C, H, W = 2, 4, 52, 52          # conv sizes 12x12 -> 5x5 -> 3x3, lin_in=576
    OUTPUT_SIZE = 5

    x = jax.random.normal(k_x, (B, C, H, W), jnp.float32)
    params = make_params(k_p, H, W, OUTPUT_SIZE)
    packed = prepare_packed(params, H, W)

    fwd = jax.jit(functools.partial(duel_cnn_forward, out_size=OUTPUT_SIZE))
    q = jax.block_until_ready(fwd(x, packed))

    q_ref = jax.block_until_ready(reference_forward(x, params))
    assert q.shape == (B, OUTPUT_SIZE), q.shape
    assert bool(jnp.all(jnp.isfinite(q)))
    assert bool(jnp.allclose(q, q_ref, rtol=5e-2, atol=5e-2)), (q, q_ref)

    print("KERNEL_OK")
</pallas_src>

<mosaic_0001>
module attributes {stable_mosaic.version = 11 : i64} {
  func.func @duel_cnn_kernel(%arg0: i32, %arg1: memref<1x12x1664xbf16, #tpu.memory_space<vmem>>, %arg2: memref<1664x384xbf16, #tpu.memory_space<vmem>>, %arg3: memref<1x384xf32, #tpu.memory_space<vmem>>, %arg4: memref<4x5x12xbf16, #tpu.memory_space<vmem>>, %arg5: memref<1536x384xbf16, #tpu.memory_space<vmem>>, %arg6: memref<1x384xf32, #tpu.memory_space<vmem>>, %arg7: memref<3x3x5xbf16, #tpu.memory_space<vmem>>, %arg8: memref<1152x256xbf16, #tpu.memory_space<vmem>>, %arg9: memref<1x256xf32, #tpu.memory_space<vmem>>, %arg10: memref<3x1x3xbf16, #tpu.memory_space<vmem>>, %arg11: memref<768x1024xbf16, #tpu.memory_space<vmem>>, %arg12: memref<1x1024xf32, #tpu.memory_space<vmem>>, %arg13: memref<1x1024xf32, #tpu.memory_space<vmem>>, %arg14: memref<1x1024xf32, #tpu.memory_space<vmem>>, %arg15: memref<1024x128xbf16, #tpu.memory_space<vmem>>, %arg16: memref<1x128xf32, #tpu.memory_space<vmem>>, %arg17: memref<1x1x128xf32, #tpu.memory_space<vmem>>) attributes {dimension_semantics = [#tpu.dimension_semantics<parallel>], iteration_bounds = array<i64: 2>, scalar_prefetch = 0 : i64, scratch_operands = 0 : i64, tpu.core_type = #tpu.core_type<tc>, window_params = [{transform_indices = @transform_0, window_bounds = array<i64: 1, 12, 1664>}, {pipeline_mode = #tpu.pipeline_mode<synchronous>, transform_indices = @transform_1, window_bounds = array<i64: 1664, 384>}, {pipeline_mode = #tpu.pipeline_mode<synchronous>, transform_indices = @transform_2, window_bounds = array<i64: 1, 384>}, {pipeline_mode = #tpu.pipeline_mode<synchronous>, transform_indices = @transform_3, window_bounds = array<i64: 4, 5, 12>}, {pipeline_mode = #tpu.pipeline_mode<synchronous>, transform_indices = @transform_4, window_bounds = array<i64: 1536, 384>}, {pipeline_mode = #tpu.pipeline_mode<synchronous>, transform_indices = @transform_5, window_bounds = array<i64: 1, 384>}, {pipeline_mode = #tpu.pipeline_mode<synchronous>, transform_indices = @transform_6, window_bounds = array<i64: 3, 3, 5>}, {pipeline_mode = #tpu.pipeline_mode<synchronous>, transform_indices = @transform_7, window_bounds = array<i64: 1152, 256>}, {pipeline_mode = #tpu.pipeline_mode<synchronous>, transform_indices = @transform_8, window_bounds = array<i64: 1, 256>}, {pipeline_mode = #tpu.pipeline_mode<synchronous>, transform_indices = @transform_9, window_bounds = array<i64: 3, 1, 3>}, {pipeline_mode = #tpu.pipeline_mode<synchronous>, transform_indices = @transform_10, window_bounds = array<i64: 768, 1024>}, {pipeline_mode = #tpu.pipeline_mode<synchronous>, transform_indices = @transform_11, window_bounds = array<i64: 1, 1024>}, {pipeline_mode = #tpu.pipeline_mode<synchronous>, transform_indices = @transform_12, window_bounds = array<i64: 1, 1024>}, {pipeline_mode = #tpu.pipeline_mode<synchronous>, transform_indices = @transform_13, window_bounds = array<i64: 1, 1024>}, {pipeline_mode = #tpu.pipeline_mode<synchronous>, transform_indices = @transform_14, window_bounds = array<i64: 1024, 128>}, {pipeline_mode = #tpu.pipeline_mode<synchronous>, transform_indices = @transform_15, window_bounds = array<i64: 1, 128>}, {transform_indices = @transform_16, window_bounds = array<i64: 1, 1, 128>}]} {
    %c0 = arith.constant 0 : index
    %c0_0 = arith.constant 0 : index
    %c0_1 = arith.constant 0 : index
    %0 = vector.load %arg1[%c0, %c0_0, %c0_1] : memref<1x12x1664xbf16, #tpu.memory_space<vmem>>, vector<1x12x1664xbf16>
    %1 = vector.shape_cast %0 : vector<1x12x1664xbf16> to vector<12x1664xbf16>
    %c0_2 = arith.constant 0 : index
    %c0_3 = arith.constant 0 : index
    %2 = vector.load %arg2[%c0_2, %c0_3] : memref<1664x384xbf16, #tpu.memory_space<vmem>>, vector<1664x384xbf16>
    %cst = arith.constant dense<0.000000e+00> : vector<12x384xf32>
    %3 = tpu.matmul %1, %2, %cst {dimension_numbers = #tpu.dot_dimension_numbers<[1], [0], [0], [1], [0, 0, 1, 1], [], []>} : vector<12x1664xbf16>, vector<1664x384xbf16>, vector<12x384xf32> -> vector<12x384xf32>
    %c0_4 = arith.constant 0 : index
    %c0_5 = arith.constant 0 : index
    %4 = vector.load %arg3[%c0_4, %c0_5] : memref<1x384xf32, #tpu.memory_space<vmem>>, vector<1x384xf32>
    %5 = vector.broadcast %4 : vector<1x384xf32> to vector<12x384xf32>
    %6 = arith.addf %3, %5 : vector<12x384xf32>
    %cst_6 = arith.constant 0.000000e+00 : f32
    %7 = vector.broadcast %cst_6 : f32 to vector<12x384xf32>
    %8 = arith.maximumf %6, %7 : vector<12x384xf32>
    %9 = arith.truncf %8 : vector<12x384xf32> to vector<12x384xbf16>
    %c0_7 = arith.constant 0 : index
    %c0_8 = arith.constant 0 : index
    %c0_9 = arith.constant 0 : index
    %10 = vector.load %arg4[%c0_7, %c0_8, %c0_9] : memref<4x5x12xbf16, #tpu.memory_space<vmem>>, vector<1x5x12xbf16>
    %11 = vector.shape_cast %10 : vector<1x5x12xbf16> to vector<5x12xbf16>
    %cst_10 = arith.constant dense<0.000000e+00> : vector<5x384xf32>
    %12 = tpu.matmul %11, %9, %cst_10 {dimension_numbers = #tpu.dot_dimension_numbers<[1], [0], [0], [1], [0, 0, 1, 1], [], []>} : vector<5x12xbf16>, vector<12x384xbf16>, vector<5x384xf32> -> vector<5x384xf32>
    %13 = arith.truncf %12 : vector<5x384xf32> to vector<5x384xbf16>
    %c1 = arith.constant 1 : index
    %c0_11 = arith.constant 0 : index
    %c0_12 = arith.constant 0 : index
    %14 = vector.load %arg4[%c1, %c0_11, %c0_12] : memref<4x5x12xbf16, #tpu.memory_space<vmem>>, vector<1x5x12xbf16>
    %15 = vector.shape_cast %14 : vector<1x5x12xbf16> to vector<5x12xbf16>
    %cst_13 = arith.constant dense<0.000000e+00> : vector<5x384xf32>
    %16 = tpu.matmul %15, %9, %cst_13 {dimension_numbers = #tpu.dot_dimension_numbers<[1], [0], [0], [1], [0, 0, 1, 1], [], []>} : vector<5x12xbf16>, vector<12x384xbf16>, vector<5x384xf32> -> vector<5x384xf32>
    %17 = arith.truncf %16 : vector<5x384xf32> to vector<5x384xbf16>
    %c2 = arith.constant 2 : index
    %c0_14 = arith.constant 0 : index
    %c0_15 = arith.constant 0 : index
    %18 = vector.load %arg4[%c2, %c0_14, %c0_15] : memref<4x5x12xbf16, #tpu.memory_space<vmem>>, vector<1x5x12xbf16>
    %19 = vector.shape_cast %18 : vector<1x5x12xbf16> to vector<5x12xbf16>
    %cst_16 = arith.constant dense<0.000000e+00> : vector<5x384xf32>
    %20 = tpu.matmul %19, %9, %cst_16 {dimension_numbers = #tpu.dot_dimension_numbers<[1], [0], [0], [1], [0, 0, 1, 1], [], []>} : vector<5x12xbf16>, vector<12x384xbf16>, vector<5x384xf32> -> vector<5x384xf32>
    %21 = arith.truncf %20 : vector<5x384xf32> to vector<5x384xbf16>
    %c3 = arith.constant 3 : index
    %c0_17 = arith.constant 0 : index
    %c0_18 = arith.constant 0 : index
    %22 = vector.load %arg4[%c3, %c0_17, %c0_18] : memref<4x5x12xbf16, #tpu.memory_space<vmem>>, vector<1x5x12xbf16>
    %23 = vector.shape_cast %22 : vector<1x5x12xbf16> to vector<5x12xbf16>
    %cst_19 = arith.constant dense<0.000000e+00> : vector<5x384xf32>
    %24 = tpu.matmul %23, %9, %cst_19 {dimension_numbers = #tpu.dot_dimension_numbers<[1], [0], [0], [1], [0, 0, 1, 1], [], []>} : vector<5x12xbf16>, vector<12x384xbf16>, vector<5x384xf32> -> vector<5x384xf32>
    %25 = arith.truncf %24 : vector<5x384xf32> to vector<5x384xbf16>
    %26 = tpu.concatenate %13, %17, %21, %25 in 1 : vector<5x384xbf16>, vector<5x384xbf16>, vector<5x384xbf16>, vector<5x384xbf16> -> vector<5x1536xbf16>
    %c0_20 = arith.constant 0 : index
    %c0_21 = arith.constant 0 : index
    %27 = vector.load %arg5[%c0_20, %c0_21] : memref<1536x384xbf16, #tpu.memory_space<vmem>>, vector<1536x384xbf16>
    %cst_22 = arith.constant dense<0.000000e+00> : vector<5x384xf32>
    %28 = tpu.matmul %26, %27, %cst_22 {dimension_numbers = #tpu.dot_dimension_numbers<[1], [0], [0], [1], [0, 0, 1, 1], [], []>} : vector<5x1536xbf16>, vector<1536x384xbf16>, vector<5x384xf32> -> vector<5x384xf32>
    %c0_23 = arith.constant 0 : index
    %c0_24 = arith.constant 0 : index
    %29 = vector.load %arg6[%c0_23, %c0_24] : memref<1x384xf32, #tpu.memory_space<vmem>>, vector<1x384xf32>
    %30 = vector.broadcast %29 : vector<1x384xf32> to vector<5x384xf32>
    %31 = arith.addf %28, %30 : vector<5x384xf32>
    %cst_25 = arith.constant 0.000000e+00 : f32
    %32 = vector.broadcast %cst_25 : f32 to vector<5x384xf32>
    %33 = arith.maximumf %31, %32 : vector<5x384xf32>
    %34 = arith.truncf %33 : vector<5x384xf32> to vector<5x384xbf16>
    %c0_26 = arith.constant 0 : index
    %c0_27 = arith.constant 0 : index
    %c0_28 = arith.constant 0 : index
    %35 = vector.load %arg7[%c0_26, %c0_27, %c0_28] : memref<3x3x5xbf16, #tpu.memory_space<vmem>>, vector<1x3x5xbf16>
    %36 = vector.shape_cast %35 : vector<1x3x5xbf16> to vector<3x5xbf16>
    %cst_29 = arith.constant dense<0.000000e+00> : vector<3x384xf32>
    %37 = tpu.matmul %36, %34, %cst_29 {dimension_numbers = #tpu.dot_dimension_numbers<[1], [0], [0], [1], [0, 0, 1, 1], [], []>} : vector<3x5xbf16>, vector<5x384xbf16>, vector<3x384xf32> -> vector<3x384xf32>
    %38 = arith.truncf %37 : vector<3x384xf32> to vector<3x384xbf16>
    %c1_30 = arith.constant 1 : index
    %c0_31 = arith.constant 0 : index
    %c0_32 = arith.constant 0 : index
    %39 = vector.load %arg7[%c1_30, %c0_31, %c0_32] : memref<3x3x5xbf16, #tpu.memory_space<vmem>>, vector<1x3x5xbf16>
    %40 = vector.shape_cast %39 : vector<1x3x5xbf16> to vector<3x5xbf16>
    %cst_33 = arith.constant dense<0.000000e+00> : vector<3x384xf32>
    %41 = tpu.matmul %40, %34, %cst_33 {dimension_numbers = #tpu.dot_dimension_numbers<[1], [0], [0], [1], [0, 0, 1, 1], [], []>} : vector<3x5xbf16>, vector<5x384xbf16>, vector<3x384xf32> -> vector<3x384xf32>
    %42 = arith.truncf %41 : vector<3x384xf32> to vector<3x384xbf16>
    %c2_34 = arith.constant 2 : index
    %c0_35 = arith.constant 0 : index
    %c0_36 = arith.constant 0 : index
    %43 = vector.load %arg7[%c2_34, %c0_35, %c0_36] : memref<3x3x5xbf16, #tpu.memory_space<vmem>>, vector<1x3x5xbf16>
    %44 = vector.shape_cast %43 : vector<1x3x5xbf16> to vector<3x5xbf16>
    %cst_37 = arith.constant dense<0.000000e+00> : vector<3x384xf32>
    %45 = tpu.matmul %44, %34, %cst_37 {dimension_numbers = #tpu.dot_dimension_numbers<[1], [0], [0], [1], [0, 0, 1, 1], [], []>} : vector<3x5xbf16>, vector<5x384xbf16>, vector<3x384xf32> -> vector<3x384xf32>
    %46 = arith.truncf %45 : vector<3x384xf32> to vector<3x384xbf16>
    %47 = tpu.concatenate %38, %42, %46 in 1 : vector<3x384xbf16>, vector<3x384xbf16>, vector<3x384xbf16> -> vector<3x1152xbf16>
    %c0_38 = arith.constant 0 : index
    %c0_39 = arith.constant 0 : index
    %48 = vector.load %arg8[%c0_38, %c0_39] : memref<1152x256xbf16, #tpu.memory_space<vmem>>, vector<1152x256xbf16>
    %cst_40 = arith.constant dense<0.000000e+00> : vector<3x256xf32>
    %49 = tpu.matmul %47, %48, %cst_40 {dimension_numbers = #tpu.dot_dimension_numbers<[1], [0], [0], [1], [0, 0, 1, 1], [], []>} : vector<3x1152xbf16>, vector<1152x256xbf16>, vector<3x256xf32> -> vector<3x256xf32>
    %c0_41 = arith.constant 0 : index
    %c0_42 = arith.constant 0 : index
    %50 = vector.load %arg9[%c0_41, %c0_42] : memref<1x256xf32, #tpu.memory_space<vmem>>, vector<1x256xf32>
    %51 = vector.broadcast %50 : vector<1x256xf32> to vector<3x256xf32>
    %52 = arith.addf %49, %51 : vector<3x256xf32>
    %cst_43 = arith.constant 0.000000e+00 : f32
    %53 = vector.broadcast %cst_43 : f32 to vector<3x256xf32>
    %54 = arith.maximumf %52, %53 : vector<3x256xf32>
    %55 = arith.truncf %54 : vector<3x256xf32> to vector<3x256xbf16>
    %c0_44 = arith.constant 0 : index
    %c0_45 = arith.constant 0 : index
    %c0_46 = arith.constant 0 : index
    %56 = vector.load %arg10[%c0_44, %c0_45, %c0_46] : memref<3x1x3xbf16, #tpu.memory_space<vmem>>, vector<1x1x3xbf16>
    %57 = vector.shape_cast %56 : vector<1x1x3xbf16> to vector<1x3xbf16>
    %cst_47 = arith.constant dense<0.000000e+00> : vector<1x256xf32>
    %58 = tpu.matmul %57, %55, %cst_47 {dimension_numbers = #tpu.dot_dimension_numbers<[1], [0], [0], [1], [0, 0, 1, 1], [], []>} : vector<1x3xbf16>, vector<3x256xbf16>, vector<1x256xf32> -> vector<1x256xf32>
    %59 = arith.truncf %58 : vector<1x256xf32> to vector<1x256xbf16>
    %c1_48 = arith.constant 1 : index
    %c0_49 = arith.constant 0 : index
    %c0_50 = arith.constant 0 : index
    %60 = vector.load %arg10[%c1_48, %c0_49, %c0_50] : memref<3x1x3xbf16, #tpu.memory_space<vmem>>, vector<1x1x3xbf16>
    %61 = vector.shape_cast %60 : vector<1x1x3xbf16> to vector<1x3xbf16>
    %cst_51 = arith.constant dense<0.000000e+00> : vector<1x256xf32>
    %62 = tpu.matmul %61, %55, %cst_51 {dimension_numbers = #tpu.dot_dimension_numbers<[1], [0], [0], [1], [0, 0, 1, 1], [], []>} : vector<1x3xbf16>, vector<3x256xbf16>, vector<1x256xf32> -> vector<1x256xf32>
    %63 = arith.truncf %62 : vector<1x256xf32> to vector<1x256xbf16>
    %c2_52 = arith.constant 2 : index
    %c0_53 = arith.constant 0 : index
    %c0_54 = arith.constant 0 : index
    %64 = vector.load %arg10[%c2_52, %c0_53, %c0_54] : memref<3x1x3xbf16, #tpu.memory_space<vmem>>, vector<1x1x3xbf16>
    %65 = vector.shape_cast %64 : vector<1x1x3xbf16> to vector<1x3xbf16>
    %cst_55 = arith.constant dense<0.000000e+00> : vector<1x256xf32>
    %66 = tpu.matmul %65, %55, %cst_55 {dimension_numbers = #tpu.dot_dimension_numbers<[1], [0], [0], [1], [0, 0, 1, 1], [], []>} : vector<1x3xbf16>, vector<3x256xbf16>, vector<1x256xf32> -> vector<1x256xf32>
    %67 = arith.truncf %66 : vector<1x256xf32> to vector<1x256xbf16>
    %68 = tpu.concatenate %59, %63, %67 in 1 : vector<1x256xbf16>, vector<1x256xbf16>, vector<1x256xbf16> -> vector<1x768xbf16>
    %c0_56 = arith.constant 0 : index
    %c0_57 = arith.constant 0 : index
    %69 = vector.load %arg11[%c0_56, %c0_57] : memref<768x1024xbf16, #tpu.memory_space<vmem>>, vector<768x1024xbf16>
    %cst_58 = arith.constant dense<0.000000e+00> : vector<1x1024xf32>
    %70 = tpu.matmul %68, %69, %cst_58 {dimension_numbers = #tpu.dot_dimension_numbers<[1], [0], [0], [1], [0, 0, 1, 1], [], []>} : vector<1x768xbf16>, vector<768x1024xbf16>, vector<1x1024xf32> -> vector<1x1024xf32>
    %c0_59 = arith.constant 0 : index
    %c0_60 = arith.constant 0 : index
    %71 = vector.load %arg12[%c0_59, %c0_60] : memref<1x1024xf32, #tpu.memory_space<vmem>>, vector<1x1024xf32>
    %72 = arith.addf %70, %71 : vector<1x1024xf32>
    %c0_61 = arith.constant 0 : index
    %c0_62 = arith.constant 0 : index
    %73 = vector.load %arg13[%c0_61, %c0_62] : memref<1x1024xf32, #tpu.memory_space<vmem>>, vector<1x1024xf32>
    %c0_63 = arith.constant 0 : index
    %c0_64 = arith.constant 0 : index
    %74 = vector.load %arg14[%c0_63, %c0_64] : memref<1x1024xf32, #tpu.memory_space<vmem>>, vector<1x1024xf32>
    %75 = vector.extract_strided_slice %72 {offsets = [0, 0], sizes = [1, 512], strides = [1, 1]} : vector<1x1024xf32> to vector<1x512xf32>
    %76 = vector.extract_strided_slice %73 {offsets = [0, 0], sizes = [1, 512], strides = [1, 1]} : vector<1x1024xf32> to vector<1x512xf32>
    %77 = vector.extract_strided_slice %74 {offsets = [0, 0], sizes = [1, 512], strides = [1, 1]} : vector<1x1024xf32> to vector<1x512xf32>
    %cst_65 = arith.constant dense<0.000000e+00> : vector<1xf32>
    %78 = vector.multi_reduction <add>, %75, %cst_65 [1] : vector<1x512xf32> to vector<1xf32>
    %79 = vector.shape_cast %78 : vector<1xf32> to vector<1x1xf32>
    %cst_66 = arith.constant 5.120000e+02 : f32
    %80 = vector.broadcast %cst_66 : f32 to vector<1x1xf32>
    %81 = arith.divf %79, %80 : vector<1x1xf32>
    %82 = vector.broadcast %81 : vector<1x1xf32> to vector<1x512xf32>
    %83 = arith.subf %75, %82 : vector<1x512xf32>
    %84 = arith.mulf %83, %83 : vector<1x512xf32>
    %cst_67 = arith.constant dense<0.000000e+00> : vector<1xf32>
    %85 = vector.multi_reduction <add>, %84, %cst_67 [1] : vector<1x512xf32> to vector<1xf32>
    %86 = vector.shape_cast %85 : vector<1xf32> to vector<1x1xf32>
    %cst_68 = arith.constant 5.120000e+02 : f32
    %87 = vector.broadcast %cst_68 : f32 to vector<1x1xf32>
    %88 = arith.divf %86, %87 : vector<1x1xf32>
    %89 = vector.broadcast %81 : vector<1x1xf32> to vector<1x512xf32>
    %90 = arith.subf %75, %89 : vector<1x512xf32>
    %cst_69 = arith.constant 9.99999974E-6 : f32
    %91 = vector.broadcast %cst_69 : f32 to vector<1x1xf32>
    %92 = arith.addf %88, %91 : vector<1x1xf32>
    %93 = math.rsqrt %92 : vector<1x1xf32>
    %94 = vector.broadcast %93 : vector<1x1xf32> to vector<1x512xf32>
    %95 = arith.mulf %90, %94 : vector<1x512xf32>
    %96 = arith.mulf %95, %76 : vector<1x512xf32>
    %97 = arith.addf %96, %77 : vector<1x512xf32>
    %cst_70 = arith.constant 0.000000e+00 : f32
    %98 = vector.broadcast %cst_70 : f32 to vector<1x512xf32>
    %99 = arith.maximumf %97, %98 : vector<1x512xf32>
    %100 = vector.extract_strided_slice %72 {offsets = [0, 512], sizes = [1, 512], strides = [1, 1]} : vector<1x1024xf32> to vector<1x512xf32>
    %101 = vector.extract_strided_slice %73 {offsets = [0, 512], sizes = [1, 512], strides = [1, 1]} : vector<1x1024xf32> to vector<1x512xf32>
    %102 = vector.extract_strided_slice %74 {offsets = [0, 512], sizes = [1, 512], strides = [1, 1]} : vector<1x1024xf32> to vector<1x512xf32>
    %cst_71 = arith.constant dense<0.000000e+00> : vector<1xf32>
    %103 = vector.multi_reduction <add>, %100, %cst_71 [1] : vector<1x512xf32> to vector<1xf32>
    %104 = vector.shape_cast %103 : vector<1xf32> to vector<1x1xf32>
    %cst_72 = arith.constant 5.120000e+02 : f32
    %105 = vector.broadcast %cst_72 : f32 to vector<1x1xf32>
    %106 = arith.divf %104, %105 : vector<1x1xf32>
    %107 = vector.broadcast %106 : vector<1x1xf32> to vector<1x512xf32>
    %108 = arith.subf %100, %107 : vector<1x512xf32>
    %109 = arith.mulf %108, %108 : vector<1x512xf32>
    %cst_73 = arith.constant dense<0.000000e+00> : vector<1xf32>
    %110 = vector.multi_reduction <add>, %109, %cst_73 [1] : vector<1x512xf32> to vector<1xf32>
    %111 = vector.shape_cast %110 : vector<1xf32> to vector<1x1xf32>
    %cst_74 = arith.constant 5.120000e+02 : f32
    %112 = vector.broadcast %cst_74 : f32 to vector<1x1xf32>
    %113 = arith.divf %111, %112 : vector<1x1xf32>
    %114 = vector.broadcast %106 : vector<1x1xf32> to vector<1x512xf32>
    %115 = arith.subf %100, %114 : vector<1x512xf32>
    %cst_75 = arith.constant 9.99999974E-6 : f32
    %116 = vector.broadcast %cst_75 : f32 to vector<1x1xf32>
    %117 = arith.addf %113, %116 : vector<1x1xf32>
    %118 = math.rsqrt %117 : vector<1x1xf32>
    %119 = vector.broadcast %118 : vector<1x1xf32> to vector<1x512xf32>
    %120 = arith.mulf %115, %119 : vector<1x512xf32>
    %121 = arith.mulf %120, %101 : vector<1x512xf32>
    %122 = arith.addf %121, %102 : vector<1x512xf32>
    %cst_76 = arith.constant 0.000000e+00 : f32
    %123 = vector.broadcast %cst_76 : f32 to vector<1x512xf32>
    %124 = arith.maximumf %122, %123 : vector<1x512xf32>
    %125 = tpu.concatenate %99, %124 in 1 : vector<1x512xf32>, vector<1x512xf32> -> vector<1x1024xf32>
    %126 = arith.truncf %125 : vector<1x1024xf32> to vector<1x1024xbf16>
    %c0_77 = arith.constant 0 : index
    %c0_78 = arith.constant 0 : index
    %127 = vector.load %arg15[%c0_77, %c0_78] : memref<1024x128xbf16, #tpu.memory_space<vmem>>, vector<1024x128xbf16>
    %cst_79 = arith.constant dense<0.000000e+00> : vector<1x128xf32>
    %128 = tpu.matmul %126, %127, %cst_79 {dimension_numbers = #tpu.dot_dimension_numbers<[1], [0], [0], [1], [0, 0, 1, 1], [], []>} : vector<1x1024xbf16>, vector<1024x128xbf16>, vector<1x128xf32> -> vector<1x128xf32>
    %c0_80 = arith.constant 0 : index
    %c0_81 = arith.constant 0 : index
    %129 = vector.load %arg16[%c0_80, %c0_81] : memref<1x128xf32, #tpu.memory_space<vmem>>, vector<1x128xf32>
    %130 = arith.addf %128, %129 : vector<1x128xf32>
    %c0_82 = arith.constant 0 : index
    %c0_83 = arith.constant 0 : index
    %c0_84 = arith.constant 0 : index
    %131 = vector.load %arg17[%c0_82, %c0_83, %c0_84] : memref<1x1x128xf32, #tpu.memory_space<vmem>>, vector<1x1x128xf32>
    %132 = vector.shape_cast %131 : vector<1x1x128xf32> to vector<1x128xf32>
    %133 = vector.shape_cast %130 : vector<1x128xf32> to vector<1x1x128xf32>
    tpu.vector_store %arg17[%c0_82, %c0_83, %c0_84], %133 {strides = array<i32>} : memref<1x1x128xf32, #tpu.memory_space<vmem>>, vector<1x1x128xf32>,
    return
  }
  func.func @transform_0(%arg0: i32) -> (i32, i32, i32) {
    %c0_i32 = arith.constant 0 : i32
    %c0_i32_0 = arith.constant 0 : i32
    %c0_i32_1 = arith.constant 0 : i32
    return %arg0, %c0_i32, %c0_i32_0 : i32, i32, i32
  }
  func.func @transform_1(%arg0: i32) -> (i32, i32) {
    %c0_i32 = arith.constant 0 : i32
    %c0_i32_0 = arith.constant 0 : i32
    %c0_i32_1 = arith.constant 0 : i32
    return %c0_i32, %c0_i32_0 : i32, i32
  }
  func.func @transform_2(%arg0: i32) -> (i32, i32) {
    %c0_i32 = arith.constant 0 : i32
    %c0_i32_0 = arith.constant 0 : i32
    %c0_i32_1 = arith.constant 0 : i32
    return %c0_i32, %c0_i32_0 : i32, i32
  }
  func.func @transform_3(%arg0: i32) -> (i32, i32, i32) {
    %c0_i32 = arith.constant 0 : i32
    %c0_i32_0 = arith.constant 0 : i32
    %c0_i32_1 = arith.constant 0 : i32
    %c0_i32_2 = arith.constant 0 : i32
    return %c0_i32, %c0_i32_0, %c0_i32_1 : i32, i32, i32
  }
  func.func @transform_4(%arg0: i32) -> (i32, i32) {
    %c0_i32 = arith.constant 0 : i32
    %c0_i32_0 = arith.constant 0 : i32
    %c0_i32_1 = arith.constant 0 : i32
    return %c0_i32, %c0_i32_0 : i32, i32
  }
  func.func @transform_5(%arg0: i32) -> (i32, i32) {
    %c0_i32 = arith.constant 0 : i32
    %c0_i32_0 = arith.constant 0 : i32
    %c0_i32_1 = arith.constant 0 : i32
    return %c0_i32, %c0_i32_0 : i32, i32
  }
  func.func @transform_6(%arg0: i32) -> (i32, i32, i32) {
    %c0_i32 = arith.constant 0 : i32
    %c0_i32_0 = arith.constant 0 : i32
    %c0_i32_1 = arith.constant 0 : i32
    %c0_i32_2 = arith.constant 0 : i32
    return %c0_i32, %c0_i32_0, %c0_i32_1 : i32, i32, i32
  }
  func.func @transform_7(%arg0: i32) -> (i32, i32) {
    %c0_i32 = arith.constant 0 : i32
    %c0_i32_0 = arith.constant 0 : i32
    %c0_i32_1 = arith.constant 0 : i32
    return %c0_i32, %c0_i32_0 : i32, i32
  }
  func.func @transform_8(%arg0: i32) -> (i32, i32) {
    %c0_i32 = arith.constant 0 : i32
    %c0_i32_0 = arith.constant 0 : i32
    %c0_i32_1 = arith.constant 0 : i32
    return %c0_i32, %c0_i32_0 : i32, i32
  }
  func.func @transform_9(%arg0: i32) -> (i32, i32, i32) {
    %c0_i32 = arith.constant 0 : i32
    %c0_i32_0 = arith.constant 0 : i32
    %c0_i32_1 = arith.constant 0 : i32
    %c0_i32_2 = arith.constant 0 : i32
    return %c0_i32, %c0_i32_0, %c0_i32_1 : i32, i32, i32
  }
  func.func @transform_10(%arg0: i32) -> (i32, i32) {
    %c0_i32 = arith.constant 0 : i32
    %c0_i32_0 = arith.constant 0 : i32
    %c0_i32_1 = arith.constant 0 : i32
    return %c0_i32, %c0_i32_0 : i32, i32
  }
  func.func @transform_11(%arg0: i32) -> (i32, i32) {
    %c0_i32 = arith.constant 0 : i32
    %c0_i32_0 = arith.constant 0 : i32
    %c0_i32_1 = arith.constant 0 : i32
    return %c0_i32, %c0_i32_0 : i32, i32
  }
  func.func @transform_12(%arg0: i32) -> (i32, i32) {
    %c0_i32 = arith.constant 0 : i32
    %c0_i32_0 = arith.constant 0 : i32
    %c0_i32_1 = arith.constant 0 : i32
    return %c0_i32, %c0_i32_0 : i32, i32
  }
  func.func @transform_13(%arg0: i32) -> (i32, i32) {
    %c0_i32 = arith.constant 0 : i32
    %c0_i32_0 = arith.constant 0 : i32
    %c0_i32_1 = arith.constant 0 : i32
    return %c0_i32, %c0_i32_0 : i32, i32
  }
  func.func @transform_14(%arg0: i32) -> (i32, i32) {
    %c0_i32 = arith.constant 0 : i32
    %c0_i32_0 = arith.constant 0 : i32
    %c0_i32_1 = arith.constant 0 : i32
    return %c0_i32, %c0_i32_0 : i32, i32
  }
  func.func @transform_15(%arg0: i32) -> (i32, i32) {
    %c0_i32 = arith.constant 0 : i32
    %c0_i32_0 = arith.constant 0 : i32
    %c0_i32_1 = arith.constant 0 : i32
    return %c0_i32, %c0_i32_0 : i32, i32
  }
  func.func @transform_16(%arg0: i32) -> (i32, i32, i32) {
    %c0_i32 = arith.constant 0 : i32
    %c0_i32_0 = arith.constant 0 : i32
    %c0_i32_1 = arith.constant 0 : i32
    return %arg0, %c0_i32, %c0_i32_0 : i32, i32, i32
  }
}

</mosaic_0001>

<llo_original>
// kernel: duel_cnn_forward.1
$region0: #{duel_cnn_forward.1}
  #allocation0 [shape = 'u32[]', space=smem, size = 0x4, offset = 0x4, fixed_abs, tag = 'smem constant byte address 0x4 - core index']
  #allocation1 [shape = 'u32[144,128]{1,0:T(1,128)}', space=vmem, size = 0x12000, scoped, tag = 'internal scratch']
  %s0 = inlined_call_operand.vmem [shape: bf16[2,12,1664], index: 0, kind: input, shape index: {}]
  %s1 = inlined_call_operand.vmem [shape: bf16[1664,384], index: 1, kind: input, shape index: {}]
  %s2 = inlined_call_operand.vmem [shape: f32[1,384], index: 2, kind: input, shape index: {}]
  %s3 = inlined_call_operand.vmem [shape: bf16[4,5,12], index: 3, kind: input, shape index: {}]
  %s4 = inlined_call_operand.vmem [shape: bf16[1536,384], index: 4, kind: input, shape index: {}]
  %s5 = inlined_call_operand.vmem [shape: f32[1,384], index: 5, kind: input, shape index: {}]
  %s6 = inlined_call_operand.vmem [shape: bf16[3,3,5], index: 6, kind: input, shape index: {}]
  %s7 = inlined_call_operand.vmem [shape: bf16[1152,256], index: 7, kind: input, shape index: {}]
  %s8 = inlined_call_operand.vmem [shape: f32[1,256], index: 8, kind: input, shape index: {}]
  %s9 = inlined_call_operand.vmem [shape: bf16[3,1,3], index: 9, kind: input, shape index: {}]
  %s10 = inlined_call_operand.vmem [shape: bf16[768,1024], index: 10, kind: input, shape index: {}]
  %s11 = inlined_call_operand.vmem [shape: f32[1,1024], index: 11, kind: input, shape index: {}]
  %s12 = inlined_call_operand.vmem [shape: f32[1,1024], index: 12, kind: input, shape index: {}]
  %s13 = inlined_call_operand.vmem [shape: f32[1,1024], index: 13, kind: input, shape index: {}]
  %s14 = inlined_call_operand.vmem [shape: bf16[1024,128], index: 14, kind: input, shape index: {}]
  %s15 = inlined_call_operand.vmem [shape: f32[1,128], index: 15, kind: input, shape index: {}]
  %s16 = inlined_call_operand.vmem [shape: f32[2,1,128], index: 16, kind: output, shape index: {}]
  %s17 = sld [smem:[#allocation0]]
  $region97: #{duel_cnn_forward.1} parent=0
    _
  %s19 = ssub.s32 1, %s17
  %s20 = scalar_select 0, %s19, %s17
  loop: start=0, step=1, limit=4
  $region2: #{duel_cnn_forward.1} parent=0 // loop_pre_header
    _
  $region3: #{duel_cnn_forward.1} parent=0 // loop_header
    %s22 = sphi 0, %s26
    %p23 = scmp.ge.s32.totalorder %s22, 4
    %s32 = sphi 0, %s34
    %s35 = sphi 0, %s32
    %s36 = sphi 0, %s35
    %s52 = sphi 0, %s36
    %s56 = sphi 0, %s56
    %s58 = sphi 0, %s56
    %s59 = sphi 0, %s58
    %s73 = sphi 0, %s59
    %s77 = sphi 0, %s77
    %s79 = sphi 0, %s77
    %s80 = sphi 0, %s79
    %s94 = sphi 0, %s80
    %s98 = sphi 0, %s98
    %s100 = sphi 0, %s98
    %s101 = sphi 0, %s100
    %s115 = sphi 0, %s101
    %s119 = sphi 0, %s119
    %s121 = sphi 0, %s119
    %s122 = sphi 0, %s121
    %s136 = sphi 0, %s122
    %s140 = sphi 0, %s140
    %s142 = sphi 0, %s140
    %s143 = sphi 0, %s142
    %s157 = sphi 0, %s143
    %s161 = sphi 0, %s161
    %s163 = sphi 0, %s161
    %s164 = sphi 0, %s163
    %s178 = sphi 0, %s164
    %s182 = sphi 0, %s182
    %s184 = sphi 0, %s182
    %s185 = sphi 0, %s184
    %s199 = sphi 0, %s185
    %s203 = sphi 0, %s203
    %s205 = sphi 0, %s203
    %s206 = sphi 0, %s205
    %s220 = sphi 0, %s206
    %s224 = sphi 0, %s224
    %s226 = sphi 0, %s224
    %s227 = sphi 0, %s226
    %s241 = sphi 0, %s227
    %s245 = sphi 0, %s245
    %s247 = sphi 0, %s245
    %s248 = sphi 0, %s247
    %s262 = sphi 0, %s248
    %s266 = sphi 0, %s266
    %s268 = sphi 0, %s266
    %s269 = sphi 0, %s268
    %s283 = sphi 0, %s269
    %s287 = sphi 0, %s287
    %s289 = sphi 0, %s287
    %s290 = sphi 0, %s289
    %s304 = sphi 0, %s290
    %s308 = sphi 0, %s308
    %s310 = sphi 0, %s308
    %s311 = sphi 0, %s310
    %s325 = sphi 0, %s311
    %s329 = sphi 0, %s329
    %s331 = sphi 0, %s329
    %s332 = sphi 0, %s331
    %s346 = sphi 0, %s332
    %s350 = sphi 0, %s350
    %s352 = sphi 0, %s350
    %s353 = sphi 0, %s352
    %s367 = sphi 0, %s353
    %s373 = sphi 0, %s375
    %s376 = sphi 0, %s373
    %s377 = sphi 0, %s376
    %s393 = sphi 0, %s377
  $region4: #{duel_cnn_forward.1} parent=0 // loop_header_branch
    %25 = sbr.rel (%p23) target = $region8
  $region5: #{duel_cnn_forward.1} parent=0 // loop_body
    %s27 = ssub.s32 %s22, 1
    %s28 = ssub.s32 %s22, 2
    %s29 = sadd.s32 %s22, 1
    %s30 = ssub.s32 %s22, %s29
    %p31 = scmp.eq.s32.totalorder %s30, 0
    %s33 = sadd.s32 %s32, 1
    %s34 = scalar_select %p31, %s32, %s33
    %p37 = pneg %p31
    %p38 = scmp.eq.s32.totalorder %s22, 1
    %p39 = por %p37, %p38
    %p40 = scmp.ne.s32.totalorder %s32, %s35
    %p41 = scmp.eq.s32.totalorder %s22, 0
    %p42 = por %p40, %p41
    %p43 = scmp.ne.s32.totalorder %s32, %s35
    %p44 = scmp.eq.s32.totalorder %s27, 1
    %p45 = por %p43, %p44
    %p46 = scmp.ne.s32.totalorder %s35, %s36
    %p47 = scmp.eq.s32.totalorder %s27, 0
    %p48 = por %p46, %p47
    %p49 = scmp.ne.s32.totalorder %s35, %s36
    %p50 = scmp.eq.s32.totalorder %s28, 1
    %p51 = por %p49, %p50
    %p53 = scmp.ne.s32.totalorder %s36, %s52
    %p54 = scmp.eq.s32.totalorder %s28, 0
    %p55 = por %p53, %p54
    %s57 = sadd.s32 %s56, 1
    %p60 = scmp.eq.s32.totalorder %s22, 1
    %p61 = scmp.ne.s32.totalorder %s56, %s58
    %p62 = scmp.eq.s32.totalorder %s22, 0
    %p63 = por %p61, %p62
    %p64 = scmp.ne.s32.totalorder %s56, %s58
    %p65 = scmp.eq.s32.totalorder %s27, 1
    %p66 = por %p64, %p65
    %p67 = scmp.ne.s32.totalorder %s58, %s59
    %p68 = scmp.eq.s32.totalorder %s27, 0
    %p69 = por %p67, %p68
    %p70 = scmp.ne.s32.totalorder %s58, %s59
    %p71 = scmp.eq.s32.totalorder %s28, 1
    %p72 = por %p70, %p71
    %p74 = scmp.ne.s32.totalorder %s59, %s73
    %p75 = scmp.eq.s32.totalorder %s28, 0
    %p76 = por %p74, %p75
    %s78 = sadd.s32 %s77, 1
    %p81 = scmp.eq.s32.totalorder %s22, 1
    %p82 = scmp.ne.s32.totalorder %s77, %s79
    %p83 = scmp.eq.s32.totalorder %s22, 0
    %p84 = por %p82, %p83
    %p85 = scmp.ne.s32.totalorder %s77, %s79
    %p86 = scmp.eq.s32.totalorder %s27, 1
    %p87 = por %p85, %p86
    %p88 = scmp.ne.s32.totalorder %s79, %s80
    %p89 = scmp.eq.s32.totalorder %s27, 0
    %p90 = por %p88, %p89
    %p91 = scmp.ne.s32.totalorder %s79, %s80
    %p92 = scmp.eq.s32.totalorder %s28, 1
    %p93 = por %p91, %p92
    %p95 = scmp.ne.s32.totalorder %s80, %s94
    %p96 = scmp.eq.s32.totalorder %s28, 0
    %p97 = por %p95, %p96
    %s99 = sadd.s32 %s98, 1
    %p102 = scmp.eq.s32.totalorder %s22, 1
    %p103 = scmp.ne.s32.totalorder %s98, %s100
    %p104 = scmp.eq.s32.totalorder %s22, 0
    %p105 = por %p103, %p104
    %p106 = scmp.ne.s32.totalorder %s98, %s100
    %p107 = scmp.eq.s32.totalorder %s27, 1
    %p108 = por %p106, %p107
    %p109 = scmp.ne.s32.totalorder %s100, %s101
    %p110 = scmp.eq.s32.totalorder %s27, 0
    %p111 = por %p109, %p110
    %p112 = scmp.ne.s32.totalorder %s100, %s101
    %p113 = scmp.eq.s32.totalorder %s28, 1
    %p114 = por %p112, %p113
    %p116 = scmp.ne.s32.totalorder %s101, %s115
    %p117 = scmp.eq.s32.totalorder %s28, 0
    %p118 = por %p116, %p117
    %s120 = sadd.s32 %s119, 1
    %p123 = scmp.eq.s32.totalorder %s22, 1
    %p124 = scmp.ne.s32.totalorder %s119, %s121
    %p125 = scmp.eq.s32.totalorder %s22, 0
    %p126 = por %p124, %p125
    %p127 = scmp.ne.s32.totalorder %s119, %s121
    %p128 = scmp.eq.s32.totalorder %s27, 1
    %p129 = por %p127, %p128
    %p130 = scmp.ne.s32.totalorder %s121, %s122
    %p131 = scmp.eq.s32.totalorder %s27, 0
    %p132 = por %p130, %p131
    %p133 = scmp.ne.s32.totalorder %s121, %s122
    %p134 = scmp.eq.s32.totalorder %s28, 1
    %p135 = por %p133, %p134
    %p137 = scmp.ne.s32.totalorder %s122, %s136
    %p138 = scmp.eq.s32.totalorder %s28, 0
    %p139 = por %p137, %p138
    %s141 = sadd.s32 %s140, 1
    %p144 = scmp.eq.s32.totalorder %s22, 1
    %p145 = scmp.ne.s32.totalorder %s140, %s142
    %p146 = scmp.eq.s32.totalorder %s22, 0
    %p147 = por %p145, %p146
    %p148 = scmp.ne.s32.totalorder %s140, %s142
    %p149 = scmp.eq.s32.totalorder %s27, 1
    %p150 = por %p148, %p149
    %p151 = scmp.ne.s32.totalorder %s142, %s143
    %p152 = scmp.eq.s32.totalorder %s27, 0
    %p153 = por %p151, %p152
    %p154 = scmp.ne.s32.totalorder %s142, %s143
    %p155 = scmp.eq.s32.totalorder %s28, 1
    %p156 = por %p154, %p155
    %p158 = scmp.ne.s32.totalorder %s143, %s157
    %p159 = scmp.eq.s32.totalorder %s28, 0
    %p160 = por %p158, %p159
    %s162 = sadd.s32 %s161, 1
    %p165 = scmp.eq.s32.totalorder %s22, 1
    %p166 = scmp.ne.s32.totalorder %s161, %s163
    %p167 = scmp.eq.s32.totalorder %s22, 0
    %p168 = por %p166, %p167
    %p169 = scmp.ne.s32.totalorder %s161, %s163
    %p170 = scmp.eq.s32.totalorder %s27, 1
    %p171 = por %p169, %p170
    %p172 = scmp.ne.s32.totalorder %s163, %s164
    %p173 = scmp.eq.s32.totalorder %s27, 0
    %p174 = por %p172, %p173
    %p175 = scmp.ne.s32.totalorder %s163, %s164
    %p176 = scmp.eq.s32.totalorder %s28, 1
    %p177 = por %p175, %p176
    %p179 = scmp.ne.s32.totalorder %s164, %s178
    %p180 = scmp.eq.s32.totalorder %s28, 0
    %p181 = por %p179, %p180
    %s183 = sadd.s32 %s182, 1
    %p186 = scmp.eq.s32.totalorder %s22, 1
    %p187 = scmp.ne.s32.totalorder %s182, %s184
    %p188 = scmp.eq.s32.totalorder %s22, 0
    %p189 = por %p187, %p188
    %p190 = scmp.ne.s32.totalorder %s182, %s184
    %p191 = scmp.eq.s32.totalorder %s27, 1
    %p192 = por %p190, %p191
    %p193 = scmp.ne.s32.totalorder %s184, %s185
    %p194 = scmp.eq.s32.totalorder %s27, 0
    %p195 = por %p193, %p194
    %p196 = scmp.ne.s32.totalorder %s184, %s185
    %p197 = scmp.eq.s32.totalorder %s28, 1
    %p198 = por %p196, %p197
    %p200 = scmp.ne.s32.totalorder %s185, %s199
    %p201 = scmp.eq.s32.totalorder %s28, 0
    %p202 = por %p200, %p201
    %s204 = sadd.s32 %s203, 1
    %p207 = scmp.eq.s32.totalorder %s22, 1
    %p208 = scmp.ne.s32.totalorder %s203, %s205
    %p209 = scmp.eq.s32.totalorder %s22, 0
    %p210 = por %p208, %p209
    %p211 = scmp.ne.s32.totalorder %s203, %s205
    %p212 = scmp.eq.s32.totalorder %s27, 1
    %p213 = por %p211, %p212
    %p214 = scmp.ne.s32.totalorder %s205, %s206
    %p215 = scmp.eq.s32.totalorder %s27, 0
    %p216 = por %p214, %p215
    %p217 = scmp.ne.s32.totalorder %s205, %s206
    %p218 = scmp.eq.s32.totalorder %s28, 1
    %p219 = por %p217, %p218
    %p221 = scmp.ne.s32.totalorder %s206, %s220
    %p222 = scmp.eq.s32.totalorder %s28, 0
    %p223 = por %p221, %p222
    %s225 = sadd.s32 %s224, 1
    %p228 = scmp.eq.s32.totalorder %s22, 1
    %p229 = scmp.ne.s32.totalorder %s224, %s226
    %p230 = scmp.eq.s32.totalorder %s22, 0
    %p231 = por %p229, %p230
    %p232 = scmp.ne.s32.totalorder %s224, %s226
    %p233 = scmp.eq.s32.totalorder %s27, 1
    %p234 = por %p232, %p233
    %p235 = scmp.ne.s32.totalorder %s226, %s227
    %p236 = scmp.eq.s32.totalorder %s27, 0
    %p237 = por %p235, %p236
    %p238 = scmp.ne.s32.totalorder %s226, %s227
    %p239 = scmp.eq.s32.totalorder %s28, 1
    %p240 = por %p238, %p239
    %p242 = scmp.ne.s32.totalorder %s227, %s241
    %p243 = scmp.eq.s32.totalorder %s28, 0
    %p244 = por %p242, %p243
    %s246 = sadd.s32 %s245, 1
    %p249 = scmp.eq.s32.totalorder %s22, 1
    %p250 = scmp.ne.s32.totalorder %s245, %s247
    %p251 = scmp.eq.s32.totalorder %s22, 0
    %p252 = por %p250, %p251
    %p253 = scmp.ne.s32.totalorder %s245, %s247
    %p254 = scmp.eq.s32.totalorder %s27, 1
    %p255 = por %p253, %p254
    %p256 = scmp.ne.s32.totalorder %s247, %s248
    %p257 = scmp.eq.s32.totalorder %s27, 0
    %p258 = por %p256, %p257
    %p259 = scmp.ne.s32.totalorder %s247, %s248
    %p260 = scmp.eq.s32.totalorder %s28, 1
    %p261 = por %p259, %p260
    %p263 = scmp.ne.s32.totalorder %s248, %s262
    %p264 = scmp.eq.s32.totalorder %s28, 0
    %p265 = por %p263, %p264
    %s267 = sadd.s32 %s266, 1
    %p270 = scmp.eq.s32.totalorder %s22, 1
    %p271 = scmp.ne.s32.totalorder %s266, %s268
    %p272 = scmp.eq.s32.totalorder %s22, 0
    %p273 = por %p271, %p272
    %p274 = scmp.ne.s32.totalorder %s266, %s268
    %p275 = scmp.eq.s32.totalorder %s27, 1
    %p276 = por %p274, %p275
    %p277 = scmp.ne.s32.totalorder %s268, %s269
    %p278 = scmp.eq.s32.totalorder %s27, 0
    %p279 = por %p277, %p278
    %p280 = scmp.ne.s32.totalorder %s268, %s269
    %p281 = scmp.eq.s32.totalorder %s28, 1
    %p282 = por %p280, %p281
    %p284 = scmp.ne.s32.totalorder %s269, %s283
    %p285 = scmp.eq.s32.totalorder %s28, 0
    %p286 = por %p284, %p285
    %s288 = sadd.s32 %s287, 1
    %p291 = scmp.eq.s32.totalorder %s22, 1
    %p292 = scmp.ne.s32.totalorder %s287, %s289
    %p293 = scmp.eq.s32.totalorder %s22, 0
    %p294 = por %p292, %p293
    %p295 = scmp.ne.s32.totalorder %s287, %s289
    %p296 = scmp.eq.s32.totalorder %s27, 1
    %p297 = por %p295, %p296
    %p298 = scmp.ne.s32.totalorder %s289, %s290
    %p299 = scmp.eq.s32.totalorder %s27, 0
    %p300 = por %p298, %p299
    %p301 = scmp.ne.s32.totalorder %s289, %s290
    %p302 = scmp.eq.s32.totalorder %s28, 1
    %p303 = por %p301, %p302
    %p305 = scmp.ne.s32.totalorder %s290, %s304
    %p306 = scmp.eq.s32.totalorder %s28, 0
    %p307 = por %p305, %p306
    %s309 = sadd.s32 %s308, 1
    %p312 = scmp.eq.s32.totalorder %s22, 1
    %p313 = scmp.ne.s32.totalorder %s308, %s310
    %p314 = scmp.eq.s32.totalorder %s22, 0
    %p315 = por %p313, %p314
    %p316 = scmp.ne.s32.totalorder %s308, %s310
    %p317 = scmp.eq.s32.totalorder %s27, 1
    %p318 = por %p316, %p317
    %p319 = scmp.ne.s32.totalorder %s310, %s311
    %p320 = scmp.eq.s32.totalorder %s27, 0
    %p321 = por %p319, %p320
    %p322 = scmp.ne.s32.totalorder %s310, %s311
    %p323 = scmp.eq.s32.totalorder %s28, 1
    %p324 = por %p322, %p323
    %p326 = scmp.ne.s32.totalorder %s311, %s325
    %p327 = scmp.eq.s32.totalorder %s28, 0
    %p328 = por %p326, %p327
    %s330 = sadd.s32 %s329, 1
    %p333 = scmp.eq.s32.totalorder %s22, 1
    %p334 = scmp.ne.s32.totalorder %s329, %s331
    %p335 = scmp.eq.s32.totalorder %s22, 0
    %p336 = por %p334, %p335
    %p337 = scmp.ne.s32.totalorder %s329, %s331
    %p338 = scmp.eq.s32.totalorder %s27, 1
    %p339 = por %p337, %p338
    %p340 = scmp.ne.s32.totalorder %s331, %s332
    %p341 = scmp.eq.s32.totalorder %s27, 0
    %p342 = por %p340, %p341
    %p343 = scmp.ne.s32.totalorder %s331, %s332
    %p344 = scmp.eq.s32.totalorder %s28, 1
    %p345 = por %p343, %p344
    %p347 = scmp.ne.s32.totalorder %s332, %s346
    %p348 = scmp.eq.s32.totalorder %s28, 0
    %p349 = por %p347, %p348
    %s351 = sadd.s32 %s350, 1
    %p354 = scmp.eq.s32.totalorder %s22, 1
    %p355 = scmp.ne.s32.totalorder %s350, %s352
    %p356 = scmp.eq.s32.totalorder %s22, 0
    %p357 = por %p355, %p356
    %p358 = scmp.ne.s32.totalorder %s350, %s352
    %p359 = scmp.eq.s32.totalorder %s27, 1
    %p360 = por %p358, %p359
    %p361 = scmp.ne.s32.totalorder %s352, %s353
    %p362 = scmp.eq.s32.totalorder %s27, 0
    %p363 = por %p361, %p362
    %p364 = scmp.ne.s32.totalorder %s352, %s353
    %p365 = scmp.eq.s32.totalorder %s28, 1
    %p366 = por %p364, %p365
    %p368 = scmp.ne.s32.totalorder %s353, %s367
    %p369 = scmp.eq.s32.totalorder %s28, 0
    %p370 = por %p368, %p369
    %s371 = ssub.s32 %s22, %s29
    %p372 = scmp.eq.s32.totalorder %s371, 0
    %s374 = sadd.s32 %s373, 1
    %s375 = scalar_select %p372, %s373, %s374
    %p378 = pneg %p372
    %p379 = scmp.eq.s32.totalorder %s22, 1
    %p380 = por %p378, %p379
    %p381 = scmp.ne.s32.totalorder %s373, %s376
    %p382 = scmp.eq.s32.totalorder %s22, 0
    %p383 = por %p381, %p382
    %p384 = scmp.ne.s32.totalorder %s373, %s376
    %p385 = scmp.eq.s32.totalorder %s27, 1
    %p386 = por %p384, %p385
    %p387 = scmp.ne.s32.totalorder %s376, %s377
    %p388 = scmp.eq.s32.totalorder %s27, 0
    %p389 = por %p387, %p388
    %p390 = scmp.ne.s32.totalorder %s376, %s377
    %p391 = scmp.eq.s32.totalorder %s28, 1
    %p392 = por %p390, %p391
    %p394 = scmp.ne.s32.totalorder %s377, %s393
    %p395 = scmp.eq.s32.totalorder %s28, 0
    %p396 = por %p394, %p395
    %p397 = scmp.le.s32.totalorder 1, %s22
    %p398 = scmp.lt.s32.totalorder %s22, 3
    %p399 = pnand %p397, %p398
    %p400 = pneg %p399
    // Predicated region
    $region9: #{duel_cnn_forward.1} parent=5 // pred_check
      _
    $region10: #{duel_cnn_forward.1} parent=5 // pred_check_branch
      %402 = sbr.rel (%p399) target = $region12
    $region11: #{duel_cnn_forward.1} parent=5 // pred_region
      %s403 = ssub.s32 %s22, 1
      // Predicated region
      $region13: #{duel_cnn_forward.1} parent=11 // pred_check
        %p404 = pneg %p69
      $region14: #{duel_cnn_forward.1} parent=11 // pred_check_branch
        %406 = sbr.rel (%p404) target = $region16
      $region15: #{duel_cnn_forward.1} parent=11 // pred_region
        _
      $region16: #{duel_cnn_forward.1} parent=11 // pred_fallthru
        _
      // Predicated region
      $region17: #{duel_cnn_forward.1} parent=11 // pred_check
        %p407 = pneg %p90
      $region18: #{duel_cnn_forward.1} parent=11 // pred_check_branch
        %409 = sbr.rel (%p407) target = $region20
      $region19: #{duel_cnn_forward.1} parent=11 // pred_region
        _
      $region20: #{duel_cnn_forward.1} parent=11 // pred_fallthru
        _
      // Predicated region
      $region21: #{duel_cnn_forward.1} parent=11 // pred_check
        %p410 = pneg %p111
      $region22: #{duel_cnn_forward.1} parent=11 // pred_check_branch
        %412 = sbr.rel (%p410) target = $region24
      $region23: #{duel_cnn_forward.1} parent=11 // pred_region
        _
      $region24: #{duel_cnn_forward.1} parent=11 // pred_fallthru
        _
      // Predicated region
      $region25: #{duel_cnn_forward.1} parent=11 // pred_check
        %p413 = pneg %p132
      $region26: #{duel_cnn_forward.1} parent=11 // pred_check_branch
        %415 = sbr.rel (%p413) target = $region28
      $region27: #{duel_cnn_forward.1} parent=11 // pred_region
        _
      $region28: #{duel_cnn_forward.1} parent=11 // pred_fallthru
        _
      // Predicated region
      $region29: #{duel_cnn_forward.1} parent=11 // pred_check
        %p416 = pneg %p153
      $region30: #{duel_cnn_forward.1} parent=11 // pred_check_branch
        %418 = sbr.rel (%p416) target = $region32
      $region31: #{duel_cnn_forward.1} parent=11 // pred_region
        _
      $region32: #{duel_cnn_forward.1} parent=11 // pred_fallthru
        _
      // Predicated region
      $region33: #{duel_cnn_forward.1} parent=11 // pred_check
        %p419 = pneg %p174
      $region34: #{duel_cnn_forward.1} parent=11 // pred_check_branch
        %421 = sbr.rel (%p419) target = $region36
      $region35: #{duel_cnn_forward.1} parent=11 // pred_region
        _
      $region36: #{duel_cnn_forward.1} parent=11 // pred_fallthru
        _
      // Predicated region
      $region37: #{duel_cnn_forward.1} parent=11 // pred_check
        %p422 = pneg %p195
      $region38: #{duel_cnn_forward.1} parent=11 // pred_check_branch
        %424 = sbr.rel (%p422) target = $region40
      $region39: #{duel_cnn_forward.1} parent=11 // pred_region
        _
      $region40: #{duel_cnn_forward.1} parent=11 // pred_fallthru
        _
      // Predicated region
      $region41: #{duel_cnn_forward.1} parent=11 // pred_check
        %p425 = pneg %p216
      $region42: #{duel_cnn_forward.1} parent=11 // pred_check_branch
        %427 = sbr.rel (%p425) target = $region44
      $region43: #{duel_cnn_forward.1} parent=11 // pred_region
        _
      $region44: #{duel_cnn_forward.1} parent=11 // pred_fallthru
        _
      // Predicated region
      $region45: #{duel_cnn_forward.1} parent=11 // pred_check
        %p428 = pneg %p237
      $region46: #{duel_cnn_forward.1} parent=11 // pred_check_branch
        %430 = sbr.rel (%p428) target = $region48
      $region47: #{duel_cnn_forward.1} parent=11 // pred_region
        _
      $region48: #{duel_cnn_forward.1} parent=11 // pred_fallthru
        _
      // Predicated region
      $region49: #{duel_cnn_forward.1} parent=11 // pred_check
        %p431 = pneg %p258
      $region50: #{duel_cnn_forward.1} parent=11 // pred_check_branch
        %433 = sbr.rel (%p431) target = $region52
      $region51: #{duel_cnn_forward.1} parent=11 // pred_region
        _
      $region52: #{duel_cnn_forward.1} parent=11 // pred_fallthru
        _
      // Predicated region
      $region53: #{duel_cnn_forward.1} parent=11 // pred_check
        %p434 = pneg %p279
      $region54: #{duel_cnn_forward.1} parent=11 // pred_check_branch
        %436 = sbr.rel (%p434) target = $region56
      $region55: #{duel_cnn_forward.1} parent=11 // pred_region
        _
      $region56: #{duel_cnn_forward.1} parent=11 // pred_fallthru
        _
      // Predicated region
      $region57: #{duel_cnn_forward.1} parent=11 // pred_check
        %p437 = pneg %p300
      $region58: #{duel_cnn_forward.1} parent=11 // pred_check_branch
        %439 = sbr.rel (%p437) target = $region60
      $region59: #{duel_cnn_forward.1} parent=11 // pred_region
        _
      $region60: #{duel_cnn_forward.1} parent=11 // pred_fallthru
        _
      // Predicated region
      $region61: #{duel_cnn_forward.1} parent=11 // pred_check
        %p440 = pneg %p321
      $region62: #{duel_cnn_forward.1} parent=11 // pred_check_branch
        %442 = sbr.rel (%p440) target = $region64
      $region63: #{duel_cnn_forward.1} parent=11 // pred_region
        _
      $region64: #{duel_cnn_forward.1} parent=11 // pred_fallthru
        _
      // Predicated region
      $region65: #{duel_cnn_forward.1} parent=11 // pred_check
        %p443 = pneg %p342
      $region66: #{duel_cnn_forward.1} parent=11 // pred_check_branch
        %445 = sbr.rel (%p443) target = $region68
      $region67: #{duel_cnn_forward.1} parent=11 // pred_region
        _
      $region68: #{duel_cnn_forward.1} parent=11 // pred_fallthru
        _
      // Predicated region
      $region69: #{duel_cnn_forward.1} parent=11 // pred_check
        %p446 = pneg %p363
      $region70: #{duel_cnn_forward.1} parent=11 // pred_check_branch
        %448 = sbr.rel (%p446) target = $region72
      $region71: #{duel_cnn_forward.1} parent=11 // pred_region
        _
      $region72: #{duel_cnn_forward.1} parent=11 // pred_fallthru
        _
    $region12: #{duel_cnn_forward.1} parent=5 // pred_fallthru
      _
    %p449 = scmp.lt.s32.totalorder %s22, 2
    // Predicated region
    $region73: #{duel_cnn_forward.1} parent=5 // pred_check
      %p450 = pneg %p449
    $region74: #{duel_cnn_forward.1} parent=5 // pred_check_branch
      %452 = sbr.rel (%p450) target = $region76
    $region75: #{duel_cnn_forward.1} parent=5 // pred_region
      // Predicated region
      $region77: #{duel_cnn_forward.1} parent=75 // pred_check
        %p453 = pneg %p42
      $region78: #{duel_cnn_forward.1} parent=75 // pred_check_branch
        %455 = sbr.rel (%p453) target = $region80
      $region79: #{duel_cnn_forward.1} parent=75 // pred_region
        %p456 = scmp.lt.s32.totalorder %s22, 1
        %s457 = scalar_select %p456, %s22, 1
        %s458 = smul.addr %s457, 26
        %s459 = smul.addr %s458, 4
        %s460 = scalar_lea.vmem %s0, %s459
      $region80: #{duel_cnn_forward.1} parent=75 // pred_fallthru
        _
    $region76: #{duel_cnn_forward.1} parent=5 // pred_fallthru
      _
    %p461 = scmp.le.s32.totalorder 1, %s22
    %p462 = scmp.lt.s32.totalorder %s22, 3
    %p463 = pnand %p461, %p462
    %p464 = pneg %p463
    // Predicated region
    $region81: #{duel_cnn_forward.1} parent=5 // pred_check
      _
    $region82: #{duel_cnn_forward.1} parent=5 // pred_check_branch
      %466 = sbr.rel (%p463) target = $region84
    $region83: #{duel_cnn_forward.1} parent=5 // pred_region
      %s467 = ssub.s32 %s22, 1
      %p468 = scmp.lt.s32.totalorder %s27, 1
      %s469 = scalar_select %p468, %s27, 1
      %s470 = smul.addr %s469, 26
      %s471 = smul.addr %s470, 4
      %s472 = scalar_lea.vmem %s0, %s471
      %p473 = pneg %p48
      %p474 = pneg %p45
      %p475 = pneg %p69
      %p476 = pneg %p66
      %p477 = pneg %p90
      %p478 = pneg %p87
      %p479 = pneg %p111
      %p480 = pneg %p108
      %p481 = pneg %p132
      %p482 = pneg %p129
      %p483 = pneg %p153
      %p484 = pneg %p150
      %p485 = pneg %p174
      %p486 = pneg %p171
      %p487 = pneg %p195
      %p488 = pneg %p192
      %p489 = pneg %p216
      %p490 = pneg %p213
      %p491 = pneg %p237
      %p492 = pneg %p234
      %p493 = pneg %p258
      %p494 = pneg %p255
      %p495 = pneg %p279
      %p496 = pneg %p276
      %p497 = pneg %p300
      %p498 = pneg %p297
      %p499 = pneg %p321
      %p500 = pneg %p318
      %p501 = pneg %p342
      %p502 = pneg %p339
      %p503 = pneg %p363
      %p504 = pneg %p360
      %p505 = pneg %p389
      %p506 = pneg %p386
      %p507 = scmp.lt.s32.totalorder %s27, 1
      %s508 = scalar_select %p507, %s27, 1
      %s509 = scalar_lea.vmem %s16, %s508
      %p510 = scmp.lt.s32.totalorder %s27, 1
      %s511 = scalar_select %p510, %s27, 1
      %s512 = smul.addr %s511, 26
      %s513 = smul.addr %s512, 4
      %s514 = scalar_lea.vmem %s0, %s513
      %p515 = scmp.lt.s32.totalorder %s27, 1
      %s516 = scalar_select %p515, %s27, 1
      %s517 = scalar_lea.vmem %s16, %s516
      %v519 = vld [vmem:[%s514] sm:$0xff]
      %v520 = vld [vmem:[%s514 + $0x8] sm:$0xff]
      %v521 = vld [vmem:[%s514 + $0x10] sm:$0xff]
      %v522 = vld [vmem:[%s514 + $0x18] sm:$0xff]
      %v523 = vld [vmem:[%s514 + $0x20] sm:$0xff]
      %v524 = vld [vmem:[%s514 + $0x28] sm:$0xff]
      %v525 = vld [vmem:[%s514 + $0x30] sm:$0xf]
      %v526 = vld [vmem:[%s514 + $0x34] sm:$0x33]
      %v527 = vld [vmem:[%s514 + $0x3c] sm:$0x33]
      %v528 = vld [vmem:[%s514 + $0x44] sm:$0x33]
      %v529 = vld [vmem:[%s514 + $0x4c] sm:$0x33]
      %v530 = vld [vmem:[%s514 + $0x54] sm:$0x33]
      %v531 = vld [vmem:[%s514 + $0x5c] sm:$0x33]
      %v532 = vld [vmem:[%s514 + $0x64] sm:$0x3]
      %v533 = vld [vmem:[%s1] sm:$0xff]
      %v534 = vld [vmem:[%s1 + $0x8] sm:$0xf]
      %v535 = vld [vmem:[%s1 + $0xc] sm:$0xff]
      %v536 = vld [vmem:[%s1 + $0x14] sm:$0xf]
      %v537 = vld [vmem:[%s1 + $0x18] sm:$0xff]
      %v538 = vld [vmem:[%s1 + $0x20] sm:$0xf]
      %v539 = vld [vmem:[%s1 + $0x24] sm:$0xff]
      %v540 = vld [vmem:[%s1 + $0x2c] sm:$0xf]
      %v541 = vld [vmem:[%s1 + $0x30] sm:$0xff]
      %v542 = vld [vmem:[%s1 + $0x38] sm:$0xf]
      %v543 = vld [vmem:[%s1 + $0x3c] sm:$0xff]
      %v544 = vld [vmem:[%s1 + $0x44] sm:$0xf]
      %v545 = vld [vmem:[%s1 + $0x48] sm:$0xff]
      %v546 = vld [vmem:[%s1 + $0x50] sm:$0xf]
      %v547 = vld [vmem:[%s1 + $0x54] sm:$0xff]
      %v548 = vld [vmem:[%s1 + $0x5c] sm:$0xf]
      %v549 = vld [vmem:[%s1 + $0x60] sm:$0xff]
      %v550 = vld [vmem:[%s1 + $0x68] sm:$0xf]
      %v551 = vld [vmem:[%s1 + $0x6c] sm:$0xff]
      %v552 = vld [vmem:[%s1 + $0x74] sm:$0xf]
      %v553 = vld [vmem:[%s1 + $0x78] sm:$0xff]
      %v554 = vld [vmem:[%s1 + $0x80] sm:$0xf]
      %v555 = vld [vmem:[%s1 + $0x84] sm:$0xff]
      %v556 = vld [vmem:[%s1 + $0x8c] sm:$0xf]
      %v557 = vld [vmem:[%s1 + $0x90] sm:$0xff]
      %v558 = vld [vmem:[%s1 + $0x98] sm:$0xf]
      %v559 = vld [vmem:[%s1 + $0x9c] sm:$0xff]
      %v560 = vld [vmem:[%s1 + $0xa4] sm:$0xf]
      %v561 = vld [vmem:[%s1 + $0xa8] sm:$0xff]
      %v562 = vld [vmem:[%s1 + $0xb0] sm:$0xf]
      %v563 = vld [vmem:[%s1 + $0xb4] sm:$0xff]
      %v564 = vld [vmem:[%s1 + $0xbc] sm:$0xf]
      %v565 = vld [vmem:[%s1 + $0xc0] sm:$0xff]
      %v566 = vld [vmem:[%s1 + $0xc8] sm:$0xf]
      %v567 = vld [vmem:[%s1 + $0xcc] sm:$0xff]
      %v568 = vld [vmem:[%s1 + $0xd4] sm:$0xf]
      %v569 = vld [vmem:[%s1 + $0xd8] sm:$0xff]
      %v570 = vld [vmem:[%s1 + $0xe0] sm:$0xf]
      %v571 = vld [vmem:[%s1 + $0xe4] sm:$0xff]
      %v572 = vld [vmem:[%s1 + $0xec] sm:$0xf]
      %v573 = vld [vmem:[%s1 + $0xf0] sm:$0xff]
      %v574 = vld [vmem:[%s1 + $0xf8] sm:$0xf]
      %v575 = vld [vmem:[%s1 + $0xfc] sm:$0xff]
      %v576 = vld [vmem:[%s1 + $0x104] sm:$0xf]
      %v577 = vld [vmem:[%s1 + $0x108] sm:$0xff]
      %v578 = vld [vmem:[%s1 + $0x110] sm:$0xf]
      %v579 = vld [vmem:[%s1 + $0x114] sm:$0xff]
      %v580 = vld [vmem:[%s1 + $0x11c] sm:$0xf]
      %v581 = vld [vmem:[%s1 + $0x120] sm:$0xff]
      %v582 = vld [vmem:[%s1 + $0x128] sm:$0xf]
      %v583 = vld [vmem:[%s1 + $0x12c] sm:$0xff]
      %v584 = vld [vmem:[%s1 + $0x134] sm:$0xf]
      %v585 = vld [vmem:[%s1 + $0x138] sm:$0xff]
      %v586 = vld [vmem:[%s1 + $0x140] sm:$0xf]
      %v587 = vld [vmem:[%s1 + $0x144] sm:$0xff]
      %v588 = vld [vmem:[%s1 + $0x14c] sm:$0xf]
      %v589 = vld [vmem:[%s1 + $0x150] sm:$0xff]
      %v590 = vld [vmem:[%s1 + $0x158] sm:$0xf]
      %v591 = vld [vmem:[%s1 + $0x15c] sm:$0xff]
      %v592 = vld [vmem:[%s1 + $0x164] sm:$0xf]
      %v593 = vld [vmem:[%s1 + $0x168] sm:$0xff]
      %v594 = vld [vmem:[%s1 + $0x170] sm:$0xf]
      %v595 = vld [vmem:[%s1 + $0x174] sm:$0xff]
      %v596 = vld [vmem:[%s1 + $0x17c] sm:$0xf]
      %v597 = vld [vmem:[%s1 + $0x180] sm:$0xff]
      %v598 = vld [vmem:[%s1 + $0x188] sm:$0xf]
      %v599 = vld [vmem:[%s1 + $0x18c] sm:$0xff]
      %v600 = vld [vmem:[%s1 + $0x194] sm:$0xf]
      %v601 = vld [vmem:[%s1 + $0x198] sm:$0xff]
      %v602 = vld [vmem:[%s1 + $0x1a0] sm:$0xf]
      %v603 = vld [vmem:[%s1 + $0x1a4] sm:$0xff]
      %v604 = vld [vmem:[%s1 + $0x1ac] sm:$0xf]
      %v605 = vld [vmem:[%s1 + $0x1b0] sm:$0xff]
      %v606 = vld [vmem:[%s1 + $0x1b8] sm:$0xf]
      %v607 = vld [vmem:[%s1 + $0x1bc] sm:$0xff]
      %v608 = vld [vmem:[%s1 + $0x1c4] sm:$0xf]
      %v609 = vld [vmem:[%s1 + $0x1c8] sm:$0xff]
      %v610 = vld [vmem:[%s1 + $0x1d0] sm:$0xf]
      %v611 = vld [vmem:[%s1 + $0x1d4] sm:$0xff]
      %v612 = vld [vmem:[%s1 + $0x1dc] sm:$0xf]
      %v613 = vld [vmem:[%s1 + $0x1e0] sm:$0xff]
      %v614 = vld [vmem:[%s1 + $0x1e8] sm:$0xf]
      %v615 = vld [vmem:[%s1 + $0x1ec] sm:$0xff]
      %v616 = vld [vmem:[%s1 + $0x1f4] sm:$0xf]
      %v617 = vld [vmem:[%s1 + $0x1f8] sm:$0xff]
      %v618 = vld [vmem:[%s1 + $0x200] sm:$0xf]
      %v619 = vld [vmem:[%s1 + $0x204] sm:$0xff]
      %v620 = vld [vmem:[%s1 + $0x20c] sm:$0xf]
      %v621 = vld [vmem:[%s1 + $0x210] sm:$0xff]
      %v622 = vld [vmem:[%s1 + $0x218] sm:$0xf]
      %v623 = vld [vmem:[%s1 + $0x21c] sm:$0xff]
      %v624 = vld [vmem:[%s1 + $0x224] sm:$0xf]
      %v625 = vld [vmem:[%s1 + $0x228] sm:$0xff]
      %v626 = vld [vmem:[%s1 + $0x230] sm:$0xf]
      %v627 = vld [vmem:[%s1 + $0x234] sm:$0xff]
      %v628 = vld [vmem:[%s1 + $0x23c] sm:$0xf]
      %v629 = vld [vmem:[%s1 + $0x240] sm:$0xff]
      %v630 = vld [vmem:[%s1 + $0x248] sm:$0xf]
      %v631 = vld [vmem:[%s1 + $0x24c] sm:$0xff]
      %v632 = vld [vmem:[%s1 + $0x254] sm:$0xf]
      %v633 = vld [vmem:[%s1 + $0x258] sm:$0xff]
      %v634 = vld [vmem:[%s1 + $0x260] sm:$0xf]
      %v635 = vld [vmem:[%s1 + $0x264] sm:$0xff]
      %v636 = vld [vmem:[%s1 + $0x26c] sm:$0xf]
      %v637 = vld [vmem:[%s1 + $0x270] sm:$0xff]
      %v638 = vld [vmem:[%s1 + $0x278] sm:$0xf]
      %v639 = vld [vmem:[%s1 + $0x27c] sm:$0xff]
      %v640 = vld [vmem:[%s1 + $0x284] sm:$0xf]
      %v641 = vld [vmem:[%s1 + $0x288] sm:$0xff]
      %v642 = vld [vmem:[%s1 + $0x290] sm:$0xf]
      %v643 = vld [vmem:[%s1 + $0x294] sm:$0xff]
      %v644 = vld [vmem:[%s1 + $0x29c] sm:$0xf]
      %v645 = vld [vmem:[%s1 + $0x2a0] sm:$0xff]
      %v646 = vld [vmem:[%s1 + $0x2a8] sm:$0xf]
      %v647 = vld [vmem:[%s1 + $0x2ac] sm:$0xff]
      %v648 = vld [vmem:[%s1 + $0x2b4] sm:$0xf]
      %v649 = vld [vmem:[%s1 + $0x2b8] sm:$0xff]
      %v650 = vld [vmem:[%s1 + $0x2c0] sm:$0xf]
      %v651 = vld [vmem:[%s1 + $0x2c4] sm:$0xff]
      %v652 = vld [vmem:[%s1 + $0x2cc] sm:$0xf]
      %v653 = vld [vmem:[%s1 + $0x2d0] sm:$0xff]
      %v654 = vld [vmem:[%s1 + $0x2d8] sm:$0xf]
      %v655 = vld [vmem:[%s1 + $0x2dc] sm:$0xff]
      %v656 = vld [vmem:[%s1 + $0x2e4] sm:$0xf]
      %v657 = vld [vmem:[%s1 + $0x2e8] sm:$0xff]
      %v658 = vld [vmem:[%s1 + $0x2f0] sm:$0xf]
      %v659 = vld [vmem:[%s1 + $0x2f4] sm:$0xff]
      %v660 = vld [vmem:[%s1 + $0x2fc] sm:$0xf]
      %v661 = vld [vmem:[%s1 + $0x300] sm:$0xff]
      %v662 = vld [vmem:[%s1 + $0x308] sm:$0xf]
      %v663 = vld [vmem:[%s1 + $0x30c] sm:$0xff]
      %v664 = vld [vmem:[%s1 + $0x314] sm:$0xf]
      %v665 = vld [vmem:[%s1 + $0x318] sm:$0xff]
      %v666 = vld [vmem:[%s1 + $0x320] sm:$0xf]
      %v667 = vld [vmem:[%s1 + $0x324] sm:$0xff]
      %v668 = vld [vmem:[%s1 + $0x32c] sm:$0xf]
      %v669 = vld [vmem:[%s1 + $0x330] sm:$0xff]
      %v670 = vld [vmem:[%s1 + $0x338] sm:$0xf]
      %v671 = vld [vmem:[%s1 + $0x33c] sm:$0xff]
      %v672 = vld [vmem:[%s1 + $0x344] sm:$0xf]
      %v673 = vld [vmem:[%s1 + $0x348] sm:$0xff]
      %v674 = vld [vmem:[%s1 + $0x350] sm:$0xf]
      %v675 = vld [vmem:[%s1 + $0x354] sm:$0xff]
      %v676 = vld [vmem:[%s1 + $0x35c] sm:$0xf]
      %v677 = vld [vmem:[%s1 + $0x360] sm:$0xff]
      %v678 = vld [vmem:[%s1 + $0x368] sm:$0xf]
      %v679 = vld [vmem:[%s1 + $0x36c] sm:$0xff]
      %v680 = vld [vmem:[%s1 + $0x374] sm:$0xf]
      %v681 = vld [vmem:[%s1 + $0x378] sm:$0xff]
      %v682 = vld [vmem:[%s1 + $0x380] sm:$0xf]
      %v683 = vld [vmem:[%s1 + $0x384] sm:$0xff]
      %v684 = vld [vmem:[%s1 + $0x38c] sm:$0xf]
      %v685 = vld [vmem:[%s1 + $0x390] sm:$0xff]
      %v686 = vld [vmem:[%s1 + $0x398] sm:$0xf]
      %v687 = vld [vmem:[%s1 + $0x39c] sm:$0xff]
      %v688 = vld [vmem:[%s1 + $0x3a4] sm:$0xf]
      %v689 = vld [vmem:[%s1 + $0x3a8] sm:$0xff]
      %v690 = vld [vmem:[%s1 + $0x3b0] sm:$0xf]
      %v691 = vld [vmem:[%s1 + $0x3b4] sm:$0xff]
      %v692 = vld [vmem:[%s1 + $0x3bc] sm:$0xf]
      %v693 = vld [vmem:[%s1 + $0x3c0] sm:$0xff]
      %v694 = vld [vmem:[%s1 + $0x3c8] sm:$0xf]
      %v695 = vld [vmem:[%s1 + $0x3cc] sm:$0xff]
      %v696 = vld [vmem:[%s1 + $0x3d4] sm:$0xf]
      %v697 = vld [vmem:[%s1 + $0x3d8] sm:$0xff]
      %v698 = vld [vmem:[%s1 + $0x3e0] sm:$0xf]
      %v699 = vld [vmem:[%s1 + $0x3e4] sm:$0xff]
      %v700 = vld [vmem:[%s1 + $0x3ec] sm:$0xf]
      %v701 = vld [vmem:[%s1 + $0x3f0] sm:$0xff]
      %v702 = vld [vmem:[%s1 + $0x3f8] sm:$0xf]
      %v703 = vld [vmem:[%s1 + $0x3fc] sm:$0xff]
      %v704 = vld [vmem:[%s1 + $0x404] sm:$0xf]
      %v705 = vld [vmem:[%s1 + $0x408] sm:$0xff]
      %v706 = vld [vmem:[%s1 + $0x410] sm:$0xf]
      %v707 = vld [vmem:[%s1 + $0x414] sm:$0xff]
      %v708 = vld [vmem:[%s1 + $0x41c] sm:$0xf]
      %v709 = vld [vmem:[%s1 + $0x420] sm:$0xff]
      %v710 = vld [vmem:[%s1 + $0x428] sm:$0xf]
      %v711 = vld [vmem:[%s1 + $0x42c] sm:$0xff]
      %v712 = vld [vmem:[%s1 + $0x434] sm:$0xf]
      %v713 = vld [vmem:[%s1 + $0x438] sm:$0xff]
      %v714 = vld [vmem:[%s1 + $0x440] sm:$0xf]
      %v715 = vld [vmem:[%s1 + $0x444] sm:$0xff]
      %v716 = vld [vmem:[%s1 + $0x44c] sm:$0xf]
      %v717 = vld [vmem:[%s1 + $0x450] sm:$0xff]
      %v718 = vld [vmem:[%s1 + $0x458] sm:$0xf]
      %v719 = vld [vmem:[%s1 + $0x45c] sm:$0xff]
      %v720 = vld [vmem:[%s1 + $0x464] sm:$0xf]
      %v721 = vld [vmem:[%s1 + $0x468] sm:$0xff]
      %v722 = vld [vmem:[%s1 + $0x470] sm:$0xf]
      %v723 = vld [vmem:[%s1 + $0x474] sm:$0xff]
      %v724 = vld [vmem:[%s1 + $0x47c] sm:$0xf]
      %v725 = vld [vmem:[%s1 + $0x480] sm:$0xff]
      %v726 = vld [vmem:[%s1 + $0x488] sm:$0xf]
      %v727 = vld [vmem:[%s1 + $0x48c] sm:$0xff]
      %v728 = vld [vmem:[%s1 + $0x494] sm:$0xf]
      %v729 = vld [vmem:[%s1 + $0x498] sm:$0xff]
      %v730 = vld [vmem:[%s1 + $0x4a0] sm:$0xf]
      %v731 = vld [vmem:[%s1 + $0x4a4] sm:$0xff]
      %v732 = vld [vmem:[%s1 + $0x4ac] sm:$0xf]
      %v733 = vld [vmem:[%s1 + $0x4b0] sm:$0xff]
      %v734 = vld [vmem:[%s1 + $0x4b8] sm:$0xf]
      %v735 = vld [vmem:[%s1 + $0x4bc] sm:$0xff]
      %v736 = vld [vmem:[%s1 + $0x4c4] sm:$0xf]
      %v737 = vld [vmem:[%s1 + $0x4c8] sm:$0xff]
      %v738 = vld [vmem:[%s1 + $0x4d0] sm:$0xf]
      %v739 = vld [vmem:[%s1 + $0x4d4] sm:$0xff]
      %v740 = vld [vmem:[%s1 + $0x4dc] sm:$0xf]
      %v741 = vld [vmem:[%s1 + $0x4e0] sm:$0xff]
      %v742 = vld [vmem:[%s1 + $0x4e8] sm:$0xf]
      %v743 = vld [vmem:[%s1 + $0x4ec] sm:$0xff]
      %v744 = vld [vmem:[%s1 + $0x4f4] sm:$0xf]
      %v745 = vld [vmem:[%s1 + $0x4f8] sm:$0xff]
      %v746 = vld [vmem:[%s1 + $0x500] sm:$0xf]
      %v747 = vld [vmem:[%s1 + $0x504] sm:$0xff]
      %v748 = vld [vmem:[%s1 + $0x50c] sm:$0xf]
      %v749 = vld [vmem:[%s1 + $0x510] sm:$0xff]
      %v750 = vld [vmem:[%s1 + $0x518] sm:$0xf]
      %v751 = vld [vmem:[%s1 + $0x51c] sm:$0xff]
      %v752 = vld [vmem:[%s1 + $0x524] sm:$0xf]
      %v753 = vld [vmem:[%s1 + $0x528] sm:$0xff]
      %v754 = vld [vmem:[%s1 + $0x530] sm:$0xf]
      %v755 = vld [vmem:[%s1 + $0x534] sm:$0xff]
      %v756 = vld [vmem:[%s1 + $0x53c] sm:$0xf]
      %v757 = vld [vmem:[%s1 + $0x540] sm:$0xff]
      %v758 = vld [vmem:[%s1 + $0x548] sm:$0xf]
      %v759 = vld [vmem:[%s1 + $0x54c] sm:$0xff]
      %v760 = vld [vmem:[%s1 + $0x554] sm:$0xf]
      %v761 = vld [vmem:[%s1 + $0x558] sm:$0xff]
      %v762 = vld [vmem:[%s1 + $0x560] sm:$0xf]
      %v763 = vld [vmem:[%s1 + $0x564] sm:$0xff]
      %v764 = vld [vmem:[%s1 + $0x56c] sm:$0xf]
      %v765 = vld [vmem:[%s1 + $0x570] sm:$0xff]
      %v766 = vld [vmem:[%s1 + $0x578] sm:$0xf]
      %v767 = vld [vmem:[%s1 + $0x57c] sm:$0xff]
      %v768 = vld [vmem:[%s1 + $0x584] sm:$0xf]
      %v769 = vld [vmem:[%s1 + $0x588] sm:$0xff]
      %v770 = vld [vmem:[%s1 + $0x590] sm:$0xf]
      %v771 = vld [vmem:[%s1 + $0x594] sm:$0xff]
      %v772 = vld [vmem:[%s1 + $0x59c] sm:$0xf]
      %v773 = vld [vmem:[%s1 + $0x5a0] sm:$0xff]
      %v774 = vld [vmem:[%s1 + $0x5a8] sm:$0xf]
      %v775 = vld [vmem:[%s1 + $0x5ac] sm:$0xff]
      %v776 = vld [vmem:[%s1 + $0x5b4] sm:$0xf]
      %v777 = vld [vmem:[%s1 + $0x5b8] sm:$0xff]
      %v778 = vld [vmem:[%s1 + $0x5c0] sm:$0xf]
      %v779 = vld [vmem:[%s1 + $0x5c4] sm:$0xff]
      %v780 = vld [vmem:[%s1 + $0x5cc] sm:$0xf]
      %v781 = vld [vmem:[%s1 + $0x5d0] sm:$0xff]
      %v782 = vld [vmem:[%s1 + $0x5d8] sm:$0xf]
      %v783 = vld [vmem:[%s1 + $0x5dc] sm:$0xff]
      %v784 = vld [vmem:[%s1 + $0x5e4] sm:$0xf]
      %v785 = vld [vmem:[%s1 + $0x5e8] sm:$0xff]
      %v786 = vld [vmem:[%s1 + $0x5f0] sm:$0xf]
      %v787 = vld [vmem:[%s1 + $0x5f4] sm:$0xff]
      %v788 = vld [vmem:[%s1 + $0x5fc] sm:$0xf]
      %v789 = vld [vmem:[%s1 + $0x600] sm:$0xff]
      %v790 = vld [vmem:[%s1 + $0x608] sm:$0xf]
      %v791 = vld [vmem:[%s1 + $0x60c] sm:$0xff]
      %v792 = vld [vmem:[%s1 + $0x614] sm:$0xf]
      %v793 = vld [vmem:[%s1 + $0x618] sm:$0xff]
      %v794 = vld [vmem:[%s1 + $0x620] sm:$0xf]
      %v795 = vld [vmem:[%s1 + $0x624] sm:$0xff]
      %v796 = vld [vmem:[%s1 + $0x62c] sm:$0xf]
      %v797 = vld [vmem:[%s1 + $0x630] sm:$0xff]
      %v798 = vld [vmem:[%s1 + $0x638] sm:$0xf]
      %v799 = vld [vmem:[%s1 + $0x63c] sm:$0xff]
      %v800 = vld [vmem:[%s1 + $0x644] sm:$0xf]
      %v801 = vld [vmem:[%s1 + $0x648] sm:$0xff]
      %v802 = vld [vmem:[%s1 + $0x650] sm:$0xf]
      %v803 = vld [vmem:[%s1 + $0x654] sm:$0xff]
      %v804 = vld [vmem:[%s1 + $0x65c] sm:$0xf]
      %v805 = vld [vmem:[%s1 + $0x660] sm:$0xff]
      %v806 = vld [vmem:[%s1 + $0x668] sm:$0xf]
      %v807 = vld [vmem:[%s1 + $0x66c] sm:$0xff]
      %v808 = vld [vmem:[%s1 + $0x674] sm:$0xf]
      %v809 = vld [vmem:[%s1 + $0x678] sm:$0xff]
      %v810 = vld [vmem:[%s1 + $0x680] sm:$0xf]
      %v811 = vld [vmem:[%s1 + $0x684] sm:$0xff]
      %v812 = vld [vmem:[%s1 + $0x68c] sm:$0xf]
      %v813 = vld [vmem:[%s1 + $0x690] sm:$0xff]
      %v814 = vld [vmem:[%s1 + $0x698] sm:$0xf]
      %v815 = vld [vmem:[%s1 + $0x69c] sm:$0xff]
      %v816 = vld [vmem:[%s1 + $0x6a4] sm:$0xf]
      %v817 = vld [vmem:[%s1 + $0x6a8] sm:$0xff]
      %v818 = vld [vmem:[%s1 + $0x6b0] sm:$0xf]
      %v819 = vld [vmem:[%s1 + $0x6b4] sm:$0xff]
      %v820 = vld [vmem:[%s1 + $0x6bc] sm:$0xf]
      %v821 = vld [vmem:[%s1 + $0x6c0] sm:$0xff]
      %v822 = vld [vmem:[%s1 + $0x6c8] sm:$0xf]
      %v823 = vld [vmem:[%s1 + $0x6cc] sm:$0xff]
      %v824 = vld [vmem:[%s1 + $0x6d4] sm:$0xf]
      %v825 = vld [vmem:[%s1 + $0x6d8] sm:$0xff]
      %v826 = vld [vmem:[%s1 + $0x6e0] sm:$0xf]
      %v827 = vld [vmem:[%s1 + $0x6e4] sm:$0xff]
      %v828 = vld [vmem:[%s1 + $0x6ec] sm:$0xf]
      %v829 = vld [vmem:[%s1 + $0x6f0] sm:$0xff]
      %v830 = vld [vmem:[%s1 + $0x6f8] sm:$0xf]
      %v831 = vld [vmem:[%s1 + $0x6fc] sm:$0xff]
      %v832 = vld [vmem:[%s1 + $0x704] sm:$0xf]
      %v833 = vld [vmem:[%s1 + $0x708] sm:$0xff]
      %v834 = vld [vmem:[%s1 + $0x710] sm:$0xf]
      %v835 = vld [vmem:[%s1 + $0x714] sm:$0xff]
      %v836 = vld [vmem:[%s1 + $0x71c] sm:$0xf]
      %v837 = vld [vmem:[%s1 + $0x720] sm:$0xff]
      %v838 = vld [vmem:[%s1 + $0x728] sm:$0xf]
      %v839 = vld [vmem:[%s1 + $0x72c] sm:$0xff]
      %v840 = vld [vmem:[%s1 + $0x734] sm:$0xf]
      %v841 = vld [vmem:[%s1 + $0x738] sm:$0xff]
      %v842 = vld [vmem:[%s1 + $0x740] sm:$0xf]
      %v843 = vld [vmem:[%s1 + $0x744] sm:$0xff]
      %v844 = vld [vmem:[%s1 + $0x74c] sm:$0xf]
      %v845 = vld [vmem:[%s1 + $0x750] sm:$0xff]
      %v846 = vld [vmem:[%s1 + $0x758] sm:$0xf]
      %v847 = vld [vmem:[%s1 + $0x75c] sm:$0xff]
      %v848 = vld [vmem:[%s1 + $0x764] sm:$0xf]
      %v849 = vld [vmem:[%s1 + $0x768] sm:$0xff]
      %v850 = vld [vmem:[%s1 + $0x770] sm:$0xf]
      %v851 = vld [vmem:[%s1 + $0x774] sm:$0xff]
      %v852 = vld [vmem:[%s1 + $0x77c] sm:$0xf]
      %v853 = vld [vmem:[%s1 + $0x780] sm:$0xff]
      %v854 = vld [vmem:[%s1 + $0x788] sm:$0xf]
      %v855 = vld [vmem:[%s1 + $0x78c] sm:$0xff]
      %v856 = vld [vmem:[%s1 + $0x794] sm:$0xf]
      %v857 = vld [vmem:[%s1 + $0x798] sm:$0xff]
      %v858 = vld [vmem:[%s1 + $0x7a0] sm:$0xf]
      %v859 = vld [vmem:[%s1 + $0x7a4] sm:$0xff]
      %v860 = vld [vmem:[%s1 + $0x7ac] sm:$0xf]
      %v861 = vld [vmem:[%s1 + $0x7b0] sm:$0xff]
      %v862 = vld [vmem:[%s1 + $0x7b8] sm:$0xf]
      %v863 = vld [vmem:[%s1 + $0x7bc] sm:$0xff]
      %v864 = vld [vmem:[%s1 + $0x7c4] sm:$0xf]
      %v865 = vld [vmem:[%s1 + $0x7c8] sm:$0xff]
      %v866 = vld [vmem:[%s1 + $0x7d0] sm:$0xf]
      %v867 = vld [vmem:[%s1 + $0x7d4] sm:$0xff]
      %v868 = vld [vmem:[%s1 + $0x7dc] sm:$0xf]
      %v869 = vld [vmem:[%s1 + $0x7e0] sm:$0xff]
      %v870 = vld [vmem:[%s1 + $0x7e8] sm:$0xf]
      %v871 = vld [vmem:[%s1 + $0x7ec] sm:$0xff]
      %v872 = vld [vmem:[%s1 + $0x7f4] sm:$0xf]
      %v873 = vld [vmem:[%s1 + $0x7f8] sm:$0xff]
      %v874 = vld [vmem:[%s1 + $0x800] sm:$0xf]
      %v875 = vld [vmem:[%s1 + $0x804] sm:$0xff]
      %v876 = vld [vmem:[%s1 + $0x80c] sm:$0xf]
      %v877 = vld [vmem:[%s1 + $0x810] sm:$0xff]
      %v878 = vld [vmem:[%s1 + $0x818] sm:$0xf]
      %v879 = vld [vmem:[%s1 + $0x81c] sm:$0xff]
      %v880 = vld [vmem:[%s1 + $0x824] sm:$0xf]
      %v881 = vld [vmem:[%s1 + $0x828] sm:$0xff]
      %v882 = vld [vmem:[%s1 + $0x830] sm:$0xf]
      %v883 = vld [vmem:[%s1 + $0x834] sm:$0xff]
      %v884 = vld [vmem:[%s1 + $0x83c] sm:$0xf]
      %v885 = vld [vmem:[%s1 + $0x840] sm:$0xff]
      %v886 = vld [vmem:[%s1 + $0x848] sm:$0xf]
      %v887 = vld [vmem:[%s1 + $0x84c] sm:$0xff]
      %v888 = vld [vmem:[%s1 + $0x854] sm:$0xf]
      %v889 = vld [vmem:[%s1 + $0x858] sm:$0xff]
      %v890 = vld [vmem:[%s1 + $0x860] sm:$0xf]
      %v891 = vld [vmem:[%s1 + $0x864] sm:$0xff]
      %v892 = vld [vmem:[%s1 + $0x86c] sm:$0xf]
      %v893 = vld [vmem:[%s1 + $0x870] sm:$0xff]
      %v894 = vld [vmem:[%s1 + $0x878] sm:$0xf]
      %v895 = vld [vmem:[%s1 + $0x87c] sm:$0xff]
      %v896 = vld [vmem:[%s1 + $0x884] sm:$0xf]
      %v897 = vld [vmem:[%s1 + $0x888] sm:$0xff]
      %v898 = vld [vmem:[%s1 + $0x890] sm:$0xf]
      %v899 = vld [vmem:[%s1 + $0x894] sm:$0xff]
      %v900 = vld [vmem:[%s1 + $0x89c] sm:$0xf]
      %v901 = vld [vmem:[%s1 + $0x8a0] sm:$0xff]
      %v902 = vld [vmem:[%s1 + $0x8a8] sm:$0xf]
      %v903 = vld [vmem:[%s1 + $0x8ac] sm:$0xff]
      %v904 = vld [vmem:[%s1 + $0x8b4] sm:$0xf]
      %v905 = vld [vmem:[%s1 + $0x8b8] sm:$0xff]
      %v906 = vld [vmem:[%s1 + $0x8c0] sm:$0xf]
      %v907 = vld [vmem:[%s1 + $0x8c4] sm:$0xff]
      %v908 = vld [vmem:[%s1 + $0x8cc] sm:$0xf]
      %v909 = vld [vmem:[%s1 + $0x8d0] sm:$0xff]
      %v910 = vld [vmem:[%s1 + $0x8d8] sm:$0xf]
      %v911 = vld [vmem:[%s1 + $0x8dc] sm:$0xff]
      %v912 = vld [vmem:[%s1 + $0x8e4] sm:$0xf]
      %v913 = vld [vmem:[%s1 + $0x8e8] sm:$0xff]
      %v914 = vld [vmem:[%s1 + $0x8f0] sm:$0xf]
      %v915 = vld [vmem:[%s1 + $0x8f4] sm:$0xff]
      %v916 = vld [vmem:[%s1 + $0x8fc] sm:$0xf]
      %v917 = vld [vmem:[%s1 + $0x900] sm:$0xff]
      %v918 = vld [vmem:[%s1 + $0x908] sm:$0xf]
      %v919 = vld [vmem:[%s1 + $0x90c] sm:$0xff]
      %v920 = vld [vmem:[%s1 + $0x914] sm:$0xf]
      %v921 = vld [vmem:[%s1 + $0x918] sm:$0xff]
      %v922 = vld [vmem:[%s1 + $0x920] sm:$0xf]
      %v923 = vld [vmem:[%s1 + $0x924] sm:$0xff]
      %v924 = vld [vmem:[%s1 + $0x92c] sm:$0xf]
      %v925 = vld [vmem:[%s1 + $0x930] sm:$0xff]
      %v926 = vld [vmem:[%s1 + $0x938] sm:$0xf]
      %v927 = vld [vmem:[%s1 + $0x93c] sm:$0xff]
      %v928 = vld [vmem:[%s1 + $0x944] sm:$0xf]
      %v929 = vld [vmem:[%s1 + $0x948] sm:$0xff]
      %v930 = vld [vmem:[%s1 + $0x950] sm:$0xf]
      %v931 = vld [vmem:[%s1 + $0x954] sm:$0xff]
      %v932 = vld [vmem:[%s1 + $0x95c] sm:$0xf]
      %v933 = vld [vmem:[%s1 + $0x960] sm:$0xff]
      %v934 = vld [vmem:[%s1 + $0x968] sm:$0xf]
      %v935 = vld [vmem:[%s1 + $0x96c] sm:$0xff]
      %v936 = vld [vmem:[%s1 + $0x974] sm:$0xf]
      %v937 = vld [vmem:[%s1 + $0x978] sm:$0xff]
      %v938 = vld [vmem:[%s1 + $0x980] sm:$0xf]
      %v939 = vld [vmem:[%s1 + $0x984] sm:$0xff]
      %v940 = vld [vmem:[%s1 + $0x98c] sm:$0xf]
      %v941 = vld [vmem:[%s1 + $0x990] sm:$0xff]
      %v942 = vld [vmem:[%s1 + $0x998] sm:$0xf]
      %v943 = vld [vmem:[%s1 + $0x99c] sm:$0xff]
      %v944 = vld [vmem:[%s1 + $0x9a4] sm:$0xf]
      %v945 = vld [vmem:[%s1 + $0x9a8] sm:$0xff]
      %v946 = vld [vmem:[%s1 + $0x9b0] sm:$0xf]
      %v947 = vld [vmem:[%s1 + $0x9b4] sm:$0xff]
      %v948 = vld [vmem:[%s1 + $0x9bc] sm:$0xf]
      %v949 = vld [vmem:[%s2] sm:$0x7]
      %v951 = vlaneseq
      %v952 = vshrl.u32 %v951, 7
      %v953 = vsub.s32 0, %v952
      %v954 = vrot.slane %v949, %v953
      %v955 = vlaneseq
      %v956 = vshrl.u32 %v955, 7
      %v957 = vsub.s32 1, %v956
      %v958 = vrot.slane %v949, %v957
      %v959 = vlaneseq
      %v960 = vshrl.u32 %v959, 7
      %v961 = vsub.s32 2, %v960
      %v962 = vrot.slane %v949, %v961
      %v980 = vunpack.c.l.b16 %v519
      %v981 = vunpack.c.h.b16 %v519
      %v982 = vunpack.c.l.b16 %v520
      %v983 = vunpack.c.h.b16 %v520
      %v984 = vunpack.c.l.b16 %v521
      %v985 = vunpack.c.h.b16 %v521
      %v986 = vunpack.c.l.b16 %v522
      %v987 = vunpack.c.h.b16 %v522
      %v988 = vunpack.c.l.b16 %v523
      %v989 = vunpack.c.h.b16 %v523
      %v990 = vunpack.c.l.b16 %v524
      %v991 = vunpack.c.h.b16 %v524
      %v992 = vunpack.c.l.b16 %v525
      %v993 = vunpack.c.l.b16 %v526
      %v994 = vunpack.c.h.b16 %v526
      %v995 = vunpack.c.l.b16 %v527
      %v996 = vunpack.c.h.b16 %v527
      %v997 = vunpack.c.l.b16 %v528
      %v998 = vunpack.c.h.b16 %v528
      %v999 = vunpack.c.l.b16 %v529
      %v1000 = vunpack.c.h.b16 %v529
      %v1001 = vunpack.c.l.b16 %v530
      %v1002 = vunpack.c.h.b16 %v530
      %v1003 = vunpack.c.l.b16 %v531
      %v1004 = vunpack.c.h.b16 %v531
      %v1005 = vunpack.c.l.b16 %v532
      %v1006 = vpack.c.b16 %v993, %v980
      %v1007 = vpack.c.b16 %v994, %v981
      %v1008 = vpack.c.b16 %v995, %v982
      %v1009 = vpack.c.b16 %v996, %v983
      %v1010 = vpack.c.b16 %v997, %v984
      %v1011 = vpack.c.b16 %v998, %v985
      %v1012 = vpack.c.b16 %v999, %v986
      %v1013 = vpack.c.b16 %v1000, %v987
      %v1014 = vpack.c.b16 %v1001, %v988
      %v1015 = vpack.c.b16 %v1002, %v989
      %v1016 = vpack.c.b16 %v1003, %v990
      %v1017 = vpack.c.b16 %v1004, %v991
      %v1018 = vpack.c.b16 %v1005, %v992
      %v1448 = vunpack.c.l.b16 %v533
      %v1449 = vunpack.c.h.b16 %v533
      %v1450 = vunpack.c.l.b16 %v534
      %v1451 = vunpack.c.l.b16 %v535
      %v1452 = vunpack.c.h.b16 %v535
      %v1453 = vunpack.c.l.b16 %v536
      %v1454 = vunpack.c.l.b16 %v537
      %v1455 = vunpack.c.h.b16 %v537
      %v1456 = vunpack.c.l.b16 %v538
      %v1457 = vunpack.c.l.b16 %v539
      %v1458 = vunpack.c.h.b16 %v539
      %v1459 = vunpack.c.l.b16 %v540
      %v1460 = vunpack.c.l.b16 %v541
      %v1461 = vunpack.c.h.b16 %v541
      %v1462 = vunpack.c.l.b16 %v542
      %v1463 = vunpack.c.l.b16 %v543
      %v1464 = vunpack.c.h.b16 %v543
      %v1465 = vunpack.c.l.b16 %v544
      %v1466 = vunpack.c.l.b16 %v545
      %v1467 = vunpack.c.h.b16 %v545
      %v1468 = vunpack.c.l.b16 %v546
      %v1469 = vunpack.c.l.b16 %v547
      %v1470 = vunpack.c.h.b16 %v547
      %v1471 = vunpack.c.l.b16 %v548
      %v1472 = vunpack.c.l.b16 %v549
      %v1473 = vunpack.c.h.b16 %v549
      %v1474 = vunpack.c.l.b16 %v550
      %v1475 = vunpack.c.l.b16 %v551
      %v1476 = vunpack.c.h.b16 %v551
      %v1477 = vunpack.c.l.b16 %v552
      %v1478 = vunpack.c.l.b16 %v553
      %v1479 = vunpack.c.h.b16 %v553
      %v1480 = vunpack.c.l.b16 %v554
      %v1481 = vunpack.c.l.b16 %v555
      %v1482 = vunpack.c.h.b16 %v555
      %v1483 = vunpack.c.l.b16 %v556
      %v1484 = vunpack.c.l.b16 %v557
      %v1485 = vunpack.c.h.b16 %v557
      %v1486 = vunpack.c.l.b16 %v558
      %v1487 = vunpack.c.l.b16 %v559
      %v1488 = vunpack.c.h.b16 %v559
      %v1489 = vunpack.c.l.b16 %v560
      %v1490 = vunpack.c.l.b16 %v561
      %v1491 = vunpack.c.h.b16 %v561
      %v1492 = vunpack.c.l.b16 %v562
      %v1493 = vunpack.c.l.b16 %v563
      %v1494 = vunpack.c.h.b16 %v563
      %v1495 = vunpack.c.l.b16 %v564
      %v1496 = vunpack.c.l.b16 %v565
      %v1497 = vunpack.c.h.b16 %v565
      %v1498 = vunpack.c.l.b16 %v566
      %v1499 = vunpack.c.l.b16 %v567
      %v1500 = vunpack.c.h.b16 %v567
      %v1501 = vunpack.c.l.b16 %v568
      %v1502 = vunpack.c.l.b16 %v569
      %v1503 = vunpack.c.h.b16 %v569
      %v1504 = vunpack.c.l.b16 %v570
      %v1505 = vunpack.c.l.b16 %v571
      %v1506 = vunpack.c.h.b16 %v571
      %v1507 = vunpack.c.l.b16 %v572
      %v1508 = vunpack.c.l.b16 %v573
      %v1509 = vunpack.c.h.b16 %v573
      %v1510 = vunpack.c.l.b16 %v574
      %v1511 = vunpack.c.l.b16 %v575
      %v1512 = vunpack.c.h.b16 %v575
      %v1513 = vunpack.c.l.b16 %v576
      %v1514 = vunpack.c.l.b16 %v577
      %v1515 = vunpack.c.h.b16 %v577
      %v1516 = vunpack.c.l.b16 %v578
      %v1517 = vunpack.c.l.b16 %v579
      %v1518 = vunpack.c.h.b16 %v579
      %v1519 = vunpack.c.l.b16 %v580
      %v1520 = vunpack.c.l.b16 %v581
      %v1521 = vunpack.c.h.b16 %v581
      %v1522 = vunpack.c.l.b16 %v582
      %v1523 = vunpack.c.l.b16 %v583
      %v1524 = vunpack.c.h.b16 %v583
      %v1525 = vunpack.c.l.b16 %v584
      %v1526 = vunpack.c.l.b16 %v585
      %v1527 = vunpack.c.h.b16 %v585
      %v1528 = vunpack.c.l.b16 %v586
      %v1529 = vunpack.c.l.b16 %v587
      %v1530 = vunpack.c.h.b16 %v587
      %v1531 = vunpack.c.l.b16 %v588
      %v1532 = vunpack.c.l.b16 %v589
      %v1533 = vunpack.c.h.b16 %v589
      %v1534 = vunpack.c.l.b16 %v590
      %v1535 = vunpack.c.l.b16 %v591
      %v1536 = vunpack.c.h.b16 %v591
      %v1537 = vunpack.c.l.b16 %v592
      %v1538 = vunpack.c.l.b16 %v593
      %v1539 = vunpack.c.h.b16 %v593
      %v1540 = vunpack.c.l.b16 %v594
      %v1541 = vunpack.c.l.b16 %v595
      %v1542 = vunpack.c.h.b16 %v595
      %v1543 = vunpack.c.l.b16 %v596
      %v1544 = vunpack.c.l.b16 %v597
      %v1545 = vunpack.c.h.b16 %v597
      %v1546 = vunpack.c.l.b16 %v598
      %v1547 = vunpack.c.l.b16 %v599
      %v1548 = vunpack.c.h.b16 %v599
      %v1549 = vunpack.c.l.b16 %v600
      %v1550 = vunpack.c.l.b16 %v601
      %v1551 = vunpack.c.h.b16 %v601
      %v1552 = vunpack.c.l.b16 %v602
      %v1553 = vunpack.c.l.b16 %v603
      %v1554 = vunpack.c.h.b16 %v603
      %v1555 = vunpack.c.l.b16 %v604
      %v1556 = vunpack.c.l.b16 %v605
      %v1557 = vunpack.c.h.b16 %v605
      %v1558 = vunpack.c.l.b16 %v606
      %v1559 = vunpack.c.l.b16 %v607
      %v1560 = vunpack.c.h.b16 %v607
      %v1561 = vunpack.c.l.b16 %v608
      %v1562 = vunpack.c.l.b16 %v609
      %v1563 = vunpack.c.h.b16 %v609
      %v1564 = vunpack.c.l.b16 %v610
      %v1565 = vunpack.c.l.b16 %v611
      %v1566 = vunpack.c.h.b16 %v611
      %v1567 = vunpack.c.l.b16 %v612
      %v1568 = vunpack.c.l.b16 %v613
      %v1569 = vunpack.c.h.b16 %v613
      %v1570 = vunpack.c.l.b16 %v614
      %v1571 = vunpack.c.l.b16 %v615
      %v1572 = vunpack.c.h.b16 %v615
      %v1573 = vunpack.c.l.b16 %v616
      %v1574 = vunpack.c.l.b16 %v617
      %v1575 = vunpack.c.h.b16 %v617
      %v1576 = vunpack.c.l.b16 %v618
      %v1577 = vunpack.c.l.b16 %v619
      %v1578 = vunpack.c.h.b16 %v619
      %v1579 = vunpack.c.l.b16 %v620
      %v1580 = vunpack.c.l.b16 %v621
      %v1581 = vunpack.c.h.b16 %v621
      %v1582 = vunpack.c.l.b16 %v622
      %v1583 = vunpack.c.l.b16 %v623
      %v1584 = vunpack.c.h.b16 %v623
      %v1585 = vunpack.c.l.b16 %v624
      %v1586 = vunpack.c.l.b16 %v625
      %v1587 = vunpack.c.h.b16 %v625
      %v1588 = vunpack.c.l.b16 %v626
      %v1589 = vunpack.c.l.b16 %v627
      %v1590 = vunpack.c.h.b16 %v627
      %v1591 = vunpack.c.l.b16 %v628
      %v1592 = vunpack.c.l.b16 %v629
      %v1593 = vunpack.c.h.b16 %v629
      %v1594 = vunpack.c.l.b16 %v630
      %v1595 = vunpack.c.l.b16 %v631
      %v1596 = vunpack.c.h.b16 %v631
      %v1597 = vunpack.c.l.b16 %v632
      %v1598 = vunpack.c.l.b16 %v633
      %v1599 = vunpack.c.h.b16 %v633
      %v1600 = vunpack.c.l.b16 %v634
      %v1601 = vunpack.c.l.b16 %v635
      %v1602 = vunpack.c.h.b16 %v635
      %v1603 = vunpack.c.l.b16 %v636
      %v1604 = vunpack.c.l.b16 %v637
      %v1605 = vunpack.c.h.b16 %v637
      %v1606 = vunpack.c.l.b16 %v638
      %v1607 = vunpack.c.l.b16 %v639
      %v1608 = vunpack.c.h.b16 %v639
      %v1609 = vunpack.c.l.b16 %v640
      %v1610 = vunpack.c.l.b16 %v641
      %v1611 = vunpack.c.h.b16 %v641
      %v1612 = vunpack.c.l.b16 %v642
      %v1613 = vunpack.c.l.b16 %v643
      %v1614 = vunpack.c.h.b16 %v643
      %v1615 = vunpack.c.l.b16 %v644
      %v1616 = vunpack.c.l.b16 %v645
      %v1617 = vunpack.c.h.b16 %v645
      %v1618 = vunpack.c.l.b16 %v646
      %v1619 = vunpack.c.l.b16 %v647
      %v1620 = vunpack.c.h.b16 %v647
      %v1621 = vunpack.c.l.b16 %v648
      %v1622 = vunpack.c.l.b16 %v649
      %v1623 = vunpack.c.h.b16 %v649
      %v1624 = vunpack.c.l.b16 %v650
      %v1625 = vunpack.c.l.b16 %v651
      %v1626 = vunpack.c.h.b16 %v651
      %v1627 = vunpack.c.l.b16 %v652
      %v1628 = vunpack.c.l.b16 %v653
      %v1629 = vunpack.c.h.b16 %v653
      %v1630 = vunpack.c.l.b16 %v654
      %v1631 = vunpack.c.l.b16 %v655
      %v1632 = vunpack.c.h.b16 %v655
      %v1633 = vunpack.c.l.b16 %v656
      %v1634 = vunpack.c.l.b16 %v657
      %v1635 = vunpack.c.h.b16 %v657
      %v1636 = vunpack.c.l.b16 %v658
      %v1637 = vunpack.c.l.b16 %v659
      %v1638 = vunpack.c.h.b16 %v659
      %v1639 = vunpack.c.l.b16 %v660
      %v1640 = vunpack.c.l.b16 %v661
      %v1641 = vunpack.c.h.b16 %v661
      %v1642 = vunpack.c.l.b16 %v662
      %v1643 = vunpack.c.l.b16 %v663
      %v1644 = vunpack.c.h.b16 %v663
      %v1645 = vunpack.c.l.b16 %v664
      %v1646 = vunpack.c.l.b16 %v665
      %v1647 = vunpack.c.h.b16 %v665
      %v1648 = vunpack.c.l.b16 %v666
      %v1649 = vunpack.c.l.b16 %v667
      %v1650 = vunpack.c.h.b16 %v667
      %v1651 = vunpack.c.l.b16 %v668
      %v1652 = vunpack.c.l.b16 %v669
      %v1653 = vunpack.c.h.b16 %v669
      %v1654 = vunpack.c.l.b16 %v670
      %v1655 = vunpack.c.l.b16 %v671
      %v1656 = vunpack.c.h.b16 %v671
      %v1657 = vunpack.c.l.b16 %v672
      %v1658 = vunpack.c.l.b16 %v673
      %v1659 = vunpack.c.h.b16 %v673
      %v1660 = vunpack.c.l.b16 %v674
      %v1661 = vunpack.c.l.b16 %v675
      %v1662 = vunpack.c.h.b16 %v675
      %v1663 = vunpack.c.l.b16 %v676
      %v1664 = vunpack.c.l.b16 %v677
      %v1665 = vunpack.c.h.b16 %v677
      %v1666 = vunpack.c.l.b16 %v678
      %v1667 = vunpack.c.l.b16 %v679
      %v1668 = vunpack.c.h.b16 %v679
      %v1669 = vunpack.c.l.b16 %v680
      %v1670 = vunpack.c.l.b16 %v681
      %v1671 = vunpack.c.h.b16 %v681
      %v1672 = vunpack.c.l.b16 %v682
      %v1673 = vunpack.c.l.b16 %v683
      %v1674 = vunpack.c.h.b16 %v683
      %v1675 = vunpack.c.l.b16 %v684
      %v1676 = vunpack.c.l.b16 %v685
      %v1677 = vunpack.c.h.b16 %v685
      %v1678 = vunpack.c.l.b16 %v686
      %v1679 = vunpack.c.l.b16 %v687
      %v1680 = vunpack.c.h.b16 %v687
      %v1681 = vunpack.c.l.b16 %v688
      %v1682 = vunpack.c.l.b16 %v689
      %v1683 = vunpack.c.h.b16 %v689
      %v1684 = vunpack.c.l.b16 %v690
      %v1685 = vunpack.c.l.b16 %v691
      %v1686 = vunpack.c.h.b16 %v691
      %v1687 = vunpack.c.l.b16 %v692
      %v1688 = vunpack.c.l.b16 %v693
      %v1689 = vunpack.c.h.b16 %v693
      %v1690 = vunpack.c.l.b16 %v694
      %v1691 = vunpack.c.l.b16 %v695
      %v1692 = vunpack.c.h.b16 %v695
      %v1693 = vunpack.c.l.b16 %v696
      %v1694 = vunpack.c.l.b16 %v697
      %v1695 = vunpack.c.h.b16 %v697
      %v1696 = vunpack.c.l.b16 %v698
      %v1697 = vunpack.c.l.b16 %v699
      %v1698 = vunpack.c.h.b16 %v699
      %v1699 = vunpack.c.l.b16 %v700
      %v1700 = vunpack.c.l.b16 %v701
      %v1701 = vunpack.c.h.b16 %v701
      %v1702 = vunpack.c.l.b16 %v702
      %v1703 = vunpack.c.l.b16 %v703
      %v1704 = vunpack.c.h.b16 %v703
      %v1705 = vunpack.c.l.b16 %v704
      %v1706 = vunpack.c.l.b16 %v705
      %v1707 = vunpack.c.h.b16 %v705
      %v1708 = vunpack.c.l.b16 %v706
      %v1709 = vunpack.c.l.b16 %v707
      %v1710 = vunpack.c.h.b16 %v707
      %v1711 = vunpack.c.l.b16 %v708
      %v1712 = vunpack.c.l.b16 %v709
      %v1713 = vunpack.c.h.b16 %v709
      %v1714 = vunpack.c.l.b16 %v710
      %v1715 = vunpack.c.l.b16 %v711
      %v1716 = vunpack.c.h.b16 %v711
      %v1717 = vunpack.c.l.b16 %v712
      %v1718 = vunpack.c.l.b16 %v713
      %v1719 = vunpack.c.h.b16 %v713
      %v1720 = vunpack.c.l.b16 %v714
      %v1721 = vunpack.c.l.b16 %v715
      %v1722 = vunpack.c.h.b16 %v715
      %v1723 = vunpack.c.l.b16 %v716
      %v1724 = vunpack.c.l.b16 %v717
      %v1725 = vunpack.c.h.b16 %v717
      %v1726 = vunpack.c.l.b16 %v718
      %v1727 = vunpack.c.l.b16 %v719
      %v1728 = vunpack.c.h.b16 %v719
      %v1729 = vunpack.c.l.b16 %v720
      %v1730 = vunpack.c.l.b16 %v721
      %v1731 = vunpack.c.h.b16 %v721
      %v1732 = vunpack.c.l.b16 %v722
      %v1733 = vunpack.c.l.b16 %v723
      %v1734 = vunpack.c.h.b16 %v723
      %v1735 = vunpack.c.l.b16 %v724
      %v1736 = vunpack.c.l.b16 %v725
      %v1737 = vunpack.c.h.b16 %v725
      %v1738 = vunpack.c.l.b16 %v726
      %v1739 = vunpack.c.l.b16 %v727
      %v1740 = vunpack.c.h.b16 %v727
      %v1741 = vunpack.c.l.b16 %v728
      %v1742 = vunpack.c.l.b16 %v729
      %v1743 = vunpack.c.h.b16 %v729
      %v1744 = vunpack.c.l.b16 %v730
      %v1745 = vunpack.c.l.b16 %v731
      %v1746 = vunpack.c.h.b16 %v731
      %v1747 = vunpack.c.l.b16 %v732
      %v1748 = vunpack.c.l.b16 %v733
      %v1749 = vunpack.c.h.b16 %v733
      %v1750 = vunpack.c.l.b16 %v734
      %v1751 = vunpack.c.l.b16 %v735
      %v1752 = vunpack.c.h.b16 %v735
      %v1753 = vunpack.c.l.b16 %v736
      %v1754 = vunpack.c.l.b16 %v737
      %v1755 = vunpack.c.h.b16 %v737
      %v1756 = vunpack.c.l.b16 %v738
      %v1757 = vunpack.c.l.b16 %v739
      %v1758 = vunpack.c.h.b16 %v739
      %v1759 = vunpack.c.l.b16 %v740
      %v1760 = vunpack.c.l.b16 %v741
      %v1761 = vunpack.c.h.b16 %v741
      %v1762 = vunpack.c.l.b16 %v742
      %v1763 = vunpack.c.l.b16 %v743
      %v1764 = vunpack.c.h.b16 %v743
      %v1765 = vunpack.c.l.b16 %v744
      %v1766 = vunpack.c.l.b16 %v745
      %v1767 = vunpack.c.h.b16 %v745
      %v1768 = vunpack.c.l.b16 %v746
      %v1769 = vunpack.c.l.b16 %v747
      %v1770 = vunpack.c.h.b16 %v747
      %v1771 = vunpack.c.l.b16 %v748
      %v1772 = vunpack.c.l.b16 %v749
      %v1773 = vunpack.c.h.b16 %v749
      %v1774 = vunpack.c.l.b16 %v750
      %v1775 = vunpack.c.l.b16 %v751
      %v1776 = vunpack.c.h.b16 %v751
      %v1777 = vunpack.c.l.b16 %v752
      %v1778 = vunpack.c.l.b16 %v753
      %v1779 = vunpack.c.h.b16 %v753
      %v1780 = vunpack.c.l.b16 %v754
      %v1781 = vunpack.c.l.b16 %v755
      %v1782 = vunpack.c.h.b16 %v755
      %v1783 = vunpack.c.l.b16 %v756
      %v1784 = vunpack.c.l.b16 %v757
      %v1785 = vunpack.c.h.b16 %v757
      %v1786 = vunpack.c.l.b16 %v758
      %v1787 = vunpack.c.l.b16 %v759
      %v1788 = vunpack.c.h.b16 %v759
      %v1789 = vunpack.c.l.b16 %v760
      %v1790 = vunpack.c.l.b16 %v761
      %v1791 = vunpack.c.h.b16 %v761
      %v1792 = vunpack.c.l.b16 %v762
      %v1793 = vunpack.c.l.b16 %v763
      %v1794 = vunpack.c.h.b16 %v763
      %v1795 = vunpack.c.l.b16 %v764
      %v1796 = vunpack.c.l.b16 %v765
      %v1797 = vunpack.c.h.b16 %v765
      %v1798 = vunpack.c.l.b16 %v766
      %v1799 = vunpack.c.l.b16 %v767
      %v1800 = vunpack.c.h.b16 %v767
      %v1801 = vunpack.c.l.b16 %v768
      %v1802 = vunpack.c.l.b16 %v769
      %v1803 = vunpack.c.h.b16 %v769
      %v1804 = vunpack.c.l.b16 %v770
      %v1805 = vunpack.c.l.b16 %v771
      %v1806 = vunpack.c.h.b16 %v771
      %v1807 = vunpack.c.l.b16 %v772
      %v1808 = vunpack.c.l.b16 %v773
      %v1809 = vunpack.c.h.b16 %v773
      %v1810 = vunpack.c.l.b16 %v774
      %v1811 = vunpack.c.l.b16 %v775
      %v1812 = vunpack.c.h.b16 %v775
      %v1813 = vunpack.c.l.b16 %v776
      %v1814 = vunpack.c.l.b16 %v777
      %v1815 = vunpack.c.h.b16 %v777
      %v1816 = vunpack.c.l.b16 %v778
      %v1817 = vunpack.c.l.b16 %v779
      %v1818 = vunpack.c.h.b16 %v779
      %v1819 = vunpack.c.l.b16 %v780
      %v1820 = vunpack.c.l.b16 %v781
      %v1821 = vunpack.c.h.b16 %v781
      %v1822 = vunpack.c.l.b16 %v782
      %v1823 = vunpack.c.l.b16 %v783
      %v1824 = vunpack.c.h.b16 %v783
      %v1825 = vunpack.c.l.b16 %v784
      %v1826 = vunpack.c.l.b16 %v785
      %v1827 = vunpack.c.h.b16 %v785
      %v1828 = vunpack.c.l.b16 %v786
      %v1829 = vunpack.c.l.b16 %v787
      %v1830 = vunpack.c.h.b16 %v787
      %v1831 = vunpack.c.l.b16 %v788
      %v1832 = vunpack.c.l.b16 %v789
      %v1833 = vunpack.c.h.b16 %v789
      %v1834 = vunpack.c.l.b16 %v790
      %v1835 = vunpack.c.l.b16 %v791
      %v1836 = vunpack.c.h.b16 %v791
      %v1837 = vunpack.c.l.b16 %v792
      %v1838 = vunpack.c.l.b16 %v793
      %v1839 = vunpack.c.h.b16 %v793
      %v1840 = vunpack.c.l.b16 %v794
      %v1841 = vunpack.c.l.b16 %v795
      %v1842 = vunpack.c.h.b16 %v795
      %v1843 = vunpack.c.l.b16 %v796
      %v1844 = vunpack.c.l.b16 %v797
      %v1845 = vunpack.c.h.b16 %v797
      %v1846 = vunpack.c.l.b16 %v798
      %v1847 = vunpack.c.l.b16 %v799
      %v1848 = vunpack.c.h.b16 %v799
      %v1849 = vunpack.c.l.b16 %v800
      %v1850 = vunpack.c.l.b16 %v801
      %v1851 = vunpack.c.h.b16 %v801
      %v1852 = vunpack.c.l.b16 %v802
      %v1853 = vunpack.c.l.b16 %v803
      %v1854 = vunpack.c.h.b16 %v803
      %v1855 = vunpack.c.l.b16 %v804
      %v1856 = vunpack.c.l.b16 %v805
      %v1857 = vunpack.c.h.b16 %v805
      %v1858 = vunpack.c.l.b16 %v806
      %v1859 = vunpack.c.l.b16 %v807
      %v1860 = vunpack.c.h.b16 %v807
      %v1861 = vunpack.c.l.b16 %v808
      %v1862 = vunpack.c.l.b16 %v809
      %v1863 = vunpack.c.h.b16 %v809
      %v1864 = vunpack.c.l.b16 %v810
      %v1865 = vunpack.c.l.b16 %v811
      %v1866 = vunpack.c.h.b16 %v811
      %v1867 = vunpack.c.l.b16 %v812
      %v1868 = vunpack.c.l.b16 %v813
      %v1869 = vunpack.c.h.b16 %v813
      %v1870 = vunpack.c.l.b16 %v814
      %v1871 = vunpack.c.l.b16 %v815
      %v1872 = vunpack.c.h.b16 %v815
      %v1873 = vunpack.c.l.b16 %v816
      %v1874 = vunpack.c.l.b16 %v817
      %v1875 = vunpack.c.h.b16 %v817
      %v1876 = vunpack.c.l.b16 %v818
      %v1877 = vunpack.c.l.b16 %v819
      %v1878 = vunpack.c.h.b16 %v819
      %v1879 = vunpack.c.l.b16 %v820
      %v1880 = vunpack.c.l.b16 %v821
      %v1881 = vunpack.c.h.b16 %v821
      %v1882 = vunpack.c.l.b16 %v822
      %v1883 = vunpack.c.l.b16 %v823
      %v1884 = vunpack.c.h.b16 %v823
      %v1885 = vunpack.c.l.b16 %v824
      %v1886 = vunpack.c.l.b16 %v825
      %v1887 = vunpack.c.h.b16 %v825
      %v1888 = vunpack.c.l.b16 %v826
      %v1889 = vunpack.c.l.b16 %v827
      %v1890 = vunpack.c.h.b16 %v827
      %v1891 = vunpack.c.l.b16 %v828
      %v1892 = vunpack.c.l.b16 %v829
      %v1893 = vunpack.c.h.b16 %v829
      %v1894 = vunpack.c.l.b16 %v830
      %v1895 = vunpack.c.l.b16 %v831
      %v1896 = vunpack.c.h.b16 %v831
      %v1897 = vunpack.c.l.b16 %v832
      %v1898 = vunpack.c.l.b16 %v833
      %v1899 = vunpack.c.h.b16 %v833
      %v1900 = vunpack.c.l.b16 %v834
      %v1901 = vunpack.c.l.b16 %v835
      %v1902 = vunpack.c.h.b16 %v835
      %v1903 = vunpack.c.l.b16 %v836
      %v1904 = vunpack.c.l.b16 %v837
      %v1905 = vunpack.c.h.b16 %v837
      %v1906 = vunpack.c.l.b16 %v838
      %v1907 = vunpack.c.l.b16 %v839
      %v1908 = vunpack.c.h.b16 %v839
      %v1909 = vunpack.c.l.b16 %v840
      %v1910 = vunpack.c.l.b16 %v841
      %v1911 = vunpack.c.h.b16 %v841
      %v1912 = vunpack.c.l.b16 %v842
      %v1913 = vunpack.c.l.b16 %v843
      %v1914 = vunpack.c.h.b16 %v843
      %v1915 = vunpack.c.l.b16 %v844
      %v1916 = vunpack.c.l.b16 %v845
      %v1917 = vunpack.c.h.b16 %v845
      %v1918 = vunpack.c.l.b16 %v846
      %v1919 = vunpack.c.l.b16 %v847
      %v1920 = vunpack.c.h.b16 %v847
      %v1921 = vunpack.c.l.b16 %v848
      %v1922 = vunpack.c.l.b16 %v849
      %v1923 = vunpack.c.h.b16 %v849
      %v1924 = vunpack.c.l.b16 %v850
      %v1925 = vunpack.c.l.b16 %v851
      %v1926 = vunpack.c.h.b16 %v851
      %v1927 = vunpack.c.l.b16 %v852
      %v1928 = vunpack.c.l.b16 %v853
      %v1929 = vunpack.c.h.b16 %v853
      %v1930 = vunpack.c.l.b16 %v854
      %v1931 = vunpack.c.l.b16 %v855
      %v1932 = vunpack.c.h.b16 %v855
      %v1933 = vunpack.c.l.b16 %v856
      %v1934 = vunpack.c.l.b16 %v857
      %v1935 = vunpack.c.h.b16 %v857
      %v1936 = vunpack.c.l.b16 %v858
      %v1937 = vunpack.c.l.b16 %v859
      %v1938 = vunpack.c.h.b16 %v859
      %v1939 = vunpack.c.l.b16 %v860
      %v1940 = vunpack.c.l.b16 %v861
      %v1941 = vunpack.c.h.b16 %v861
      %v1942 = vunpack.c.l.b16 %v862
      %v1943 = vunpack.c.l.b16 %v863
      %v1944 = vunpack.c.h.b16 %v863
      %v1945 = vunpack.c.l.b16 %v864
      %v1946 = vunpack.c.l.b16 %v865
      %v1947 = vunpack.c.h.b16 %v865
      %v1948 = vunpack.c.l.b16 %v866
      %v1949 = vunpack.c.l.b16 %v867
      %v1950 = vunpack.c.h.b16 %v867
      %v1951 = vunpack.c.l.b16 %v868
      %v1952 = vunpack.c.l.b16 %v869
      %v1953 = vunpack.c.h.b16 %v869
      %v1954 = vunpack.c.l.b16 %v870
      %v1955 = vunpack.c.l.b16 %v871
      %v1956 = vunpack.c.h.b16 %v871
      %v1957 = vunpack.c.l.b16 %v872
      %v1958 = vunpack.c.l.b16 %v873
      %v1959 = vunpack.c.h.b16 %v873
      %v1960 = vunpack.c.l.b16 %v874
      %v1961 = vunpack.c.l.b16 %v875
      %v1962 = vunpack.c.h.b16 %v875
      %v1963 = vunpack.c.l.b16 %v876
      %v1964 = vunpack.c.l.b16 %v877
      %v1965 = vunpack.c.h.b16 %v877
      %v1966 = vunpack.c.l.b16 %v878
      %v1967 = vunpack.c.l.b16 %v879
      %v1968 = vunpack.c.h.b16 %v879
      %v1969 = vunpack.c.l.b16 %v880
      %v1970 = vunpack.c.l.b16 %v881
      %v1971 = vunpack.c.h.b16 %v881
      %v1972 = vunpack.c.l.b16 %v882
      %v1973 = vunpack.c.l.b16 %v883
      %v1974 = vunpack.c.h.b16 %v883
      %v1975 = vunpack.c.l.b16 %v884
      %v1976 = vunpack.c.l.b16 %v885
      %v1977 = vunpack.c.h.b16 %v885
      %v1978 = vunpack.c.l.b16 %v886
      %v1979 = vunpack.c.l.b16 %v887
      %v1980 = vunpack.c.h.b16 %v887
      %v1981 = vunpack.c.l.b16 %v888
      %v1982 = vunpack.c.l.b16 %v889
      %v1983 = vunpack.c.h.b16 %v889
      %v1984 = vunpack.c.l.b16 %v890
      %v1985 = vunpack.c.l.b16 %v891
      %v1986 = vunpack.c.h.b16 %v891
      %v1987 = vunpack.c.l.b16 %v892
      %v1988 = vunpack.c.l.b16 %v893
      %v1989 = vunpack.c.h.b16 %v893
      %v1990 = vunpack.c.l.b16 %v894
      %v1991 = vunpack.c.l.b16 %v895
      %v1992 = vunpack.c.h.b16 %v895
      %v1993 = vunpack.c.l.b16 %v896
      %v1994 = vunpack.c.l.b16 %v897
      %v1995 = vunpack.c.h.b16 %v897
      %v1996 = vunpack.c.l.b16 %v898
      %v1997 = vunpack.c.l.b16 %v899
      %v1998 = vunpack.c.h.b16 %v899
      %v1999 = vunpack.c.l.b16 %v900
      %v2000 = vunpack.c.l.b16 %v901
      %v2001 = vunpack.c.h.b16 %v901
      %v2002 = vunpack.c.l.b16 %v902
      %v2003 = vunpack.c.l.b16 %v903
      %v2004 = vunpack.c.h.b16 %v903
      %v2005 = vunpack.c.l.b16 %v904
      %v2006 = vunpack.c.l.b16 %v905
      %v2007 = vunpack.c.h.b16 %v905
      %v2008 = vunpack.c.l.b16 %v906
      %v2009 = vunpack.c.l.b16 %v907
      %v2010 = vunpack.c.h.b16 %v907
      %v2011 = vunpack.c.l.b16 %v908
      %v2012 = vunpack.c.l.b16 %v909
      %v2013 = vunpack.c.h.b16 %v909
      %v2014 = vunpack.c.l.b16 %v910
      %v2015 = vunpack.c.l.b16 %v911
      %v2016 = vunpack.c.h.b16 %v911
      %v2017 = vunpack.c.l.b16 %v912
      %v2018 = vunpack.c.l.b16 %v913
      %v2019 = vunpack.c.h.b16 %v913
      %v2020 = vunpack.c.l.b16 %v914
      %v2021 = vunpack.c.l.b16 %v915
      %v2022 = vunpack.c.h.b16 %v915
      %v2023 = vunpack.c.l.b16 %v916
      %v2024 = vunpack.c.l.b16 %v917
      %v2025 = vunpack.c.h.b16 %v917
      %v2026 = vunpack.c.l.b16 %v918
      %v2027 = vunpack.c.l.b16 %v919
      %v2028 = vunpack.c.h.b16 %v919
      %v2029 = vunpack.c.l.b16 %v920
      %v2030 = vunpack.c.l.b16 %v921
      %v2031 = vunpack.c.h.b16 %v921
      %v2032 = vunpack.c.l.b16 %v922
      %v2033 = vunpack.c.l.b16 %v923
      %v2034 = vunpack.c.h.b16 %v923
      %v2035 = vunpack.c.l.b16 %v924
      %v2036 = vunpack.c.l.b16 %v925
      %v2037 = vunpack.c.h.b16 %v925
      %v2038 = vunpack.c.l.b16 %v926
      %v2039 = vunpack.c.l.b16 %v927
      %v2040 = vunpack.c.h.b16 %v927
      %v2041 = vunpack.c.l.b16 %v928
      %v2042 = vunpack.c.l.b16 %v929
      %v2043 = vunpack.c.h.b16 %v929
      %v2044 = vunpack.c.l.b16 %v930
      %v2045 = vunpack.c.l.b16 %v931
      %v2046 = vunpack.c.h.b16 %v931
      %v2047 = vunpack.c.l.b16 %v932
      %v2048 = vunpack.c.l.b16 %v933
      %v2049 = vunpack.c.h.b16 %v933
      %v2050 = vunpack.c.l.b16 %v934
      %v2051 = vunpack.c.l.b16 %v935
      %v2052 = vunpack.c.h.b16 %v935
      %v2053 = vunpack.c.l.b16 %v936
      %v2054 = vunpack.c.l.b16 %v937
      %v2055 = vunpack.c.h.b16 %v937
      %v2056 = vunpack.c.l.b16 %v938
      %v2057 = vunpack.c.l.b16 %v939
      %v2058 = vunpack.c.h.b16 %v939
      %v2059 = vunpack.c.l.b16 %v940
      %v2060 = vunpack.c.l.b16 %v941
      %v2061 = vunpack.c.h.b16 %v941
      %v2062 = vunpack.c.l.b16 %v942
      %v2063 = vunpack.c.l.b16 %v943
      %v2064 = vunpack.c.h.b16 %v943
      %v2065 = vunpack.c.l.b16 %v944
      %v2066 = vunpack.c.l.b16 %v945
      %v2067 = vunpack.c.h.b16 %v945
      %v2068 = vunpack.c.l.b16 %v946
      %v2069 = vunpack.c.l.b16 %v947
      %v2070 = vunpack.c.h.b16 %v947
      %v2071 = vunpack.c.l.b16 %v948
      %v2072 = vpack.c.b16 %v1451, %v1448
      %v2073 = vpack.c.b16 %v1452, %v1449
      %v2074 = vpack.c.b16 %v1453, %v1450
      %v2075 = vpack.c.b16 %v1457, %v1454
      %v2076 = vpack.c.b16 %v1458, %v1455
      %v2077 = vpack.c.b16 %v1459, %v1456
      %v2078 = vpack.c.b16 %v1463, %v1460
      %v2079 = vpack.c.b16 %v1464, %v1461
      %v2080 = vpack.c.b16 %v1465, %v1462
      %v2081 = vpack.c.b16 %v1469, %v1466
      %v2082 = vpack.c.b16 %v1470, %v1467
      %v2083 = vpack.c.b16 %v1471, %v1468
      %v2084 = vpack.c.b16 %v1475, %v1472
      %v2085 = vpack.c.b16 %v1476, %v1473
      %v2086 = vpack.c.b16 %v1477, %v1474
      %v2087 = vpack.c.b16 %v1481, %v1478
      %v2088 = vpack.c.b16 %v1482, %v1479
      %v2089 = vpack.c.b16 %v1483, %v1480
      %v2090 = vpack.c.b16 %v1487, %v1484
      %v2091 = vpack.c.b16 %v1488, %v1485
      %v2092 = vpack.c.b16 %v1489, %v1486
      %v2093 = vpack.c.b16 %v1493, %v1490
      %v2094 = vpack.c.b16 %v1494, %v1491
      %v2095 = vpack.c.b16 %v1495, %v1492
      %v2096 = vpack.c.b16 %v1499, %v1496
      %v2097 = vpack.c.b16 %v1500, %v1497
      %v2098 = vpack.c.b16 %v1501, %v1498
      %v2099 = vpack.c.b16 %v1505, %v1502
      %v2100 = vpack.c.b16 %v1506, %v1503
      %v2101 = vpack.c.b16 %v1507, %v1504
      %v2102 = vpack.c.b16 %v1511, %v1508
      %v2103 = vpack.c.b16 %v1512, %v1509
      %v2104 = vpack.c.b16 %v1513, %v1510
      %v2105 = vpack.c.b16 %v1517, %v1514
      %v2106 = vpack.c.b16 %v1518, %v1515
      %v2107 = vpack.c.b16 %v1519, %v1516
      %v2108 = vpack.c.b16 %v1523, %v1520
      %v2109 = vpack.c.b16 %v1524, %v1521
      %v2110 = vpack.c.b16 %v1525, %v1522
      %v2111 = vpack.c.b16 %v1529, %v1526
      %v2112 = vpack.c.b16 %v1530, %v1527
      %v2113 = vpack.c.b16 %v1531, %v1528
      %v2114 = vpack.c.b16 %v1535, %v1532
      %v2115 = vpack.c.b16 %v1536, %v1533
      %v2116 = vpack.c.b16 %v1537, %v1534
      %v2117 = vpack.c.b16 %v1541, %v1538
      %v2118 = vpack.c.b16 %v1542, %v1539
      %v2119 = vpack.c.b16 %v1543, %v1540
      %v2120 = vpack.c.b16 %v1547, %v1544
      %v2121 = vpack.c.b16 %v1548, %v1545
      %v2122 = vpack.c.b16 %v1549, %v1546
      %v2123 = vpack.c.b16 %v1553, %v1550
      %v2124 = vpack.c.b16 %v1554, %v1551
      %v2125 = vpack.c.b16 %v1555, %v1552
      %v2126 = vpack.c.b16 %v1559, %v1556
      %v2127 = vpack.c.b16 %v1560, %v1557
      %v2128 = vpack.c.b16 %v1561, %v1558
      %v2129 = vpack.c.b16 %v1565, %v1562
      %v2130 = vpack.c.b16 %v1566, %v1563
      %v2131 = vpack.c.b16 %v1567, %v1564
      %v2132 = vpack.c.b16 %v1571, %v1568
      %v2133 = vpack.c.b16 %v1572, %v1569
      %v2134 = vpack.c.b16 %v1573, %v1570
      %v2135 = vpack.c.b16 %v1577, %v1574
      %v2136 = vpack.c.b16 %v1578, %v1575
      %v2137 = vpack.c.b16 %v1579, %v1576
      %v2138 = vpack.c.b16 %v1583, %v1580
      %v2139 = vpack.c.b16 %v1584, %v1581
      %v2140 = vpack.c.b16 %v1585, %v1582
      %v2141 = vpack.c.b16 %v1589, %v1586
      %v2142 = vpack.c.b16 %v1590, %v1587
      %v2143 = vpack.c.b16 %v1591, %v1588
      %v2144 = vpack.c.b16 %v1595, %v1592
      %v2145 = vpack.c.b16 %v1596, %v1593
      %v2146 = vpack.c.b16 %v1597, %v1594
      %v2147 = vpack.c.b16 %v1601, %v1598
      %v2148 = vpack.c.b16 %v1602, %v1599
      %v2149 = vpack.c.b16 %v1603, %v1600
      %v2150 = vpack.c.b16 %v1607, %v1604
      %v2151 = vpack.c.b16 %v1608, %v1605
      %v2152 = vpack.c.b16 %v1609, %v1606
      %v2153 = vpack.c.b16 %v1613, %v1610
      %v2154 = vpack.c.b16 %v1614, %v1611
      %v2155 = vpack.c.b16 %v1615, %v1612
      %v2156 = vpack.c.b16 %v1619, %v1616
      %v2157 = vpack.c.b16 %v1620, %v1617
      %v2158 = vpack.c.b16 %v1621, %v1618
      %v2159 = vpack.c.b16 %v1625, %v1622
      %v2160 = vpack.c.b16 %v1626, %v1623
      %v2161 = vpack.c.b16 %v1627, %v1624
      %v2162 = vpack.c.b16 %v1631, %v1628
      %v2163 = vpack.c.b16 %v1632, %v1629
      %v2164 = vpack.c.b16 %v1633, %v1630
      %v2165 = vpack.c.b16 %v1637, %v1634
      %v2166 = vpack.c.b16 %v1638, %v1635
      %v2167 = vpack.c.b16 %v1639, %v1636
      %v2168 = vpack.c.b16 %v1643, %v1640
      %v2169 = vpack.c.b16 %v1644, %v1641
      %v2170 = vpack.c.b16 %v1645, %v1642
      %v2171 = vpack.c.b16 %v1649, %v1646
      %v2172 = vpack.c.b16 %v1650, %v1647
      %v2173 = vpack.c.b16 %v1651, %v1648
      %v2174 = vpack.c.b16 %v1655, %v1652
      %v2175 = vpack.c.b16 %v1656, %v1653
      %v2176 = vpack.c.b16 %v1657, %v1654
      %v2177 = vpack.c.b16 %v1661, %v1658
      %v2178 = vpack.c.b16 %v1662, %v1659
      %v2179 = vpack.c.b16 %v1663, %v1660
      %v2180 = vpack.c.b16 %v1667, %v1664
      %v2181 = vpack.c.b16 %v1668, %v1665
      %v2182 = vpack.c.b16 %v1669, %v1666
      %v2183 = vpack.c.b16 %v1673, %v1670
      %v2184 = vpack.c.b16 %v1674, %v1671
      %v2185 = vpack.c.b16 %v1675, %v1672
      %v2186 = vpack.c.b16 %v1679, %v1676
      %v2187 = vpack.c.b16 %v1680, %v1677
      %v2188 = vpack.c.b16 %v1681, %v1678
      %v2189 = vpack.c.b16 %v1685, %v1682
      %v2190 = vpack.c.b16 %v1686, %v1683
      %v2191 = vpack.c.b16 %v1687, %v1684
      %v2192 = vpack.c.b16 %v1691, %v1688
      %v2193 = vpack.c.b16 %v1692, %v1689
      %v2194 = vpack.c.b16 %v1693, %v1690
      %v2195 = vpack.c.b16 %v1697, %v1694
      %v2196 = vpack.c.b16 %v1698, %v1695
      %v2197 = vpack.c.b16 %v1699, %v1696
      %v2198 = vpack.c.b16 %v1703, %v1700
      %v2199 = vpack.c.b16 %v1704, %v1701
      %v2200 = vpack.c.b16 %v1705, %v1702
      %v2201 = vpack.c.b16 %v1709, %v1706
      %v2202 = vpack.c.b16 %v1710, %v1707
      %v2203 = vpack.c.b16 %v1711, %v1708
      %v2204 = vpack.c.b16 %v1715, %v1712
      %v2205 = vpack.c.b16 %v1716, %v1713
      %v2206 = vpack.c.b16 %v1717, %v1714
      %v2207 = vpack.c.b16 %v1721, %v1718
      %v2208 = vpack.c.b16 %v1722, %v1719
      %v2209 = vpack.c.b16 %v1723, %v1720
      %v2210 = vpack.c.b16 %v1727, %v1724
      %v2211 = vpack.c.b16 %v1728, %v1725
      %v2212 = vpack.c.b16 %v1729, %v1726
      %v2213 = vpack.c.b16 %v1733, %v1730
      %v2214 = vpack.c.b16 %v1734, %v1731
      %v2215 = vpack.c.b16 %v1735, %v1732
      %v2216 = vpack.c.b16 %v1739, %v1736
      %v2217 = vpack.c.b16 %v1740, %v1737
      %v2218 = vpack.c.b16 %v1741, %v1738
      %v2219 = vpack.c.b16 %v1745, %v1742
      %v2220 = vpack.c.b16 %v1746, %v1743
      %v2221 = vpack.c.b16 %v1747, %v1744
      %v2222 = vpack.c.b16 %v1751, %v1748
      %v2223 = vpack.c.b16 %v1752, %v1749
      %v2224 = vpack.c.b16 %v1753, %v1750
      %v2225 = vpack.c.b16 %v1757, %v1754
      %v2226 = vpack.c.b16 %v1758, %v1755
      %v2227 = vpack.c.b16 %v1759, %v1756
      %v2228 = vpack.c.b16 %v1763, %v1760
      %v2229 = vpack.c.b16 %v1764, %v1761
      %v2230 = vpack.c.b16 %v1765, %v1762
      %v2231 = vpack.c.b16 %v1769, %v1766
      %v2232 = vpack.c.b16 %v1770, %v1767
      %v2233 = vpack.c.b16 %v1771, %v1768
      %v2234 = vpack.c.b16 %v1775, %v1772
      %v2235 = vpack.c.b16 %v1776, %v1773
      %v2236 = vpack.c.b16 %v1777, %v1774
      %v2237 = vpack.c.b16 %v1781, %v1778
      %v2238 = vpack.c.b16 %v1782, %v1779
      %v2239 = vpack.c.b16 %v1783, %v1780
      %v2240 = vpack.c.b16 %v1787, %v1784
      %v2241 = vpack.c.b16 %v1788, %v1785
      %v2242 = vpack.c.b16 %v1789, %v1786
      %v2243 = vpack.c.b16 %v1793, %v1790
      %v2244 = vpack.c.b16 %v1794, %v1791
      %v2245 = vpack.c.b16 %v1795, %v1792
      %v2246 = vpack.c.b16 %v1799, %v1796
      %v2247 = vpack.c.b16 %v1800, %v1797
      %v2248 = vpack.c.b16 %v1801, %v1798
      %v2249 = vpack.c.b16 %v1805, %v1802
      %v2250 = vpack.c.b16 %v1806, %v1803
      %v2251 = vpack.c.b16 %v1807, %v1804
      %v2252 = vpack.c.b16 %v1811, %v1808
      %v2253 = vpack.c.b16 %v1812, %v1809
      %v2254 = vpack.c.b16 %v1813, %v1810
      %v2255 = vpack.c.b16 %v1817, %v1814
      %v2256 = vpack.c.b16 %v1818, %v1815
      %v2257 = vpack.c.b16 %v1819, %v1816
      %v2258 = vpack.c.b16 %v1823, %v1820
      %v2259 = vpack.c.b16 %v1824, %v1821
      %v2260 = vpack.c.b16 %v1825, %v1822
      %v2261 = vpack.c.b16 %v1829, %v1826
      %v2262 = vpack.c.b16 %v1830, %v1827
      %v2263 = vpack.c.b16 %v1831, %v1828
      %v2264 = vpack.c.b16 %v1835, %v1832
      %v2265 = vpack.c.b16 %v1836, %v1833
      %v2266 = vpack.c.b16 %v1837, %v1834
      %v2267 = vpack.c.b16 %v1841, %v1838
      %v2268 = vpack.c.b16 %v1842, %v1839
      %v2269 = vpack.c.b16 %v1843, %v1840
      %v2270 = vpack.c.b16 %v1847, %v1844
      %v2271 = vpack.c.b16 %v1848, %v1845
      %v2272 = vpack.c.b16 %v1849, %v1846
      %v2273 = vpack.c.b16 %v1853, %v1850
      %v2274 = vpack.c.b16 %v1854, %v1851
      %v2275 = vpack.c.b16 %v1855, %v1852
      %v2276 = vpack.c.b16 %v1859, %v1856
      %v2277 = vpack.c.b16 %v1860, %v1857
      %v2278 = vpack.c.b16 %v1861, %v1858
      %v2279 = vpack.c.b16 %v1865, %v1862
      %v2280 = vpack.c.b16 %v1866, %v1863
      %v2281 = vpack.c.b16 %v1867, %v1864
      %v2282 = vpack.c.b16 %v1871, %v1868
      %v2283 = vpack.c.b16 %v1872, %v1869
      %v2284 = vpack.c.b16 %v1873, %v1870
      %v2285 = vpack.c.b16 %v1877, %v1874
      %v2286 = vpack.c.b16 %v1878, %v1875
      %v2287 = vpack.c.b16 %v1879, %v1876
      %v2288 = vpack.c.b16 %v1883, %v1880
      %v2289 = vpack.c.b16 %v1884, %v1881
      %v2290 = vpack.c.b16 %v1885, %v1882
      %v2291 = vpack.c.b16 %v1889, %v1886
      %v2292 = vpack.c.b16 %v1890, %v1887
      %v2293 = vpack.c.b16 %v1891, %v1888
      %v2294 = vpack.c.b16 %v1895, %v1892
      %v2295 = vpack.c.b16 %v1896, %v1893
      %v2296 = vpack.c.b16 %v1897, %v1894
      %v2297 = vpack.c.b16 %v1901, %v1898
      %v2298 = vpack.c.b16 %v1902, %v1899
      %v2299 = vpack.c.b16 %v1903, %v1900
      %v2300 = vpack.c.b16 %v1907, %v1904
      %v2301 = vpack.c.b16 %v1908, %v1905
      %v2302 = vpack.c.b16 %v1909, %v1906
      %v2303 = vpack.c.b16 %v1913, %v1910
      %v2304 = vpack.c.b16 %v1914, %v1911
      %v2305 = vpack.c.b16 %v1915, %v1912
      %v2306 = vpack.c.b16 %v1919, %v1916
      %v2307 = vpack.c.b16 %v1920, %v1917
      %v2308 = vpack.c.b16 %v1921, %v1918
      %v2309 = vpack.c.b16 %v1925, %v1922
      %v2310 = vpack.c.b16 %v1926, %v1923
      %v2311 = vpack.c.b16 %v1927, %v1924
      %v2312 = vpack.c.b16 %v1931, %v1928
      %v2313 = vpack.c.b16 %v1932, %v1929
      %v2314 = vpack.c.b16 %v1933, %v1930
      %v2315 = vpack.c.b16 %v1937, %v1934
      %v2316 = vpack.c.b16 %v1938, %v1935
      %v2317 = vpack.c.b16 %v1939, %v1936
      %v2318 = vpack.c.b16 %v1943, %v1940
      %v2319 = vpack.c.b16 %v1944, %v1941
      %v2320 = vpack.c.b16 %v1945, %v1942
      %v2321 = vpack.c.b16 %v1949, %v1946
      %v2322 = vpack.c.b16 %v1950, %v1947
      %v2323 = vpack.c.b16 %v1951, %v1948
      %v2324 = vpack.c.b16 %v1955, %v1952
      %v2325 = vpack.c.b16 %v1956, %v1953
      %v2326 = vpack.c.b16 %v1957, %v1954
      %v2327 = vpack.c.b16 %v1961, %v1958
      %v2328 = vpack.c.b16 %v1962, %v1959
      %v2329 = vpack.c.b16 %v1963, %v1960
      %v2330 = vpack.c.b16 %v1967, %v1964
      %v2331 = vpack.c.b16 %v1968, %v1965
      %v2332 = vpack.c.b16 %v1969, %v1966
      %v2333 = vpack.c.b16 %v1973, %v1970
      %v2334 = vpack.c.b16 %v1974, %v1971
      %v2335 = vpack.c.b16 %v1975, %v1972
      %v2336 = vpack.c.b16 %v1979, %v1976
      %v2337 = vpack.c.b16 %v1980, %v1977
      %v2338 = vpack.c.b16 %v1981, %v1978
      %v2339 = vpack.c.b16 %v1985, %v1982
      %v2340 = vpack.c.b16 %v1986, %v1983
      %v2341 = vpack.c.b16 %v1987, %v1984
      %v2342 = vpack.c.b16 %v1991, %v1988
      %v2343 = vpack.c.b16 %v1992, %v1989
      %v2344 = vpack.c.b16 %v1993, %v1990
      %v2345 = vpack.c.b16 %v1997, %v1994
      %v2346 = vpack.c.b16 %v1998, %v1995
      %v2347 = vpack.c.b16 %v1999, %v1996
      %v2348 = vpack.c.b16 %v2003, %v2000
      %v2349 = vpack.c.b16 %v2004, %v2001
      %v2350 = vpack.c.b16 %v2005, %v2002
      %v2351 = vpack.c.b16 %v2009, %v2006
      %v2352 = vpack.c.b16 %v2010, %v2007
      %v2353 = vpack.c.b16 %v2011, %v2008
      %v2354 = vpack.c.b16 %v2015, %v2012
      %v2355 = vpack.c.b16 %v2016, %v2013
      %v2356 = vpack.c.b16 %v2017, %v2014
      %v2357 = vpack.c.b16 %v2021, %v2018
      %v2358 = vpack.c.b16 %v2022, %v2019
      %v2359 = vpack.c.b16 %v2023, %v2020
      %v2360 = vpack.c.b16 %v2027, %v2024
      %v2361 = vpack.c.b16 %v2028, %v2025
      %v2362 = vpack.c.b16 %v2029, %v2026
      %v2363 = vpack.c.b16 %v2033, %v2030
      %v2364 = vpack.c.b16 %v2034, %v2031
      %v2365 = vpack.c.b16 %v2035, %v2032
      %v2366 = vpack.c.b16 %v2039, %v2036
      %v2367 = vpack.c.b16 %v2040, %v2037
      %v2368 = vpack.c.b16 %v2041, %v2038
      %v2369 = vpack.c.b16 %v2045, %v2042
      %v2370 = vpack.c.b16 %v2046, %v2043
      %v2371 = vpack.c.b16 %v2047, %v2044
      %v2372 = vpack.c.b16 %v2051, %v2048
      %v2373 = vpack.c.b16 %v2052, %v2049
      %v2374 = vpack.c.b16 %v2053, %v2050
      %v2375 = vpack.c.b16 %v2057, %v2054
      %v2376 = vpack.c.b16 %v2058, %v2055
      %v2377 = vpack.c.b16 %v2059, %v2056
      %v2378 = vpack.c.b16 %v2063, %v2060
      %v2379 = vpack.c.b16 %v2064, %v2061
      %v2380 = vpack.c.b16 %v2065, %v2062
      %v2381 = vpack.c.b16 %v2069, %v2066
      %v2382 = vpack.c.b16 %v2070, %v2067
      %v2383 = vpack.c.b16 %v2071, %v2068
      %2696 = vmatprep.subr.bf16.mxu0 %v2094
      %2697 = vmatpush1.bf16.msra.mxu0 %v2093
      %2698 = vmatprep.subr.bf16.mxu0 %v2091
      %2699 = vmatpush1.bf16.msra.mxu0 %v2090
      %2700 = vmatprep.subr.bf16.mxu0 %v2088
      %2701 = vmatpush1.bf16.msra.mxu0 %v2087
      %2702 = vmatprep.subr.bf16.mxu0 %v2085
      %2703 = vmatpush1.bf16.msra.mxu0 %v2084
      %2704 = vmatprep.subr.bf16.mxu0 %v2082
      %2705 = vmatpush1.bf16.msra.mxu0 %v2081
      %2706 = vmatprep.subr.bf16.mxu0 %v2079
      %2707 = vmatpush1.bf16.msra.mxu0 %v2078
      %2708 = vmatprep.subr.bf16.mxu0 %v2076
      %2709 = vmatpush1.bf16.msra.mxu0 %v2075
      %2710 = vmatprep.subr.bf16.mxu0 %v2073
      %2711 = vmatpush1.bf16.msra.mxu0 %v2072
      %2712 = vmatprep.subr.bf16.mxu0 %v2118
      %2713 = vmatpush2.bf16.msra.mxu0 %v2117
      %2714 = vmatprep.subr.bf16.mxu0 %v2115
      %2715 = vmatpush2.bf16.msra.mxu0 %v2114
      %2716 = vmatprep.subr.bf16.mxu0 %v2112
      %2717 = vmatpush2.bf16.msra.mxu0 %v2111
      %2718 = vmatprep.subr.bf16.mxu0 %v2109
      %2719 = vmatpush2.bf16.msra.mxu0 %v2108
      %2720 = vmatprep.subr.bf16.mxu0 %v2106
      %2721 = vmatpush2.bf16.msra.mxu0 %v2105
      %2722 = vmatprep.subr.bf16.mxu0 %v2103
      %2723 = vmatpush2.bf16.msra.mxu0 %v2102
      %2724 = vmatprep.subr.bf16.mxu0 %v2100
      %2725 = vmatpush2.bf16.msra.mxu0 %v2099
      %2726 = vmatprep.subr.bf16.mxu0 %v2097
      %2727 = vmatpush2.bf16.msra.mxu0 %v2096
      %2728 = vmatprep.mubr.bf16.mxu0 %v1007
      %2729 = vmatmul.mubr.bf16.gmra.mxu0 %v1006
      %v2730 = vpop.f32.mrf.mxu0
      %v2731 = vadd.f32 %v954, %v2730
      %v2732 = vpop.f32.mrf.mxu0
      %v2733 = vadd.f32 %v958, %v2732
      %v2734 = vpop.f32.mrf.mxu0
      %v2735 = vadd.f32 %v954, %v2734
      %v2736 = vpop.f32.mrf.mxu0
      %v2737 = vadd.f32 %v958, %v2736
      %2738 = vdwg.mxu0
      %2739 = vmatprep.subr.bf16.mxu0 %v2142
      %2740 = vmatpush1.bf16.msra.mxu0 %v2141
      %2741 = vmatprep.subr.bf16.mxu0 %v2139
      %2742 = vmatpush1.bf16.msra.mxu0 %v2138
      %2743 = vmatprep.subr.bf16.mxu0 %v2136
      %2744 = vmatpush1.bf16.msra.mxu0 %v2135
      %2745 = vmatprep.subr.bf16.mxu0 %v2133
      %2746 = vmatpush1.bf16.msra.mxu0 %v2132
      %2747 = vmatprep.subr.bf16.mxu0 %v2130
      %2748 = vmatpush1.bf16.msra.mxu0 %v2129
      %2749 = vmatprep.subr.bf16.mxu0 %v2127
      %2750 = vmatpush1.bf16.msra.mxu0 %v2126
      %2751 = vmatprep.subr.bf16.mxu0 %v2124
      %2752 = vmatpush1.bf16.msra.mxu0 %v2123
      %2753 = vmatprep.subr.bf16.mxu0 %v2121
      %2754 = vmatpush1.bf16.msra.mxu0 %v2120
      %2755 = vmatprep.subr.bf16.mxu0 %v2166
      %2756 = vmatpush2.bf16.msra.mxu0 %v2165
      %2757 = vmatprep.subr.bf16.mxu0 %v2163
      %2758 = vmatpush2.bf16.msra.mxu0 %v2162
      %2759 = vmatprep.subr.bf16.mxu0 %v2160
      %2760 = vmatpush2.bf16.msra.mxu0 %v2159
      %2761 = vmatprep.subr.bf16.mxu0 %v2157
      %2762 = vmatpush2.bf16.msra.mxu0 %v2156
      %2763 = vmatprep.subr.bf16.mxu0 %v2154
      %2764 = vmatpush2.bf16.msra.mxu0 %v2153
      %2765 = vmatprep.subr.bf16.mxu0 %v2151
      %2766 = vmatpush2.bf16.msra.mxu0 %v2150
      %2767 = vmatprep.subr.bf16.mxu0 %v2148
      %2768 = vmatpush2.bf16.msra.mxu0 %v2147
      %2769 = vmatprep.subr.bf16.mxu0 %v2145
      %2770 = vmatpush2.bf16.msra.mxu0 %v2144
      %2771 = vmatprep.mubr.bf16.mxu0 %v1009
      %2772 = vmatmul.mubr.bf16.gmra.mxu0 %v1008
      %v2773 = vpop.f32.mrf.mxu0
      %v2774 = vadd.f32 %v2731, %v2773
      %v2775 = vpop.f32.mrf.mxu0
      %v2776 = vadd.f32 %v2733, %v2775
      %v2777 = vpop.f32.mrf.mxu0
      %v2778 = vadd.f32 %v2735, %v2777
      %v2779 = vpop.f32.mrf.mxu0
      %v2780 = vadd.f32 %v2737, %v2779
      %2781 = vdwg.mxu0
      %2782 = vmatprep.subr.bf16.mxu0 %v2190
      %2783 = vmatpush1.bf16.msra.mxu0 %v2189
      %2784 = vmatprep.subr.bf16.mxu0 %v2187
      %2785 = vmatpush1.bf16.msra.mxu0 %v2186
      %2786 = vmatprep.subr.bf16.mxu0 %v2184
      %2787 = vmatpush1.bf16.msra.mxu0 %v2183
      %2788 = vmatprep.subr.bf16.mxu0 %v2181
      %2789 = vmatpush1.bf16.msra.mxu0 %v2180
      %2790 = vmatprep.subr.bf16.mxu0 %v2178
      %2791 = vmatpush1.bf16.msra.mxu0 %v2177
      %2792 = vmatprep.subr.bf16.mxu0 %v2175
      %2793 = vmatpush1.bf16.msra.mxu0 %v2174
      %2794 = vmatprep.subr.bf16.mxu0 %v2172
      %2795 = vmatpush1.bf16.msra.mxu0 %v2171
      %2796 = vmatprep.subr.bf16.mxu0 %v2169
      %2797 = vmatpush1.bf16.msra.mxu0 %v2168
      %2798 = vmatprep.subr.bf16.mxu0 %v2214
      %2799 = vmatpush2.bf16.msra.mxu0 %v2213
      %2800 = vmatprep.subr.bf16.mxu0 %v2211
      %2801 = vmatpush2.bf16.msra.mxu0 %v2210
      %2802 = vmatprep.subr.bf16.mxu0 %v2208
      %2803 = vmatpush2.bf16.msra.mxu0 %v2207
      %2804 = vmatprep.subr.bf16.mxu0 %v2205
      %2805 = vmatpush2.bf16.msra.mxu0 %v2204
      %2806 = vmatprep.subr.bf16.mxu0 %v2202
      %2807 = vmatpush2.bf16.msra.mxu0 %v2201
      %2808 = vmatprep.subr.bf16.mxu0 %v2199
      %2809 = vmatpush2.bf16.msra.mxu0 %v2198
      %2810 = vmatprep.subr.bf16.mxu0 %v2196
      %2811 = vmatpush2.bf16.msra.mxu0 %v2195
      %2812 = vmatprep.subr.bf16.mxu0 %v2193
      %2813 = vmatpush2.bf16.msra.mxu0 %v2192
      %2814 = vmatprep.mubr.bf16.mxu0 %v1011
      %2815 = vmatmul.mubr.bf16.gmra.mxu0 %v1010
      %v2816 = vpop.f32.mrf.mxu0
      %v2817 = vadd.f32 %v2774, %v2816
      %v2818 = vpop.f32.mrf.mxu0
      %v2819 = vadd.f32 %v2776, %v2818
      %v2820 = vpop.f32.mrf.mxu0
      %v2821 = vadd.f32 %v2778, %v2820
      %v2822 = vpop.f32.mrf.mxu0
      %v2823 = vadd.f32 %v2780, %v2822
      %2824 = vdwg.mxu0
      %2825 = vmatprep.subr.bf16.mxu0 %v2238
      %2826 = vmatpush1.bf16.msra.mxu0 %v2237
      %2827 = vmatprep.subr.bf16.mxu0 %v2235
      %2828 = vmatpush1.bf16.msra.mxu0 %v2234
      %2829 = vmatprep.subr.bf16.mxu0 %v2232
      %2830 = vmatpush1.bf16.msra.mxu0 %v2231
      %2831 = vmatprep.subr.bf16.mxu0 %v2229
      %2832 = vmatpush1.bf16.msra.mxu0 %v2228
      %2833 = vmatprep.subr.bf16.mxu0 %v2226
      %2834 = vmatpush1.bf16.msra.mxu0 %v2225
      %2835 = vmatprep.subr.bf16.mxu0 %v2223
      %2836 = vmatpush1.bf16.msra.mxu0 %v2222
      %2837 = vmatprep.subr.bf16.mxu0 %v2220
      %2838 = vmatpush1.bf16.msra.mxu0 %v2219
      %2839 = vmatprep.subr.bf16.mxu0 %v2217
      %2840 = vmatpush1.bf16.msra.mxu0 %v2216
      %2841 = vmatprep.subr.bf16.mxu0 %v2262
      %2842 = vmatpush2.bf16.msra.mxu0 %v2261
      %2843 = vmatprep.subr.bf16.mxu0 %v2259
      %2844 = vmatpush2.bf16.msra.mxu0 %v2258
      %2845 = vmatprep.subr.bf16.mxu0 %v2256
      %2846 = vmatpush2.bf16.msra.mxu0 %v2255
      %2847 = vmatprep.subr.bf16.mxu0 %v2253
      %2848 = vmatpush2.bf16.msra.mxu0 %v2252
      %2849 = vmatprep.subr.bf16.mxu0 %v2250
      %2850 = vmatpush2.bf16.msra.mxu0 %v2249
      %2851 = vmatprep.subr.bf16.mxu0 %v2247
      %2852 = vmatpush2.bf16.msra.mxu0 %v2246
      %2853 = vmatprep.subr.bf16.mxu0 %v2244
      %2854 = vmatpush2.bf16.msra.mxu0 %v2243
      %2855 = vmatprep.subr.bf16.mxu0 %v2241
      %2856 = vmatpush2.bf16.msra.mxu0 %v2240
      %2857 = vmatprep.mubr.bf16.mxu0 %v1013
      %2858 = vmatmul.mubr.bf16.gmra.mxu0 %v1012
      %v2859 = vpop.f32.mrf.mxu0
      %v2860 = vadd.f32 %v2817, %v2859
      %v2861 = vpop.f32.mrf.mxu0
      %v2862 = vadd.f32 %v2819, %v2861
      %v2863 = vpop.f32.mrf.mxu0
      %v2864 = vadd.f32 %v2821, %v2863
      %v2865 = vpop.f32.mrf.mxu0
      %v2866 = vadd.f32 %v2823, %v2865
      %2867 = vdwg.mxu0
      %2868 = vmatprep.subr.bf16.mxu0 %v2286
      %2869 = vmatpush1.bf16.msra.mxu0 %v2285
      %2870 = vmatprep.subr.bf16.mxu0 %v2283
      %2871 = vmatpush1.bf16.msra.mxu0 %v2282
      %2872 = vmatprep.subr.bf16.mxu0 %v2280
      %2873 = vmatpush1.bf16.msra.mxu0 %v2279
      %2874 = vmatprep.subr.bf16.mxu0 %v2277
      %2875 = vmatpush1.bf16.msra.mxu0 %v2276
      %2876 = vmatprep.subr.bf16.mxu0 %v2274
      %2877 = vmatpush1.bf16.msra.mxu0 %v2273
      %2878 = vmatprep.subr.bf16.mxu0 %v2271
      %2879 = vmatpush1.bf16.msra.mxu0 %v2270
      %2880 = vmatprep.subr.bf16.mxu0 %v2268
      %2881 = vmatpush1.bf16.msra.mxu0 %v2267
      %2882 = vmatprep.subr.bf16.mxu0 %v2265
      %2883 = vmatpush1.bf16.msra.mxu0 %v2264
      %2884 = vmatprep.subr.bf16.mxu0 %v2310
      %2885 = vmatpush2.bf16.msra.mxu0 %v2309
      %2886 = vmatprep.subr.bf16.mxu0 %v2307
      %2887 = vmatpush2.bf16.msra.mxu0 %v2306
      %2888 = vmatprep.subr.bf16.mxu0 %v2304
      %2889 = vmatpush2.bf16.msra.mxu0 %v2303
      %2890 = vmatprep.subr.bf16.mxu0 %v2301
      %2891 = vmatpush2.bf16.msra.mxu0 %v2300
      %2892 = vmatprep.subr.bf16.mxu0 %v2298
      %2893 = vmatpush2.bf16.msra.mxu0 %v2297
      %2894 = vmatprep.subr.bf16.mxu0 %v2295
      %2895 = vmatpush2.bf16.msra.mxu0 %v2294
      %2896 = vmatprep.subr.bf16.mxu0 %v2292
      %2897 = vmatpush2.bf16.msra.mxu0 %v2291
      %2898 = vmatprep.subr.bf16.mxu0 %v2289
      %2899 = vmatpush2.bf16.msra.mxu0 %v2288
      %2900 = vmatprep.mubr.bf16.mxu0 %v1015
      %2901 = vmatmul.mubr.bf16.gmra.mxu0 %v1014
      %v2902 = vpop.f32.mrf.mxu0
      %v2903 = vadd.f32 %v2860, %v2902
      %v2904 = vpop.f32.mrf.mxu0
      %v2905 = vadd.f32 %v2862, %v2904
      %v2906 = vpop.f32.mrf.mxu0
      %v2907 = vadd.f32 %v2864, %v2906
      %v2908 = vpop.f32.mrf.mxu0
      %v2909 = vadd.f32 %v2866, %v2908
      %2910 = vdwg.mxu0
      %2911 = vmatprep.subr.bf16.mxu0 %v2334
      %2912 = vmatpush1.bf16.msra.mxu0 %v2333
      %2913 = vmatprep.subr.bf16.mxu0 %v2331
      %2914 = vmatpush1.bf16.msra.mxu0 %v2330
      %2915 = vmatprep.subr.bf16.mxu0 %v2328
      %2916 = vmatpush1.bf16.msra.mxu0 %v2327
      %2917 = vmatprep.subr.bf16.mxu0 %v2325
      %2918 = vmatpush1.bf16.msra.mxu0 %v2324
      %2919 = vmatprep.subr.bf16.mxu0 %v2322
      %2920 = vmatpush1.bf16.msra.mxu0 %v2321
      %2921 = vmatprep.subr.bf16.mxu0 %v2319
      %2922 = vmatpush1.bf16.msra.mxu0 %v2318
      %2923 = vmatprep.subr.bf16.mxu0 %v2316
      %2924 = vmatpush1.bf16.msra.mxu0 %v2315
      %2925 = vmatprep.subr.bf16.mxu0 %v2313
      %2926 = vmatpush1.bf16.msra.mxu0 %v2312
      %2927 = vmatprep.subr.bf16.mxu0 %v2358
      %2928 = vmatpush2.bf16.msra.mxu0 %v2357
      %2929 = vmatprep.subr.bf16.mxu0 %v2355
      %2930 = vmatpush2.bf16.msra.mxu0 %v2354
      %2931 = vmatprep.subr.bf16.mxu0 %v2352
      %2932 = vmatpush2.bf16.msra.mxu0 %v2351
      %2933 = vmatprep.subr.bf16.mxu0 %v2349
      %2934 = vmatpush2.bf16.msra.mxu0 %v2348
      %2935 = vmatprep.subr.bf16.mxu0 %v2346
      %2936 = vmatpush2.bf16.msra.mxu0 %v2345
      %2937 = vmatprep.subr.bf16.mxu0 %v2343
      %2938 = vmatpush2.bf16.msra.mxu0 %v2342
      %2939 = vmatprep.subr.bf16.mxu0 %v2340
      %2940 = vmatpush2.bf16.msra.mxu0 %v2339
      %2941 = vmatprep.subr.bf16.mxu0 %v2337
      %2942 = vmatpush2.bf16.msra.mxu0 %v2336
      %2943 = vmatprep.mubr.bf16.mxu0 %v1017
      %2944 = vmatmul.mubr.bf16.gmra.mxu0 %v1016
      %v2945 = vpop.f32.mrf.mxu0
      %v2946 = vadd.f32 %v2903, %v2945
      %v2947 = vpop.f32.mrf.mxu0
      %v2948 = vadd.f32 %v2905, %v2947
      %v2949 = vpop.f32.mrf.mxu0
      %v2950 = vadd.f32 %v2907, %v2949
      %v2951 = vpop.f32.mrf.mxu0
      %v2952 = vadd.f32 %v2909, %v2951
      %2953 = vdwg.mxu0
      %2954 = vmatprep.subr.bf16.mxu0 %v2382
      %2955 = vmatpush1.bf16.msra.mxu0 %v2381
      %2956 = vmatprep.subr.bf16.mxu0 %v2379
      %2957 = vmatpush1.bf16.msra.mxu0 %v2378
      %2958 = vmatprep.subr.bf16.mxu0 %v2376
      %2959 = vmatpush1.bf16.msra.mxu0 %v2375
      %2960 = vmatprep.subr.bf16.mxu0 %v2373
      %2961 = vmatpush1.bf16.msra.mxu0 %v2372
      %2962 = vmatprep.subr.bf16.mxu0 %v2370
      %2963 = vmatpush1.bf16.msra.mxu0 %v2369
      %2964 = vmatprep.subr.bf16.mxu0 %v2367
      %2965 = vmatpush1.bf16.msra.mxu0 %v2366
      %2966 = vmatprep.subr.bf16.mxu0 %v2364
      %2967 = vmatpush1.bf16.msra.mxu0 %v2363
      %2968 = vmatprep.subr.bf16.mxu0 %v2361
      %2969 = vmatpush1.bf16.msra.mxu0 %v2360
      %2970 = vmatprep.subr.bf16.mxu0 0
      %2971 = vmatpush2.bf16.msra.mxu0 0
      %2972 = vmatprep.subr.bf16.mxu0 0
      %2973 = vmatpush2.bf16.msra.mxu0 0
      %2974 = vmatprep.subr.bf16.mxu0 0
      %2975 = vmatpush2.bf16.msra.mxu0 0
      %2976 = vmatprep.subr.bf16.mxu0 0
      %2977 = vmatpush2.bf16.msra.mxu0 0
      %2978 = vmatprep.subr.bf16.mxu0 0
      %2979 = vmatpush2.bf16.msra.mxu0 0
      %2980 = vmatprep.subr.bf16.mxu0 0
      %2981 = vmatpush2.bf16.msra.mxu0 0
      %2982 = vmatprep.subr.bf16.mxu0 0
      %2983 = vmatpush2.bf16.msra.mxu0 0
      %2984 = vmatprep.subr.bf16.mxu0 0
      %2985 = vmatpush2.bf16.msra.mxu0 0
      %2986 = vmatprep.mubr.bf16.mxu0 0
      %2987 = vmatmul.mubr.bf16.gmra.mxu0 %v1018
      %v2988 = vpop.f32.mrf.mxu0
      %v2989 = vadd.f32 %v2946, %v2988
      %v2990 = vpop.f32.mrf.mxu0
      %v2991 = vadd.f32 %v2948, %v2990
      %v2992 = vpop.f32.mrf.mxu0
      %v2993 = vadd.f32 %v2950, %v2992
      %v2994 = vpop.f32.mrf.mxu0
      %v2995 = vadd.f32 %v2952, %v2994
      %2996 = vdwg.mxu0
      %2997 = vmatprep.subr.bf16.mxu0 0
      %2998 = vmatpush1.bf16.msra.mxu0 %v2095
      %2999 = vmatprep.subr.bf16.mxu0 0
      %3000 = vmatpush1.bf16.msra.mxu0 %v2092
      %3001 = vmatprep.subr.bf16.mxu0 0
      %3002 = vmatpush1.bf16.msra.mxu0 %v2089
      %3003 = vmatprep.subr.bf16.mxu0 0
      %3004 = vmatpush1.bf16.msra.mxu0 %v2086
      %3005 = vmatprep.subr.bf16.mxu0 0
      %3006 = vmatpush1.bf16.msra.mxu0 %v2083
      %3007 = vmatprep.subr.bf16.mxu0 0
      %3008 = vmatpush1.bf16.msra.mxu0 %v2080
      %3009 = vmatprep.subr.bf16.mxu0 0
      %3010 = vmatpush1.bf16.msra.mxu0 %v2077
      %3011 = vmatprep.subr.bf16.mxu0 0
      %3012 = vmatpush1.bf16.msra.mxu0 %v2074
      %3013 = vmatprep.subr.bf16.mxu0 0
      %3014 = vmatpush2.bf16.msra.mxu0 %v2119
      %3015 = vmatprep.subr.bf16.mxu0 0
      %3016 = vmatpush2.bf16.msra.mxu0 %v2116
      %3017 = vmatprep.subr.bf16.mxu0 0
      %3018 = vmatpush2.bf16.msra.mxu0 %v2113
      %3019 = vmatprep.subr.bf16.mxu0 0
      %3020 = vmatpush2.bf16.msra.mxu0 %v2110
      %3021 = vmatprep.subr.bf16.mxu0 0
      %3022 = vmatpush2.bf16.msra.mxu0 %v2107
      %3023 = vmatprep.subr.bf16.mxu0 0
      %3024 = vmatpush2.bf16.msra.mxu0 %v2104
      %3025 = vmatprep.subr.bf16.mxu0 0
      %3026 = vmatpush2.bf16.msra.mxu0 %v2101
      %3027 = vmatprep.subr.bf16.mxu0 0
      %3028 = vmatpush2.bf16.msra.mxu0 %v2098
      %3029 = vmatprep.mubr.bf16.mxu0 %v1007
      %3030 = vmatmul.mubr.bf16.gmra.mxu0 %v1006
      %v3031 = vpop.f32.mrf.mxu0
      %v3032 = vadd.f32 %v962, %v3031
      %v3033 = vpop.f32.mrf.mxu0
      %v3034 = vpop.f32.mrf.mxu0
      %v3035 = vadd.f32 %v962, %v3034
      %v3036 = vpop.f32.mrf.mxu0
      %3037 = vdwg.mxu0
      %3038 = vmatprep.subr.bf16.mxu0 0
      %3039 = vmatpush1.bf16.msra.mxu0 %v2143
      %3040 = vmatprep.subr.bf16.mxu0 0
      %3041 = vmatpush1.bf16.msra.mxu0 %v2140
      %3042 = vmatprep.subr.bf16.mxu0 0
      %3043 = vmatpush1.bf16.msra.mxu0 %v2137
      %3044 = vmatprep.subr.bf16.mxu0 0
      %3045 = vmatpush1.bf16.msra.mxu0 %v2134
      %3046 = vmatprep.subr.bf16.mxu0 0
      %3047 = vmatpush1.bf16.msra.mxu0 %v2131
      %3048 = vmatprep.subr.bf16.mxu0 0
      %3049 = vmatpush1.bf16.msra.mxu0 %v2128
      %3050 = vmatprep.subr.bf16.mxu0 0
      %3051 = vmatpush1.bf16.msra.mxu0 %v2125
      %3052 = vmatprep.subr.bf16.mxu0 0
      %3053 = vmatpush1.bf16.msra.mxu0 %v2122
      %3054 = vmatprep.subr.bf16.mxu0 0
      %3055 = vmatpush2.bf16.msra.mxu0 %v2167
      %3056 = vmatprep.subr.bf16.mxu0 0
      %3057 = vmatpush2.bf16.msra.mxu0 %v2164
      %3058 = vmatprep.subr.bf16.mxu0 0
      %3059 = vmatpush2.bf16.msra.mxu0 %v2161
      %3060 = vmatprep.subr.bf16.mxu0 0
      %3061 = vmatpush2.bf16.msra.mxu0 %v2158
      %3062 = vmatprep.subr.bf16.mxu0 0
      %3063 = vmatpush2.bf16.msra.mxu0 %v2155
      %3064 = vmatprep.subr.bf16.mxu0 0
      %3065 = vmatpush2.bf16.msra.mxu0 %v2152
      %3066 = vmatprep.subr.bf16.mxu0 0
      %3067 = vmatpush2.bf16.msra.mxu0 %v2149
      %3068 = vmatprep.subr.bf16.mxu0 0
      %3069 = vmatpush2.bf16.msra.mxu0 %v2146
      %3070 = vmatprep.mubr.bf16.mxu0 %v1009
      %3071 = vmatmul.mubr.bf16.gmra.mxu0 %v1008
      %v3072 = vpop.f32.mrf.mxu0
      %v3073 = vadd.f32 %v3032, %v3072
      %v3074 = vpop.f32.mrf.mxu0
      %v3075 = vpop.f32.mrf.mxu0
      %v3076 = vadd.f32 %v3035, %v3075
      %v3077 = vpop.f32.mrf.mxu0
      %3078 = vdwg.mxu0
      %3079 = vmatprep.subr.bf16.mxu0 0
      %3080 = vmatpush1.bf16.msra.mxu0 %v2191
      %3081 = vmatprep.subr.bf16.mxu0 0
      %3082 = vmatpush1.bf16.msra.mxu0 %v2188
      %3083 = vmatprep.subr.bf16.mxu0 0
      %3084 = vmatpush1.bf16.msra.mxu0 %v2185
      %3085 = vmatprep.subr.bf16.mxu0 0
      %3086 = vmatpush1.bf16.msra.mxu0 %v2182
      %3087 = vmatprep.subr.bf16.mxu0 0
      %3088 = vmatpush1.bf16.msra.mxu0 %v2179
      %3089 = vmatprep.subr.bf16.mxu0 0
      %3090 = vmatpush1.bf16.msra.mxu0 %v2176
      %3091 = vmatprep.subr.bf16.mxu0 0
      %3092 = vmatpush1.bf16.msra.mxu0 %v2173
      %3093 = vmatprep.subr.bf16.mxu0 0
      %3094 = vmatpush1.bf16.msra.mxu0 %v2170
      %3095 = vmatprep.subr.bf16.mxu0 0
      %3096 = vmatpush2.bf16.msra.mxu0 %v2215
      %3097 = vmatprep.subr.bf16.mxu0 0
      %3098 = vmatpush2.bf16.msra.mxu0 %v2212
      %3099 = vmatprep.subr.bf16.mxu0 0
      %3100 = vmatpush2.bf16.msra.mxu0 %v2209
      %3101 = vmatprep.subr.bf16.mxu0 0
      %3102 = vmatpush2.bf16.msra.mxu0 %v2206
      %3103 = vmatprep.subr.bf16.mxu0 0
      %3104 = vmatpush2.bf16.msra.mxu0 %v2203
      %3105 = vmatprep.subr.bf16.mxu0 0
      %3106 = vmatpush2.bf16.msra.mxu0 %v2200
      %3107 = vmatprep.subr.bf16.mxu0 0
      %3108 = vmatpush2.bf16.msra.mxu0 %v2197
      %3109 = vmatprep.subr.bf16.mxu0 0
      %3110 = vmatpush2.bf16.msra.mxu0 %v2194
      %3111 = vmatprep.mubr.bf16.mxu0 %v1011
      %3112 = vmatmul.mubr.bf16.gmra.mxu0 %v1010
      %v3113 = vpop.f32.mrf.mxu0
      %v3114 = vadd.f32 %v3073, %v3113
      %v3115 = vpop.f32.mrf.mxu0
      %v3116 = vpop.f32.mrf.mxu0
      %v3117 = vadd.f32 %v3076, %v3116
      %v3118 = vpop.f32.mrf.mxu0
      %3119 = vdwg.mxu0
      %3120 = vmatprep.subr.bf16.mxu0 0
      %3121 = vmatpush1.bf16.msra.mxu0 %v2239
      %3122 = vmatprep.subr.bf16.mxu0 0
      %3123 = vmatpush1.bf16.msra.mxu0 %v2236
      %3124 = vmatprep.subr.bf16.mxu0 0
      %3125 = vmatpush1.bf16.msra.mxu0 %v2233
      %3126 = vmatprep.subr.bf16.mxu0 0
      %3127 = vmatpush1.bf16.msra.mxu0 %v2230
      %3128 = vmatprep.subr.bf16.mxu0 0
      %3129 = vmatpush1.bf16.msra.mxu0 %v2227
      %3130 = vmatprep.subr.bf16.mxu0 0
      %3131 = vmatpush1.bf16.msra.mxu0 %v2224
      %3132 = vmatprep.subr.bf16.mxu0 0
      %3133 = vmatpush1.bf16.msra.mxu0 %v2221
      %3134 = vmatprep.subr.bf16.mxu0 0
      %3135 = vmatpush1.bf16.msra.mxu0 %v2218
      %3136 = vmatprep.subr.bf16.mxu0 0
      %3137 = vmatpush2.bf16.msra.mxu0 %v2263
      %3138 = vmatprep.subr.bf16.mxu0 0
      %3139 = vmatpush2.bf16.msra.mxu0 %v2260
      %3140 = vmatprep.subr.bf16.mxu0 0
      %3141 = vmatpush2.bf16.msra.mxu0 %v2257
      %3142 = vmatprep.subr.bf16.mxu0 0
      %3143 = vmatpush2.bf16.msra.mxu0 %v2254
      %3144 = vmatprep.subr.bf16.mxu0 0
      %3145 = vmatpush2.bf16.msra.mxu0 %v2251
      %3146 = vmatprep.subr.bf16.mxu0 0
      %3147 = vmatpush2.bf16.msra.mxu0 %v2248
      %3148 = vmatprep.subr.bf16.mxu0 0
      %3149 = vmatpush2.bf16.msra.mxu0 %v2245
      %3150 = vmatprep.subr.bf16.mxu0 0
      %3151 = vmatpush2.bf16.msra.mxu0 %v2242
      %3152 = vmatprep.mubr.bf16.mxu0 %v1013
      %3153 = vmatmul.mubr.bf16.gmra.mxu0 %v1012
      %v3154 = vpop.f32.mrf.mxu0
      %v3155 = vadd.f32 %v3114, %v3154
      %v3156 = vpop.f32.mrf.mxu0
      %v3157 = vpop.f32.mrf.mxu0
      %v3158 = vadd.f32 %v3117, %v3157
      %v3159 = vpop.f32.mrf.mxu0
      %3160 = vdwg.mxu0
      %3161 = vmatprep.subr.bf16.mxu0 0
      %3162 = vmatpush1.bf16.msra.mxu0 %v2287
      %3163 = vmatprep.subr.bf16.mxu0 0
      %3164 = vmatpush1.bf16.msra.mxu0 %v2284
      %3165 = vmatprep.subr.bf16.mxu0 0
      %3166 = vmatpush1.bf16.msra.mxu0 %v2281
      %3167 = vmatprep.subr.bf16.mxu0 0
      %3168 = vmatpush1.bf16.msra.mxu0 %v2278
      %3169 = vmatprep.subr.bf16.mxu0 0
      %3170 = vmatpush1.bf16.msra.mxu0 %v2275
      %3171 = vmatprep.subr.bf16.mxu0 0
      %3172 = vmatpush1.bf16.msra.mxu0 %v2272
      %3173 = vmatprep.subr.bf16.mxu0 0
      %3174 = vmatpush1.bf16.msra.mxu0 %v2269
      %3175 = vmatprep.subr.bf16.mxu0 0
      %3176 = vmatpush1.bf16.msra.mxu0 %v2266
      %3177 = vmatprep.subr.bf16.mxu0 0
      %3178 = vmatpush2.bf16.msra.mxu0 %v2311
      %3179 = vmatprep.subr.bf16.mxu0 0
      %3180 = vmatpush2.bf16.msra.mxu0 %v2308
      %3181 = vmatprep.subr.bf16.mxu0 0
      %3182 = vmatpush2.bf16.msra.mxu0 %v2305
      %3183 = vmatprep.subr.bf16.mxu0 0
      %3184 = vmatpush2.bf16.msra.mxu0 %v2302
      %3185 = vmatprep.subr.bf16.mxu0 0
      %3186 = vmatpush2.bf16.msra.mxu0 %v2299
      %3187 = vmatprep.subr.bf16.mxu0 0
      %3188 = vmatpush2.bf16.msra.mxu0 %v2296
      %3189 = vmatprep.subr.bf16.mxu0 0
      %3190 = vmatpush2.bf16.msra.mxu0 %v2293
      %3191 = vmatprep.subr.bf16.mxu0 0
      %3192 = vmatpush2.bf16.msra.mxu0 %v2290
      %3193 = vmatprep.mubr.bf16.mxu0 %v1015
      %3194 = vmatmul.mubr.bf16.gmra.mxu0 %v1014
      %v3195 = vpop.f32.mrf.mxu0
      %v3196 = vadd.f32 %v3155, %v3195
      %v3197 = vpop.f32.mrf.mxu0
      %v3198 = vpop.f32.mrf.mxu0
      %v3199 = vadd.f32 %v3158, %v3198
      %v3200 = vpop.f32.mrf.mxu0
      %3201 = vdwg.mxu0
      %3202 = vmatprep.subr.bf16.mxu0 0
      %3203 = vmatpush1.bf16.msra.mxu0 %v2335
      %3204 = vmatprep.subr.bf16.mxu0 0
      %3205 = vmatpush1.bf16.msra.mxu0 %v2332
      %3206 = vmatprep.subr.bf16.mxu0 0
      %3207 = vmatpush1.bf16.msra.mxu0 %v2329
      %3208 = vmatprep.subr.bf16.mxu0 0
      %3209 = vmatpush1.bf16.msra.mxu0 %v2326
      %3210 = vmatprep.subr.bf16.mxu0 0
      %3211 = vmatpush1.bf16.msra.mxu0 %v2323
      %3212 = vmatprep.subr.bf16.mxu0 0
      %3213 = vmatpush1.bf16.msra.mxu0 %v2320
      %3214 = vmatprep.subr.bf16.mxu0 0
      %3215 = vmatpush1.bf16.msra.mxu0 %v2317
      %3216 = vmatprep.subr.bf16.mxu0 0
      %3217 = vmatpush1.bf16.msra.mxu0 %v2314
      %3218 = vmatprep.subr.bf16.mxu0 0
      %3219 = vmatpush2.bf16.msra.mxu0 %v2359
      %3220 = vmatprep.subr.bf16.mxu0 0
      %3221 = vmatpush2.bf16.msra.mxu0 %v2356
      %3222 = vmatprep.subr.bf16.mxu0 0
      %3223 = vmatpush2.bf16.msra.mxu0 %v2353
      %3224 = vmatprep.subr.bf16.mxu0 0
      %3225 = vmatpush2.bf16.msra.mxu0 %v2350
      %3226 = vmatprep.subr.bf16.mxu0 0
      %3227 = vmatpush2.bf16.msra.mxu0 %v2347
      %3228 = vmatprep.subr.bf16.mxu0 0
      %3229 = vmatpush2.bf16.msra.mxu0 %v2344
      %3230 = vmatprep.subr.bf16.mxu0 0
      %3231 = vmatpush2.bf16.msra.mxu0 %v2341
      %3232 = vmatprep.subr.bf16.mxu0 0
      %3233 = vmatpush2.bf16.msra.mxu0 %v2338
      %3234 = vmatprep.mubr.bf16.mxu0 %v1017
      %3235 = vmatmul.mubr.bf16.gmra.mxu0 %v1016
      %v3236 = vpop.f32.mrf.mxu0
      %v3237 = vadd.f32 %v3196, %v3236
      %v3238 = vpop.f32.mrf.mxu0
      %v3239 = vpop.f32.mrf.mxu0
      %v3240 = vadd.f32 %v3199, %v3239
      %v3241 = vpop.f32.mrf.mxu0
      %3242 = vdwg.mxu0
      %3243 = vmatprep.subr.bf16.mxu0 0
      %3244 = vmatpush1.bf16.msra.mxu0 %v2383
      %3245 = vmatprep.subr.bf16.mxu0 0
      %3246 = vmatpush1.bf16.msra.mxu0 %v2380
      %3247 = vmatprep.subr.bf16.mxu0 0
      %3248 = vmatpush1.bf16.msra.mxu0 %v2377
      %3249 = vmatprep.subr.bf16.mxu0 0
      %3250 = vmatpush1.bf16.msra.mxu0 %v2374
      %3251 = vmatprep.subr.bf16.mxu0 0
      %3252 = vmatpush1.bf16.msra.mxu0 %v2371
      %3253 = vmatprep.subr.bf16.mxu0 0
      %3254 = vmatpush1.bf16.msra.mxu0 %v2368
      %3255 = vmatprep.subr.bf16.mxu0 0
      %3256 = vmatpush1.bf16.msra.mxu0 %v2365
      %3257 = vmatprep.subr.bf16.mxu0 0
      %3258 = vmatpush1.bf16.msra.mxu0 %v2362
      %3259 = vmatprep.subr.bf16.mxu0 0
      %3260 = vmatpush2.bf16.msra.mxu0 0
      %3261 = vmatprep.subr.bf16.mxu0 0
      %3262 = vmatpush2.bf16.msra.mxu0 0
      %3263 = vmatprep.subr.bf16.mxu0 0
      %3264 = vmatpush2.bf16.msra.mxu0 0
      %3265 = vmatprep.subr.bf16.mxu0 0
      %3266 = vmatpush2.bf16.msra.mxu0 0
      %3267 = vmatprep.subr.bf16.mxu0 0
      %3268 = vmatpush2.bf16.msra.mxu0 0
      %3269 = vmatprep.subr.bf16.mxu0 0
      %3270 = vmatpush2.bf16.msra.mxu0 0
      %3271 = vmatprep.subr.bf16.mxu0 0
      %3272 = vmatpush2.bf16.msra.mxu0 0
      %3273 = vmatprep.subr.bf16.mxu0 0
      %3274 = vmatpush2.bf16.msra.mxu0 0
      %3275 = vmatprep.mubr.bf16.mxu0 0
      %3276 = vmatmul.mubr.bf16.gmra.mxu0 %v1018
      %v3277 = vpop.f32.mrf.mxu0
      %v3278 = vadd.f32 %v3237, %v3277
      %v3279 = vpop.f32.mrf.mxu0
      %v3280 = vpop.f32.mrf.mxu0
      %v3281 = vadd.f32 %v3240, %v3280
      %v3282 = vpop.f32.mrf.mxu0
      %3283 = vdwg.mxu0
      %v3284 = vmax.f32 %v2989, 0.0
      %v3285 = vmax.f32 %v2991, 0.0
      %v3286 = vmax.f32 %v3278, 0.0
      %v3287 = vmax.f32 %v2993, 0.0
      %v3288 = vmax.f32 %v2995, 0.0
      %v3289 = vmax.f32 %v3281, 0.0
      %v3290 = vpack.c.bf16 %v3287, %v3284
      %v3291 = vpack.c.bf16 %v3288, %v3285
      %v3292 = vpack.c.bf16 %v3289, %v3286
      %v3293 = vld [vmem:[%s3] sm:$0x7]
      %vm3294 = vcmask 97280
      %v3296 = vsel %vm3294, %v3293, 0
      %vm3298 = vcmask 1045504
      %v3300 = vsel %vm3298, %v3290, 0
      %v3303 = vsel %vm3298, %v3291, 0
      %v3306 = vsel %vm3298, %v3292, 0
      %3308 = vmatprep.subr.bf16.mxu0 0
      %3309 = vmatpush1.bf16.msra.mxu0 0
      %3310 = vmatprep.subr.bf16.mxu0 0
      %3311 = vmatpush1.bf16.msra.mxu0 0
      %3312 = vmatprep.subr.bf16.mxu0 0
      %3313 = vmatpush1.bf16.msra.mxu0 0
      %3314 = vmatprep.subr.bf16.mxu0 0
      %3315 = vmatpush1.bf16.msra.mxu0 0
      %3316 = vmatprep.subr.bf16.mxu0 0
      %3317 = vmatpush1.bf16.msra.mxu0 0
      %3318 = vmatprep.subr.bf16.mxu0 0
      %3319 = vmatpush1.bf16.msra.mxu0 0
      %3320 = vmatprep.subr.bf16.mxu0 0
      %3321 = vmatpush1.bf16.msra.mxu0 0
      %3322 = vmatprep.subr.bf16.mxu0 %v3303
      %3323 = vmatpush1.bf16.msra.mxu0 %v3300
      %3324 = vmatprep.subr.bf16.mxu0 0
      %3325 = vmatpush2.bf16.msra.mxu0 0
      %3326 = vmatprep.subr.bf16.mxu0 0
      %3327 = vmatpush2.bf16.msra.mxu0 0
      %3328 = vmatprep.subr.bf16.mxu0 0
      %3329 = vmatpush2.bf16.msra.mxu0 0
      %3330 = vmatprep.subr.bf16.mxu0 0
      %3331 = vmatpush2.bf16.msra.mxu0 0
      %3332 = vmatprep.subr.bf16.mxu0 0
      %3333 = vmatpush2.bf16.msra.mxu0 0
      %3334 = vmatprep.subr.bf16.mxu0 0
      %3335 = vmatpush2.bf16.msra.mxu0 0
      %3336 = vmatprep.subr.bf16.mxu0 0
      %3337 = vmatpush2.bf16.msra.mxu0 0
      %3338 = vmatprep.subr.bf16.mxu0 0
      %3339 = vmatpush2.bf16.msra.mxu0 0
      %3340 = vmatprep.mubr.bf16.mxu0 0
      %3341 = vmatmul.mubr.bf16.gmra.mxu0 %v3296
      %v3342 = vpop.f32.mrf.mxu0
      %v3343 = vadd.f32 0.0, %v3342
      %v3344 = vpop.f32.mrf.mxu0
      %v3345 = vadd.f32 0.0, %v3344
      %v3346 = vpop.f32.mrf.mxu0
      %v3347 = vpop.f32.mrf.mxu0
      %3348 = vdwg.mxu0
      %3349 = vmatprep.subr.bf16.mxu0 0
      %3350 = vmatpush1.bf16.msra.mxu0 0
      %3351 = vmatprep.subr.bf16.mxu0 0
      %3352 = vmatpush1.bf16.msra.mxu0 0
      %3353 = vmatprep.subr.bf16.mxu0 0
      %3354 = vmatpush1.bf16.msra.mxu0 0
      %3355 = vmatprep.subr.bf16.mxu0 0
      %3356 = vmatpush1.bf16.msra.mxu0 0
      %3357 = vmatprep.subr.bf16.mxu0 0
      %3358 = vmatpush1.bf16.msra.mxu0 0
      %3359 = vmatprep.subr.bf16.mxu0 0
      %3360 = vmatpush1.bf16.msra.mxu0 0
      %3361 = vmatprep.subr.bf16.mxu0 0
      %3362 = vmatpush1.bf16.msra.mxu0 0
      %3363 = vmatprep.subr.bf16.mxu0 0
      %3364 = vmatpush1.bf16.msra.mxu0 %v3306
      %3365 = vmatprep.subr.bf16.mxu0 0
      %3366 = vmatpush2.bf16.msra.mxu0 0
      %3367 = vmatprep.subr.bf16.mxu0 0
      %3368 = vmatpush2.bf16.msra.mxu0 0
      %3369 = vmatprep.subr.bf16.mxu0 0
      %3370 = vmatpush2.bf16.msra.mxu0 0
      %3371 = vmatprep.subr.bf16.mxu0 0
      %3372 = vmatpush2.bf16.msra.mxu0 0
      %3373 = vmatprep.subr.bf16.mxu0 0
      %3374 = vmatpush2.bf16.msra.mxu0 0
      %3375 = vmatprep.subr.bf16.mxu0 0
      %3376 = vmatpush2.bf16.msra.mxu0 0
      %3377 = vmatprep.subr.bf16.mxu0 0
      %3378 = vmatpush2.bf16.msra.mxu0 0
      %3379 = vmatprep.subr.bf16.mxu0 0
      %3380 = vmatpush2.bf16.msra.mxu0 0
      %3381 = vmatprep.mubr.bf16.mxu0 0
      %3382 = vmatmul.mubr.bf16.gmra.mxu0 %v3296
      %v3383 = vpop.f32.mrf.mxu0
      %v3384 = vadd.f32 0.0, %v3383
      %v3385 = vpop.f32.mrf.mxu0
      %v3386 = vpop.f32.mrf.mxu0
      %v3387 = vpop.f32.mrf.mxu0
      %3388 = vdwg.mxu0
      %v3389 = vpack.c.bf16 %v3343, %v3343
      %v3390 = vpack.c.bf16 %v3345, %v3345
      %v3391 = vpack.c.bf16 %v3384, %v3384
      %s3392 = scalar_lea.vmem %s3, 4
      %v3393 = vld [vmem:[%s3392] sm:$0x7]
      %v3395 = vsel %vm3294, %v3393, 0
      %3397 = vmatprep.subr.bf16.mxu0 0
      %3398 = vmatpush1.bf16.msra.mxu0 0
      %3399 = vmatprep.subr.bf16.mxu0 0
      %3400 = vmatpush1.bf16.msra.mxu0 0
      %3401 = vmatprep.subr.bf16.mxu0 0
      %3402 = vmatpush1.bf16.msra.mxu0 0
      %3403 = vmatprep.subr.bf16.mxu0 0
      %3404 = vmatpush1.bf16.msra.mxu0 0
      %3405 = vmatprep.subr.bf16.mxu0 0
      %3406 = vmatpush1.bf16.msra.mxu0 0
      %3407 = vmatprep.subr.bf16.mxu0 0
      %3408 = vmatpush1.bf16.msra.mxu0 0
      %3409 = vmatprep.subr.bf16.mxu0 0
      %3410 = vmatpush1.bf16.msra.mxu0 0
      %3411 = vmatprep.subr.bf16.mxu0 %v3303
      %3412 = vmatpush1.bf16.msra.mxu0 %v3300
      %3413 = vmatprep.subr.bf16.mxu0 0
      %3414 = vmatpush2.bf16.msra.mxu0 0
      %3415 = vmatprep.subr.bf16.mxu0 0
      %3416 = vmatpush2.bf16.msra.mxu0 0
      %3417 = vmatprep.subr.bf16.mxu0 0
      %3418 = vmatpush2.bf16.msra.mxu0 0
      %3419 = vmatprep.subr.bf16.mxu0 0
      %3420 = vmatpush2.bf16.msra.mxu0 0
      %3421 = vmatprep.subr.bf16.mxu0 0
      %3422 = vmatpush2.bf16.msra.mxu0 0
      %3423 = vmatprep.subr.bf16.mxu0 0
      %3424 = vmatpush2.bf16.msra.mxu0 0
      %3425 = vmatprep.subr.bf16.mxu0 0
      %3426 = vmatpush2.bf16.msra.mxu0 0
      %3427 = vmatprep.subr.bf16.mxu0 0
      %3428 = vmatpush2.bf16.msra.mxu0 0
      %3429 = vmatprep.mubr.bf16.mxu0 0
      %3430 = vmatmul.mubr.bf16.gmra.mxu0 %v3395
      %v3431 = vpop.f32.mrf.mxu0
      %v3432 = vadd.f32 0.0, %v3431
      %v3433 = vpop.f32.mrf.mxu0
      %v3434 = vadd.f32 0.0, %v3433
      %v3435 = vpop.f32.mrf.mxu0
      %v3436 = vpop.f32.mrf.mxu0
      %3437 = vdwg.mxu0
      %3438 = vmatprep.subr.bf16.mxu0 0
      %3439 = vmatpush1.bf16.msra.mxu0 0
      %3440 = vmatprep.subr.bf16.mxu0 0
      %3441 = vmatpush1.bf16.msra.mxu0 0
      %3442 = vmatprep.subr.bf16.mxu0 0
      %3443 = vmatpush1.bf16.msra.mxu0 0
      %3444 = vmatprep.subr.bf16.mxu0 0
      %3445 = vmatpush1.bf16.msra.mxu0 0
      %3446 = vmatprep.subr.bf16.mxu0 0
      %3447 = vmatpush1.bf16.msra.mxu0 0
      %3448 = vmatprep.subr.bf16.mxu0 0
      %3449 = vmatpush1.bf16.msra.mxu0 0
      %3450 = vmatprep.subr.bf16.mxu0 0
      %3451 = vmatpush1.bf16.msra.mxu0 0
      %3452 = vmatprep.subr.bf16.mxu0 0
      %3453 = vmatpush1.bf16.msra.mxu0 %v3306
      %3454 = vmatprep.subr.bf16.mxu0 0
      %3455 = vmatpush2.bf16.msra.mxu0 0
      %3456 = vmatprep.subr.bf16.mxu0 0
      %3457 = vmatpush2.bf16.msra.mxu0 0
      %3458 = vmatprep.subr.bf16.mxu0 0
      %3459 = vmatpush2.bf16.msra.mxu0 0
      %3460 = vmatprep.subr.bf16.mxu0 0
      %3461 = vmatpush2.bf16.msra.mxu0 0
      %3462 = vmatprep.subr.bf16.mxu0 0
      %3463 = vmatpush2.bf16.msra.mxu0 0
      %3464 = vmatprep.subr.bf16.mxu0 0
      %3465 = vmatpush2.bf16.msra.mxu0 0
      %3466 = vmatprep.subr.bf16.mxu0 0
      %3467 = vmatpush2.bf16.msra.mxu0 0
      %3468 = vmatprep.subr.bf16.mxu0 0
      %3469 = vmatpush2.bf16.msra.mxu0 0
      %3470 = vmatprep.mubr.bf16.mxu0 0
      %3471 = vmatmul.mubr.bf16.gmra.mxu0 %v3395
      %v3472 = vpop.f32.mrf.mxu0
      %v3473 = vadd.f32 0.0, %v3472
      %v3474 = vpop.f32.mrf.mxu0
      %v3475 = vpop.f32.mrf.mxu0
      %v3476 = vpop.f32.mrf.mxu0
      %3477 = vdwg.mxu0
      %v3478 = vpack.c.bf16 %v3432, %v3432
      %v3479 = vpack.c.bf16 %v3434, %v3434
      %v3480 = vpack.c.bf16 %v3473, %v3473
      %s3481 = scalar_lea.vmem %s3, 8
      %v3482 = vld [vmem:[%s3481] sm:$0x7]
      %v3484 = vsel %vm3294, %v3482, 0
      %3486 = vmatprep.subr.bf16.mxu0 0
      %3487 = vmatpush1.bf16.msra.mxu0 0
      %3488 = vmatprep.subr.bf16.mxu0 0
      %3489 = vmatpush1.bf16.msra.mxu0 0
      %3490 = vmatprep.subr.bf16.mxu0 0
      %3491 = vmatpush1.bf16.msra.mxu0 0
      %3492 = vmatprep.subr.bf16.mxu0 0
      %3493 = vmatpush1.bf16.msra.mxu0 0
      %3494 = vmatprep.subr.bf16.mxu0 0
      %3495 = vmatpush1.bf16.msra.mxu0 0
      %3496 = vmatprep.subr.bf16.mxu0 0
      %3497 = vmatpush1.bf16.msra.mxu0 0
      %3498 = vmatprep.subr.bf16.mxu0 0
      %3499 = vmatpush1.bf16.msra.mxu0 0
      %3500 = vmatprep.subr.bf16.mxu0 %v3303
      %3501 = vmatpush1.bf16.msra.mxu0 %v3300
      %3502 = vmatprep.subr.bf16.mxu0 0
      %3503 = vmatpush2.bf16.msra.mxu0 0
      %3504 = vmatprep.subr.bf16.mxu0 0
      %3505 = vmatpush2.bf16.msra.mxu0 0
      %3506 = vmatprep.subr.bf16.mxu0 0
      %3507 = vmatpush2.bf16.msra.mxu0 0
      %3508 = vmatprep.subr.bf16.mxu0 0
      %3509 = vmatpush2.bf16.msra.mxu0 0
      %3510 = vmatprep.subr.bf16.mxu0 0
      %3511 = vmatpush2.bf16.msra.mxu0 0
      %3512 = vmatprep.subr.bf16.mxu0 0
      %3513 = vmatpush2.bf16.msra.mxu0 0
      %3514 = vmatprep.subr.bf16.mxu0 0
      %3515 = vmatpush2.bf16.msra.mxu0 0
      %3516 = vmatprep.subr.bf16.mxu0 0
      %3517 = vmatpush2.bf16.msra.mxu0 0
      %3518 = vmatprep.mubr.bf16.mxu0 0
      %3519 = vmatmul.mubr.bf16.gmra.mxu0 %v3484
      %v3520 = vpop.f32.mrf.mxu0
      %v3521 = vadd.f32 0.0, %v3520
      %v3522 = vpop.f32.mrf.mxu0
      %v3523 = vadd.f32 0.0, %v3522
      %v3524 = vpop.f32.mrf.mxu0
      %v3525 = vpop.f32.mrf.mxu0
      %3526 = vdwg.mxu0
      %3527 = vmatprep.subr.bf16.mxu0 0
      %3528 = vmatpush1.bf16.msra.mxu0 0
      %3529 = vmatprep.subr.bf16.mxu0 0
      %3530 = vmatpush1.bf16.msra.mxu0 0
      %3531 = vmatprep.subr.bf16.mxu0 0
      %3532 = vmatpush1.bf16.msra.mxu0 0
      %3533 = vmatprep.subr.bf16.mxu0 0
      %3534 = vmatpush1.bf16.msra.mxu0 0
      %3535 = vmatprep.subr.bf16.mxu0 0
      %3536 = vmatpush1.bf16.msra.mxu0 0
      %3537 = vmatprep.subr.bf16.mxu0 0
      %3538 = vmatpush1.bf16.msra.mxu0 0
      %3539 = vmatprep.subr.bf16.mxu0 0
      %3540 = vmatpush1.bf16.msra.mxu0 0
      %3541 = vmatprep.subr.bf16.mxu0 0
      %3542 = vmatpush1.bf16.msra.mxu0 %v3306
      %3543 = vmatprep.subr.bf16.mxu0 0
      %3544 = vmatpush2.bf16.msra.mxu0 0
      %3545 = vmatprep.subr.bf16.mxu0 0
      %3546 = vmatpush2.bf16.msra.mxu0 0
      %3547 = vmatprep.subr.bf16.mxu0 0
      %3548 = vmatpush2.bf16.msra.mxu0 0
      %3549 = vmatprep.subr.bf16.mxu0 0
      %3550 = vmatpush2.bf16.msra.mxu0 0
      %3551 = vmatprep.subr.bf16.mxu0 0
      %3552 = vmatpush2.bf16.msra.mxu0 0
      %3553 = vmatprep.subr.bf16.mxu0 0
      %3554 = vmatpush2.bf16.msra.mxu0 0
      %3555 = vmatprep.subr.bf16.mxu0 0
      %3556 = vmatpush2.bf16.msra.mxu0 0
      %3557 = vmatprep.subr.bf16.mxu0 0
      %3558 = vmatpush2.bf16.msra.mxu0 0
      %3559 = vmatprep.mubr.bf16.mxu0 0
      %3560 = vmatmul.mubr.bf16.gmra.mxu0 %v3484
      %v3561 = vpop.f32.mrf.mxu0
      %v3562 = vadd.f32 0.0, %v3561
      %v3563 = vpop.f32.mrf.mxu0
      %v3564 = vpop.f32.mrf.mxu0
      %v3565 = vpop.f32.mrf.mxu0
      %3566 = vdwg.mxu0
      %v3567 = vpack.c.bf16 %v3521, %v3521
      %v3568 = vpack.c.bf16 %v3523, %v3523
      %v3569 = vpack.c.bf16 %v3562, %v3562
      %s3570 = scalar_lea.vmem %s3, 12
      %v3571 = vld [vmem:[%s3570] sm:$0x7]
      %v3573 = vsel %vm3294, %v3571, 0
      %3575 = vmatprep.subr.bf16.mxu0 0
      %3576 = vmatpush1.bf16.msra.mxu0 0
      %3577 = vmatprep.subr.bf16.mxu0 0
      %3578 = vmatpush1.bf16.msra.mxu0 0
      %3579 = vmatprep.subr.bf16.mxu0 0
      %3580 = vmatpush1.bf16.msra.mxu0 0
      %3581 = vmatprep.subr.bf16.mxu0 0
      %3582 = vmatpush1.bf16.msra.mxu0 0
      %3583 = vmatprep.subr.bf16.mxu0 0
      %3584 = vmatpush1.bf16.msra.mxu0 0
      %3585 = vmatprep.subr.bf16.mxu0 0
      %3586 = vmatpush1.bf16.msra.mxu0 0
      %3587 = vmatprep.subr.bf16.mxu0 0
      %3588 = vmatpush1.bf16.msra.mxu0 0
      %3589 = vmatprep.subr.bf16.mxu0 %v3303
      %3590 = vmatpush1.bf16.msra.mxu0 %v3300
      %3591 = vmatprep.subr.bf16.mxu0 0
      %3592 = vmatpush2.bf16.msra.mxu0 0
      %3593 = vmatprep.subr.bf16.mxu0 0
      %3594 = vmatpush2.bf16.msra.mxu0 0
      %3595 = vmatprep.subr.bf16.mxu0 0
      %3596 = vmatpush2.bf16.msra.mxu0 0
      %3597 = vmatprep.subr.bf16.mxu0 0
      %3598 = vmatpush2.bf16.msra.mxu0 0
      %3599 = vmatprep.subr.bf16.mxu0 0
      %3600 = vmatpush2.bf16.msra.mxu0 0
      %3601 = vmatprep.subr.bf16.mxu0 0
      %3602 = vmatpush2.bf16.msra.mxu0 0
      %3603 = vmatprep.subr.bf16.mxu0 0
      %3604 = vmatpush2.bf16.msra.mxu0 0
      %3605 = vmatprep.subr.bf16.mxu0 0
      %3606 = vmatpush2.bf16.msra.mxu0 0
      %3607 = vmatprep.mubr.bf16.mxu0 0
      %3608 = vmatmul.mubr.bf16.gmra.mxu0 %v3573
      %v3609 = vpop.f32.mrf.mxu0
      %v3610 = vadd.f32 0.0, %v3609
      %v3611 = vpop.f32.mrf.mxu0
      %v3612 = vadd.f32 0.0, %v3611
      %v3613 = vpop.f32.mrf.mxu0
      %v3614 = vpop.f32.mrf.mxu0
      %3615 = vdwg.mxu0
      %3616 = vmatprep.subr.bf16.mxu0 0
      %3617 = vmatpush1.bf16.msra.mxu0 0
      %3618 = vmatprep.subr.bf16.mxu0 0
      %3619 = vmatpush1.bf16.msra.mxu0 0
      %3620 = vmatprep.subr.bf16.mxu0 0
      %3621 = vmatpush1.bf16.msra.mxu0 0
      %3622 = vmatprep.subr.bf16.mxu0 0
      %3623 = vmatpush1.bf16.msra.mxu0 0
      %3624 = vmatprep.subr.bf16.mxu0 0
      %3625 = vmatpush1.bf16.msra.mxu0 0
      %3626 = vmatprep.subr.bf16.mxu0 0
      %3627 = vmatpush1.bf16.msra.mxu0 0
      %3628 = vmatprep.subr.bf16.mxu0 0
      %3629 = vmatpush1.bf16.msra.mxu0 0
      %3630 = vmatprep.subr.bf16.mxu0 0
      %3631 = vmatpush1.bf16.msra.mxu0 %v3306
      %3632 = vmatprep.subr.bf16.mxu0 0
      %3633 = vmatpush2.bf16.msra.mxu0 0
      %3634 = vmatprep.subr.bf16.mxu0 0
      %3635 = vmatpush2.bf16.msra.mxu0 0
      %3636 = vmatprep.subr.bf16.mxu0 0
      %3637 = vmatpush2.bf16.msra.mxu0 0
      %3638 = vmatprep.subr.bf16.mxu0 0
      %3639 = vmatpush2.bf16.msra.mxu0 0
      %3640 = vmatprep.subr.bf16.mxu0 0
      %3641 = vmatpush2.bf16.msra.mxu0 0
      %3642 = vmatprep.subr.bf16.mxu0 0
      %3643 = vmatpush2.bf16.msra.mxu0 0
      %3644 = vmatprep.subr.bf16.mxu0 0
      %3645 = vmatpush2.bf16.msra.mxu0 0
      %3646 = vmatprep.subr.bf16.mxu0 0
      %3647 = vmatpush2.bf16.msra.mxu0 0
      %3648 = vmatprep.mubr.bf16.mxu0 0
      %3649 = vmatmul.mubr.bf16.gmra.mxu0 %v3573
      %v3650 = vpop.f32.mrf.mxu0
      %v3651 = vadd.f32 0.0, %v3650
      %v3652 = vpop.f32.mrf.mxu0
      %v3653 = vpop.f32.mrf.mxu0
      %v3654 = vpop.f32.mrf.mxu0
      %3655 = vdwg.mxu0
      %v3656 = vpack.c.bf16 %v3610, %v3610
      %v3657 = vpack.c.bf16 %v3612, %v3612
      %v3658 = vpack.c.bf16 %v3651, %v3651
      %v3659 = vld [vmem:[%s4] sm:$0xff]
      %v3660 = vld [vmem:[%s4 + $0x8] sm:$0xf]
      %v3661 = vld [vmem:[%s4 + $0xc] sm:$0xff]
      %v3662 = vld [vmem:[%s4 + $0x14] sm:$0xf]
      %v3663 = vld [vmem:[%s4 + $0x18] sm:$0xff]
      %v3664 = vld [vmem:[%s4 + $0x20] sm:$0xf]
      %v3665 = vld [vmem:[%s4 + $0x24] sm:$0xff]
      %v3666 = vld [vmem:[%s4 + $0x2c] sm:$0xf]
      %v3667 = vld [vmem:[%s4 + $0x30] sm:$0xff]
      %v3668 = vld [vmem:[%s4 + $0x38] sm:$0xf]
      %v3669 = vld [vmem:[%s4 + $0x3c] sm:$0xff]
      %v3670 = vld [vmem:[%s4 + $0x44] sm:$0xf]
      %v3671 = vld [vmem:[%s4 + $0x48] sm:$0xff]
      %v3672 = vld [vmem:[%s4 + $0x50] sm:$0xf]
      %v3673 = vld [vmem:[%s4 + $0x54] sm:$0xff]
      %v3674 = vld [vmem:[%s4 + $0x5c] sm:$0xf]
      %v3675 = vld [vmem:[%s4 + $0x60] sm:$0xff]
      %v3676 = vld [vmem:[%s4 + $0x68] sm:$0xf]
      %v3677 = vld [vmem:[%s4 + $0x6c] sm:$0xff]
      %v3678 = vld [vmem:[%s4 + $0x74] sm:$0xf]
      %v3679 = vld [vmem:[%s4 + $0x78] sm:$0xff]
      %v3680 = vld [vmem:[%s4 + $0x80] sm:$0xf]
      %v3681 = vld [vmem:[%s4 + $0x84] sm:$0xff]
      %v3682 = vld [vmem:[%s4 + $0x8c] sm:$0xf]
      %v3683 = vld [vmem:[%s4 + $0x90] sm:$0xff]
      %v3684 = vld [vmem:[%s4 + $0x98] sm:$0xf]
      %v3685 = vld [vmem:[%s4 + $0x9c] sm:$0xff]
      %v3686 = vld [vmem:[%s4 + $0xa4] sm:$0xf]
      %v3687 = vld [vmem:[%s4 + $0xa8] sm:$0xff]
      %v3688 = vld [vmem:[%s4 + $0xb0] sm:$0xf]
      %v3689 = vld [vmem:[%s4 + $0xb4] sm:$0xff]
      %v3690 = vld [vmem:[%s4 + $0xbc] sm:$0xf]
      %v3691 = vld [vmem:[%s4 + $0xc0] sm:$0xff]
      %v3692 = vld [vmem:[%s4 + $0xc8] sm:$0xf]
      %v3693 = vld [vmem:[%s4 + $0xcc] sm:$0xff]
      %v3694 = vld [vmem:[%s4 + $0xd4] sm:$0xf]
      %v3695 = vld [vmem:[%s4 + $0xd8] sm:$0xff]
      %v3696 = vld [vmem:[%s4 + $0xe0] sm:$0xf]
      %v3697 = vld [vmem:[%s4 + $0xe4] sm:$0xff]
      %v3698 = vld [vmem:[%s4 + $0xec] sm:$0xf]
      %v3699 = vld [vmem:[%s4 + $0xf0] sm:$0xff]
      %v3700 = vld [vmem:[%s4 + $0xf8] sm:$0xf]
      %v3701 = vld [vmem:[%s4 + $0xfc] sm:$0xff]
      %v3702 = vld [vmem:[%s4 + $0x104] sm:$0xf]
      %v3703 = vld [vmem:[%s4 + $0x108] sm:$0xff]
      %v3704 = vld [vmem:[%s4 + $0x110] sm:$0xf]
      %v3705 = vld [vmem:[%s4 + $0x114] sm:$0xff]
      %v3706 = vld [vmem:[%s4 + $0x11c] sm:$0xf]
      %v3707 = vld [vmem:[%s4 + $0x120] sm:$0xff]
      %v3708 = vld [vmem:[%s4 + $0x128] sm:$0xf]
      %v3709 = vld [vmem:[%s4 + $0x12c] sm:$0xff]
      %v3710 = vld [vmem:[%s4 + $0x134] sm:$0xf]
      %v3711 = vld [vmem:[%s4 + $0x138] sm:$0xff]
      %v3712 = vld [vmem:[%s4 + $0x140] sm:$0xf]
      %v3713 = vld [vmem:[%s4 + $0x144] sm:$0xff]
      %v3714 = vld [vmem:[%s4 + $0x14c] sm:$0xf]
      %v3715 = vld [vmem:[%s4 + $0x150] sm:$0xff]
      %v3716 = vld [vmem:[%s4 + $0x158] sm:$0xf]
      %v3717 = vld [vmem:[%s4 + $0x15c] sm:$0xff]
      %v3718 = vld [vmem:[%s4 + $0x164] sm:$0xf]
      %v3719 = vld [vmem:[%s4 + $0x168] sm:$0xff]
      %v3720 = vld [vmem:[%s4 + $0x170] sm:$0xf]
      %v3721 = vld [vmem:[%s4 + $0x174] sm:$0xff]
      %v3722 = vld [vmem:[%s4 + $0x17c] sm:$0xf]
      %v3723 = vld [vmem:[%s4 + $0x180] sm:$0xff]
      %v3724 = vld [vmem:[%s4 + $0x188] sm:$0xf]
      %v3725 = vld [vmem:[%s4 + $0x18c] sm:$0xff]
      %v3726 = vld [vmem:[%s4 + $0x194] sm:$0xf]
      %v3727 = vld [vmem:[%s4 + $0x198] sm:$0xff]
      %v3728 = vld [vmem:[%s4 + $0x1a0] sm:$0xf]
      %v3729 = vld [vmem:[%s4 + $0x1a4] sm:$0xff]
      %v3730 = vld [vmem:[%s4 + $0x1ac] sm:$0xf]
      %v3731 = vld [vmem:[%s4 + $0x1b0] sm:$0xff]
      %v3732 = vld [vmem:[%s4 + $0x1b8] sm:$0xf]
      %v3733 = vld [vmem:[%s4 + $0x1bc] sm:$0xff]
      %v3734 = vld [vmem:[%s4 + $0x1c4] sm:$0xf]
      %v3735 = vld [vmem:[%s4 + $0x1c8] sm:$0xff]
      %v3736 = vld [vmem:[%s4 + $0x1d0] sm:$0xf]
      %v3737 = vld [vmem:[%s4 + $0x1d4] sm:$0xff]
      %v3738 = vld [vmem:[%s4 + $0x1dc] sm:$0xf]
      %v3739 = vld [vmem:[%s4 + $0x1e0] sm:$0xff]
      %v3740 = vld [vmem:[%s4 + $0x1e8] sm:$0xf]
      %v3741 = vld [vmem:[%s4 + $0x1ec] sm:$0xff]
      %v3742 = vld [vmem:[%s4 + $0x1f4] sm:$0xf]
      %v3743 = vld [vmem:[%s4 + $0x1f8] sm:$0xff]
      %v3744 = vld [vmem:[%s4 + $0x200] sm:$0xf]
      %v3745 = vld [vmem:[%s4 + $0x204] sm:$0xff]
      %v3746 = vld [vmem:[%s4 + $0x20c] sm:$0xf]
      %v3747 = vld [vmem:[%s4 + $0x210] sm:$0xff]
      %v3748 = vld [vmem:[%s4 + $0x218] sm:$0xf]
      %v3749 = vld [vmem:[%s4 + $0x21c] sm:$0xff]
      %v3750 = vld [vmem:[%s4 + $0x224] sm:$0xf]
      %v3751 = vld [vmem:[%s4 + $0x228] sm:$0xff]
      %v3752 = vld [vmem:[%s4 + $0x230] sm:$0xf]
      %v3753 = vld [vmem:[%s4 + $0x234] sm:$0xff]
      %v3754 = vld [vmem:[%s4 + $0x23c] sm:$0xf]
      %v3755 = vld [vmem:[%s4 + $0x240] sm:$0xff]
      %v3756 = vld [vmem:[%s4 + $0x248] sm:$0xf]
      %v3757 = vld [vmem:[%s4 + $0x24c] sm:$0xff]
      %v3758 = vld [vmem:[%s4 + $0x254] sm:$0xf]
      %v3759 = vld [vmem:[%s4 + $0x258] sm:$0xff]
      %v3760 = vld [vmem:[%s4 + $0x260] sm:$0xf]
      %v3761 = vld [vmem:[%s4 + $0x264] sm:$0xff]
      %v3762 = vld [vmem:[%s4 + $0x26c] sm:$0xf]
      %v3763 = vld [vmem:[%s4 + $0x270] sm:$0xff]
      %v3764 = vld [vmem:[%s4 + $0x278] sm:$0xf]
      %v3765 = vld [vmem:[%s4 + $0x27c] sm:$0xff]
      %v3766 = vld [vmem:[%s4 + $0x284] sm:$0xf]
      %v3767 = vld [vmem:[%s4 + $0x288] sm:$0xff]
      %v3768 = vld [vmem:[%s4 + $0x290] sm:$0xf]
      %v3769 = vld [vmem:[%s4 + $0x294] sm:$0xff]
      %v3770 = vld [vmem:[%s4 + $0x29c] sm:$0xf]
      %v3771 = vld [vmem:[%s4 + $0x2a0] sm:$0xff]
      %v3772 = vld [vmem:[%s4 + $0x2a8] sm:$0xf]
      %v3773 = vld [vmem:[%s4 + $0x2ac] sm:$0xff]
      %v3774 = vld [vmem:[%s4 + $0x2b4] sm:$0xf]
      %v3775 = vld [vmem:[%s4 + $0x2b8] sm:$0xff]
      %v3776 = vld [vmem:[%s4 + $0x2c0] sm:$0xf]
      %v3777 = vld [vmem:[%s4 + $0x2c4] sm:$0xff]
      %v3778 = vld [vmem:[%s4 + $0x2cc] sm:$0xf]
      %v3779 = vld [vmem:[%s4 + $0x2d0] sm:$0xff]
      %v3780 = vld [vmem:[%s4 + $0x2d8] sm:$0xf]
      %v3781 = vld [vmem:[%s4 + $0x2dc] sm:$0xff]
      %v3782 = vld [vmem:[%s4 + $0x2e4] sm:$0xf]
      %v3783 = vld [vmem:[%s4 + $0x2e8] sm:$0xff]
      %v3784 = vld [vmem:[%s4 + $0x2f0] sm:$0xf]
      %v3785 = vld [vmem:[%s4 + $0x2f4] sm:$0xff]
      %v3786 = vld [vmem:[%s4 + $0x2fc] sm:$0xf]
      %v3787 = vld [vmem:[%s4 + $0x300] sm:$0xff]
      %v3788 = vld [vmem:[%s4 + $0x308] sm:$0xf]
      %v3789 = vld [vmem:[%s4 + $0x30c] sm:$0xff]
      %v3790 = vld [vmem:[%s4 + $0x314] sm:$0xf]
      %v3791 = vld [vmem:[%s4 + $0x318] sm:$0xff]
      %v3792 = vld [vmem:[%s4 + $0x320] sm:$0xf]
      %v3793 = vld [vmem:[%s4 + $0x324] sm:$0xff]
      %v3794 = vld [vmem:[%s4 + $0x32c] sm:$0xf]
      %v3795 = vld [vmem:[%s4 + $0x330] sm:$0xff]
      %v3796 = vld [vmem:[%s4 + $0x338] sm:$0xf]
      %v3797 = vld [vmem:[%s4 + $0x33c] sm:$0xff]
      %v3798 = vld [vmem:[%s4 + $0x344] sm:$0xf]
      %v3799 = vld [vmem:[%s4 + $0x348] sm:$0xff]
      %v3800 = vld [vmem:[%s4 + $0x350] sm:$0xf]
      %v3801 = vld [vmem:[%s4 + $0x354] sm:$0xff]
      %v3802 = vld [vmem:[%s4 + $0x35c] sm:$0xf]
      %v3803 = vld [vmem:[%s4 + $0x360] sm:$0xff]
      %v3804 = vld [vmem:[%s4 + $0x368] sm:$0xf]
      %v3805 = vld [vmem:[%s4 + $0x36c] sm:$0xff]
      %v3806 = vld [vmem:[%s4 + $0x374] sm:$0xf]
      %v3807 = vld [vmem:[%s4 + $0x378] sm:$0xff]
      %v3808 = vld [vmem:[%s4 + $0x380] sm:$0xf]
      %v3809 = vld [vmem:[%s4 + $0x384] sm:$0xff]
      %v3810 = vld [vmem:[%s4 + $0x38c] sm:$0xf]
      %v3811 = vld [vmem:[%s4 + $0x390] sm:$0xff]
      %v3812 = vld [vmem:[%s4 + $0x398] sm:$0xf]
      %v3813 = vld [vmem:[%s4 + $0x39c] sm:$0xff]
      %v3814 = vld [vmem:[%s4 + $0x3a4] sm:$0xf]
      %v3815 = vld [vmem:[%s4 + $0x3a8] sm:$0xff]
      %v3816 = vld [vmem:[%s4 + $0x3b0] sm:$0xf]
      %v3817 = vld [vmem:[%s4 + $0x3b4] sm:$0xff]
      %v3818 = vld [vmem:[%s4 + $0x3bc] sm:$0xf]
      %v3819 = vld [vmem:[%s4 + $0x3c0] sm:$0xff]
      %v3820 = vld [vmem:[%s4 + $0x3c8] sm:$0xf]
      %v3821 = vld [vmem:[%s4 + $0x3cc] sm:$0xff]
      %v3822 = vld [vmem:[%s4 + $0x3d4] sm:$0xf]
      %v3823 = vld [vmem:[%s4 + $0x3d8] sm:$0xff]
      %v3824 = vld [vmem:[%s4 + $0x3e0] sm:$0xf]
      %v3825 = vld [vmem:[%s4 + $0x3e4] sm:$0xff]
      %v3826 = vld [vmem:[%s4 + $0x3ec] sm:$0xf]
      %v3827 = vld [vmem:[%s4 + $0x3f0] sm:$0xff]
      %v3828 = vld [vmem:[%s4 + $0x3f8] sm:$0xf]
      %v3829 = vld [vmem:[%s4 + $0x3fc] sm:$0xff]
      %v3830 = vld [vmem:[%s4 + $0x404] sm:$0xf]
      %v3831 = vld [vmem:[%s4 + $0x408] sm:$0xff]
      %v3832 = vld [vmem:[%s4 + $0x410] sm:$0xf]
      %v3833 = vld [vmem:[%s4 + $0x414] sm:$0xff]
      %v3834 = vld [vmem:[%s4 + $0x41c] sm:$0xf]
      %v3835 = vld [vmem:[%s4 + $0x420] sm:$0xff]
      %v3836 = vld [vmem:[%s4 + $0x428] sm:$0xf]
      %v3837 = vld [vmem:[%s4 + $0x42c] sm:$0xff]
      %v3838 = vld [vmem:[%s4 + $0x434] sm:$0xf]
      %v3839 = vld [vmem:[%s4 + $0x438] sm:$0xff]
      %v3840 = vld [vmem:[%s4 + $0x440] sm:$0xf]
      %v3841 = vld [vmem:[%s4 + $0x444] sm:$0xff]
      %v3842 = vld [vmem:[%s4 + $0x44c] sm:$0xf]
      %v3843 = vld [vmem:[%s4 + $0x450] sm:$0xff]
      %v3844 = vld [vmem:[%s4 + $0x458] sm:$0xf]
      %v3845 = vld [vmem:[%s4 + $0x45c] sm:$0xff]
      %v3846 = vld [vmem:[%s4 + $0x464] sm:$0xf]
      %v3847 = vld [vmem:[%s4 + $0x468] sm:$0xff]
      %v3848 = vld [vmem:[%s4 + $0x470] sm:$0xf]
      %v3849 = vld [vmem:[%s4 + $0x474] sm:$0xff]
      %v3850 = vld [vmem:[%s4 + $0x47c] sm:$0xf]
      %v3851 = vld [vmem:[%s4 + $0x480] sm:$0xff]
      %v3852 = vld [vmem:[%s4 + $0x488] sm:$0xf]
      %v3853 = vld [vmem:[%s4 + $0x48c] sm:$0xff]
      %v3854 = vld [vmem:[%s4 + $0x494] sm:$0xf]
      %v3855 = vld [vmem:[%s4 + $0x498] sm:$0xff]
      %v3856 = vld [vmem:[%s4 + $0x4a0] sm:$0xf]
      %v3857 = vld [vmem:[%s4 + $0x4a4] sm:$0xff]
      %v3858 = vld [vmem:[%s4 + $0x4ac] sm:$0xf]
      %v3859 = vld [vmem:[%s4 + $0x4b0] sm:$0xff]
      %v3860 = vld [vmem:[%s4 + $0x4b8] sm:$0xf]
      %v3861 = vld [vmem:[%s4 + $0x4bc] sm:$0xff]
      %v3862 = vld [vmem:[%s4 + $0x4c4] sm:$0xf]
      %v3863 = vld [vmem:[%s4 + $0x4c8] sm:$0xff]
      %v3864 = vld [vmem:[%s4 + $0x4d0] sm:$0xf]
      %v3865 = vld [vmem:[%s4 + $0x4d4] sm:$0xff]
      %v3866 = vld [vmem:[%s4 + $0x4dc] sm:$0xf]
      %v3867 = vld [vmem:[%s4 + $0x4e0] sm:$0xff]
      %v3868 = vld [vmem:[%s4 + $0x4e8] sm:$0xf]
      %v3869 = vld [vmem:[%s4 + $0x4ec] sm:$0xff]
      %v3870 = vld [vmem:[%s4 + $0x4f4] sm:$0xf]
      %v3871 = vld [vmem:[%s4 + $0x4f8] sm:$0xff]
      %v3872 = vld [vmem:[%s4 + $0x500] sm:$0xf]
      %v3873 = vld [vmem:[%s4 + $0x504] sm:$0xff]
      %v3874 = vld [vmem:[%s4 + $0x50c] sm:$0xf]
      %v3875 = vld [vmem:[%s4 + $0x510] sm:$0xff]
      %v3876 = vld [vmem:[%s4 + $0x518] sm:$0xf]
      %v3877 = vld [vmem:[%s4 + $0x51c] sm:$0xff]
      %v3878 = vld [vmem:[%s4 + $0x524] sm:$0xf]
      %v3879 = vld [vmem:[%s4 + $0x528] sm:$0xff]
      %v3880 = vld [vmem:[%s4 + $0x530] sm:$0xf]
      %v3881 = vld [vmem:[%s4 + $0x534] sm:$0xff]
      %v3882 = vld [vmem:[%s4 + $0x53c] sm:$0xf]
      %v3883 = vld [vmem:[%s4 + $0x540] sm:$0xff]
      %v3884 = vld [vmem:[%s4 + $0x548] sm:$0xf]
      %v3885 = vld [vmem:[%s4 + $0x54c] sm:$0xff]
      %v3886 = vld [vmem:[%s4 + $0x554] sm:$0xf]
      %v3887 = vld [vmem:[%s4 + $0x558] sm:$0xff]
      %v3888 = vld [vmem:[%s4 + $0x560] sm:$0xf]
      %v3889 = vld [vmem:[%s4 + $0x564] sm:$0xff]
      %v3890 = vld [vmem:[%s4 + $0x56c] sm:$0xf]
      %v3891 = vld [vmem:[%s4 + $0x570] sm:$0xff]
      %v3892 = vld [vmem:[%s4 + $0x578] sm:$0xf]
      %v3893 = vld [vmem:[%s4 + $0x57c] sm:$0xff]
      %v3894 = vld [vmem:[%s4 + $0x584] sm:$0xf]
      %v3895 = vld [vmem:[%s4 + $0x588] sm:$0xff]
      %v3896 = vld [vmem:[%s4 + $0x590] sm:$0xf]
      %v3897 = vld [vmem:[%s4 + $0x594] sm:$0xff]
      %v3898 = vld [vmem:[%s4 + $0x59c] sm:$0xf]
      %v3899 = vld [vmem:[%s4 + $0x5a0] sm:$0xff]
      %v3900 = vld [vmem:[%s4 + $0x5a8] sm:$0xf]
      %v3901 = vld [vmem:[%s4 + $0x5ac] sm:$0xff]
      %v3902 = vld [vmem:[%s4 + $0x5b4] sm:$0xf]
      %v3903 = vld [vmem:[%s4 + $0x5b8] sm:$0xff]
      %v3904 = vld [vmem:[%s4 + $0x5c0] sm:$0xf]
      %v3905 = vld [vmem:[%s4 + $0x5c4] sm:$0xff]
      %v3906 = vld [vmem:[%s4 + $0x5cc] sm:$0xf]
      %v3907 = vld [vmem:[%s4 + $0x5d0] sm:$0xff]
      %v3908 = vld [vmem:[%s4 + $0x5d8] sm:$0xf]
      %v3909 = vld [vmem:[%s4 + $0x5dc] sm:$0xff]
      %v3910 = vld [vmem:[%s4 + $0x5e4] sm:$0xf]
      %v3911 = vld [vmem:[%s4 + $0x5e8] sm:$0xff]
      %v3912 = vld [vmem:[%s4 + $0x5f0] sm:$0xf]
      %v3913 = vld [vmem:[%s4 + $0x5f4] sm:$0xff]
      %v3914 = vld [vmem:[%s4 + $0x5fc] sm:$0xf]
      %v3915 = vld [vmem:[%s4 + $0x600] sm:$0xff]
      %v3916 = vld [vmem:[%s4 + $0x608] sm:$0xf]
      %v3917 = vld [vmem:[%s4 + $0x60c] sm:$0xff]
      %v3918 = vld [vmem:[%s4 + $0x614] sm:$0xf]
      %v3919 = vld [vmem:[%s4 + $0x618] sm:$0xff]
      %v3920 = vld [vmem:[%s4 + $0x620] sm:$0xf]
      %v3921 = vld [vmem:[%s4 + $0x624] sm:$0xff]
      %v3922 = vld [vmem:[%s4 + $0x62c] sm:$0xf]
      %v3923 = vld [vmem:[%s4 + $0x630] sm:$0xff]
      %v3924 = vld [vmem:[%s4 + $0x638] sm:$0xf]
      %v3925 = vld [vmem:[%s4 + $0x63c] sm:$0xff]
      %v3926 = vld [vmem:[%s4 + $0x644] sm:$0xf]
      %v3927 = vld [vmem:[%s4 + $0x648] sm:$0xff]
      %v3928 = vld [vmem:[%s4 + $0x650] sm:$0xf]
      %v3929 = vld [vmem:[%s4 + $0x654] sm:$0xff]
      %v3930 = vld [vmem:[%s4 + $0x65c] sm:$0xf]
      %v3931 = vld [vmem:[%s4 + $0x660] sm:$0xff]
      %v3932 = vld [vmem:[%s4 + $0x668] sm:$0xf]
      %v3933 = vld [vmem:[%s4 + $0x66c] sm:$0xff]
      %v3934 = vld [vmem:[%s4 + $0x674] sm:$0xf]
      %v3935 = vld [vmem:[%s4 + $0x678] sm:$0xff]
      %v3936 = vld [vmem:[%s4 + $0x680] sm:$0xf]
      %v3937 = vld [vmem:[%s4 + $0x684] sm:$0xff]
      %v3938 = vld [vmem:[%s4 + $0x68c] sm:$0xf]
      %v3939 = vld [vmem:[%s4 + $0x690] sm:$0xff]
      %v3940 = vld [vmem:[%s4 + $0x698] sm:$0xf]
      %v3941 = vld [vmem:[%s4 + $0x69c] sm:$0xff]
      %v3942 = vld [vmem:[%s4 + $0x6a4] sm:$0xf]
      %v3943 = vld [vmem:[%s4 + $0x6a8] sm:$0xff]
      %v3944 = vld [vmem:[%s4 + $0x6b0] sm:$0xf]
      %v3945 = vld [vmem:[%s4 + $0x6b4] sm:$0xff]
      %v3946 = vld [vmem:[%s4 + $0x6bc] sm:$0xf]
      %v3947 = vld [vmem:[%s4 + $0x6c0] sm:$0xff]
      %v3948 = vld [vmem:[%s4 + $0x6c8] sm:$0xf]
      %v3949 = vld [vmem:[%s4 + $0x6cc] sm:$0xff]
      %v3950 = vld [vmem:[%s4 + $0x6d4] sm:$0xf]
      %v3951 = vld [vmem:[%s4 + $0x6d8] sm:$0xff]
      %v3952 = vld [vmem:[%s4 + $0x6e0] sm:$0xf]
      %v3953 = vld [vmem:[%s4 + $0x6e4] sm:$0xff]
      %v3954 = vld [vmem:[%s4 + $0x6ec] sm:$0xf]
      %v3955 = vld [vmem:[%s4 + $0x6f0] sm:$0xff]
      %v3956 = vld [vmem:[%s4 + $0x6f8] sm:$0xf]
      %v3957 = vld [vmem:[%s4 + $0x6fc] sm:$0xff]
      %v3958 = vld [vmem:[%s4 + $0x704] sm:$0xf]
      %v3959 = vld [vmem:[%s4 + $0x708] sm:$0xff]
      %v3960 = vld [vmem:[%s4 + $0x710] sm:$0xf]
      %v3961 = vld [vmem:[%s4 + $0x714] sm:$0xff]
      %v3962 = vld [vmem:[%s4 + $0x71c] sm:$0xf]
      %v3963 = vld [vmem:[%s4 + $0x720] sm:$0xff]
      %v3964 = vld [vmem:[%s4 + $0x728] sm:$0xf]
      %v3965 = vld [vmem:[%s4 + $0x72c] sm:$0xff]
      %v3966 = vld [vmem:[%s4 + $0x734] sm:$0xf]
      %v3967 = vld [vmem:[%s4 + $0x738] sm:$0xff]
      %v3968 = vld [vmem:[%s4 + $0x740] sm:$0xf]
      %v3969 = vld [vmem:[%s4 + $0x744] sm:$0xff]
      %v3970 = vld [vmem:[%s4 + $0x74c] sm:$0xf]
      %v3971 = vld [vmem:[%s4 + $0x750] sm:$0xff]
      %v3972 = vld [vmem:[%s4 + $0x758] sm:$0xf]
      %v3973 = vld [vmem:[%s4 + $0x75c] sm:$0xff]
      %v3974 = vld [vmem:[%s4 + $0x764] sm:$0xf]
      %v3975 = vld [vmem:[%s4 + $0x768] sm:$0xff]
      %v3976 = vld [vmem:[%s4 + $0x770] sm:$0xf]
      %v3977 = vld [vmem:[%s4 + $0x774] sm:$0xff]
      %v3978 = vld [vmem:[%s4 + $0x77c] sm:$0xf]
      %v3979 = vld [vmem:[%s4 + $0x780] sm:$0xff]
      %v3980 = vld [vmem:[%s4 + $0x788] sm:$0xf]
      %v3981 = vld [vmem:[%s4 + $0x78c] sm:$0xff]
      %v3982 = vld [vmem:[%s4 + $0x794] sm:$0xf]
      %v3983 = vld [vmem:[%s4 + $0x798] sm:$0xff]
      %v3984 = vld [vmem:[%s4 + $0x7a0] sm:$0xf]
      %v3985 = vld [vmem:[%s4 + $0x7a4] sm:$0xff]
      %v3986 = vld [vmem:[%s4 + $0x7ac] sm:$0xf]
      %v3987 = vld [vmem:[%s4 + $0x7b0] sm:$0xff]
      %v3988 = vld [vmem:[%s4 + $0x7b8] sm:$0xf]
      %v3989 = vld [vmem:[%s4 + $0x7bc] sm:$0xff]
      %v3990 = vld [vmem:[%s4 + $0x7c4] sm:$0xf]
      %v3991 = vld [vmem:[%s4 + $0x7c8] sm:$0xff]
      %v3992 = vld [vmem:[%s4 + $0x7d0] sm:$0xf]
      %v3993 = vld [vmem:[%s4 + $0x7d4] sm:$0xff]
      %v3994 = vld [vmem:[%s4 + $0x7dc] sm:$0xf]
      %v3995 = vld [vmem:[%s4 + $0x7e0] sm:$0xff]
      %v3996 = vld [vmem:[%s4 + $0x7e8] sm:$0xf]
      %v3997 = vld [vmem:[%s4 + $0x7ec] sm:$0xff]
      %v3998 = vld [vmem:[%s4 + $0x7f4] sm:$0xf]
      %v3999 = vld [vmem:[%s4 + $0x7f8] sm:$0xff]
      %v4000 = vld [vmem:[%s4 + $0x800] sm:$0xf]
      %v4001 = vld [vmem:[%s4 + $0x804] sm:$0xff]
      %v4002 = vld [vmem:[%s4 + $0x80c] sm:$0xf]
      %v4003 = vld [vmem:[%s4 + $0x810] sm:$0xff]
      %v4004 = vld [vmem:[%s4 + $0x818] sm:$0xf]
      %v4005 = vld [vmem:[%s4 + $0x81c] sm:$0xff]
      %v4006 = vld [vmem:[%s4 + $0x824] sm:$0xf]
      %v4007 = vld [vmem:[%s4 + $0x828] sm:$0xff]
      %v4008 = vld [vmem:[%s4 + $0x830] sm:$0xf]
      %v4009 = vld [vmem:[%s4 + $0x834] sm:$0xff]
      %v4010 = vld [vmem:[%s4 + $0x83c] sm:$0xf]
      %v4011 = vld [vmem:[%s4 + $0x840] sm:$0xff]
      %v4012 = vld [vmem:[%s4 + $0x848] sm:$0xf]
      %v4013 = vld [vmem:[%s4 + $0x84c] sm:$0xff]
      %v4014 = vld [vmem:[%s4 + $0x854] sm:$0xf]
      %v4015 = vld [vmem:[%s4 + $0x858] sm:$0xff]
      %v4016 = vld [vmem:[%s4 + $0x860] sm:$0xf]
      %v4017 = vld [vmem:[%s4 + $0x864] sm:$0xff]
      %v4018 = vld [vmem:[%s4 + $0x86c] sm:$0xf]
      %v4019 = vld [vmem:[%s4 + $0x870] sm:$0xff]
      %v4020 = vld [vmem:[%s4 + $0x878] sm:$0xf]
      %v4021 = vld [vmem:[%s4 + $0x87c] sm:$0xff]
      %v4022 = vld [vmem:[%s4 + $0x884] sm:$0xf]
      %v4023 = vld [vmem:[%s4 + $0x888] sm:$0xff]
      %v4024 = vld [vmem:[%s4 + $0x890] sm:$0xf]
      %v4025 = vld [vmem:[%s4 + $0x894] sm:$0xff]
      %v4026 = vld [vmem:[%s4 + $0x89c] sm:$0xf]
      %v4027 = vld [vmem:[%s4 + $0x8a0] sm:$0xff]
      %v4028 = vld [vmem:[%s4 + $0x8a8] sm:$0xf]
      %v4029 = vld [vmem:[%s4 + $0x8ac] sm:$0xff]
      %v4030 = vld [vmem:[%s4 + $0x8b4] sm:$0xf]
      %v4031 = vld [vmem:[%s4 + $0x8b8] sm:$0xff]
      %v4032 = vld [vmem:[%s4 + $0x8c0] sm:$0xf]
      %v4033 = vld [vmem:[%s4 + $0x8c4] sm:$0xff]
      %v4034 = vld [vmem:[%s4 + $0x8cc] sm:$0xf]
      %v4035 = vld [vmem:[%s4 + $0x8d0] sm:$0xff]
      %v4036 = vld [vmem:[%s4 + $0x8d8] sm:$0xf]
      %v4037 = vld [vmem:[%s4 + $0x8dc] sm:$0xff]
      %v4038 = vld [vmem:[%s4 + $0x8e4] sm:$0xf]
      %v4039 = vld [vmem:[%s4 + $0x8e8] sm:$0xff]
      %v4040 = vld [vmem:[%s4 + $0x8f0] sm:$0xf]
      %v4041 = vld [vmem:[%s4 + $0x8f4] sm:$0xff]
      %v4042 = vld [vmem:[%s4 + $0x8fc] sm:$0xf]
      %v4043 = vld [vmem:[%s5] sm:$0x7]
      %v4045 = vlaneseq
      %v4046 = vshrl.u32 %v4045, 7
      %v4047 = vsub.s32 0, %v4046
      %v4048 = vrot.slane %v4043, %v4047
      %v4049 = vlaneseq
      %v4050 = vshrl.u32 %v4049, 7
      %v4051 = vsub.s32 1, %v4050
      %v4052 = vrot.slane %v4043, %v4051
      %v4053 = vlaneseq
      %v4054 = vshrl.u32 %v4053, 7
      %v4055 = vsub.s32 2, %v4054
      %v4056 = vrot.slane %v4043, %v4055
      %v4444 = vunpack.c.l.b16 %v3659
      %v4445 = vunpack.c.h.b16 %v3659
      %v4446 = vunpack.c.l.b16 %v3660
      %v4447 = vunpack.c.l.b16 %v3661
      %v4448 = vunpack.c.h.b16 %v3661
      %v4449 = vunpack.c.l.b16 %v3662
      %v4450 = vunpack.c.l.b16 %v3663
      %v4451 = vunpack.c.h.b16 %v3663
      %v4452 = vunpack.c.l.b16 %v3664
      %v4453 = vunpack.c.l.b16 %v3665
      %v4454 = vunpack.c.h.b16 %v3665
      %v4455 = vunpack.c.l.b16 %v3666
      %v4456 = vunpack.c.l.b16 %v3667
      %v4457 = vunpack.c.h.b16 %v3667
      %v4458 = vunpack.c.l.b16 %v3668
      %v4459 = vunpack.c.l.b16 %v3669
      %v4460 = vunpack.c.h.b16 %v3669
      %v4461 = vunpack.c.l.b16 %v3670
      %v4462 = vunpack.c.l.b16 %v3671
      %v4463 = vunpack.c.h.b16 %v3671
      %v4464 = vunpack.c.l.b16 %v3672
      %v4465 = vunpack.c.l.b16 %v3673
      %v4466 = vunpack.c.h.b16 %v3673
      %v4467 = vunpack.c.l.b16 %v3674
      %v4468 = vunpack.c.l.b16 %v3675
      %v4469 = vunpack.c.h.b16 %v3675
      %v4470 = vunpack.c.l.b16 %v3676
      %v4471 = vunpack.c.l.b16 %v3677
      %v4472 = vunpack.c.h.b16 %v3677
      %v4473 = vunpack.c.l.b16 %v3678
      %v4474 = vunpack.c.l.b16 %v3679
      %v4475 = vunpack.c.h.b16 %v3679
      %v4476 = vunpack.c.l.b16 %v3680
      %v4477 = vunpack.c.l.b16 %v3681
      %v4478 = vunpack.c.h.b16 %v3681
      %v4479 = vunpack.c.l.b16 %v3682
      %v4480 = vunpack.c.l.b16 %v3683
      %v4481 = vunpack.c.h.b16 %v3683
      %v4482 = vunpack.c.l.b16 %v3684
      %v4483 = vunpack.c.l.b16 %v3685
      %v4484 = vunpack.c.h.b16 %v3685
      %v4485 = vunpack.c.l.b16 %v3686
      %v4486 = vunpack.c.l.b16 %v3687
      %v4487 = vunpack.c.h.b16 %v3687
      %v4488 = vunpack.c.l.b16 %v3688
      %v4489 = vunpack.c.l.b16 %v3689
      %v4490 = vunpack.c.h.b16 %v3689
      %v4491 = vunpack.c.l.b16 %v3690
      %v4492 = vunpack.c.l.b16 %v3691
      %v4493 = vunpack.c.h.b16 %v3691
      %v4494 = vunpack.c.l.b16 %v3692
      %v4495 = vunpack.c.l.b16 %v3693
      %v4496 = vunpack.c.h.b16 %v3693
      %v4497 = vunpack.c.l.b16 %v3694
      %v4498 = vunpack.c.l.b16 %v3695
      %v4499 = vunpack.c.h.b16 %v3695
      %v4500 = vunpack.c.l.b16 %v3696
      %v4501 = vunpack.c.l.b16 %v3697
      %v4502 = vunpack.c.h.b16 %v3697
      %v4503 = vunpack.c.l.b16 %v3698
      %v4504 = vunpack.c.l.b16 %v3699
      %v4505 = vunpack.c.h.b16 %v3699
      %v4506 = vunpack.c.l.b16 %v3700
      %v4507 = vunpack.c.l.b16 %v3701
      %v4508 = vunpack.c.h.b16 %v3701
      %v4509 = vunpack.c.l.b16 %v3702
      %v4510 = vunpack.c.l.b16 %v3703
      %v4511 = vunpack.c.h.b16 %v3703
      %v4512 = vunpack.c.l.b16 %v3704
      %v4513 = vunpack.c.l.b16 %v3705
      %v4514 = vunpack.c.h.b16 %v3705
      %v4515 = vunpack.c.l.b16 %v3706
      %v4516 = vunpack.c.l.b16 %v3707
      %v4517 = vunpack.c.h.b16 %v3707
      %v4518 = vunpack.c.l.b16 %v3708
      %v4519 = vunpack.c.l.b16 %v3709
      %v4520 = vunpack.c.h.b16 %v3709
      %v4521 = vunpack.c.l.b16 %v3710
      %v4522 = vunpack.c.l.b16 %v3711
      %v4523 = vunpack.c.h.b16 %v3711
      %v4524 = vunpack.c.l.b16 %v3712
      %v4525 = vunpack.c.l.b16 %v3713
      %v4526 = vunpack.c.h.b16 %v3713
      %v4527 = vunpack.c.l.b16 %v3714
      %v4528 = vunpack.c.l.b16 %v3715
      %v4529 = vunpack.c.h.b16 %v3715
      %v4530 = vunpack.c.l.b16 %v3716
      %v4531 = vunpack.c.l.b16 %v3717
      %v4532 = vunpack.c.h.b16 %v3717
      %v4533 = vunpack.c.l.b16 %v3718
      %v4534 = vunpack.c.l.b16 %v3719
      %v4535 = vunpack.c.h.b16 %v3719
      %v4536 = vunpack.c.l.b16 %v3720
      %v4537 = vunpack.c.l.b16 %v3721
      %v4538 = vunpack.c.h.b16 %v3721
      %v4539 = vunpack.c.l.b16 %v3722
      %v4540 = vunpack.c.l.b16 %v3723
      %v4541 = vunpack.c.h.b16 %v3723
      %v4542 = vunpack.c.l.b16 %v3724
      %v4543 = vunpack.c.l.b16 %v3725
      %v4544 = vunpack.c.h.b16 %v3725
      %v4545 = vunpack.c.l.b16 %v3726
      %v4546 = vunpack.c.l.b16 %v3727
      %v4547 = vunpack.c.h.b16 %v3727
      %v4548 = vunpack.c.l.b16 %v3728
      %v4549 = vunpack.c.l.b16 %v3729
      %v4550 = vunpack.c.h.b16 %v3729
      %v4551 = vunpack.c.l.b16 %v3730
      %v4552 = vunpack.c.l.b16 %v3731
      %v4553 = vunpack.c.h.b16 %v3731
      %v4554 = vunpack.c.l.b16 %v3732
      %v4555 = vunpack.c.l.b16 %v3733
      %v4556 = vunpack.c.h.b16 %v3733
      %v4557 = vunpack.c.l.b16 %v3734
      %v4558 = vunpack.c.l.b16 %v3735
      %v4559 = vunpack.c.h.b16 %v3735
      %v4560 = vunpack.c.l.b16 %v3736
      %v4561 = vunpack.c.l.b16 %v3737
      %v4562 = vunpack.c.h.b16 %v3737
      %v4563 = vunpack.c.l.b16 %v3738
      %v4564 = vunpack.c.l.b16 %v3739
      %v4565 = vunpack.c.h.b16 %v3739
      %v4566 = vunpack.c.l.b16 %v3740
      %v4567 = vunpack.c.l.b16 %v3741
      %v4568 = vunpack.c.h.b16 %v3741
      %v4569 = vunpack.c.l.b16 %v3742
      %v4570 = vunpack.c.l.b16 %v3743
      %v4571 = vunpack.c.h.b16 %v3743
      %v4572 = vunpack.c.l.b16 %v3744
      %v4573 = vunpack.c.l.b16 %v3745
      %v4574 = vunpack.c.h.b16 %v3745
      %v4575 = vunpack.c.l.b16 %v3746
      %v4576 = vunpack.c.l.b16 %v3747
      %v4577 = vunpack.c.h.b16 %v3747
      %v4578 = vunpack.c.l.b16 %v3748
      %v4579 = vunpack.c.l.b16 %v3749
      %v4580 = vunpack.c.h.b16 %v3749
      %v4581 = vunpack.c.l.b16 %v3750
      %v4582 = vunpack.c.l.b16 %v3751
      %v4583 = vunpack.c.h.b16 %v3751
      %v4584 = vunpack.c.l.b16 %v3752
      %v4585 = vunpack.c.l.b16 %v3753
      %v4586 = vunpack.c.h.b16 %v3753
      %v4587 = vunpack.c.l.b16 %v3754
      %v4588 = vunpack.c.l.b16 %v3755
      %v4589 = vunpack.c.h.b16 %v3755
      %v4590 = vunpack.c.l.b16 %v3756
      %v4591 = vunpack.c.l.b16 %v3757
      %v4592 = vunpack.c.h.b16 %v3757
      %v4593 = vunpack.c.l.b16 %v3758
      %v4594 = vunpack.c.l.b16 %v3759
      %v4595 = vunpack.c.h.b16 %v3759
      %v4596 = vunpack.c.l.b16 %v3760
      %v4597 = vunpack.c.l.b16 %v3761
      %v4598 = vunpack.c.h.b16 %v3761
      %v4599 = vunpack.c.l.b16 %v3762
      %v4600 = vunpack.c.l.b16 %v3763
      %v4601 = vunpack.c.h.b16 %v3763
      %v4602 = vunpack.c.l.b16 %v3764
      %v4603 = vunpack.c.l.b16 %v3765
      %v4604 = vunpack.c.h.b16 %v3765
      %v4605 = vunpack.c.l.b16 %v3766
      %v4606 = vunpack.c.l.b16 %v3767
      %v4607 = vunpack.c.h.b16 %v3767
      %v4608 = vunpack.c.l.b16 %v3768
      %v4609 = vunpack.c.l.b16 %v3769
      %v4610 = vunpack.c.h.b16 %v3769
      %v4611 = vunpack.c.l.b16 %v3770
      %v4612 = vunpack.c.l.b16 %v3771
      %v4613 = vunpack.c.h.b16 %v3771
      %v4614 = vunpack.c.l.b16 %v3772
      %v4615 = vunpack.c.l.b16 %v3773
      %v4616 = vunpack.c.h.b16 %v3773
      %v4617 = vunpack.c.l.b16 %v3774
      %v4618 = vunpack.c.l.b16 %v3775
      %v4619 = vunpack.c.h.b16 %v3775
      %v4620 = vunpack.c.l.b16 %v3776
      %v4621 = vunpack.c.l.b16 %v3777
      %v4622 = vunpack.c.h.b16 %v3777
      %v4623 = vunpack.c.l.b16 %v3778
      %v4624 = vunpack.c.l.b16 %v3779
      %v4625 = vunpack.c.h.b16 %v3779
      %v4626 = vunpack.c.l.b16 %v3780
      %v4627 = vunpack.c.l.b16 %v3781
      %v4628 = vunpack.c.h.b16 %v3781
      %v4629 = vunpack.c.l.b16 %v3782
      %v4630 = vunpack.c.l.b16 %v3783
      %v4631 = vunpack.c.h.b16 %v3783
      %v4632 = vunpack.c.l.b16 %v3784
      %v4633 = vunpack.c.l.b16 %v3785
      %v4634 = vunpack.c.h.b16 %v3785
      %v4635 = vunpack.c.l.b16 %v3786
      %v4636 = vunpack.c.l.b16 %v3787
      %v4637 = vunpack.c.h.b16 %v3787
      %v4638 = vunpack.c.l.b16 %v3788
      %v4639 = vunpack.c.l.b16 %v3789
      %v4640 = vunpack.c.h.b16 %v3789
      %v4641 = vunpack.c.l.b16 %v3790
      %v4642 = vunpack.c.l.b16 %v3791
      %v4643 = vunpack.c.h.b16 %v3791
      %v4644 = vunpack.c.l.b16 %v3792
      %v4645 = vunpack.c.l.b16 %v3793
      %v4646 = vunpack.c.h.b16 %v3793
      %v4647 = vunpack.c.l.b16 %v3794
      %v4648 = vunpack.c.l.b16 %v3795
      %v4649 = vunpack.c.h.b16 %v3795
      %v4650 = vunpack.c.l.b16 %v3796
      %v4651 = vunpack.c.l.b16 %v3797
      %v4652 = vunpack.c.h.b16 %v3797
      %v4653 = vunpack.c.l.b16 %v3798
      %v4654 = vunpack.c.l.b16 %v3799
      %v4655 = vunpack.c.h.b16 %v3799
      %v4656 = vunpack.c.l.b16 %v3800
      %v4657 = vunpack.c.l.b16 %v3801
      %v4658 = vunpack.c.h.b16 %v3801
      %v4659 = vunpack.c.l.b16 %v3802
      %v4660 = vunpack.c.l.b16 %v3803
      %v4661 = vunpack.c.h.b16 %v3803
      %v4662 = vunpack.c.l.b16 %v3804
      %v4663 = vunpack.c.l.b16 %v3805
      %v4664 = vunpack.c.h.b16 %v3805
      %v4665 = vunpack.c.l.b16 %v3806
      %v4666 = vunpack.c.l.b16 %v3807
      %v4667 = vunpack.c.h.b16 %v3807
      %v4668 = vunpack.c.l.b16 %v3808
      %v4669 = vunpack.c.l.b16 %v3809
      %v4670 = vunpack.c.h.b16 %v3809
      %v4671 = vunpack.c.l.b16 %v3810
      %v4672 = vunpack.c.l.b16 %v3811
      %v4673 = vunpack.c.h.b16 %v3811
      %v4674 = vunpack.c.l.b16 %v3812
      %v4675 = vunpack.c.l.b16 %v3813
      %v4676 = vunpack.c.h.b16 %v3813
      %v4677 = vunpack.c.l.b16 %v3814
      %v4678 = vunpack.c.l.b16 %v3815
      %v4679 = vunpack.c.h.b16 %v3815
      %v4680 = vunpack.c.l.b16 %v3816
      %v4681 = vunpack.c.l.b16 %v3817
      %v4682 = vunpack.c.h.b16 %v3817
      %v4683 = vunpack.c.l.b16 %v3818
      %v4684 = vunpack.c.l.b16 %v3819
      %v4685 = vunpack.c.h.b16 %v3819
      %v4686 = vunpack.c.l.b16 %v3820
      %v4687 = vunpack.c.l.b16 %v3821
      %v4688 = vunpack.c.h.b16 %v3821
      %v4689 = vunpack.c.l.b16 %v3822
      %v4690 = vunpack.c.l.b16 %v3823
      %v4691 = vunpack.c.h.b16 %v3823
      %v4692 = vunpack.c.l.b16 %v3824
      %v4693 = vunpack.c.l.b16 %v3825
      %v4694 = vunpack.c.h.b16 %v3825
      %v4695 = vunpack.c.l.b16 %v3826
      %v4696 = vunpack.c.l.b16 %v3827
      %v4697 = vunpack.c.h.b16 %v3827
      %v4698 = vunpack.c.l.b16 %v3828
      %v4699 = vunpack.c.l.b16 %v3829
      %v4700 = vunpack.c.h.b16 %v3829
      %v4701 = vunpack.c.l.b16 %v3830
      %v4702 = vunpack.c.l.b16 %v3831
      %v4703 = vunpack.c.h.b16 %v3831
      %v4704 = vunpack.c.l.b16 %v3832
      %v4705 = vunpack.c.l.b16 %v3833
      %v4706 = vunpack.c.h.b16 %v3833
      %v4707 = vunpack.c.l.b16 %v3834
      %v4708 = vunpack.c.l.b16 %v3835
      %v4709 = vunpack.c.h.b16 %v3835
      %v4710 = vunpack.c.l.b16 %v3836
      %v4711 = vunpack.c.l.b16 %v3837
      %v4712 = vunpack.c.h.b16 %v3837
      %v4713 = vunpack.c.l.b16 %v3838
      %v4714 = vunpack.c.l.b16 %v3839
      %v4715 = vunpack.c.h.b16 %v3839
      %v4716 = vunpack.c.l.b16 %v3840
      %v4717 = vunpack.c.l.b16 %v3841
      %v4718 = vunpack.c.h.b16 %v3841
      %v4719 = vunpack.c.l.b16 %v3842
      %v4720 = vunpack.c.l.b16 %v3843
      %v4721 = vunpack.c.h.b16 %v3843
      %v4722 = vunpack.c.l.b16 %v3844
      %v4723 = vunpack.c.l.b16 %v3845
      %v4724 = vunpack.c.h.b16 %v3845
      %v4725 = vunpack.c.l.b16 %v3846
      %v4726 = vunpack.c.l.b16 %v3847
      %v4727 = vunpack.c.h.b16 %v3847
      %v4728 = vunpack.c.l.b16 %v3848
      %v4729 = vunpack.c.l.b16 %v3849
      %v4730 = vunpack.c.h.b16 %v3849
      %v4731 = vunpack.c.l.b16 %v3850
      %v4732 = vunpack.c.l.b16 %v3851
      %v4733 = vunpack.c.h.b16 %v3851
      %v4734 = vunpack.c.l.b16 %v3852
      %v4735 = vunpack.c.l.b16 %v3853
      %v4736 = vunpack.c.h.b16 %v3853
      %v4737 = vunpack.c.l.b16 %v3854
      %v4738 = vunpack.c.l.b16 %v3855
      %v4739 = vunpack.c.h.b16 %v3855
      %v4740 = vunpack.c.l.b16 %v3856
      %v4741 = vunpack.c.l.b16 %v3857
      %v4742 = vunpack.c.h.b16 %v3857
      %v4743 = vunpack.c.l.b16 %v3858
      %v4744 = vunpack.c.l.b16 %v3859
      %v4745 = vunpack.c.h.b16 %v3859
      %v4746 = vunpack.c.l.b16 %v3860
      %v4747 = vunpack.c.l.b16 %v3861
      %v4748 = vunpack.c.h.b16 %v3861
      %v4749 = vunpack.c.l.b16 %v3862
      %v4750 = vunpack.c.l.b16 %v3863
      %v4751 = vunpack.c.h.b16 %v3863
      %v4752 = vunpack.c.l.b16 %v3864
      %v4753 = vunpack.c.l.b16 %v3865
      %v4754 = vunpack.c.h.b16 %v3865
      %v4755 = vunpack.c.l.b16 %v3866
      %v4756 = vunpack.c.l.b16 %v3867
      %v4757 = vunpack.c.h.b16 %v3867
      %v4758 = vunpack.c.l.b16 %v3868
      %v4759 = vunpack.c.l.b16 %v3869
      %v4760 = vunpack.c.h.b16 %v3869
      %v4761 = vunpack.c.l.b16 %v3870
      %v4762 = vunpack.c.l.b16 %v3871
      %v4763 = vunpack.c.h.b16 %v3871
      %v4764 = vunpack.c.l.b16 %v3872
      %v4765 = vunpack.c.l.b16 %v3873
      %v4766 = vunpack.c.h.b16 %v3873
      %v4767 = vunpack.c.l.b16 %v3874
      %v4768 = vunpack.c.l.b16 %v3875
      %v4769 = vunpack.c.h.b16 %v3875
      %v4770 = vunpack.c.l.b16 %v3876
      %v4771 = vunpack.c.l.b16 %v3877
      %v4772 = vunpack.c.h.b16 %v3877
      %v4773 = vunpack.c.l.b16 %v3878
      %v4774 = vunpack.c.l.b16 %v3879
      %v4775 = vunpack.c.h.b16 %v3879
      %v4776 = vunpack.c.l.b16 %v3880
      %v4777 = vunpack.c.l.b16 %v3881
      %v4778 = vunpack.c.h.b16 %v3881
      %v4779 = vunpack.c.l.b16 %v3882
      %v4780 = vunpack.c.l.b16 %v3883
      %v4781 = vunpack.c.h.b16 %v3883
      %v4782 = vunpack.c.l.b16 %v3884
      %v4783 = vunpack.c.l.b16 %v3885
      %v4784 = vunpack.c.h.b16 %v3885
      %v4785 = vunpack.c.l.b16 %v3886
      %v4786 = vunpack.c.l.b16 %v3887
      %v4787 = vunpack.c.h.b16 %v3887
      %v4788 = vunpack.c.l.b16 %v3888
      %v4789 = vunpack.c.l.b16 %v3889
      %v4790 = vunpack.c.h.b16 %v3889
      %v4791 = vunpack.c.l.b16 %v3890
      %v4792 = vunpack.c.l.b16 %v3891
      %v4793 = vunpack.c.h.b16 %v3891
      %v4794 = vunpack.c.l.b16 %v3892
      %v4795 = vunpack.c.l.b16 %v3893
      %v4796 = vunpack.c.h.b16 %v3893
      %v4797 = vunpack.c.l.b16 %v3894
      %v4798 = vunpack.c.l.b16 %v3895
      %v4799 = vunpack.c.h.b16 %v3895
      %v4800 = vunpack.c.l.b16 %v3896
      %v4801 = vunpack.c.l.b16 %v3897
      %v4802 = vunpack.c.h.b16 %v3897
      %v4803 = vunpack.c.l.b16 %v3898
      %v4804 = vunpack.c.l.b16 %v3899
      %v4805 = vunpack.c.h.b16 %v3899
      %v4806 = vunpack.c.l.b16 %v3900
      %v4807 = vunpack.c.l.b16 %v3901
      %v4808 = vunpack.c.h.b16 %v3901
      %v4809 = vunpack.c.l.b16 %v3902
      %v4810 = vunpack.c.l.b16 %v3903
      %v4811 = vunpack.c.h.b16 %v3903
      %v4812 = vunpack.c.l.b16 %v3904
      %v4813 = vunpack.c.l.b16 %v3905
      %v4814 = vunpack.c.h.b16 %v3905
      %v4815 = vunpack.c.l.b16 %v3906
      %v4816 = vunpack.c.l.b16 %v3907
      %v4817 = vunpack.c.h.b16 %v3907
      %v4818 = vunpack.c.l.b16 %v3908
      %v4819 = vunpack.c.l.b16 %v3909
      %v4820 = vunpack.c.h.b16 %v3909
      %v4821 = vunpack.c.l.b16 %v3910
      %v4822 = vunpack.c.l.b16 %v3911
      %v4823 = vunpack.c.h.b16 %v3911
      %v4824 = vunpack.c.l.b16 %v3912
      %v4825 = vunpack.c.l.b16 %v3913
      %v4826 = vunpack.c.h.b16 %v3913
      %v4827 = vunpack.c.l.b16 %v3914
      %v4828 = vunpack.c.l.b16 %v3915
      %v4829 = vunpack.c.h.b16 %v3915
      %v4830 = vunpack.c.l.b16 %v3916
      %v4831 = vunpack.c.l.b16 %v3917
      %v4832 = vunpack.c.h.b16 %v3917
      %v4833 = vunpack.c.l.b16 %v3918
      %v4834 = vunpack.c.l.b16 %v3919
      %v4835 = vunpack.c.h.b16 %v3919
      %v4836 = vunpack.c.l.b16 %v3920
      %v4837 = vunpack.c.l.b16 %v3921
      %v4838 = vunpack.c.h.b16 %v3921
      %v4839 = vunpack.c.l.b16 %v3922
      %v4840 = vunpack.c.l.b16 %v3923
      %v4841 = vunpack.c.h.b16 %v3923
      %v4842 = vunpack.c.l.b16 %v3924
      %v4843 = vunpack.c.l.b16 %v3925
      %v4844 = vunpack.c.h.b16 %v3925
      %v4845 = vunpack.c.l.b16 %v3926
      %v4846 = vunpack.c.l.b16 %v3927
      %v4847 = vunpack.c.h.b16 %v3927
      %v4848 = vunpack.c.l.b16 %v3928
      %v4849 = vunpack.c.l.b16 %v3929
      %v4850 = vunpack.c.h.b16 %v3929
      %v4851 = vunpack.c.l.b16 %v3930
      %v4852 = vunpack.c.l.b16 %v3931
      %v4853 = vunpack.c.h.b16 %v3931
      %v4854 = vunpack.c.l.b16 %v3932
      %v4855 = vunpack.c.l.b16 %v3933
      %v4856 = vunpack.c.h.b16 %v3933
      %v4857 = vunpack.c.l.b16 %v3934
      %v4858 = vunpack.c.l.b16 %v3935
      %v4859 = vunpack.c.h.b16 %v3935
      %v4860 = vunpack.c.l.b16 %v3936
      %v4861 = vunpack.c.l.b16 %v3937
      %v4862 = vunpack.c.h.b16 %v3937
      %v4863 = vunpack.c.l.b16 %v3938
      %v4864 = vunpack.c.l.b16 %v3939
      %v4865 = vunpack.c.h.b16 %v3939
      %v4866 = vunpack.c.l.b16 %v3940
      %v4867 = vunpack.c.l.b16 %v3941
      %v4868 = vunpack.c.h.b16 %v3941
      %v4869 = vunpack.c.l.b16 %v3942
      %v4870 = vunpack.c.l.b16 %v3943
      %v4871 = vunpack.c.h.b16 %v3943
      %v4872 = vunpack.c.l.b16 %v3944
      %v4873 = vunpack.c.l.b16 %v3945
      %v4874 = vunpack.c.h.b16 %v3945
      %v4875 = vunpack.c.l.b16 %v3946
      %v4876 = vunpack.c.l.b16 %v3947
      %v4877 = vunpack.c.h.b16 %v3947
      %v4878 = vunpack.c.l.b16 %v3948
      %v4879 = vunpack.c.l.b16 %v3949
      %v4880 = vunpack.c.h.b16 %v3949
      %v4881 = vunpack.c.l.b16 %v3950
      %v4882 = vunpack.c.l.b16 %v3951
      %v4883 = vunpack.c.h.b16 %v3951
      %v4884 = vunpack.c.l.b16 %v3952
      %v4885 = vunpack.c.l.b16 %v3953
      %v4886 = vunpack.c.h.b16 %v3953
      %v4887 = vunpack.c.l.b16 %v3954
      %v4888 = vunpack.c.l.b16 %v3955
      %v4889 = vunpack.c.h.b16 %v3955
      %v4890 = vunpack.c.l.b16 %v3956
      %v4891 = vunpack.c.l.b16 %v3957
      %v4892 = vunpack.c.h.b16 %v3957
      %v4893 = vunpack.c.l.b16 %v3958
      %v4894 = vunpack.c.l.b16 %v3959
      %v4895 = vunpack.c.h.b16 %v3959
      %v4896 = vunpack.c.l.b16 %v3960
      %v4897 = vunpack.c.l.b16 %v3961
      %v4898 = vunpack.c.h.b16 %v3961
      %v4899 = vunpack.c.l.b16 %v3962
      %v4900 = vunpack.c.l.b16 %v3963
      %v4901 = vunpack.c.h.b16 %v3963
      %v4902 = vunpack.c.l.b16 %v3964
      %v4903 = vunpack.c.l.b16 %v3965
      %v4904 = vunpack.c.h.b16 %v3965
      %v4905 = vunpack.c.l.b16 %v3966
      %v4906 = vunpack.c.l.b16 %v3967
      %v4907 = vunpack.c.h.b16 %v3967
      %v4908 = vunpack.c.l.b16 %v3968
      %v4909 = vunpack.c.l.b16 %v3969
      %v4910 = vunpack.c.h.b16 %v3969
      %v4911 = vunpack.c.l.b16 %v3970
      %v4912 = vunpack.c.l.b16 %v3971
      %v4913 = vunpack.c.h.b16 %v3971
      %v4914 = vunpack.c.l.b16 %v3972
      %v4915 = vunpack.c.l.b16 %v3973
      %v4916 = vunpack.c.h.b16 %v3973
      %v4917 = vunpack.c.l.b16 %v3974
      %v4918 = vunpack.c.l.b16 %v3975
      %v4919 = vunpack.c.h.b16 %v3975
      %v4920 = vunpack.c.l.b16 %v3976
      %v4921 = vunpack.c.l.b16 %v3977
      %v4922 = vunpack.c.h.b16 %v3977
      %v4923 = vunpack.c.l.b16 %v3978
      %v4924 = vunpack.c.l.b16 %v3979
      %v4925 = vunpack.c.h.b16 %v3979
      %v4926 = vunpack.c.l.b16 %v3980
      %v4927 = vunpack.c.l.b16 %v3981
      %v4928 = vunpack.c.h.b16 %v3981
      %v4929 = vunpack.c.l.b16 %v3982
      %v4930 = vunpack.c.l.b16 %v3983
      %v4931 = vunpack.c.h.b16 %v3983
      %v4932 = vunpack.c.l.b16 %v3984
      %v4933 = vunpack.c.l.b16 %v3985
      %v4934 = vunpack.c.h.b16 %v3985
      %v4935 = vunpack.c.l.b16 %v3986
      %v4936 = vunpack.c.l.b16 %v3987
      %v4937 = vunpack.c.h.b16 %v3987
      %v4938 = vunpack.c.l.b16 %v3988
      %v4939 = vunpack.c.l.b16 %v3989
      %v4940 = vunpack.c.h.b16 %v3989
      %v4941 = vunpack.c.l.b16 %v3990
      %v4942 = vunpack.c.l.b16 %v3991
      %v4943 = vunpack.c.h.b16 %v3991
      %v4944 = vunpack.c.l.b16 %v3992
      %v4945 = vunpack.c.l.b16 %v3993
      %v4946 = vunpack.c.h.b16 %v3993
      %v4947 = vunpack.c.l.b16 %v3994
      %v4948 = vunpack.c.l.b16 %v3995
      %v4949 = vunpack.c.h.b16 %v3995
      %v4950 = vunpack.c.l.b16 %v3996
      %v4951 = vunpack.c.l.b16 %v3997
      %v4952 = vunpack.c.h.b16 %v3997
      %v4953 = vunpack.c.l.b16 %v3998
      %v4954 = vunpack.c.l.b16 %v3999
      %v4955 = vunpack.c.h.b16 %v3999
      %v4956 = vunpack.c.l.b16 %v4000
      %v4957 = vunpack.c.l.b16 %v4001
      %v4958 = vunpack.c.h.b16 %v4001
      %v4959 = vunpack.c.l.b16 %v4002
      %v4960 = vunpack.c.l.b16 %v4003
      %v4961 = vunpack.c.h.b16 %v4003
      %v4962 = vunpack.c.l.b16 %v4004
      %v4963 = vunpack.c.l.b16 %v4005
      %v4964 = vunpack.c.h.b16 %v4005
      %v4965 = vunpack.c.l.b16 %v4006
      %v4966 = vunpack.c.l.b16 %v4007
      %v4967 = vunpack.c.h.b16 %v4007
      %v4968 = vunpack.c.l.b16 %v4008
      %v4969 = vunpack.c.l.b16 %v4009
      %v4970 = vunpack.c.h.b16 %v4009
      %v4971 = vunpack.c.l.b16 %v4010
      %v4972 = vunpack.c.l.b16 %v4011
      %v4973 = vunpack.c.h.b16 %v4011
      %v4974 = vunpack.c.l.b16 %v4012
      %v4975 = vunpack.c.l.b16 %v4013
      %v4976 = vunpack.c.h.b16 %v4013
      %v4977 = vunpack.c.l.b16 %v4014
      %v4978 = vunpack.c.l.b16 %v4015
      %v4979 = vunpack.c.h.b16 %v4015
      %v4980 = vunpack.c.l.b16 %v4016
      %v4981 = vunpack.c.l.b16 %v4017
      %v4982 = vunpack.c.h.b16 %v4017
      %v4983 = vunpack.c.l.b16 %v4018
      %v4984 = vunpack.c.l.b16 %v4019
      %v4985 = vunpack.c.h.b16 %v4019
      %v4986 = vunpack.c.l.b16 %v4020
      %v4987 = vunpack.c.l.b16 %v4021
      %v4988 = vunpack.c.h.b16 %v4021
      %v4989 = vunpack.c.l.b16 %v4022
      %v4990 = vunpack.c.l.b16 %v4023
      %v4991 = vunpack.c.h.b16 %v4023
      %v4992 = vunpack.c.l.b16 %v4024
      %v4993 = vunpack.c.l.b16 %v4025
      %v4994 = vunpack.c.h.b16 %v4025
      %v4995 = vunpack.c.l.b16 %v4026
      %v4996 = vunpack.c.l.b16 %v4027
      %v4997 = vunpack.c.h.b16 %v4027
      %v4998 = vunpack.c.l.b16 %v4028
      %v4999 = vunpack.c.l.b16 %v4029
      %v5000 = vunpack.c.h.b16 %v4029
      %v5001 = vunpack.c.l.b16 %v4030
      %v5002 = vunpack.c.l.b16 %v4031
      %v5003 = vunpack.c.h.b16 %v4031
      %v5004 = vunpack.c.l.b16 %v4032
      %v5005 = vunpack.c.l.b16 %v4033
      %v5006 = vunpack.c.h.b16 %v4033
      %v5007 = vunpack.c.l.b16 %v4034
      %v5008 = vunpack.c.l.b16 %v4035
      %v5009 = vunpack.c.h.b16 %v4035
      %v5010 = vunpack.c.l.b16 %v4036
      %v5011 = vunpack.c.l.b16 %v4037
      %v5012 = vunpack.c.h.b16 %v4037
      %v5013 = vunpack.c.l.b16 %v4038
      %v5014 = vunpack.c.l.b16 %v4039
      %v5015 = vunpack.c.h.b16 %v4039
      %v5016 = vunpack.c.l.b16 %v4040
      %v5017 = vunpack.c.l.b16 %v4041
      %v5018 = vunpack.c.h.b16 %v4041
      %v5019 = vunpack.c.l.b16 %v4042
      %v5020 = vpack.c.b16 %v4447, %v4444
      %v5021 = vpack.c.b16 %v4448, %v4445
      %v5022 = vpack.c.b16 %v4449, %v4446
      %v5023 = vpack.c.b16 %v4453, %v4450
      %v5024 = vpack.c.b16 %v4454, %v4451
      %v5025 = vpack.c.b16 %v4455, %v4452
      %v5026 = vpack.c.b16 %v4459, %v4456
      %v5027 = vpack.c.b16 %v4460, %v4457
      %v5028 = vpack.c.b16 %v4461, %v4458
      %v5029 = vpack.c.b16 %v4465, %v4462
      %v5030 = vpack.c.b16 %v4466, %v4463
      %v5031 = vpack.c.b16 %v4467, %v4464
      %v5032 = vpack.c.b16 %v4471, %v4468
      %v5033 = vpack.c.b16 %v4472, %v4469
      %v5034 = vpack.c.b16 %v4473, %v4470
      %v5035 = vpack.c.b16 %v4477, %v4474
      %v5036 = vpack.c.b16 %v4478, %v4475
      %v5037 = vpack.c.b16 %v4479, %v4476
      %v5038 = vpack.c.b16 %v4483, %v4480
      %v5039 = vpack.c.b16 %v4484, %v4481
      %v5040 = vpack.c.b16 %v4485, %v4482
      %v5041 = vpack.c.b16 %v4489, %v4486
      %v5042 = vpack.c.b16 %v4490, %v4487
      %v5043 = vpack.c.b16 %v4491, %v4488
      %v5044 = vpack.c.b16 %v4495, %v4492
      %v5045 = vpack.c.b16 %v4496, %v4493
      %v5046 = vpack.c.b16 %v4497, %v4494
      %v5047 = vpack.c.b16 %v4501, %v4498
      %v5048 = vpack.c.b16 %v4502, %v4499
      %v5049 = vpack.c.b16 %v4503, %v4500
      %v5050 = vpack.c.b16 %v4507, %v4504
      %v5051 = vpack.c.b16 %v4508, %v4505
      %v5052 = vpack.c.b16 %v4509, %v4506
      %v5053 = vpack.c.b16 %v4513, %v4510
      %v5054 = vpack.c.b16 %v4514, %v4511
      %v5055 = vpack.c.b16 %v4515, %v4512
      %v5056 = vpack.c.b16 %v4519, %v4516
      %v5057 = vpack.c.b16 %v4520, %v4517
      %v5058 = vpack.c.b16 %v4521, %v4518
      %v5059 = vpack.c.b16 %v4525, %v4522
      %v5060 = vpack.c.b16 %v4526, %v4523
      %v5061 = vpack.c.b16 %v4527, %v4524
      %v5062 = vpack.c.b16 %v4531, %v4528
      %v5063 = vpack.c.b16 %v4532, %v4529
      %v5064 = vpack.c.b16 %v4533, %v4530
      %v5065 = vpack.c.b16 %v4537, %v4534
      %v5066 = vpack.c.b16 %v4538, %v4535
      %v5067 = vpack.c.b16 %v4539, %v4536
      %v5068 = vpack.c.b16 %v4543, %v4540
      %v5069 = vpack.c.b16 %v4544, %v4541
      %v5070 = vpack.c.b16 %v4545, %v4542
      %v5071 = vpack.c.b16 %v4549, %v4546
      %v5072 = vpack.c.b16 %v4550, %v4547
      %v5073 = vpack.c.b16 %v4551, %v4548
      %v5074 = vpack.c.b16 %v4555, %v4552
      %v5075 = vpack.c.b16 %v4556, %v4553
      %v5076 = vpack.c.b16 %v4557, %v4554
      %v5077 = vpack.c.b16 %v4561, %v4558
      %v5078 = vpack.c.b16 %v4562, %v4559
      %v5079 = vpack.c.b16 %v4563, %v4560
      %v5080 = vpack.c.b16 %v4567, %v4564
      %v5081 = vpack.c.b16 %v4568, %v4565
      %v5082 = vpack.c.b16 %v4569, %v4566
      %v5083 = vpack.c.b16 %v4573, %v4570
      %v5084 = vpack.c.b16 %v4574, %v4571
      %v5085 = vpack.c.b16 %v4575, %v4572
      %v5086 = vpack.c.b16 %v4579, %v4576
      %v5087 = vpack.c.b16 %v4580, %v4577
      %v5088 = vpack.c.b16 %v4581, %v4578
      %v5089 = vpack.c.b16 %v4585, %v4582
      %v5090 = vpack.c.b16 %v4586, %v4583
      %v5091 = vpack.c.b16 %v4587, %v4584
      %v5092 = vpack.c.b16 %v4591, %v4588
      %v5093 = vpack.c.b16 %v4592, %v4589
      %v5094 = vpack.c.b16 %v4593, %v4590
      %v5095 = vpack.c.b16 %v4597, %v4594
      %v5096 = vpack.c.b16 %v4598, %v4595
      %v5097 = vpack.c.b16 %v4599, %v4596
      %v5098 = vpack.c.b16 %v4603, %v4600
      %v5099 = vpack.c.b16 %v4604, %v4601
      %v5100 = vpack.c.b16 %v4605, %v4602
      %v5101 = vpack.c.b16 %v4609, %v4606
      %v5102 = vpack.c.b16 %v4610, %v4607
      %v5103 = vpack.c.b16 %v4611, %v4608
      %v5104 = vpack.c.b16 %v4615, %v4612
      %v5105 = vpack.c.b16 %v4616, %v4613
      %v5106 = vpack.c.b16 %v4617, %v4614
      %v5107 = vpack.c.b16 %v4621, %v4618
      %v5108 = vpack.c.b16 %v4622, %v4619
      %v5109 = vpack.c.b16 %v4623, %v4620
      %v5110 = vpack.c.b16 %v4627, %v4624
      %v5111 = vpack.c.b16 %v4628, %v4625
      %v5112 = vpack.c.b16 %v4629, %v4626
      %v5113 = vpack.c.b16 %v4633, %v4630
      %v5114 = vpack.c.b16 %v4634, %v4631
      %v5115 = vpack.c.b16 %v4635, %v4632
      %v5116 = vpack.c.b16 %v4639, %v4636
      %v5117 = vpack.c.b16 %v4640, %v4637
      %v5118 = vpack.c.b16 %v4641, %v4638
      %v5119 = vpack.c.b16 %v4645, %v4642
      %v5120 = vpack.c.b16 %v4646, %v4643
      %v5121 = vpack.c.b16 %v4647, %v4644
      %v5122 = vpack.c.b16 %v4651, %v4648
      %v5123 = vpack.c.b16 %v4652, %v4649
      %v5124 = vpack.c.b16 %v4653, %v4650
      %v5125 = vpack.c.b16 %v4657, %v4654
      %v5126 = vpack.c.b16 %v4658, %v4655
      %v5127 = vpack.c.b16 %v4659, %v4656
      %v5128 = vpack.c.b16 %v4663, %v4660
      %v5129 = vpack.c.b16 %v4664, %v4661
      %v5130 = vpack.c.b16 %v4665, %v4662
      %v5131 = vpack.c.b16 %v4669, %v4666
      %v5132 = vpack.c.b16 %v4670, %v4667
      %v5133 = vpack.c.b16 %v4671, %v4668
      %v5134 = vpack.c.b16 %v4675, %v4672
      %v5135 = vpack.c.b16 %v4676, %v4673
      %v5136 = vpack.c.b16 %v4677, %v4674
      %v5137 = vpack.c.b16 %v4681, %v4678
      %v5138 = vpack.c.b16 %v4682, %v4679
      %v5139 = vpack.c.b16 %v4683, %v4680
      %v5140 = vpack.c.b16 %v4687, %v4684
      %v5141 = vpack.c.b16 %v4688, %v4685
      %v5142 = vpack.c.b16 %v4689, %v4686
      %v5143 = vpack.c.b16 %v4693, %v4690
      %v5144 = vpack.c.b16 %v4694, %v4691
      %v5145 = vpack.c.b16 %v4695, %v4692
      %v5146 = vpack.c.b16 %v4699, %v4696
      %v5147 = vpack.c.b16 %v4700, %v4697
      %v5148 = vpack.c.b16 %v4701, %v4698
      %v5149 = vpack.c.b16 %v4705, %v4702
      %v5150 = vpack.c.b16 %v4706, %v4703
      %v5151 = vpack.c.b16 %v4707, %v4704
      %v5152 = vpack.c.b16 %v4711, %v4708
      %v5153 = vpack.c.b16 %v4712, %v4709
      %v5154 = vpack.c.b16 %v4713, %v4710
      %v5155 = vpack.c.b16 %v4717, %v4714
      %v5156 = vpack.c.b16 %v4718, %v4715
      %v5157 = vpack.c.b16 %v4719, %v4716
      %v5158 = vpack.c.b16 %v4723, %v4720
      %v5159 = vpack.c.b16 %v4724, %v4721
      %v5160 = vpack.c.b16 %v4725, %v4722
      %v5161 = vpack.c.b16 %v4729, %v4726
      %v5162 = vpack.c.b16 %v4730, %v4727
      %v5163 = vpack.c.b16 %v4731, %v4728
      %v5164 = vpack.c.b16 %v4735, %v4732
      %v5165 = vpack.c.b16 %v4736, %v4733
      %v5166 = vpack.c.b16 %v4737, %v4734
      %v5167 = vpack.c.b16 %v4741, %v4738
      %v5168 = vpack.c.b16 %v4742, %v4739
      %v5169 = vpack.c.b16 %v4743, %v4740
      %v5170 = vpack.c.b16 %v4747, %v4744
      %v5171 = vpack.c.b16 %v4748, %v4745
      %v5172 = vpack.c.b16 %v4749, %v4746
      %v5173 = vpack.c.b16 %v4753, %v4750
      %v5174 = vpack.c.b16 %v4754, %v4751
      %v5175 = vpack.c.b16 %v4755, %v4752
      %v5176 = vpack.c.b16 %v4759, %v4756
      %v5177 = vpack.c.b16 %v4760, %v4757
      %v5178 = vpack.c.b16 %v4761, %v4758
      %v5179 = vpack.c.b16 %v4765, %v4762
      %v5180 = vpack.c.b16 %v4766, %v4763
      %v5181 = vpack.c.b16 %v4767, %v4764
      %v5182 = vpack.c.b16 %v4771, %v4768
      %v5183 = vpack.c.b16 %v4772, %v4769
      %v5184 = vpack.c.b16 %v4773, %v4770
      %v5185 = vpack.c.b16 %v4777, %v4774
      %v5186 = vpack.c.b16 %v4778, %v4775
      %v5187 = vpack.c.b16 %v4779, %v4776
      %v5188 = vpack.c.b16 %v4783, %v4780
      %v5189 = vpack.c.b16 %v4784, %v4781
      %v5190 = vpack.c.b16 %v4785, %v4782
      %v5191 = vpack.c.b16 %v4789, %v4786
      %v5192 = vpack.c.b16 %v4790, %v4787
      %v5193 = vpack.c.b16 %v4791, %v4788
      %v5194 = vpack.c.b16 %v4795, %v4792
      %v5195 = vpack.c.b16 %v4796, %v4793
      %v5196 = vpack.c.b16 %v4797, %v4794
      %v5197 = vpack.c.b16 %v4801, %v4798
      %v5198 = vpack.c.b16 %v4802, %v4799
      %v5199 = vpack.c.b16 %v4803, %v4800
      %v5200 = vpack.c.b16 %v4807, %v4804
      %v5201 = vpack.c.b16 %v4808, %v4805
      %v5202 = vpack.c.b16 %v4809, %v4806
      %v5203 = vpack.c.b16 %v4813, %v4810
      %v5204 = vpack.c.b16 %v4814, %v4811
      %v5205 = vpack.c.b16 %v4815, %v4812
      %v5206 = vpack.c.b16 %v4819, %v4816
      %v5207 = vpack.c.b16 %v4820, %v4817
      %v5208 = vpack.c.b16 %v4821, %v4818
      %v5209 = vpack.c.b16 %v4825, %v4822
      %v5210 = vpack.c.b16 %v4826, %v4823
      %v5211 = vpack.c.b16 %v4827, %v4824
      %v5212 = vpack.c.b16 %v4831, %v4828
      %v5213 = vpack.c.b16 %v4832, %v4829
      %v5214 = vpack.c.b16 %v4833, %v4830
      %v5215 = vpack.c.b16 %v4837, %v4834
      %v5216 = vpack.c.b16 %v4838, %v4835
      %v5217 = vpack.c.b16 %v4839, %v4836
      %v5218 = vpack.c.b16 %v4843, %v4840
      %v5219 = vpack.c.b16 %v4844, %v4841
      %v5220 = vpack.c.b16 %v4845, %v4842
      %v5221 = vpack.c.b16 %v4849, %v4846
      %v5222 = vpack.c.b16 %v4850, %v4847
      %v5223 = vpack.c.b16 %v4851, %v4848
      %v5224 = vpack.c.b16 %v4855, %v4852
      %v5225 = vpack.c.b16 %v4856, %v4853
      %v5226 = vpack.c.b16 %v4857, %v4854
      %v5227 = vpack.c.b16 %v4861, %v4858
      %v5228 = vpack.c.b16 %v4862, %v4859
      %v5229 = vpack.c.b16 %v4863, %v4860
      %v5230 = vpack.c.b16 %v4867, %v4864
      %v5231 = vpack.c.b16 %v4868, %v4865
      %v5232 = vpack.c.b16 %v4869, %v4866
      %v5233 = vpack.c.b16 %v4873, %v4870
      %v5234 = vpack.c.b16 %v4874, %v4871
      %v5235 = vpack.c.b16 %v4875, %v4872
      %v5236 = vpack.c.b16 %v4879, %v4876
      %v5237 = vpack.c.b16 %v4880, %v4877
      %v5238 = vpack.c.b16 %v4881, %v4878
      %v5239 = vpack.c.b16 %v4885, %v4882
      %v5240 = vpack.c.b16 %v4886, %v4883
      %v5241 = vpack.c.b16 %v4887, %v4884
      %v5242 = vpack.c.b16 %v4891, %v4888
      %v5243 = vpack.c.b16 %v4892, %v4889
      %v5244 = vpack.c.b16 %v4893, %v4890
      %v5245 = vpack.c.b16 %v4897, %v4894
      %v5246 = vpack.c.b16 %v4898, %v4895
      %v5247 = vpack.c.b16 %v4899, %v4896
      %v5248 = vpack.c.b16 %v4903, %v4900
      %v5249 = vpack.c.b16 %v4904, %v4901
      %v5250 = vpack.c.b16 %v4905, %v4902
      %v5251 = vpack.c.b16 %v4909, %v4906
      %v5252 = vpack.c.b16 %v4910, %v4907
      %v5253 = vpack.c.b16 %v4911, %v4908
      %v5254 = vpack.c.b16 %v4915, %v4912
      %v5255 = vpack.c.b16 %v4916, %v4913
      %v5256 = vpack.c.b16 %v4917, %v4914
      %v5257 = vpack.c.b16 %v4921, %v4918
      %v5258 = vpack.c.b16 %v4922, %v4919
      %v5259 = vpack.c.b16 %v4923, %v4920
      %v5260 = vpack.c.b16 %v4927, %v4924
      %v5261 = vpack.c.b16 %v4928, %v4925
      %v5262 = vpack.c.b16 %v4929, %v4926
      %v5263 = vpack.c.b16 %v4933, %v4930
      %v5264 = vpack.c.b16 %v4934, %v4931
      %v5265 = vpack.c.b16 %v4935, %v4932
      %v5266 = vpack.c.b16 %v4939, %v4936
      %v5267 = vpack.c.b16 %v4940, %v4937
      %v5268 = vpack.c.b16 %v4941, %v4938
      %v5269 = vpack.c.b16 %v4945, %v4942
      %v5270 = vpack.c.b16 %v4946, %v4943
      %v5271 = vpack.c.b16 %v4947, %v4944
      %v5272 = vpack.c.b16 %v4951, %v4948
      %v5273 = vpack.c.b16 %v4952, %v4949
      %v5274 = vpack.c.b16 %v4953, %v4950
      %v5275 = vpack.c.b16 %v4957, %v4954
      %v5276 = vpack.c.b16 %v4958, %v4955
      %v5277 = vpack.c.b16 %v4959, %v4956
      %v5278 = vpack.c.b16 %v4963, %v4960
      %v5279 = vpack.c.b16 %v4964, %v4961
      %v5280 = vpack.c.b16 %v4965, %v4962
      %v5281 = vpack.c.b16 %v4969, %v4966
      %v5282 = vpack.c.b16 %v4970, %v4967
      %v5283 = vpack.c.b16 %v4971, %v4968
      %v5284 = vpack.c.b16 %v4975, %v4972
      %v5285 = vpack.c.b16 %v4976, %v4973
      %v5286 = vpack.c.b16 %v4977, %v4974
      %v5287 = vpack.c.b16 %v4981, %v4978
      %v5288 = vpack.c.b16 %v4982, %v4979
      %v5289 = vpack.c.b16 %v4983, %v4980
      %v5290 = vpack.c.b16 %v4987, %v4984
      %v5291 = vpack.c.b16 %v4988, %v4985
      %v5292 = vpack.c.b16 %v4989, %v4986
      %v5293 = vpack.c.b16 %v4993, %v4990
      %v5294 = vpack.c.b16 %v4994, %v4991
      %v5295 = vpack.c.b16 %v4995, %v4992
      %v5296 = vpack.c.b16 %v4999, %v4996
      %v5297 = vpack.c.b16 %v5000, %v4997
      %v5298 = vpack.c.b16 %v5001, %v4998
      %v5299 = vpack.c.b16 %v5005, %v5002
      %v5300 = vpack.c.b16 %v5006, %v5003
      %v5301 = vpack.c.b16 %v5007, %v5004
      %v5302 = vpack.c.b16 %v5011, %v5008
      %v5303 = vpack.c.b16 %v5012, %v5009
      %v5304 = vpack.c.b16 %v5013, %v5010
      %v5305 = vpack.c.b16 %v5017, %v5014
      %v5306 = vpack.c.b16 %v5018, %v5015
      %v5307 = vpack.c.b16 %v5019, %v5016
      %5596 = vmatprep.subr.bf16.mxu0 %v5042
      %5597 = vmatpush1.bf16.msra.mxu0 %v5041
      %5598 = vmatprep.subr.bf16.mxu0 %v5039
      %5599 = vmatpush1.bf16.msra.mxu0 %v5038
      %5600 = vmatprep.subr.bf16.mxu0 %v5036
      %5601 = vmatpush1.bf16.msra.mxu0 %v5035
      %5602 = vmatprep.subr.bf16.mxu0 %v5033
      %5603 = vmatpush1.bf16.msra.mxu0 %v5032
      %5604 = vmatprep.subr.bf16.mxu0 %v5030
      %5605 = vmatpush1.bf16.msra.mxu0 %v5029
      %5606 = vmatprep.subr.bf16.mxu0 %v5027
      %5607 = vmatpush1.bf16.msra.mxu0 %v5026
      %5608 = vmatprep.subr.bf16.mxu0 %v5024
      %5609 = vmatpush1.bf16.msra.mxu0 %v5023
      %5610 = vmatprep.subr.bf16.mxu0 %v5021
      %5611 = vmatpush1.bf16.msra.mxu0 %v5020
      %5612 = vmatprep.subr.bf16.mxu0 %v5066
      %5613 = vmatpush2.bf16.msra.mxu0 %v5065
      %5614 = vmatprep.subr.bf16.mxu0 %v5063
      %5615 = vmatpush2.bf16.msra.mxu0 %v5062
      %5616 = vmatprep.subr.bf16.mxu0 %v5060
      %5617 = vmatpush2.bf16.msra.mxu0 %v5059
      %5618 = vmatprep.subr.bf16.mxu0 %v5057
      %5619 = vmatpush2.bf16.msra.mxu0 %v5056
      %5620 = vmatprep.subr.bf16.mxu0 %v5054
      %5621 = vmatpush2.bf16.msra.mxu0 %v5053
      %5622 = vmatprep.subr.bf16.mxu0 %v5051
      %5623 = vmatpush2.bf16.msra.mxu0 %v5050
      %5624 = vmatprep.subr.bf16.mxu0 %v5048
      %5625 = vmatpush2.bf16.msra.mxu0 %v5047
      %5626 = vmatprep.subr.bf16.mxu0 %v5045
      %5627 = vmatpush2.bf16.msra.mxu0 %v5044
      %5628 = vmatprep.mubr.bf16.mxu0 %v3390
      %5629 = vmatmul.mubr.bf16.gmra.mxu0 %v3389
      %v5630 = vpop.f32.mrf.mxu0
      %v5631 = vadd.f32 %v4048, %v5630
      %v5632 = vpop.f32.mrf.mxu0
      %v5633 = vadd.f32 %v4052, %v5632
      %v5634 = vpop.f32.mrf.mxu0
      %v5635 = vpop.f32.mrf.mxu0
      %5636 = vdwg.mxu0
      %5637 = vmatprep.subr.bf16.mxu0 %v5090
      %5638 = vmatpush1.bf16.msra.mxu0 %v5089
      %5639 = vmatprep.subr.bf16.mxu0 %v5087
      %5640 = vmatpush1.bf16.msra.mxu0 %v5086
      %5641 = vmatprep.subr.bf16.mxu0 %v5084
      %5642 = vmatpush1.bf16.msra.mxu0 %v5083
      %5643 = vmatprep.subr.bf16.mxu0 %v5081
      %5644 = vmatpush1.bf16.msra.mxu0 %v5080
      %5645 = vmatprep.subr.bf16.mxu0 %v5078
      %5646 = vmatpush1.bf16.msra.mxu0 %v5077
      %5647 = vmatprep.subr.bf16.mxu0 %v5075
      %5648 = vmatpush1.bf16.msra.mxu0 %v5074
      %5649 = vmatprep.subr.bf16.mxu0 %v5072
      %5650 = vmatpush1.bf16.msra.mxu0 %v5071
      %5651 = vmatprep.subr.bf16.mxu0 %v5069
      %5652 = vmatpush1.bf16.msra.mxu0 %v5068
      %5653 = vmatprep.subr.bf16.mxu0 %v5114
      %5654 = vmatpush2.bf16.msra.mxu0 %v5113
      %5655 = vmatprep.subr.bf16.mxu0 %v5111
      %5656 = vmatpush2.bf16.msra.mxu0 %v5110
      %5657 = vmatprep.subr.bf16.mxu0 %v5108
      %5658 = vmatpush2.bf16.msra.mxu0 %v5107
      %5659 = vmatprep.subr.bf16.mxu0 %v5105
      %5660 = vmatpush2.bf16.msra.mxu0 %v5104
      %5661 = vmatprep.subr.bf16.mxu0 %v5102
      %5662 = vmatpush2.bf16.msra.mxu0 %v5101
      %5663 = vmatprep.subr.bf16.mxu0 %v5099
      %5664 = vmatpush2.bf16.msra.mxu0 %v5098
      %5665 = vmatprep.subr.bf16.mxu0 %v5096
      %5666 = vmatpush2.bf16.msra.mxu0 %v5095
      %5667 = vmatprep.subr.bf16.mxu0 %v5093
      %5668 = vmatpush2.bf16.msra.mxu0 %v5092
      %5669 = vmatprep.mubr.bf16.mxu0 %v3478
      %5670 = vmatmul.mubr.bf16.gmra.mxu0 %v3391
      %v5671 = vpop.f32.mrf.mxu0
      %v5672 = vadd.f32 %v5631, %v5671
      %v5673 = vpop.f32.mrf.mxu0
      %v5674 = vadd.f32 %v5633, %v5673
      %v5675 = vpop.f32.mrf.mxu0
      %v5676 = vpop.f32.mrf.mxu0
      %5677 = vdwg.mxu0
      %5678 = vmatprep.subr.bf16.mxu0 %v5138
      %5679 = vmatpush1.bf16.msra.mxu0 %v5137
      %5680 = vmatprep.subr.bf16.mxu0 %v5135
      %5681 = vmatpush1.bf16.msra.mxu0 %v5134
      %5682 = vmatprep.subr.bf16.mxu0 %v5132
      %5683 = vmatpush1.bf16.msra.mxu0 %v5131
      %5684 = vmatprep.subr.bf16.mxu0 %v5129
      %5685 = vmatpush1.bf16.msra.mxu0 %v5128
      %5686 = vmatprep.subr.bf16.mxu0 %v5126
      %5687 = vmatpush1.bf16.msra.mxu0 %v5125
      %5688 = vmatprep.subr.bf16.mxu0 %v5123
      %5689 = vmatpush1.bf16.msra.mxu0 %v5122
      %5690 = vmatprep.subr.bf16.mxu0 %v5120
      %5691 = vmatpush1.bf16.msra.mxu0 %v5119
      %5692 = vmatprep.subr.bf16.mxu0 %v5117
      %5693 = vmatpush1.bf16.msra.mxu0 %v5116
      %5694 = vmatprep.subr.bf16.mxu0 %v5162
      %5695 = vmatpush2.bf16.msra.mxu0 %v5161
      %5696 = vmatprep.subr.bf16.mxu0 %v5159
      %5697 = vmatpush2.bf16.msra.mxu0 %v5158
      %5698 = vmatprep.subr.bf16.mxu0 %v5156
      %5699 = vmatpush2.bf16.msra.mxu0 %v5155
      %5700 = vmatprep.subr.bf16.mxu0 %v5153
      %5701 = vmatpush2.bf16.msra.mxu0 %v5152
      %5702 = vmatprep.subr.bf16.mxu0 %v5150
      %5703 = vmatpush2.bf16.msra.mxu0 %v5149
      %5704 = vmatprep.subr.bf16.mxu0 %v5147
      %5705 = vmatpush2.bf16.msra.mxu0 %v5146
      %5706 = vmatprep.subr.bf16.mxu0 %v5144
      %5707 = vmatpush2.bf16.msra.mxu0 %v5143
      %5708 = vmatprep.subr.bf16.mxu0 %v5141
      %5709 = vmatpush2.bf16.msra.mxu0 %v5140
      %5710 = vmatprep.mubr.bf16.mxu0 %v3480
      %5711 = vmatmul.mubr.bf16.gmra.mxu0 %v3479
      %v5712 = vpop.f32.mrf.mxu0
      %v5713 = vadd.f32 %v5672, %v5712
      %v5714 = vpop.f32.mrf.mxu0
      %v5715 = vadd.f32 %v5674, %v5714
      %v5716 = vpop.f32.mrf.mxu0
      %v5717 = vpop.f32.mrf.mxu0
      %5718 = vdwg.mxu0
      %5719 = vmatprep.subr.bf16.mxu0 %v5186
      %5720 = vmatpush1.bf16.msra.mxu0 %v5185
      %5721 = vmatprep.subr.bf16.mxu0 %v5183
      %5722 = vmatpush1.bf16.msra.mxu0 %v5182
      %5723 = vmatprep.subr.bf16.mxu0 %v5180
      %5724 = vmatpush1.bf16.msra.mxu0 %v5179
      %5725 = vmatprep.subr.bf16.mxu0 %v5177
      %5726 = vmatpush1.bf16.msra.mxu0 %v5176
      %5727 = vmatprep.subr.bf16.mxu0 %v5174
      %5728 = vmatpush1.bf16.msra.mxu0 %v5173
      %5729 = vmatprep.subr.bf16.mxu0 %v5171
      %5730 = vmatpush1.bf16.msra.mxu0 %v5170
      %5731 = vmatprep.subr.bf16.mxu0 %v5168
      %5732 = vmatpush1.bf16.msra.mxu0 %v5167
      %5733 = vmatprep.subr.bf16.mxu0 %v5165
      %5734 = vmatpush1.bf16.msra.mxu0 %v5164
      %5735 = vmatprep.subr.bf16.mxu0 %v5210
      %5736 = vmatpush2.bf16.msra.mxu0 %v5209
      %5737 = vmatprep.subr.bf16.mxu0 %v5207
      %5738 = vmatpush2.bf16.msra.mxu0 %v5206
      %5739 = vmatprep.subr.bf16.mxu0 %v5204
      %5740 = vmatpush2.bf16.msra.mxu0 %v5203
      %5741 = vmatprep.subr.bf16.mxu0 %v5201
      %5742 = vmatpush2.bf16.msra.mxu0 %v5200
      %5743 = vmatprep.subr.bf16.mxu0 %v5198
      %5744 = vmatpush2.bf16.msra.mxu0 %v5197
      %5745 = vmatprep.subr.bf16.mxu0 %v5195
      %5746 = vmatpush2.bf16.msra.mxu0 %v5194
      %5747 = vmatprep.subr.bf16.mxu0 %v5192
      %5748 = vmatpush2.bf16.msra.mxu0 %v5191
      %5749 = vmatprep.subr.bf16.mxu0 %v5189
      %5750 = vmatpush2.bf16.msra.mxu0 %v5188
      %5751 = vmatprep.mubr.bf16.mxu0 %v3568
      %5752 = vmatmul.mubr.bf16.gmra.mxu0 %v3567
      %v5753 = vpop.f32.mrf.mxu0
      %v5754 = vadd.f32 %v5713, %v5753
      %v5755 = vpop.f32.mrf.mxu0
      %v5756 = vadd.f32 %v5715, %v5755
      %v5757 = vpop.f32.mrf.mxu0
      %v5758 = vpop.f32.mrf.mxu0
      %5759 = vdwg.mxu0
      %5760 = vmatprep.subr.bf16.mxu0 %v5234
      %5761 = vmatpush1.bf16.msra.mxu0 %v5233
      %5762 = vmatprep.subr.bf16.mxu0 %v5231
      %5763 = vmatpush1.bf16.msra.mxu0 %v5230
      %5764 = vmatprep.subr.bf16.mxu0 %v5228
      %5765 = vmatpush1.bf16.msra.mxu0 %v5227
      %5766 = vmatprep.subr.bf16.mxu0 %v5225
      %5767 = vmatpush1.bf16.msra.mxu0 %v5224
      %5768 = vmatprep.subr.bf16.mxu0 %v5222
      %5769 = vmatpush1.bf16.msra.mxu0 %v5221
      %5770 = vmatprep.subr.bf16.mxu0 %v5219
      %5771 = vmatpush1.bf16.msra.mxu0 %v5218
      %5772 = vmatprep.subr.bf16.mxu0 %v5216
      %5773 = vmatpush1.bf16.msra.mxu0 %v5215
      %5774 = vmatprep.subr.bf16.mxu0 %v5213
      %5775 = vmatpush1.bf16.msra.mxu0 %v5212
      %5776 = vmatprep.subr.bf16.mxu0 %v5258
      %5777 = vmatpush2.bf16.msra.mxu0 %v5257
      %5778 = vmatprep.subr.bf16.mxu0 %v5255
      %5779 = vmatpush2.bf16.msra.mxu0 %v5254
      %5780 = vmatprep.subr.bf16.mxu0 %v5252
      %5781 = vmatpush2.bf16.msra.mxu0 %v5251
      %5782 = vmatprep.subr.bf16.mxu0 %v5249
      %5783 = vmatpush2.bf16.msra.mxu0 %v5248
      %5784 = vmatprep.subr.bf16.mxu0 %v5246
      %5785 = vmatpush2.bf16.msra.mxu0 %v5245
      %5786 = vmatprep.subr.bf16.mxu0 %v5243
      %5787 = vmatpush2.bf16.msra.mxu0 %v5242
      %5788 = vmatprep.subr.bf16.mxu0 %v5240
      %5789 = vmatpush2.bf16.msra.mxu0 %v5239
      %5790 = vmatprep.subr.bf16.mxu0 %v5237
      %5791 = vmatpush2.bf16.msra.mxu0 %v5236
      %5792 = vmatprep.mubr.bf16.mxu0 %v3656
      %5793 = vmatmul.mubr.bf16.gmra.mxu0 %v3569
      %v5794 = vpop.f32.mrf.mxu0
      %v5795 = vadd.f32 %v5754, %v5794
      %v5796 = vpop.f32.mrf.mxu0
      %v5797 = vadd.f32 %v5756, %v5796
      %v5798 = vpop.f32.mrf.mxu0
      %v5799 = vpop.f32.mrf.mxu0
      %5800 = vdwg.mxu0
      %5801 = vmatprep.subr.bf16.mxu0 %v5282
      %5802 = vmatpush1.bf16.msra.mxu0 %v5281
      %5803 = vmatprep.subr.bf16.mxu0 %v5279
      %5804 = vmatpush1.bf16.msra.mxu0 %v5278
      %5805 = vmatprep.subr.bf16.mxu0 %v5276
      %5806 = vmatpush1.bf16.msra.mxu0 %v5275
      %5807 = vmatprep.subr.bf16.mxu0 %v5273
      %5808 = vmatpush1.bf16.msra.mxu0 %v5272
      %5809 = vmatprep.subr.bf16.mxu0 %v5270
      %5810 = vmatpush1.bf16.msra.mxu0 %v5269
      %5811 = vmatprep.subr.bf16.mxu0 %v5267
      %5812 = vmatpush1.bf16.msra.mxu0 %v5266
      %5813 = vmatprep.subr.bf16.mxu0 %v5264
      %5814 = vmatpush1.bf16.msra.mxu0 %v5263
      %5815 = vmatprep.subr.bf16.mxu0 %v5261
      %5816 = vmatpush1.bf16.msra.mxu0 %v5260
      %5817 = vmatprep.subr.bf16.mxu0 %v5306
      %5818 = vmatpush2.bf16.msra.mxu0 %v5305
      %5819 = vmatprep.subr.bf16.mxu0 %v5303
      %5820 = vmatpush2.bf16.msra.mxu0 %v5302
      %5821 = vmatprep.subr.bf16.mxu0 %v5300
      %5822 = vmatpush2.bf16.msra.mxu0 %v5299
      %5823 = vmatprep.subr.bf16.mxu0 %v5297
      %5824 = vmatpush2.bf16.msra.mxu0 %v5296
      %5825 = vmatprep.subr.bf16.mxu0 %v5294
      %5826 = vmatpush2.bf16.msra.mxu0 %v5293
      %5827 = vmatprep.subr.bf16.mxu0 %v5291
      %5828 = vmatpush2.bf16.msra.mxu0 %v5290
      %5829 = vmatprep.subr.bf16.mxu0 %v5288
      %5830 = vmatpush2.bf16.msra.mxu0 %v5287
      %5831 = vmatprep.subr.bf16.mxu0 %v5285
      %5832 = vmatpush2.bf16.msra.mxu0 %v5284
      %5833 = vmatprep.mubr.bf16.mxu0 %v3658
      %5834 = vmatmul.mubr.bf16.gmra.mxu0 %v3657
      %v5835 = vpop.f32.mrf.mxu0
      %v5836 = vadd.f32 %v5795, %v5835
      %v5837 = vpop.f32.mrf.mxu0
      %v5838 = vadd.f32 %v5797, %v5837
      %v5839 = vpop.f32.mrf.mxu0
      %v5840 = vpop.f32.mrf.mxu0
      %5841 = vdwg.mxu0
      %5842 = vmatprep.subr.bf16.mxu0 0
      %5843 = vmatpush1.bf16.msra.mxu0 %v5043
      %5844 = vmatprep.subr.bf16.mxu0 0
      %5845 = vmatpush1.bf16.msra.mxu0 %v5040
      %5846 = vmatprep.subr.bf16.mxu0 0
      %5847 = vmatpush1.bf16.msra.mxu0 %v5037
      %5848 = vmatprep.subr.bf16.mxu0 0
      %5849 = vmatpush1.bf16.msra.mxu0 %v5034
      %5850 = vmatprep.subr.bf16.mxu0 0
      %5851 = vmatpush1.bf16.msra.mxu0 %v5031
      %5852 = vmatprep.subr.bf16.mxu0 0
      %5853 = vmatpush1.bf16.msra.mxu0 %v5028
      %5854 = vmatprep.subr.bf16.mxu0 0
      %5855 = vmatpush1.bf16.msra.mxu0 %v5025
      %5856 = vmatprep.subr.bf16.mxu0 0
      %5857 = vmatpush1.bf16.msra.mxu0 %v5022
      %5858 = vmatprep.subr.bf16.mxu0 0
      %5859 = vmatpush2.bf16.msra.mxu0 %v5067
      %5860 = vmatprep.subr.bf16.mxu0 0
      %5861 = vmatpush2.bf16.msra.mxu0 %v5064
      %5862 = vmatprep.subr.bf16.mxu0 0
      %5863 = vmatpush2.bf16.msra.mxu0 %v5061
      %5864 = vmatprep.subr.bf16.mxu0 0
      %5865 = vmatpush2.bf16.msra.mxu0 %v5058
      %5866 = vmatprep.subr.bf16.mxu0 0
      %5867 = vmatpush2.bf16.msra.mxu0 %v5055
      %5868 = vmatprep.subr.bf16.mxu0 0
      %5869 = vmatpush2.bf16.msra.mxu0 %v5052
      %5870 = vmatprep.subr.bf16.mxu0 0
      %5871 = vmatpush2.bf16.msra.mxu0 %v5049
      %5872 = vmatprep.subr.bf16.mxu0 0
      %5873 = vmatpush2.bf16.msra.mxu0 %v5046
      %5874 = vmatprep.mubr.bf16.mxu0 %v3390
      %5875 = vmatmul.mubr.bf16.gmra.mxu0 %v3389
      %v5876 = vpop.f32.mrf.mxu0
      %v5877 = vadd.f32 %v4056, %v5876
      %v5878 = vpop.f32.mrf.mxu0
      %v5879 = vpop.f32.mrf.mxu0
      %v5880 = vpop.f32.mrf.mxu0
      %5881 = vdwg.mxu0
      %5882 = vmatprep.subr.bf16.mxu0 0
      %5883 = vmatpush1.bf16.msra.mxu0 %v5091
      %5884 = vmatprep.subr.bf16.mxu0 0
      %5885 = vmatpush1.bf16.msra.mxu0 %v5088
      %5886 = vmatprep.subr.bf16.mxu0 0
      %5887 = vmatpush1.bf16.msra.mxu0 %v5085
      %5888 = vmatprep.subr.bf16.mxu0 0
      %5889 = vmatpush1.bf16.msra.mxu0 %v5082
      %5890 = vmatprep.subr.bf16.mxu0 0
      %5891 = vmatpush1.bf16.msra.mxu0 %v5079
      %5892 = vmatprep.subr.bf16.mxu0 0
      %5893 = vmatpush1.bf16.msra.mxu0 %v5076
      %5894 = vmatprep.subr.bf16.mxu0 0
      %5895 = vmatpush1.bf16.msra.mxu0 %v5073
      %5896 = vmatprep.subr.bf16.mxu0 0
      %5897 = vmatpush1.bf16.msra.mxu0 %v5070
      %5898 = vmatprep.subr.bf16.mxu0 0
      %5899 = vmatpush2.bf16.msra.mxu0 %v5115
      %5900 = vmatprep.subr.bf16.mxu0 0
      %5901 = vmatpush2.bf16.msra.mxu0 %v5112
      %5902 = vmatprep.subr.bf16.mxu0 0
      %5903 = vmatpush2.bf16.msra.mxu0 %v5109
      %5904 = vmatprep.subr.bf16.mxu0 0
      %5905 = vmatpush2.bf16.msra.mxu0 %v5106
      %5906 = vmatprep.subr.bf16.mxu0 0
      %5907 = vmatpush2.bf16.msra.mxu0 %v5103
      %5908 = vmatprep.subr.bf16.mxu0 0
      %5909 = vmatpush2.bf16.msra.mxu0 %v5100
      %5910 = vmatprep.subr.bf16.mxu0 0
      %5911 = vmatpush2.bf16.msra.mxu0 %v5097
      %5912 = vmatprep.subr.bf16.mxu0 0
      %5913 = vmatpush2.bf16.msra.mxu0 %v5094
      %5914 = vmatprep.mubr.bf16.mxu0 %v3478
      %5915 = vmatmul.mubr.bf16.gmra.mxu0 %v3391
      %v5916 = vpop.f32.mrf.mxu0
      %v5917 = vadd.f32 %v5877, %v5916
      %v5918 = vpop.f32.mrf.mxu0
      %v5919 = vpop.f32.mrf.mxu0
      %v5920 = vpop.f32.mrf.mxu0
      %5921 = vdwg.mxu0
      %5922 = vmatprep.subr.bf16.mxu0 0
      %5923 = vmatpush1.bf16.msra.mxu0 %v5139
      %5924 = vmatprep.subr.bf16.mxu0 0
      %5925 = vmatpush1.bf16.msra.mxu0 %v5136
      %5926 = vmatprep.subr.bf16.mxu0 0
      %5927 = vmatpush1.bf16.msra.mxu0 %v5133
      %5928 = vmatprep.subr.bf16.mxu0 0
      %5929 = vmatpush1.bf16.msra.mxu0 %v5130
      %5930 = vmatprep.subr.bf16.mxu0 0
      %5931 = vmatpush1.bf16.msra.mxu0 %v5127
      %5932 = vmatprep.subr.bf16.mxu0 0
      %5933 = vmatpush1.bf16.msra.mxu0 %v5124
      %5934 = vmatprep.subr.bf16.mxu0 0
      %5935 = vmatpush1.bf16.msra.mxu0 %v5121
      %5936 = vmatprep.subr.bf16.mxu0 0
      %5937 = vmatpush1.bf16.msra.mxu0 %v5118
      %5938 = vmatprep.subr.bf16.mxu0 0
      %5939 = vmatpush2.bf16.msra.mxu0 %v5163
      %5940 = vmatprep.subr.bf16.mxu0 0
      %5941 = vmatpush2.bf16.msra.mxu0 %v5160
      %5942 = vmatprep.subr.bf16.mxu0 0
      %5943 = vmatpush2.bf16.msra.mxu0 %v5157
      %5944 = vmatprep.subr.bf16.mxu0 0
      %5945 = vmatpush2.bf16.msra.mxu0 %v5154
      %5946 = vmatprep.subr.bf16.mxu0 0
      %5947 = vmatpush2.bf16.msra.mxu0 %v5151
      %5948 = vmatprep.subr.bf16.mxu0 0
      %5949 = vmatpush2.bf16.msra.mxu0 %v5148
      %5950 = vmatprep.subr.bf16.mxu0 0
      %5951 = vmatpush2.bf16.msra.mxu0 %v5145
      %5952 = vmatprep.subr.bf16.mxu0 0
      %5953 = vmatpush2.bf16.msra.mxu0 %v5142
      %5954 = vmatprep.mubr.bf16.mxu0 %v3480
      %5955 = vmatmul.mubr.bf16.gmra.mxu0 %v3479
      %v5956 = vpop.f32.mrf.mxu0
      %v5957 = vadd.f32 %v5917, %v5956
      %v5958 = vpop.f32.mrf.mxu0
      %v5959 = vpop.f32.mrf.mxu0
      %v5960 = vpop.f32.mrf.mxu0
      %5961 = vdwg.mxu0
      %5962 = vmatprep.subr.bf16.mxu0 0
      %5963 = vmatpush1.bf16.msra.mxu0 %v5187
      %5964 = vmatprep.subr.bf16.mxu0 0
      %5965 = vmatpush1.bf16.msra.mxu0 %v5184
      %5966 = vmatprep.subr.bf16.mxu0 0
      %5967 = vmatpush1.bf16.msra.mxu0 %v5181
      %5968 = vmatprep.subr.bf16.mxu0 0
      %5969 = vmatpush1.bf16.msra.mxu0 %v5178
      %5970 = vmatprep.subr.bf16.mxu0 0
      %5971 = vmatpush1.bf16.msra.mxu0 %v5175
      %5972 = vmatprep.subr.bf16.mxu0 0
      %5973 = vmatpush1.bf16.msra.mxu0 %v5172
      %5974 = vmatprep.subr.bf16.mxu0 0
      %5975 = vmatpush1.bf16.msra.mxu0 %v5169
      %5976 = vmatprep.subr.bf16.mxu0 0
      %5977 = vmatpush1.bf16.msra.mxu0 %v5166
      %5978 = vmatprep.subr.bf16.mxu0 0
      %5979 = vmatpush2.bf16.msra.mxu0 %v5211
      %5980 = vmatprep.subr.bf16.mxu0 0
      %5981 = vmatpush2.bf16.msra.mxu0 %v5208
      %5982 = vmatprep.subr.bf16.mxu0 0
      %5983 = vmatpush2.bf16.msra.mxu0 %v5205
      %5984 = vmatprep.subr.bf16.mxu0 0
      %5985 = vmatpush2.bf16.msra.mxu0 %v5202
      %5986 = vmatprep.subr.bf16.mxu0 0
      %5987 = vmatpush2.bf16.msra.mxu0 %v5199
      %5988 = vmatprep.subr.bf16.mxu0 0
      %5989 = vmatpush2.bf16.msra.mxu0 %v5196
      %5990 = vmatprep.subr.bf16.mxu0 0
      %5991 = vmatpush2.bf16.msra.mxu0 %v5193
      %5992 = vmatprep.subr.bf16.mxu0 0
      %5993 = vmatpush2.bf16.msra.mxu0 %v5190
      %5994 = vmatprep.mubr.bf16.mxu0 %v3568
      %5995 = vmatmul.mubr.bf16.gmra.mxu0 %v3567
      %v5996 = vpop.f32.mrf.mxu0
      %v5997 = vadd.f32 %v5957, %v5996
      %v5998 = vpop.f32.mrf.mxu0
      %v5999 = vpop.f32.mrf.mxu0
      %v6000 = vpop.f32.mrf.mxu0
      %6001 = vdwg.mxu0
      %6002 = vmatprep.subr.bf16.mxu0 0
      %6003 = vmatpush1.bf16.msra.mxu0 %v5235
      %6004 = vmatprep.subr.bf16.mxu0 0
      %6005 = vmatpush1.bf16.msra.mxu0 %v5232
      %6006 = vmatprep.subr.bf16.mxu0 0
      %6007 = vmatpush1.bf16.msra.mxu0 %v5229
      %6008 = vmatprep.subr.bf16.mxu0 0
      %6009 = vmatpush1.bf16.msra.mxu0 %v5226
      %6010 = vmatprep.subr.bf16.mxu0 0
      %6011 = vmatpush1.bf16.msra.mxu0 %v5223
      %6012 = vmatprep.subr.bf16.mxu0 0
      %6013 = vmatpush1.bf16.msra.mxu0 %v5220
      %6014 = vmatprep.subr.bf16.mxu0 0
      %6015 = vmatpush1.bf16.msra.mxu0 %v5217
      %6016 = vmatprep.subr.bf16.mxu0 0
      %6017 = vmatpush1.bf16.msra.mxu0 %v5214
      %6018 = vmatprep.subr.bf16.mxu0 0
      %6019 = vmatpush2.bf16.msra.mxu0 %v5259
      %6020 = vmatprep.subr.bf16.mxu0 0
      %6021 = vmatpush2.bf16.msra.mxu0 %v5256
      %6022 = vmatprep.subr.bf16.mxu0 0
      %6023 = vmatpush2.bf16.msra.mxu0 %v5253
      %6024 = vmatprep.subr.bf16.mxu0 0
      %6025 = vmatpush2.bf16.msra.mxu0 %v5250
      %6026 = vmatprep.subr.bf16.mxu0 0
      %6027 = vmatpush2.bf16.msra.mxu0 %v5247
      %6028 = vmatprep.subr.bf16.mxu0 0
      %6029 = vmatpush2.bf16.msra.mxu0 %v5244
      %6030 = vmatprep.subr.bf16.mxu0 0
      %6031 = vmatpush2.bf16.msra.mxu0 %v5241
      %6032 = vmatprep.subr.bf16.mxu0 0
      %6033 = vmatpush2.bf16.msra.mxu0 %v5238
      %6034 = vmatprep.mubr.bf16.mxu0 %v3656
      %6035 = vmatmul.mubr.bf16.gmra.mxu0 %v3569
      %v6036 = vpop.f32.mrf.mxu0
      %v6037 = vadd.f32 %v5997, %v6036
      %v6038 = vpop.f32.mrf.mxu0
      %v6039 = vpop.f32.mrf.mxu0
      %v6040 = vpop.f32.mrf.mxu0
      %6041 = vdwg.mxu0
      %6042 = vmatprep.subr.bf16.mxu0 0
      %6043 = vmatpush1.bf16.msra.mxu0 %v5283
      %6044 = vmatprep.subr.bf16.mxu0 0
      %6045 = vmatpush1.bf16.msra.mxu0 %v5280
      %6046 = vmatprep.subr.bf16.mxu0 0
      %6047 = vmatpush1.bf16.msra.mxu0 %v5277
      %6048 = vmatprep.subr.bf16.mxu0 0
      %6049 = vmatpush1.bf16.msra.mxu0 %v5274
      %6050 = vmatprep.subr.bf16.mxu0 0
      %6051 = vmatpush1.bf16.msra.mxu0 %v5271
      %6052 = vmatprep.subr.bf16.mxu0 0
      %6053 = vmatpush1.bf16.msra.mxu0 %v5268
      %6054 = vmatprep.subr.bf16.mxu0 0
      %6055 = vmatpush1.bf16.msra.mxu0 %v5265
      %6056 = vmatprep.subr.bf16.mxu0 0
      %6057 = vmatpush1.bf16.msra.mxu0 %v5262
      %6058 = vmatprep.subr.bf16.mxu0 0
      %6059 = vmatpush2.bf16.msra.mxu0 %v5307
      %6060 = vmatprep.subr.bf16.mxu0 0
      %6061 = vmatpush2.bf16.msra.mxu0 %v5304
      %6062 = vmatprep.subr.bf16.mxu0 0
      %6063 = vmatpush2.bf16.msra.mxu0 %v5301
      %6064 = vmatprep.subr.bf16.mxu0 0
      %6065 = vmatpush2.bf16.msra.mxu0 %v5298
      %6066 = vmatprep.subr.bf16.mxu0 0
      %6067 = vmatpush2.bf16.msra.mxu0 %v5295
      %6068 = vmatprep.subr.bf16.mxu0 0
      %6069 = vmatpush2.bf16.msra.mxu0 %v5292
      %6070 = vmatprep.subr.bf16.mxu0 0
      %6071 = vmatpush2.bf16.msra.mxu0 %v5289
      %6072 = vmatprep.subr.bf16.mxu0 0
      %6073 = vmatpush2.bf16.msra.mxu0 %v5286
      %6074 = vmatprep.mubr.bf16.mxu0 %v3658
      %6075 = vmatmul.mubr.bf16.gmra.mxu0 %v3657
      %v6076 = vpop.f32.mrf.mxu0
      %v6077 = vadd.f32 %v6037, %v6076
      %v6078 = vpop.f32.mrf.mxu0
      %v6079 = vpop.f32.mrf.mxu0
      %v6080 = vpop.f32.mrf.mxu0
      %6081 = vdwg.mxu0
      %v6082 = vmax.f32 %v5836, 0.0
      %v6083 = vmax.f32 %v5838, 0.0
      %v6084 = vmax.f32 %v6077, 0.0
      %v6085 = vpack.c.bf16 %v6082, %v6082
      %v6086 = vpack.c.bf16 %v6083, %v6083
      %v6087 = vpack.c.bf16 %v6084, %v6084
      %v6088 = vld [vmem:[%s6] sm:$0x3]
      %vm6089 = vcmask 39936
      %v6091 = vsel %vm6089, %v6088, 0
      %vm6093 = vcmask 1041408
      %vm6094 = vcmask 1042432
      %v6095 = vsel %vm6093, 4294967295, 65535
      %v6096 = vsel %vm6094, %v6095, 0
      %v6098 = vand.u32 %v6085, %v6096
      %v6101 = vand.u32 %v6086, %v6096
      %v6104 = vand.u32 %v6087, %v6096
      %6106 = vmatprep.subr.bf16.mxu0 0
      %6107 = vmatpush1.bf16.msra.mxu0 0
      %6108 = vmatprep.subr.bf16.mxu0 0
      %6109 = vmatpush1.bf16.msra.mxu0 0
      %6110 = vmatprep.subr.bf16.mxu0 0
      %6111 = vmatpush1.bf16.msra.mxu0 0
      %6112 = vmatprep.subr.bf16.mxu0 0
      %6113 = vmatpush1.bf16.msra.mxu0 0
      %6114 = vmatprep.subr.bf16.mxu0 0
      %6115 = vmatpush1.bf16.msra.mxu0 0
      %6116 = vmatprep.subr.bf16.mxu0 0
      %6117 = vmatpush1.bf16.msra.mxu0 0
      %6118 = vmatprep.subr.bf16.mxu0 0
      %6119 = vmatpush1.bf16.msra.mxu0 0
      %6120 = vmatprep.subr.bf16.mxu0 %v6101
      %6121 = vmatpush1.bf16.msra.mxu0 %v6098
      %6122 = vmatprep.subr.bf16.mxu0 0
      %6123 = vmatpush2.bf16.msra.mxu0 0
      %6124 = vmatprep.subr.bf16.mxu0 0
      %6125 = vmatpush2.bf16.msra.mxu0 0
      %6126 = vmatprep.subr.bf16.mxu0 0
      %6127 = vmatpush2.bf16.msra.mxu0 0
      %6128 = vmatprep.subr.bf16.mxu0 0
      %6129 = vmatpush2.bf16.msra.mxu0 0
      %6130 = vmatprep.subr.bf16.mxu0 0
      %6131 = vmatpush2.bf16.msra.mxu0 0
      %6132 = vmatprep.subr.bf16.mxu0 0
      %6133 = vmatpush2.bf16.msra.mxu0 0
      %6134 = vmatprep.subr.bf16.mxu0 0
      %6135 = vmatpush2.bf16.msra.mxu0 0
      %6136 = vmatprep.subr.bf16.mxu0 0
      %6137 = vmatpush2.bf16.msra.mxu0 0
      %6138 = vmatprep.mubr.bf16.mxu0 0
      %6139 = vmatmul.mubr.bf16.gmra.mxu0 %v6091
      %v6140 = vpop.f32.mrf.mxu0
      %v6141 = vadd.f32 0.0, %v6140
      %v6142 = vpop.f32.mrf.mxu0
      %v6143 = vadd.f32 0.0, %v6142
      %v6144 = vpop.f32.mrf.mxu0
      %v6145 = vpop.f32.mrf.mxu0
      %6146 = vdwg.mxu0
      %6147 = vmatprep.subr.bf16.mxu0 0
      %6148 = vmatpush1.bf16.msra.mxu0 0
      %6149 = vmatprep.subr.bf16.mxu0 0
      %6150 = vmatpush1.bf16.msra.mxu0 0
      %6151 = vmatprep.subr.bf16.mxu0 0
      %6152 = vmatpush1.bf16.msra.mxu0 0
      %6153 = vmatprep.subr.bf16.mxu0 0
      %6154 = vmatpush1.bf16.msra.mxu0 0
      %6155 = vmatprep.subr.bf16.mxu0 0
      %6156 = vmatpush1.bf16.msra.mxu0 0
      %6157 = vmatprep.subr.bf16.mxu0 0
      %6158 = vmatpush1.bf16.msra.mxu0 0
      %6159 = vmatprep.subr.bf16.mxu0 0
      %6160 = vmatpush1.bf16.msra.mxu0 0
      %6161 = vmatprep.subr.bf16.mxu0 0
      %6162 = vmatpush1.bf16.msra.mxu0 %v6104
      %6163 = vmatprep.subr.bf16.mxu0 0
      %6164 = vmatpush2.bf16.msra.mxu0 0
      %6165 = vmatprep.subr.bf16.mxu0 0
      %6166 = vmatpush2.bf16.msra.mxu0 0
      %6167 = vmatprep.subr.bf16.mxu0 0
      %6168 = vmatpush2.bf16.msra.mxu0 0
      %6169 = vmatprep.subr.bf16.mxu0 0
      %6170 = vmatpush2.bf16.msra.mxu0 0
      %6171 = vmatprep.subr.bf16.mxu0 0
      %6172 = vmatpush2.bf16.msra.mxu0 0
      %6173 = vmatprep.subr.bf16.mxu0 0
      %6174 = vmatpush2.bf16.msra.mxu0 0
      %6175 = vmatprep.subr.bf16.mxu0 0
      %6176 = vmatpush2.bf16.msra.mxu0 0
      %6177 = vmatprep.subr.bf16.mxu0 0
      %6178 = vmatpush2.bf16.msra.mxu0 0
      %6179 = vmatprep.mubr.bf16.mxu0 0
      %6180 = vmatmul.mubr.bf16.gmra.mxu0 %v6091
      %v6181 = vpop.f32.mrf.mxu0
      %v6182 = vadd.f32 0.0, %v6181
      %v6183 = vpop.f32.mrf.mxu0
      %v6184 = vpop.f32.mrf.mxu0
      %v6185 = vpop.f32.mrf.mxu0
      %6186 = vdwg.mxu0
      %v6187 = vpack.c.bf16 %v6141, %v6141
      %v6188 = vpack.c.bf16 %v6143, %v6143
      %v6189 = vpack.c.bf16 %v6182, %v6182
      %s6190 = scalar_lea.vmem %s6, 2
      %v6191 = vld [vmem:[%s6190] sm:$0x3]
      %v6193 = vsel %vm6089, %v6191, 0
      %6195 = vmatprep.subr.bf16.mxu0 0
      %6196 = vmatpush1.bf16.msra.mxu0 0
      %6197 = vmatprep.subr.bf16.mxu0 0
      %6198 = vmatpush1.bf16.msra.mxu0 0
      %6199 = vmatprep.subr.bf16.mxu0 0
      %6200 = vmatpush1.bf16.msra.mxu0 0
      %6201 = vmatprep.subr.bf16.mxu0 0
      %6202 = vmatpush1.bf16.msra.mxu0 0
      %6203 = vmatprep.subr.bf16.mxu0 0
      %6204 = vmatpush1.bf16.msra.mxu0 0
      %6205 = vmatprep.subr.bf16.mxu0 0
      %6206 = vmatpush1.bf16.msra.mxu0 0
      %6207 = vmatprep.subr.bf16.mxu0 0
      %6208 = vmatpush1.bf16.msra.mxu0 0
      %6209 = vmatprep.subr.bf16.mxu0 %v6101
      %6210 = vmatpush1.bf16.msra.mxu0 %v6098
      %6211 = vmatprep.subr.bf16.mxu0 0
      %6212 = vmatpush2.bf16.msra.mxu0 0
      %6213 = vmatprep.subr.bf16.mxu0 0
      %6214 = vmatpush2.bf16.msra.mxu0 0
      %6215 = vmatprep.subr.bf16.mxu0 0
      %6216 = vmatpush2.bf16.msra.mxu0 0
      %6217 = vmatprep.subr.bf16.mxu0 0
      %6218 = vmatpush2.bf16.msra.mxu0 0
      %6219 = vmatprep.subr.bf16.mxu0 0
      %6220 = vmatpush2.bf16.msra.mxu0 0
      %6221 = vmatprep.subr.bf16.mxu0 0
      %6222 = vmatpush2.bf16.msra.mxu0 0
      %6223 = vmatprep.subr.bf16.mxu0 0
      %6224 = vmatpush2.bf16.msra.mxu0 0
      %6225 = vmatprep.subr.bf16.mxu0 0
      %6226 = vmatpush2.bf16.msra.mxu0 0
      %6227 = vmatprep.mubr.bf16.mxu0 0
      %6228 = vmatmul.mubr.bf16.gmra.mxu0 %v6193
      %v6229 = vpop.f32.mrf.mxu0
      %v6230 = vadd.f32 0.0, %v6229
      %v6231 = vpop.f32.mrf.mxu0
      %v6232 = vadd.f32 0.0, %v6231
      %v6233 = vpop.f32.mrf.mxu0
      %v6234 = vpop.f32.mrf.mxu0
      %6235 = vdwg.mxu0
      %6236 = vmatprep.subr.bf16.mxu0 0
      %6237 = vmatpush1.bf16.msra.mxu0 0
      %6238 = vmatprep.subr.bf16.mxu0 0
      %6239 = vmatpush1.bf16.msra.mxu0 0
      %6240 = vmatprep.subr.bf16.mxu0 0
      %6241 = vmatpush1.bf16.msra.mxu0 0
      %6242 = vmatprep.subr.bf16.mxu0 0
      %6243 = vmatpush1.bf16.msra.mxu0 0
      %6244 = vmatprep.subr.bf16.mxu0 0
      %6245 = vmatpush1.bf16.msra.mxu0 0
      %6246 = vmatprep.subr.bf16.mxu0 0
      %6247 = vmatpush1.bf16.msra.mxu0 0
      %6248 = vmatprep.subr.bf16.mxu0 0
      %6249 = vmatpush1.bf16.msra.mxu0 0
      %6250 = vmatprep.subr.bf16.mxu0 0
      %6251 = vmatpush1.bf16.msra.mxu0 %v6104
      %6252 = vmatprep.subr.bf16.mxu0 0
      %6253 = vmatpush2.bf16.msra.mxu0 0
      %6254 = vmatprep.subr.bf16.mxu0 0
      %6255 = vmatpush2.bf16.msra.mxu0 0
      %6256 = vmatprep.subr.bf16.mxu0 0
      %6257 = vmatpush2.bf16.msra.mxu0 0
      %6258 = vmatprep.subr.bf16.mxu0 0
      %6259 = vmatpush2.bf16.msra.mxu0 0
      %6260 = vmatprep.subr.bf16.mxu0 0
      %6261 = vmatpush2.bf16.msra.mxu0 0
      %6262 = vmatprep.subr.bf16.mxu0 0
      %6263 = vmatpush2.bf16.msra.mxu0 0
      %6264 = vmatprep.subr.bf16.mxu0 0
      %6265 = vmatpush2.bf16.msra.mxu0 0
      %6266 = vmatprep.subr.bf16.mxu0 0
      %6267 = vmatpush2.bf16.msra.mxu0 0
      %6268 = vmatprep.mubr.bf16.mxu0 0
      %6269 = vmatmul.mubr.bf16.gmra.mxu0 %v6193
      %v6270 = vpop.f32.mrf.mxu0
      %v6271 = vadd.f32 0.0, %v6270
      %v6272 = vpop.f32.mrf.mxu0
      %v6273 = vpop.f32.mrf.mxu0
      %v6274 = vpop.f32.mrf.mxu0
      %6275 = vdwg.mxu0
      %v6276 = vpack.c.bf16 %v6230, %v6230
      %v6277 = vpack.c.bf16 %v6232, %v6232
      %v6278 = vpack.c.bf16 %v6271, %v6271
      %s6279 = scalar_lea.vmem %s6, 4
      %v6280 = vld [vmem:[%s6279] sm:$0x3]
      %v6282 = vsel %vm6089, %v6280, 0
      %6284 = vmatprep.subr.bf16.mxu0 0
      %6285 = vmatpush1.bf16.msra.mxu0 0
      %6286 = vmatprep.subr.bf16.mxu0 0
      %6287 = vmatpush1.bf16.msra.mxu0 0
      %6288 = vmatprep.subr.bf16.mxu0 0
      %6289 = vmatpush1.bf16.msra.mxu0 0
      %6290 = vmatprep.subr.bf16.mxu0 0
      %6291 = vmatpush1.bf16.msra.mxu0 0
      %6292 = vmatprep.subr.bf16.mxu0 0
      %6293 = vmatpush1.bf16.msra.mxu0 0
      %6294 = vmatprep.subr.bf16.mxu0 0
      %6295 = vmatpush1.bf16.msra.mxu0 0
      %6296 = vmatprep.subr.bf16.mxu0 0
      %6297 = vmatpush1.bf16.msra.mxu0 0
      %6298 = vmatprep.subr.bf16.mxu0 %v6101
      %6299 = vmatpush1.bf16.msra.mxu0 %v6098
      %6300 = vmatprep.subr.bf16.mxu0 0
      %6301 = vmatpush2.bf16.msra.mxu0 0
      %6302 = vmatprep.subr.bf16.mxu0 0
      %6303 = vmatpush2.bf16.msra.mxu0 0
      %6304 = vmatprep.subr.bf16.mxu0 0
      %6305 = vmatpush2.bf16.msra.mxu0 0
      %6306 = vmatprep.subr.bf16.mxu0 0
      %6307 = vmatpush2.bf16.msra.mxu0 0
      %6308 = vmatprep.subr.bf16.mxu0 0
      %6309 = vmatpush2.bf16.msra.mxu0 0
      %6310 = vmatprep.subr.bf16.mxu0 0
      %6311 = vmatpush2.bf16.msra.mxu0 0
      %6312 = vmatprep.subr.bf16.mxu0 0
      %6313 = vmatpush2.bf16.msra.mxu0 0
      %6314 = vmatprep.subr.bf16.mxu0 0
      %6315 = vmatpush2.bf16.msra.mxu0 0
      %6316 = vmatprep.mubr.bf16.mxu0 0
      %6317 = vmatmul.mubr.bf16.gmra.mxu0 %v6282
      %v6318 = vpop.f32.mrf.mxu0
      %v6319 = vadd.f32 0.0, %v6318
      %v6320 = vpop.f32.mrf.mxu0
      %v6321 = vadd.f32 0.0, %v6320
      %v6322 = vpop.f32.mrf.mxu0
      %v6323 = vpop.f32.mrf.mxu0
      %6324 = vdwg.mxu0
      %6325 = vmatprep.subr.bf16.mxu0 0
      %6326 = vmatpush1.bf16.msra.mxu0 0
      %6327 = vmatprep.subr.bf16.mxu0 0
      %6328 = vmatpush1.bf16.msra.mxu0 0
      %6329 = vmatprep.subr.bf16.mxu0 0
      %6330 = vmatpush1.bf16.msra.mxu0 0
      %6331 = vmatprep.subr.bf16.mxu0 0
      %6332 = vmatpush1.bf16.msra.mxu0 0
      %6333 = vmatprep.subr.bf16.mxu0 0
      %6334 = vmatpush1.bf16.msra.mxu0 0
      %6335 = vmatprep.subr.bf16.mxu0 0
      %6336 = vmatpush1.bf16.msra.mxu0 0
      %6337 = vmatprep.subr.bf16.mxu0 0
      %6338 = vmatpush1.bf16.msra.mxu0 0
      %6339 = vmatprep.subr.bf16.mxu0 0
      %6340 = vmatpush1.bf16.msra.mxu0 %v6104
      %6341 = vmatprep.subr.bf16.mxu0 0
      %6342 = vmatpush2.bf16.msra.mxu0 0
      %6343 = vmatprep.subr.bf16.mxu0 0
      %6344 = vmatpush2.bf16.msra.mxu0 0
      %6345 = vmatprep.subr.bf16.mxu0 0
      %6346 = vmatpush2.bf16.msra.mxu0 0
      %6347 = vmatprep.subr.bf16.mxu0 0
      %6348 = vmatpush2.bf16.msra.mxu0 0
      %6349 = vmatprep.subr.bf16.mxu0 0
      %6350 = vmatpush2.bf16.msra.mxu0 0
      %6351 = vmatprep.subr.bf16.mxu0 0
      %6352 = vmatpush2.bf16.msra.mxu0 0
      %6353 = vmatprep.subr.bf16.mxu0 0
      %6354 = vmatpush2.bf16.msra.mxu0 0
      %6355 = vmatprep.subr.bf16.mxu0 0
      %6356 = vmatpush2.bf16.msra.mxu0 0
      %6357 = vmatprep.mubr.bf16.mxu0 0
      %6358 = vmatmul.mubr.bf16.gmra.mxu0 %v6282
      %v6359 = vpop.f32.mrf.mxu0
      %v6360 = vadd.f32 0.0, %v6359
      %v6361 = vpop.f32.mrf.mxu0
      %v6362 = vpop.f32.mrf.mxu0
      %v6363 = vpop.f32.mrf.mxu0
      %6364 = vdwg.mxu0
      %v6365 = vpack.c.bf16 %v6319, %v6319
      %v6366 = vpack.c.bf16 %v6321, %v6321
      %v6367 = vpack.c.bf16 %v6360, %v6360
      %v6368 = vld [vmem:[%s7] sm:$0xff]
      %v6369 = vld [vmem:[%s7 + $0x8] sm:$0xff]
      %v6370 = vld [vmem:[%s7 + $0x10] sm:$0xff]
      %v6371 = vld [vmem:[%s7 + $0x18] sm:$0xff]
      %v6372 = vld [vmem:[%s7 + $0x20] sm:$0xff]
      %v6373 = vld [vmem:[%s7 + $0x28] sm:$0xff]
      %v6374 = vld [vmem:[%s7 + $0x30] sm:$0xff]
      %v6375 = vld [vmem:[%s7 + $0x38] sm:$0xff]
      %v6376 = vld [vmem:[%s7 + $0x40] sm:$0xff]
      %v6377 = vld [vmem:[%s7 + $0x48] sm:$0xff]
      %v6378 = vld [vmem:[%s7 + $0x50] sm:$0xff]
      %v6379 = vld [vmem:[%s7 + $0x58] sm:$0xff]
      %v6380 = vld [vmem:[%s7 + $0x60] sm:$0xff]
      %v6381 = vld [vmem:[%s7 + $0x68] sm:$0xff]
      %v6382 = vld [vmem:[%s7 + $0x70] sm:$0xff]
      %v6383 = vld [vmem:[%s7 + $0x78] sm:$0xff]
      %v6384 = vld [vmem:[%s7 + $0x80] sm:$0xff]
      %v6385 = vld [vmem:[%s7 + $0x88] sm:$0xff]
      %v6386 = vld [vmem:[%s7 + $0x90] sm:$0xff]
      %v6387 = vld [vmem:[%s7 + $0x98] sm:$0xff]
      %v6388 = vld [vmem:[%s7 + $0xa0] sm:$0xff]
      %v6389 = vld [vmem:[%s7 + $0xa8] sm:$0xff]
      %v6390 = vld [vmem:[%s7 + $0xb0] sm:$0xff]
      %v6391 = vld [vmem:[%s7 + $0xb8] sm:$0xff]
      %v6392 = vld [vmem:[%s7 + $0xc0] sm:$0xff]
      %v6393 = vld [vmem:[%s7 + $0xc8] sm:$0xff]
      %v6394 = vld [vmem:[%s7 + $0xd0] sm:$0xff]
      %v6395 = vld [vmem:[%s7 + $0xd8] sm:$0xff]
      %v6396 = vld [vmem:[%s7 + $0xe0] sm:$0xff]
      %v6397 = vld [vmem:[%s7 + $0xe8] sm:$0xff]
      %v6398 = vld [vmem:[%s7 + $0xf0] sm:$0xff]
      %v6399 = vld [vmem:[%s7 + $0xf8] sm:$0xff]
      %v6400 = vld [vmem:[%s7 + $0x100] sm:$0xff]
      %v6401 = vld [vmem:[%s7 + $0x108] sm:$0xff]
      %v6402 = vld [vmem:[%s7 + $0x110] sm:$0xff]
      %v6403 = vld [vmem:[%s7 + $0x118] sm:$0xff]
      %v6404 = vld [vmem:[%s7 + $0x120] sm:$0xff]
      %v6405 = vld [vmem:[%s7 + $0x128] sm:$0xff]
      %v6406 = vld [vmem:[%s7 + $0x130] sm:$0xff]
      %v6407 = vld [vmem:[%s7 + $0x138] sm:$0xff]
      %v6408 = vld [vmem:[%s7 + $0x140] sm:$0xff]
      %v6409 = vld [vmem:[%s7 + $0x148] sm:$0xff]
      %v6410 = vld [vmem:[%s7 + $0x150] sm:$0xff]
      %v6411 = vld [vmem:[%s7 + $0x158] sm:$0xff]
      %v6412 = vld [vmem:[%s7 + $0x160] sm:$0xff]
      %v6413 = vld [vmem:[%s7 + $0x168] sm:$0xff]
      %v6414 = vld [vmem:[%s7 + $0x170] sm:$0xff]
      %v6415 = vld [vmem:[%s7 + $0x178] sm:$0xff]
      %v6416 = vld [vmem:[%s7 + $0x180] sm:$0xff]
      %v6417 = vld [vmem:[%s7 + $0x188] sm:$0xff]
      %v6418 = vld [vmem:[%s7 + $0x190] sm:$0xff]
      %v6419 = vld [vmem:[%s7 + $0x198] sm:$0xff]
      %v6420 = vld [vmem:[%s7 + $0x1a0] sm:$0xff]
      %v6421 = vld [vmem:[%s7 + $0x1a8] sm:$0xff]
      %v6422 = vld [vmem:[%s7 + $0x1b0] sm:$0xff]
      %v6423 = vld [vmem:[%s7 + $0x1b8] sm:$0xff]
      %v6424 = vld [vmem:[%s7 + $0x1c0] sm:$0xff]
      %v6425 = vld [vmem:[%s7 + $0x1c8] sm:$0xff]
      %v6426 = vld [vmem:[%s7 + $0x1d0] sm:$0xff]
      %v6427 = vld [vmem:[%s7 + $0x1d8] sm:$0xff]
      %v6428 = vld [vmem:[%s7 + $0x1e0] sm:$0xff]
      %v6429 = vld [vmem:[%s7 + $0x1e8] sm:$0xff]
      %v6430 = vld [vmem:[%s7 + $0x1f0] sm:$0xff]
      %v6431 = vld [vmem:[%s7 + $0x1f8] sm:$0xff]
      %v6432 = vld [vmem:[%s7 + $0x200] sm:$0xff]
      %v6433 = vld [vmem:[%s7 + $0x208] sm:$0xff]
      %v6434 = vld [vmem:[%s7 + $0x210] sm:$0xff]
      %v6435 = vld [vmem:[%s7 + $0x218] sm:$0xff]
      %v6436 = vld [vmem:[%s7 + $0x220] sm:$0xff]
      %v6437 = vld [vmem:[%s7 + $0x228] sm:$0xff]
      %v6438 = vld [vmem:[%s7 + $0x230] sm:$0xff]
      %v6439 = vld [vmem:[%s7 + $0x238] sm:$0xff]
      %v6440 = vld [vmem:[%s7 + $0x240] sm:$0xff]
      %v6441 = vld [vmem:[%s7 + $0x248] sm:$0xff]
      %v6442 = vld [vmem:[%s7 + $0x250] sm:$0xff]
      %v6443 = vld [vmem:[%s7 + $0x258] sm:$0xff]
      %v6444 = vld [vmem:[%s7 + $0x260] sm:$0xff]
      %v6445 = vld [vmem:[%s7 + $0x268] sm:$0xff]
      %v6446 = vld [vmem:[%s7 + $0x270] sm:$0xff]
      %v6447 = vld [vmem:[%s7 + $0x278] sm:$0xff]
      %v6448 = vld [vmem:[%s7 + $0x280] sm:$0xff]
      %v6449 = vld [vmem:[%s7 + $0x288] sm:$0xff]
      %v6450 = vld [vmem:[%s7 + $0x290] sm:$0xff]
      %v6451 = vld [vmem:[%s7 + $0x298] sm:$0xff]
      %v6452 = vld [vmem:[%s7 + $0x2a0] sm:$0xff]
      %v6453 = vld [vmem:[%s7 + $0x2a8] sm:$0xff]
      %v6454 = vld [vmem:[%s7 + $0x2b0] sm:$0xff]
      %v6455 = vld [vmem:[%s7 + $0x2b8] sm:$0xff]
      %v6456 = vld [vmem:[%s7 + $0x2c0] sm:$0xff]
      %v6457 = vld [vmem:[%s7 + $0x2c8] sm:$0xff]
      %v6458 = vld [vmem:[%s7 + $0x2d0] sm:$0xff]
      %v6459 = vld [vmem:[%s7 + $0x2d8] sm:$0xff]
      %v6460 = vld [vmem:[%s7 + $0x2e0] sm:$0xff]
      %v6461 = vld [vmem:[%s7 + $0x2e8] sm:$0xff]
      %v6462 = vld [vmem:[%s7 + $0x2f0] sm:$0xff]
      %v6463 = vld [vmem:[%s7 + $0x2f8] sm:$0xff]
      %v6464 = vld [vmem:[%s7 + $0x300] sm:$0xff]
      %v6465 = vld [vmem:[%s7 + $0x308] sm:$0xff]
      %v6466 = vld [vmem:[%s7 + $0x310] sm:$0xff]
      %v6467 = vld [vmem:[%s7 + $0x318] sm:$0xff]
      %v6468 = vld [vmem:[%s7 + $0x320] sm:$0xff]
      %v6469 = vld [vmem:[%s7 + $0x328] sm:$0xff]
      %v6470 = vld [vmem:[%s7 + $0x330] sm:$0xff]
      %v6471 = vld [vmem:[%s7 + $0x338] sm:$0xff]
      %v6472 = vld [vmem:[%s7 + $0x340] sm:$0xff]
      %v6473 = vld [vmem:[%s7 + $0x348] sm:$0xff]
      %v6474 = vld [vmem:[%s7 + $0x350] sm:$0xff]
      %v6475 = vld [vmem:[%s7 + $0x358] sm:$0xff]
      %v6476 = vld [vmem:[%s7 + $0x360] sm:$0xff]
      %v6477 = vld [vmem:[%s7 + $0x368] sm:$0xff]
      %v6478 = vld [vmem:[%s7 + $0x370] sm:$0xff]
      %v6479 = vld [vmem:[%s7 + $0x378] sm:$0xff]
      %v6480 = vld [vmem:[%s7 + $0x380] sm:$0xff]
      %v6481 = vld [vmem:[%s7 + $0x388] sm:$0xff]
      %v6482 = vld [vmem:[%s7 + $0x390] sm:$0xff]
      %v6483 = vld [vmem:[%s7 + $0x398] sm:$0xff]
      %v6484 = vld [vmem:[%s7 + $0x3a0] sm:$0xff]
      %v6485 = vld [vmem:[%s7 + $0x3a8] sm:$0xff]
      %v6486 = vld [vmem:[%s7 + $0x3b0] sm:$0xff]
      %v6487 = vld [vmem:[%s7 + $0x3b8] sm:$0xff]
      %v6488 = vld [vmem:[%s7 + $0x3c0] sm:$0xff]
      %v6489 = vld [vmem:[%s7 + $0x3c8] sm:$0xff]
      %v6490 = vld [vmem:[%s7 + $0x3d0] sm:$0xff]
      %v6491 = vld [vmem:[%s7 + $0x3d8] sm:$0xff]
      %v6492 = vld [vmem:[%s7 + $0x3e0] sm:$0xff]
      %v6493 = vld [vmem:[%s7 + $0x3e8] sm:$0xff]
      %v6494 = vld [vmem:[%s7 + $0x3f0] sm:$0xff]
      %v6495 = vld [vmem:[%s7 + $0x3f8] sm:$0xff]
      %v6496 = vld [vmem:[%s7 + $0x400] sm:$0xff]
      %v6497 = vld [vmem:[%s7 + $0x408] sm:$0xff]
      %v6498 = vld [vmem:[%s7 + $0x410] sm:$0xff]
      %v6499 = vld [vmem:[%s7 + $0x418] sm:$0xff]
      %v6500 = vld [vmem:[%s7 + $0x420] sm:$0xff]
      %v6501 = vld [vmem:[%s7 + $0x428] sm:$0xff]
      %v6502 = vld [vmem:[%s7 + $0x430] sm:$0xff]
      %v6503 = vld [vmem:[%s7 + $0x438] sm:$0xff]
      %v6504 = vld [vmem:[%s7 + $0x440] sm:$0xff]
      %v6505 = vld [vmem:[%s7 + $0x448] sm:$0xff]
      %v6506 = vld [vmem:[%s7 + $0x450] sm:$0xff]
      %v6507 = vld [vmem:[%s7 + $0x458] sm:$0xff]
      %v6508 = vld [vmem:[%s7 + $0x460] sm:$0xff]
      %v6509 = vld [vmem:[%s7 + $0x468] sm:$0xff]
      %v6510 = vld [vmem:[%s7 + $0x470] sm:$0xff]
      %v6511 = vld [vmem:[%s7 + $0x478] sm:$0xff]
      %v6512 = vld [vmem:[%s8] sm:$0x3]
      %v6514 = vlaneseq
      %v6515 = vshrl.u32 %v6514, 7
      %v6516 = vsub.s32 0, %v6515
      %v6517 = vrot.slane %v6512, %v6516
      %v6518 = vlaneseq
      %v6519 = vshrl.u32 %v6518, 7
      %v6520 = vsub.s32 1, %v6519
      %v6521 = vrot.slane %v6512, %v6520
      %v6668 = vunpack.c.l.b16 %v6368
      %v6669 = vunpack.c.h.b16 %v6368
      %v6670 = vunpack.c.l.b16 %v6369
      %v6671 = vunpack.c.h.b16 %v6369
      %v6672 = vunpack.c.l.b16 %v6370
      %v6673 = vunpack.c.h.b16 %v6370
      %v6674 = vunpack.c.l.b16 %v6371
      %v6675 = vunpack.c.h.b16 %v6371
      %v6676 = vunpack.c.l.b16 %v6372
      %v6677 = vunpack.c.h.b16 %v6372
      %v6678 = vunpack.c.l.b16 %v6373
      %v6679 = vunpack.c.h.b16 %v6373
      %v6680 = vunpack.c.l.b16 %v6374
      %v6681 = vunpack.c.h.b16 %v6374
      %v6682 = vunpack.c.l.b16 %v6375
      %v6683 = vunpack.c.h.b16 %v6375
      %v6684 = vunpack.c.l.b16 %v6376
      %v6685 = vunpack.c.h.b16 %v6376
      %v6686 = vunpack.c.l.b16 %v6377
      %v6687 = vunpack.c.h.b16 %v6377
      %v6688 = vunpack.c.l.b16 %v6378
      %v6689 = vunpack.c.h.b16 %v6378
      %v6690 = vunpack.c.l.b16 %v6379
      %v6691 = vunpack.c.h.b16 %v6379
      %v6692 = vunpack.c.l.b16 %v6380
      %v6693 = vunpack.c.h.b16 %v6380
      %v6694 = vunpack.c.l.b16 %v6381
      %v6695 = vunpack.c.h.b16 %v6381
      %v6696 = vunpack.c.l.b16 %v6382
      %v6697 = vunpack.c.h.b16 %v6382
      %v6698 = vunpack.c.l.b16 %v6383
      %v6699 = vunpack.c.h.b16 %v6383
      %v6700 = vunpack.c.l.b16 %v6384
      %v6701 = vunpack.c.h.b16 %v6384
      %v6702 = vunpack.c.l.b16 %v6385
      %v6703 = vunpack.c.h.b16 %v6385
      %v6704 = vunpack.c.l.b16 %v6386
      %v6705 = vunpack.c.h.b16 %v6386
      %v6706 = vunpack.c.l.b16 %v6387
      %v6707 = vunpack.c.h.b16 %v6387
      %v6708 = vunpack.c.l.b16 %v6388
      %v6709 = vunpack.c.h.b16 %v6388
      %v6710 = vunpack.c.l.b16 %v6389
      %v6711 = vunpack.c.h.b16 %v6389
      %v6712 = vunpack.c.l.b16 %v6390
      %v6713 = vunpack.c.h.b16 %v6390
      %v6714 = vunpack.c.l.b16 %v6391
      %v6715 = vunpack.c.h.b16 %v6391
      %v6716 = vunpack.c.l.b16 %v6392
      %v6717 = vunpack.c.h.b16 %v6392
      %v6718 = vunpack.c.l.b16 %v6393
      %v6719 = vunpack.c.h.b16 %v6393
      %v6720 = vunpack.c.l.b16 %v6394
      %v6721 = vunpack.c.h.b16 %v6394
      %v6722 = vunpack.c.l.b16 %v6395
      %v6723 = vunpack.c.h.b16 %v6395
      %v6724 = vunpack.c.l.b16 %v6396
      %v6725 = vunpack.c.h.b16 %v6396
      %v6726 = vunpack.c.l.b16 %v6397
      %v6727 = vunpack.c.h.b16 %v6397
      %v6728 = vunpack.c.l.b16 %v6398
      %v6729 = vunpack.c.h.b16 %v6398
      %v6730 = vunpack.c.l.b16 %v6399
      %v6731 = vunpack.c.h.b16 %v6399
      %v6732 = vunpack.c.l.b16 %v6400
      %v6733 = vunpack.c.h.b16 %v6400
      %v6734 = vunpack.c.l.b16 %v6401
      %v6735 = vunpack.c.h.b16 %v6401
      %v6736 = vunpack.c.l.b16 %v6402
      %v6737 = vunpack.c.h.b16 %v6402
      %v6738 = vunpack.c.l.b16 %v6403
      %v6739 = vunpack.c.h.b16 %v6403
      %v6740 = vunpack.c.l.b16 %v6404
      %v6741 = vunpack.c.h.b16 %v6404
      %v6742 = vunpack.c.l.b16 %v6405
      %v6743 = vunpack.c.h.b16 %v6405
      %v6744 = vunpack.c.l.b16 %v6406
      %v6745 = vunpack.c.h.b16 %v6406
      %v6746 = vunpack.c.l.b16 %v6407
      %v6747 = vunpack.c.h.b16 %v6407
      %v6748 = vunpack.c.l.b16 %v6408
      %v6749 = vunpack.c.h.b16 %v6408
      %v6750 = vunpack.c.l.b16 %v6409
      %v6751 = vunpack.c.h.b16 %v6409
      %v6752 = vunpack.c.l.b16 %v6410
      %v6753 = vunpack.c.h.b16 %v6410
      %v6754 = vunpack.c.l.b16 %v6411
      %v6755 = vunpack.c.h.b16 %v6411
      %v6756 = vunpack.c.l.b16 %v6412
      %v6757 = vunpack.c.h.b16 %v6412
      %v6758 = vunpack.c.l.b16 %v6413
      %v6759 = vunpack.c.h.b16 %v6413
      %v6760 = vunpack.c.l.b16 %v6414
      %v6761 = vunpack.c.h.b16 %v6414
      %v6762 = vunpack.c.l.b16 %v6415
      %v6763 = vunpack.c.h.b16 %v6415
      %v6764 = vunpack.c.l.b16 %v6416
      %v6765 = vunpack.c.h.b16 %v6416
      %v6766 = vunpack.c.l.b16 %v6417
      %v6767 = vunpack.c.h.b16 %v6417
      %v6768 = vunpack.c.l.b16 %v6418
      %v6769 = vunpack.c.h.b16 %v6418
      %v6770 = vunpack.c.l.b16 %v6419
      %v6771 = vunpack.c.h.b16 %v6419
      %v6772 = vunpack.c.l.b16 %v6420
      %v6773 = vunpack.c.h.b16 %v6420
      %v6774 = vunpack.c.l.b16 %v6421
      %v6775 = vunpack.c.h.b16 %v6421
      %v6776 = vunpack.c.l.b16 %v6422
      %v6777 = vunpack.c.h.b16 %v6422
      %v6778 = vunpack.c.l.b16 %v6423
      %v6779 = vunpack.c.h.b16 %v6423
      %v6780 = vunpack.c.l.b16 %v6424
      %v6781 = vunpack.c.h.b16 %v6424
      %v6782 = vunpack.c.l.b16 %v6425
      %v6783 = vunpack.c.h.b16 %v6425
      %v6784 = vunpack.c.l.b16 %v6426
      %v6785 = vunpack.c.h.b16 %v6426
      %v6786 = vunpack.c.l.b16 %v6427
      %v6787 = vunpack.c.h.b16 %v6427
      %v6788 = vunpack.c.l.b16 %v6428
      %v6789 = vunpack.c.h.b16 %v6428
      %v6790 = vunpack.c.l.b16 %v6429
      %v6791 = vunpack.c.h.b16 %v6429
      %v6792 = vunpack.c.l.b16 %v6430
      %v6793 = vunpack.c.h.b16 %v6430
      %v6794 = vunpack.c.l.b16 %v6431
      %v6795 = vunpack.c.h.b16 %v6431
      %v6796 = vunpack.c.l.b16 %v6432
      %v6797 = vunpack.c.h.b16 %v6432
      %v6798 = vunpack.c.l.b16 %v6433
      %v6799 = vunpack.c.h.b16 %v6433
      %v6800 = vunpack.c.l.b16 %v6434
      %v6801 = vunpack.c.h.b16 %v6434
      %v6802 = vunpack.c.l.b16 %v6435
      %v6803 = vunpack.c.h.b16 %v6435
      %v6804 = vunpack.c.l.b16 %v6436
      %v6805 = vunpack.c.h.b16 %v6436
      %v6806 = vunpack.c.l.b16 %v6437
      %v6807 = vunpack.c.h.b16 %v6437
      %v6808 = vunpack.c.l.b16 %v6438
      %v6809 = vunpack.c.h.b16 %v6438
      %v6810 = vunpack.c.l.b16 %v6439
      %v6811 = vunpack.c.h.b16 %v6439
      %v6812 = vunpack.c.l.b16 %v6440
      %v6813 = vunpack.c.h.b16 %v6440
      %v6814 = vunpack.c.l.b16 %v6441
      %v6815 = vunpack.c.h.b16 %v6441
      %v6816 = vunpack.c.l.b16 %v6442
      %v6817 = vunpack.c.h.b16 %v6442
      %v6818 = vunpack.c.l.b16 %v6443
      %v6819 = vunpack.c.h.b16 %v6443
      %v6820 = vunpack.c.l.b16 %v6444
      %v6821 = vunpack.c.h.b16 %v6444
      %v6822 = vunpack.c.l.b16 %v6445
      %v6823 = vunpack.c.h.b16 %v6445
      %v6824 = vunpack.c.l.b16 %v6446
      %v6825 = vunpack.c.h.b16 %v6446
      %v6826 = vunpack.c.l.b16 %v6447
      %v6827 = vunpack.c.h.b16 %v6447
      %v6828 = vunpack.c.l.b16 %v6448
      %v6829 = vunpack.c.h.b16 %v6448
      %v6830 = vunpack.c.l.b16 %v6449
      %v6831 = vunpack.c.h.b16 %v6449
      %v6832 = vunpack.c.l.b16 %v6450
      %v6833 = vunpack.c.h.b16 %v6450
      %v6834 = vunpack.c.l.b16 %v6451
      %v6835 = vunpack.c.h.b16 %v6451
      %v6836 = vunpack.c.l.b16 %v6452
      %v6837 = vunpack.c.h.b16 %v6452
      %v6838 = vunpack.c.l.b16 %v6453
      %v6839 = vunpack.c.h.b16 %v6453
      %v6840 = vunpack.c.l.b16 %v6454
      %v6841 = vunpack.c.h.b16 %v6454
      %v6842 = vunpack.c.l.b16 %v6455
      %v6843 = vunpack.c.h.b16 %v6455
      %v6844 = vunpack.c.l.b16 %v6456
      %v6845 = vunpack.c.h.b16 %v6456
      %v6846 = vunpack.c.l.b16 %v6457
      %v6847 = vunpack.c.h.b16 %v6457
      %v6848 = vunpack.c.l.b16 %v6458
      %v6849 = vunpack.c.h.b16 %v6458
      %v6850 = vunpack.c.l.b16 %v6459
      %v6851 = vunpack.c.h.b16 %v6459
      %v6852 = vunpack.c.l.b16 %v6460
      %v6853 = vunpack.c.h.b16 %v6460
      %v6854 = vunpack.c.l.b16 %v6461
      %v6855 = vunpack.c.h.b16 %v6461
      %v6856 = vunpack.c.l.b16 %v6462
      %v6857 = vunpack.c.h.b16 %v6462
      %v6858 = vunpack.c.l.b16 %v6463
      %v6859 = vunpack.c.h.b16 %v6463
      %v6860 = vunpack.c.l.b16 %v6464
      %v6861 = vunpack.c.h.b16 %v6464
      %v6862 = vunpack.c.l.b16 %v6465
      %v6863 = vunpack.c.h.b16 %v6465
      %v6864 = vunpack.c.l.b16 %v6466
      %v6865 = vunpack.c.h.b16 %v6466
      %v6866 = vunpack.c.l.b16 %v6467
      %v6867 = vunpack.c.h.b16 %v6467
      %v6868 = vunpack.c.l.b16 %v6468
      %v6869 = vunpack.c.h.b16 %v6468
      %v6870 = vunpack.c.l.b16 %v6469
      %v6871 = vunpack.c.h.b16 %v6469
      %v6872 = vunpack.c.l.b16 %v6470
      %v6873 = vunpack.c.h.b16 %v6470
      %v6874 = vunpack.c.l.b16 %v6471
      %v6875 = vunpack.c.h.b16 %v6471
      %v6876 = vunpack.c.l.b16 %v6472
      %v6877 = vunpack.c.h.b16 %v6472
      %v6878 = vunpack.c.l.b16 %v6473
      %v6879 = vunpack.c.h.b16 %v6473
      %v6880 = vunpack.c.l.b16 %v6474
      %v6881 = vunpack.c.h.b16 %v6474
      %v6882 = vunpack.c.l.b16 %v6475
      %v6883 = vunpack.c.h.b16 %v6475
      %v6884 = vunpack.c.l.b16 %v6476
      %v6885 = vunpack.c.h.b16 %v6476
      %v6886 = vunpack.c.l.b16 %v6477
      %v6887 = vunpack.c.h.b16 %v6477
      %v6888 = vunpack.c.l.b16 %v6478
      %v6889 = vunpack.c.h.b16 %v6478
      %v6890 = vunpack.c.l.b16 %v6479
      %v6891 = vunpack.c.h.b16 %v6479
      %v6892 = vunpack.c.l.b16 %v6480
      %v6893 = vunpack.c.h.b16 %v6480
      %v6894 = vunpack.c.l.b16 %v6481
      %v6895 = vunpack.c.h.b16 %v6481
      %v6896 = vunpack.c.l.b16 %v6482
      %v6897 = vunpack.c.h.b16 %v6482
      %v6898 = vunpack.c.l.b16 %v6483
      %v6899 = vunpack.c.h.b16 %v6483
      %v6900 = vunpack.c.l.b16 %v6484
      %v6901 = vunpack.c.h.b16 %v6484
      %v6902 = vunpack.c.l.b16 %v6485
      %v6903 = vunpack.c.h.b16 %v6485
      %v6904 = vunpack.c.l.b16 %v6486
      %v6905 = vunpack.c.h.b16 %v6486
      %v6906 = vunpack.c.l.b16 %v6487
      %v6907 = vunpack.c.h.b16 %v6487
      %v6908 = vunpack.c.l.b16 %v6488
      %v6909 = vunpack.c.h.b16 %v6488
      %v6910 = vunpack.c.l.b16 %v6489
      %v6911 = vunpack.c.h.b16 %v6489
      %v6912 = vunpack.c.l.b16 %v6490
      %v6913 = vunpack.c.h.b16 %v6490
      %v6914 = vunpack.c.l.b16 %v6491
      %v6915 = vunpack.c.h.b16 %v6491
      %v6916 = vunpack.c.l.b16 %v6492
      %v6917 = vunpack.c.h.b16 %v6492
      %v6918 = vunpack.c.l.b16 %v6493
      %v6919 = vunpack.c.h.b16 %v6493
      %v6920 = vunpack.c.l.b16 %v6494
      %v6921 = vunpack.c.h.b16 %v6494
      %v6922 = vunpack.c.l.b16 %v6495
      %v6923 = vunpack.c.h.b16 %v6495
      %v6924 = vunpack.c.l.b16 %v6496
      %v6925 = vunpack.c.h.b16 %v6496
      %v6926 = vunpack.c.l.b16 %v6497
      %v6927 = vunpack.c.h.b16 %v6497
      %v6928 = vunpack.c.l.b16 %v6498
      %v6929 = vunpack.c.h.b16 %v6498
      %v6930 = vunpack.c.l.b16 %v6499
      %v6931 = vunpack.c.h.b16 %v6499
      %v6932 = vunpack.c.l.b16 %v6500
      %v6933 = vunpack.c.h.b16 %v6500
      %v6934 = vunpack.c.l.b16 %v6501
      %v6935 = vunpack.c.h.b16 %v6501
      %v6936 = vunpack.c.l.b16 %v6502
      %v6937 = vunpack.c.h.b16 %v6502
      %v6938 = vunpack.c.l.b16 %v6503
      %v6939 = vunpack.c.h.b16 %v6503
      %v6940 = vunpack.c.l.b16 %v6504
      %v6941 = vunpack.c.h.b16 %v6504
      %v6942 = vunpack.c.l.b16 %v6505
      %v6943 = vunpack.c.h.b16 %v6505
      %v6944 = vunpack.c.l.b16 %v6506
      %v6945 = vunpack.c.h.b16 %v6506
      %v6946 = vunpack.c.l.b16 %v6507
      %v6947 = vunpack.c.h.b16 %v6507
      %v6948 = vunpack.c.l.b16 %v6508
      %v6949 = vunpack.c.h.b16 %v6508
      %v6950 = vunpack.c.l.b16 %v6509
      %v6951 = vunpack.c.h.b16 %v6509
      %v6952 = vunpack.c.l.b16 %v6510
      %v6953 = vunpack.c.h.b16 %v6510
      %v6954 = vunpack.c.l.b16 %v6511
      %v6955 = vunpack.c.h.b16 %v6511
      %v6956 = vpack.c.b16 %v6670, %v6668
      %v6957 = vpack.c.b16 %v6671, %v6669
      %v6958 = vpack.c.b16 %v6674, %v6672
      %v6959 = vpack.c.b16 %v6675, %v6673
      %v6960 = vpack.c.b16 %v6678, %v6676
      %v6961 = vpack.c.b16 %v6679, %v6677
      %v6962 = vpack.c.b16 %v6682, %v6680
      %v6963 = vpack.c.b16 %v6683, %v6681
      %v6964 = vpack.c.b16 %v6686, %v6684
      %v6965 = vpack.c.b16 %v6687, %v6685
      %v6966 = vpack.c.b16 %v6690, %v6688
      %v6967 = vpack.c.b16 %v6691, %v6689
      %v6968 = vpack.c.b16 %v6694, %v6692
      %v6969 = vpack.c.b16 %v6695, %v6693
      %v6970 = vpack.c.b16 %v6698, %v6696
      %v6971 = vpack.c.b16 %v6699, %v6697
      %v6972 = vpack.c.b16 %v6702, %v6700
      %v6973 = vpack.c.b16 %v6703, %v6701
      %v6974 = vpack.c.b16 %v6706, %v6704
      %v6975 = vpack.c.b16 %v6707, %v6705
      %v6976 = vpack.c.b16 %v6710, %v6708
      %v6977 = vpack.c.b16 %v6711, %v6709
      %v6978 = vpack.c.b16 %v6714, %v6712
      %v6979 = vpack.c.b16 %v6715, %v6713
      %v6980 = vpack.c.b16 %v6718, %v6716
      %v6981 = vpack.c.b16 %v6719, %v6717
      %v6982 = vpack.c.b16 %v6722, %v6720
      %v6983 = vpack.c.b16 %v6723, %v6721
      %v6984 = vpack.c.b16 %v6726, %v6724
      %v6985 = vpack.c.b16 %v6727, %v6725
      %v6986 = vpack.c.b16 %v6730, %v6728
      %v6987 = vpack.c.b16 %v6731, %v6729
      %v6988 = vpack.c.b16 %v6734, %v6732
      %v6989 = vpack.c.b16 %v6735, %v6733
      %v6990 = vpack.c.b16 %v6738, %v6736
      %v6991 = vpack.c.b16 %v6739, %v6737
      %v6992 = vpack.c.b16 %v6742, %v6740
      %v6993 = vpack.c.b16 %v6743, %v6741
      %v6994 = vpack.c.b16 %v6746, %v6744
      %v6995 = vpack.c.b16 %v6747, %v6745
      %v6996 = vpack.c.b16 %v6750, %v6748
      %v6997 = vpack.c.b16 %v6751, %v6749
      %v6998 = vpack.c.b16 %v6754, %v6752
      %v6999 = vpack.c.b16 %v6755, %v6753
      %v7000 = vpack.c.b16 %v6758, %v6756
      %v7001 = vpack.c.b16 %v6759, %v6757
      %v7002 = vpack.c.b16 %v6762, %v6760
      %v7003 = vpack.c.b16 %v6763, %v6761
      %v7004 = vpack.c.b16 %v6766, %v6764
      %v7005 = vpack.c.b16 %v6767, %v6765
      %v7006 = vpack.c.b16 %v6770, %v6768
      %v7007 = vpack.c.b16 %v6771, %v6769
      %v7008 = vpack.c.b16 %v6774, %v6772
      %v7009 = vpack.c.b16 %v6775, %v6773
      %v7010 = vpack.c.b16 %v6778, %v6776
      %v7011 = vpack.c.b16 %v6779, %v6777
      %v7012 = vpack.c.b16 %v6782, %v6780
      %v7013 = vpack.c.b16 %v6783, %v6781
      %v7014 = vpack.c.b16 %v6786, %v6784
      %v7015 = vpack.c.b16 %v6787, %v6785
      %v7016 = vpack.c.b16 %v6790, %v6788
      %v7017 = vpack.c.b16 %v6791, %v6789
      %v7018 = vpack.c.b16 %v6794, %v6792
      %v7019 = vpack.c.b16 %v6795, %v6793
      %v7020 = vpack.c.b16 %v6798, %v6796
      %v7021 = vpack.c.b16 %v6799, %v6797
      %v7022 = vpack.c.b16 %v6802, %v6800
      %v7023 = vpack.c.b16 %v6803, %v6801
      %v7024 = vpack.c.b16 %v6806, %v6804
      %v7025 = vpack.c.b16 %v6807, %v6805
      %v7026 = vpack.c.b16 %v6810, %v6808
      %v7027 = vpack.c.b16 %v6811, %v6809
      %v7028 = vpack.c.b16 %v6814, %v6812
      %v7029 = vpack.c.b16 %v6815, %v6813
      %v7030 = vpack.c.b16 %v6818, %v6816
      %v7031 = vpack.c.b16 %v6819, %v6817
      %v7032 = vpack.c.b16 %v6822, %v6820
      %v7033 = vpack.c.b16 %v6823, %v6821
      %v7034 = vpack.c.b16 %v6826, %v6824
      %v7035 = vpack.c.b16 %v6827, %v6825
      %v7036 = vpack.c.b16 %v6830, %v6828
      %v7037 = vpack.c.b16 %v6831, %v6829
      %v7038 = vpack.c.b16 %v6834, %v6832
      %v7039 = vpack.c.b16 %v6835, %v6833
      %v7040 = vpack.c.b16 %v6838, %v6836
      %v7041 = vpack.c.b16 %v6839, %v6837
      %v7042 = vpack.c.b16 %v6842, %v6840
      %v7043 = vpack.c.b16 %v6843, %v6841
      %v7044 = vpack.c.b16 %v6846, %v6844
      %v7045 = vpack.c.b16 %v6847, %v6845
      %v7046 = vpack.c.b16 %v6850, %v6848
      %v7047 = vpack.c.b16 %v6851, %v6849
      %v7048 = vpack.c.b16 %v6854, %v6852
      %v7049 = vpack.c.b16 %v6855, %v6853
      %v7050 = vpack.c.b16 %v6858, %v6856
      %v7051 = vpack.c.b16 %v6859, %v6857
      %v7052 = vpack.c.b16 %v6862, %v6860
      %v7053 = vpack.c.b16 %v6863, %v6861
      %v7054 = vpack.c.b16 %v6866, %v6864
      %v7055 = vpack.c.b16 %v6867, %v6865
      %v7056 = vpack.c.b16 %v6870, %v6868
      %v7057 = vpack.c.b16 %v6871, %v6869
      %v7058 = vpack.c.b16 %v6874, %v6872
      %v7059 = vpack.c.b16 %v6875, %v6873
      %v7060 = vpack.c.b16 %v6878, %v6876
      %v7061 = vpack.c.b16 %v6879, %v6877
      %v7062 = vpack.c.b16 %v6882, %v6880
      %v7063 = vpack.c.b16 %v6883, %v6881
      %v7064 = vpack.c.b16 %v6886, %v6884
      %v7065 = vpack.c.b16 %v6887, %v6885
      %v7066 = vpack.c.b16 %v6890, %v6888
      %v7067 = vpack.c.b16 %v6891, %v6889
      %v7068 = vpack.c.b16 %v6894, %v6892
      %v7069 = vpack.c.b16 %v6895, %v6893
      %v7070 = vpack.c.b16 %v6898, %v6896
      %v7071 = vpack.c.b16 %v6899, %v6897
      %v7072 = vpack.c.b16 %v6902, %v6900
      %v7073 = vpack.c.b16 %v6903, %v6901
      %v7074 = vpack.c.b16 %v6906, %v6904
      %v7075 = vpack.c.b16 %v6907, %v6905
      %v7076 = vpack.c.b16 %v6910, %v6908
      %v7077 = vpack.c.b16 %v6911, %v6909
      %v7078 = vpack.c.b16 %v6914, %v6912
      %v7079 = vpack.c.b16 %v6915, %v6913
      %v7080 = vpack.c.b16 %v6918, %v6916
      %v7081 = vpack.c.b16 %v6919, %v6917
      %v7082 = vpack.c.b16 %v6922, %v6920
      %v7083 = vpack.c.b16 %v6923, %v6921
      %v7084 = vpack.c.b16 %v6926, %v6924
      %v7085 = vpack.c.b16 %v6927, %v6925
      %v7086 = vpack.c.b16 %v6930, %v6928
      %v7087 = vpack.c.b16 %v6931, %v6929
      %v7088 = vpack.c.b16 %v6934, %v6932
      %v7089 = vpack.c.b16 %v6935, %v6933
      %v7090 = vpack.c.b16 %v6938, %v6936
      %v7091 = vpack.c.b16 %v6939, %v6937
      %v7092 = vpack.c.b16 %v6942, %v6940
      %v7093 = vpack.c.b16 %v6943, %v6941
      %v7094 = vpack.c.b16 %v6946, %v6944
      %v7095 = vpack.c.b16 %v6947, %v6945
      %v7096 = vpack.c.b16 %v6950, %v6948
      %v7097 = vpack.c.b16 %v6951, %v6949
      %v7098 = vpack.c.b16 %v6954, %v6952
      %v7099 = vpack.c.b16 %v6955, %v6953
      %7244 = vmatprep.subr.bf16.mxu0 %v6971
      %7245 = vmatpush1.bf16.msra.mxu0 %v6970
      %7246 = vmatprep.subr.bf16.mxu0 %v6969
      %7247 = vmatpush1.bf16.msra.mxu0 %v6968
      %7248 = vmatprep.subr.bf16.mxu0 %v6967
      %7249 = vmatpush1.bf16.msra.mxu0 %v6966
      %7250 = vmatprep.subr.bf16.mxu0 %v6965
      %7251 = vmatpush1.bf16.msra.mxu0 %v6964
      %7252 = vmatprep.subr.bf16.mxu0 %v6963
      %7253 = vmatpush1.bf16.msra.mxu0 %v6962
      %7254 = vmatprep.subr.bf16.mxu0 %v6961
      %7255 = vmatpush1.bf16.msra.mxu0 %v6960
      %7256 = vmatprep.subr.bf16.mxu0 %v6959
      %7257 = vmatpush1.bf16.msra.mxu0 %v6958
      %7258 = vmatprep.subr.bf16.mxu0 %v6957
      %7259 = vmatpush1.bf16.msra.mxu0 %v6956
      %7260 = vmatprep.subr.bf16.mxu0 %v6987
      %7261 = vmatpush2.bf16.msra.mxu0 %v6986
      %7262 = vmatprep.subr.bf16.mxu0 %v6985
      %7263 = vmatpush2.bf16.msra.mxu0 %v6984
      %7264 = vmatprep.subr.bf16.mxu0 %v6983
      %7265 = vmatpush2.bf16.msra.mxu0 %v6982
      %7266 = vmatprep.subr.bf16.mxu0 %v6981
      %7267 = vmatpush2.bf16.msra.mxu0 %v6980
      %7268 = vmatprep.subr.bf16.mxu0 %v6979
      %7269 = vmatpush2.bf16.msra.mxu0 %v6978
      %7270 = vmatprep.subr.bf16.mxu0 %v6977
      %7271 = vmatpush2.bf16.msra.mxu0 %v6976
      %7272 = vmatprep.subr.bf16.mxu0 %v6975
      %7273 = vmatpush2.bf16.msra.mxu0 %v6974
      %7274 = vmatprep.subr.bf16.mxu0 %v6973
      %7275 = vmatpush2.bf16.msra.mxu0 %v6972
      %7276 = vmatprep.mubr.bf16.mxu0 %v6188
      %7277 = vmatmul.mubr.bf16.gmra.mxu0 %v6187
      %v7278 = vpop.f32.mrf.mxu0
      %v7279 = vadd.f32 %v6517, %v7278
      %v7280 = vpop.f32.mrf.mxu0
      %v7281 = vadd.f32 %v6521, %v7280
      %v7282 = vpop.f32.mrf.mxu0
      %v7283 = vpop.f32.mrf.mxu0
      %7284 = vdwg.mxu0
      %7285 = vmatprep.subr.bf16.mxu0 %v7003
      %7286 = vmatpush1.bf16.msra.mxu0 %v7002
      %7287 = vmatprep.subr.bf16.mxu0 %v7001
      %7288 = vmatpush1.bf16.msra.mxu0 %v7000
      %7289 = vmatprep.subr.bf16.mxu0 %v6999
      %7290 = vmatpush1.bf16.msra.mxu0 %v6998
      %7291 = vmatprep.subr.bf16.mxu0 %v6997
      %7292 = vmatpush1.bf16.msra.mxu0 %v6996
      %7293 = vmatprep.subr.bf16.mxu0 %v6995
      %7294 = vmatpush1.bf16.msra.mxu0 %v6994
      %7295 = vmatprep.subr.bf16.mxu0 %v6993
      %7296 = vmatpush1.bf16.msra.mxu0 %v6992
      %7297 = vmatprep.subr.bf16.mxu0 %v6991
      %7298 = vmatpush1.bf16.msra.mxu0 %v6990
      %7299 = vmatprep.subr.bf16.mxu0 %v6989
      %7300 = vmatpush1.bf16.msra.mxu0 %v6988
      %7301 = vmatprep.subr.bf16.mxu0 %v7019
      %7302 = vmatpush2.bf16.msra.mxu0 %v7018
      %7303 = vmatprep.subr.bf16.mxu0 %v7017
      %7304 = vmatpush2.bf16.msra.mxu0 %v7016
      %7305 = vmatprep.subr.bf16.mxu0 %v7015
      %7306 = vmatpush2.bf16.msra.mxu0 %v7014
      %7307 = vmatprep.subr.bf16.mxu0 %v7013
      %7308 = vmatpush2.bf16.msra.mxu0 %v7012
      %7309 = vmatprep.subr.bf16.mxu0 %v7011
      %7310 = vmatpush2.bf16.msra.mxu0 %v7010
      %7311 = vmatprep.subr.bf16.mxu0 %v7009
      %7312 = vmatpush2.bf16.msra.mxu0 %v7008
      %7313 = vmatprep.subr.bf16.mxu0 %v7007
      %7314 = vmatpush2.bf16.msra.mxu0 %v7006
      %7315 = vmatprep.subr.bf16.mxu0 %v7005
      %7316 = vmatpush2.bf16.msra.mxu0 %v7004
      %7317 = vmatprep.mubr.bf16.mxu0 %v6276
      %7318 = vmatmul.mubr.bf16.gmra.mxu0 %v6189
      %v7319 = vpop.f32.mrf.mxu0
      %v7320 = vadd.f32 %v7279, %v7319
      %v7321 = vpop.f32.mrf.mxu0
      %v7322 = vadd.f32 %v7281, %v7321
      %v7323 = vpop.f32.mrf.mxu0
      %v7324 = vpop.f32.mrf.mxu0
      %7325 = vdwg.mxu0
      %7326 = vmatprep.subr.bf16.mxu0 %v7035
      %7327 = vmatpush1.bf16.msra.mxu0 %v7034
      %7328 = vmatprep.subr.bf16.mxu0 %v7033
      %7329 = vmatpush1.bf16.msra.mxu0 %v7032
      %7330 = vmatprep.subr.bf16.mxu0 %v7031
      %7331 = vmatpush1.bf16.msra.mxu0 %v7030
      %7332 = vmatprep.subr.bf16.mxu0 %v7029
      %7333 = vmatpush1.bf16.msra.mxu0 %v7028
      %7334 = vmatprep.subr.bf16.mxu0 %v7027
      %7335 = vmatpush1.bf16.msra.mxu0 %v7026
      %7336 = vmatprep.subr.bf16.mxu0 %v7025
      %7337 = vmatpush1.bf16.msra.mxu0 %v7024
      %7338 = vmatprep.subr.bf16.mxu0 %v7023
      %7339 = vmatpush1.bf16.msra.mxu0 %v7022
      %7340 = vmatprep.subr.bf16.mxu0 %v7021
      %7341 = vmatpush1.bf16.msra.mxu0 %v7020
      %7342 = vmatprep.subr.bf16.mxu0 %v7051
      %7343 = vmatpush2.bf16.msra.mxu0 %v7050
      %7344 = vmatprep.subr.bf16.mxu0 %v7049
      %7345 = vmatpush2.bf16.msra.mxu0 %v7048
      %7346 = vmatprep.subr.bf16.mxu0 %v7047
      %7347 = vmatpush2.bf16.msra.mxu0 %v7046
      %7348 = vmatprep.subr.bf16.mxu0 %v7045
      %7349 = vmatpush2.bf16.msra.mxu0 %v7044
      %7350 = vmatprep.subr.bf16.mxu0 %v7043
      %7351 = vmatpush2.bf16.msra.mxu0 %v7042
      %7352 = vmatprep.subr.bf16.mxu0 %v7041
      %7353 = vmatpush2.bf16.msra.mxu0 %v7040
      %7354 = vmatprep.subr.bf16.mxu0 %v7039
      %7355 = vmatpush2.bf16.msra.mxu0 %v7038
      %7356 = vmatprep.subr.bf16.mxu0 %v7037
      %7357 = vmatpush2.bf16.msra.mxu0 %v7036
      %7358 = vmatprep.mubr.bf16.mxu0 %v6278
      %7359 = vmatmul.mubr.bf16.gmra.mxu0 %v6277
      %v7360 = vpop.f32.mrf.mxu0
      %v7361 = vadd.f32 %v7320, %v7360
      %v7362 = vpop.f32.mrf.mxu0
      %v7363 = vadd.f32 %v7322, %v7362
      %v7364 = vpop.f32.mrf.mxu0
      %v7365 = vpop.f32.mrf.mxu0
      %7366 = vdwg.mxu0
      %7367 = vmatprep.subr.bf16.mxu0 %v7067
      %7368 = vmatpush1.bf16.msra.mxu0 %v7066
      %7369 = vmatprep.subr.bf16.mxu0 %v7065
      %7370 = vmatpush1.bf16.msra.mxu0 %v7064
      %7371 = vmatprep.subr.bf16.mxu0 %v7063
      %7372 = vmatpush1.bf16.msra.mxu0 %v7062
      %7373 = vmatprep.subr.bf16.mxu0 %v7061
      %7374 = vmatpush1.bf16.msra.mxu0 %v7060
      %7375 = vmatprep.subr.bf16.mxu0 %v7059
      %7376 = vmatpush1.bf16.msra.mxu0 %v7058
      %7377 = vmatprep.subr.bf16.mxu0 %v7057
      %7378 = vmatpush1.bf16.msra.mxu0 %v7056
      %7379 = vmatprep.subr.bf16.mxu0 %v7055
      %7380 = vmatpush1.bf16.msra.mxu0 %v7054
      %7381 = vmatprep.subr.bf16.mxu0 %v7053
      %7382 = vmatpush1.bf16.msra.mxu0 %v7052
      %7383 = vmatprep.subr.bf16.mxu0 %v7083
      %7384 = vmatpush2.bf16.msra.mxu0 %v7082
      %7385 = vmatprep.subr.bf16.mxu0 %v7081
      %7386 = vmatpush2.bf16.msra.mxu0 %v7080
      %7387 = vmatprep.subr.bf16.mxu0 %v7079
      %7388 = vmatpush2.bf16.msra.mxu0 %v7078
      %7389 = vmatprep.subr.bf16.mxu0 %v7077
      %7390 = vmatpush2.bf16.msra.mxu0 %v7076
      %7391 = vmatprep.subr.bf16.mxu0 %v7075
      %7392 = vmatpush2.bf16.msra.mxu0 %v7074
      %7393 = vmatprep.subr.bf16.mxu0 %v7073
      %7394 = vmatpush2.bf16.msra.mxu0 %v7072
      %7395 = vmatprep.subr.bf16.mxu0 %v7071
      %7396 = vmatpush2.bf16.msra.mxu0 %v7070
      %7397 = vmatprep.subr.bf16.mxu0 %v7069
      %7398 = vmatpush2.bf16.msra.mxu0 %v7068
      %7399 = vmatprep.mubr.bf16.mxu0 %v6366
      %7400 = vmatmul.mubr.bf16.gmra.mxu0 %v6365
      %v7401 = vpop.f32.mrf.mxu0
      %v7402 = vadd.f32 %v7361, %v7401
      %v7403 = vpop.f32.mrf.mxu0
      %v7404 = vadd.f32 %v7363, %v7403
      %v7405 = vpop.f32.mrf.mxu0
      %v7406 = vpop.f32.mrf.mxu0
      %7407 = vdwg.mxu0
      %7408 = vmatprep.subr.bf16.mxu0 %v7099
      %7409 = vmatpush1.bf16.msra.mxu0 %v7098
      %7410 = vmatprep.subr.bf16.mxu0 %v7097
      %7411 = vmatpush1.bf16.msra.mxu0 %v7096
      %7412 = vmatprep.subr.bf16.mxu0 %v7095
      %7413 = vmatpush1.bf16.msra.mxu0 %v7094
      %7414 = vmatprep.subr.bf16.mxu0 %v7093
      %7415 = vmatpush1.bf16.msra.mxu0 %v7092
      %7416 = vmatprep.subr.bf16.mxu0 %v7091
      %7417 = vmatpush1.bf16.msra.mxu0 %v7090
      %7418 = vmatprep.subr.bf16.mxu0 %v7089
      %7419 = vmatpush1.bf16.msra.mxu0 %v7088
      %7420 = vmatprep.subr.bf16.mxu0 %v7087
      %7421 = vmatpush1.bf16.msra.mxu0 %v7086
      %7422 = vmatprep.subr.bf16.mxu0 %v7085
      %7423 = vmatpush1.bf16.msra.mxu0 %v7084
      %7424 = vmatprep.subr.bf16.mxu0 0
      %7425 = vmatpush2.bf16.msra.mxu0 0
      %7426 = vmatprep.subr.bf16.mxu0 0
      %7427 = vmatpush2.bf16.msra.mxu0 0
      %7428 = vmatprep.subr.bf16.mxu0 0
      %7429 = vmatpush2.bf16.msra.mxu0 0
      %7430 = vmatprep.subr.bf16.mxu0 0
      %7431 = vmatpush2.bf16.msra.mxu0 0
      %7432 = vmatprep.subr.bf16.mxu0 0
      %7433 = vmatpush2.bf16.msra.mxu0 0
      %7434 = vmatprep.subr.bf16.mxu0 0
      %7435 = vmatpush2.bf16.msra.mxu0 0
      %7436 = vmatprep.subr.bf16.mxu0 0
      %7437 = vmatpush2.bf16.msra.mxu0 0
      %7438 = vmatprep.subr.bf16.mxu0 0
      %7439 = vmatpush2.bf16.msra.mxu0 0
      %7440 = vmatprep.mubr.bf16.mxu0 0
      %7441 = vmatmul.mubr.bf16.gmra.mxu0 %v6367
      %v7442 = vpop.f32.mrf.mxu0
      %v7443 = vadd.f32 %v7402, %v7442
      %v7444 = vpop.f32.mrf.mxu0
      %v7445 = vadd.f32 %v7404, %v7444
      %v7446 = vpop.f32.mrf.mxu0
      %v7447 = vpop.f32.mrf.mxu0
      %7448 = vdwg.mxu0
      %v7449 = vmax.f32 %v7443, 0.0
      %v7450 = vmax.f32 %v7445, 0.0
      %v7451 = vpack.c.bf16 %v7449, %v7449
      %v7452 = vpack.c.bf16 %v7450, %v7450
      %v7453 = vld [vmem:[%s9] sm:$0x1]
      %vm7454 = vcmask 23552
      %v7456 = vsel %vm7454, %v7453, 0
      %vm7458 = vcmask 1040384
      %v7459 = vsel %vm7458, 4294967295, 65535
      %v7460 = vsel %vm6093, %v7459, 0
      %v7462 = vand.u32 %v7451, %v7460
      %v7465 = vand.u32 %v7452, %v7460
      %7467 = vmatprep.subr.bf16.mxu0 0
      %7468 = vmatpush1.bf16.msra.mxu0 0
      %7469 = vmatprep.subr.bf16.mxu0 0
      %7470 = vmatpush1.bf16.msra.mxu0 0
      %7471 = vmatprep.subr.bf16.mxu0 0
      %7472 = vmatpush1.bf16.msra.mxu0 0
      %7473 = vmatprep.subr.bf16.mxu0 0
      %7474 = vmatpush1.bf16.msra.mxu0 0
      %7475 = vmatprep.subr.bf16.mxu0 0
      %7476 = vmatpush1.bf16.msra.mxu0 0
      %7477 = vmatprep.subr.bf16.mxu0 0
      %7478 = vmatpush1.bf16.msra.mxu0 0
      %7479 = vmatprep.subr.bf16.mxu0 0
      %7480 = vmatpush1.bf16.msra.mxu0 0
      %7481 = vmatprep.subr.bf16.mxu0 %v7465
      %7482 = vmatpush1.bf16.msra.mxu0 %v7462
      %7483 = vmatprep.subr.bf16.mxu0 0
      %7484 = vmatpush2.bf16.msra.mxu0 0
      %7485 = vmatprep.subr.bf16.mxu0 0
      %7486 = vmatpush2.bf16.msra.mxu0 0
      %7487 = vmatprep.subr.bf16.mxu0 0
      %7488 = vmatpush2.bf16.msra.mxu0 0
      %7489 = vmatprep.subr.bf16.mxu0 0
      %7490 = vmatpush2.bf16.msra.mxu0 0
      %7491 = vmatprep.subr.bf16.mxu0 0
      %7492 = vmatpush2.bf16.msra.mxu0 0
      %7493 = vmatprep.subr.bf16.mxu0 0
      %7494 = vmatpush2.bf16.msra.mxu0 0
      %7495 = vmatprep.subr.bf16.mxu0 0
      %7496 = vmatpush2.bf16.msra.mxu0 0
      %7497 = vmatprep.subr.bf16.mxu0 0
      %7498 = vmatpush2.bf16.msra.mxu0 0
      %7499 = vmatprep.mubr.bf16.mxu0 0
      %7500 = vmatmul.mubr.bf16.gmra.mxu0 %v7456
      %v7501 = vpop.f32.mrf.mxu0
      %v7502 = vadd.f32 0.0, %v7501
      %v7503 = vpop.f32.mrf.mxu0
      %v7504 = vadd.f32 0.0, %v7503
      %v7505 = vpop.f32.mrf.mxu0
      %v7506 = vpop.f32.mrf.mxu0
      %7507 = vdwg.mxu0
      %v7508 = vpack.c.bf16 %v7502, %v7502
      %v7509 = vpack.c.bf16 %v7504, %v7504
      %s7510 = scalar_lea.vmem %s9, 1
      %v7511 = vld [vmem:[%s7510] sm:$0x1]
      %v7513 = vsel %vm7454, %v7511, 0
      %7515 = vmatprep.subr.bf16.mxu0 0
      %7516 = vmatpush1.bf16.msra.mxu0 0
      %7517 = vmatprep.subr.bf16.mxu0 0
      %7518 = vmatpush1.bf16.msra.mxu0 0
      %7519 = vmatprep.subr.bf16.mxu0 0
      %7520 = vmatpush1.bf16.msra.mxu0 0
      %7521 = vmatprep.subr.bf16.mxu0 0
      %7522 = vmatpush1.bf16.msra.mxu0 0
      %7523 = vmatprep.subr.bf16.mxu0 0
      %7524 = vmatpush1.bf16.msra.mxu0 0
      %7525 = vmatprep.subr.bf16.mxu0 0
      %7526 = vmatpush1.bf16.msra.mxu0 0
      %7527 = vmatprep.subr.bf16.mxu0 0
      %7528 = vmatpush1.bf16.msra.mxu0 0
      %7529 = vmatprep.subr.bf16.mxu0 %v7465
      %7530 = vmatpush1.bf16.msra.mxu0 %v7462
      %7531 = vmatprep.subr.bf16.mxu0 0
      %7532 = vmatpush2.bf16.msra.mxu0 0
      %7533 = vmatprep.subr.bf16.mxu0 0
      %7534 = vmatpush2.bf16.msra.mxu0 0
      %7535 = vmatprep.subr.bf16.mxu0 0
      %7536 = vmatpush2.bf16.msra.mxu0 0
      %7537 = vmatprep.subr.bf16.mxu0 0
      %7538 = vmatpush2.bf16.msra.mxu0 0
      %7539 = vmatprep.subr.bf16.mxu0 0
      %7540 = vmatpush2.bf16.msra.mxu0 0
      %7541 = vmatprep.subr.bf16.mxu0 0
      %7542 = vmatpush2.bf16.msra.mxu0 0
      %7543 = vmatprep.subr.bf16.mxu0 0
      %7544 = vmatpush2.bf16.msra.mxu0 0
      %7545 = vmatprep.subr.bf16.mxu0 0
      %7546 = vmatpush2.bf16.msra.mxu0 0
      %7547 = vmatprep.mubr.bf16.mxu0 0
      %7548 = vmatmul.mubr.bf16.gmra.mxu0 %v7513
      %v7549 = vpop.f32.mrf.mxu0
      %v7550 = vadd.f32 0.0, %v7549
      %v7551 = vpop.f32.mrf.mxu0
      %v7552 = vadd.f32 0.0, %v7551
      %v7553 = vpop.f32.mrf.mxu0
      %v7554 = vpop.f32.mrf.mxu0
      %7555 = vdwg.mxu0
      %v7556 = vpack.c.bf16 %v7550, %v7550
      %v7557 = vpack.c.bf16 %v7552, %v7552
      %s7558 = scalar_lea.vmem %s9, 2
      %v7559 = vld [vmem:[%s7558] sm:$0x1]
      %v7561 = vsel %vm7454, %v7559, 0
      %7563 = vmatprep.subr.bf16.mxu0 0
      %7564 = vmatpush1.bf16.msra.mxu0 0
      %7565 = vmatprep.subr.bf16.mxu0 0
      %7566 = vmatpush1.bf16.msra.mxu0 0
      %7567 = vmatprep.subr.bf16.mxu0 0
      %7568 = vmatpush1.bf16.msra.mxu0 0
      %7569 = vmatprep.subr.bf16.mxu0 0
      %7570 = vmatpush1.bf16.msra.mxu0 0
      %7571 = vmatprep.subr.bf16.mxu0 0
      %7572 = vmatpush1.bf16.msra.mxu0 0
      %7573 = vmatprep.subr.bf16.mxu0 0
      %7574 = vmatpush1.bf16.msra.mxu0 0
      %7575 = vmatprep.subr.bf16.mxu0 0
      %7576 = vmatpush1.bf16.msra.mxu0 0
      %7577 = vmatprep.subr.bf16.mxu0 %v7465
      %7578 = vmatpush1.bf16.msra.mxu0 %v7462
      %7579 = vmatprep.subr.bf16.mxu0 0
      %7580 = vmatpush2.bf16.msra.mxu0 0
      %7581 = vmatprep.subr.bf16.mxu0 0
      %7582 = vmatpush2.bf16.msra.mxu0 0
      %7583 = vmatprep.subr.bf16.mxu0 0
      %7584 = vmatpush2.bf16.msra.mxu0 0
      %7585 = vmatprep.subr.bf16.mxu0 0
      %7586 = vmatpush2.bf16.msra.mxu0 0
      %7587 = vmatprep.subr.bf16.mxu0 0
      %7588 = vmatpush2.bf16.msra.mxu0 0
      %7589 = vmatprep.subr.bf16.mxu0 0
      %7590 = vmatpush2.bf16.msra.mxu0 0
      %7591 = vmatprep.subr.bf16.mxu0 0
      %7592 = vmatpush2.bf16.msra.mxu0 0
      %7593 = vmatprep.subr.bf16.mxu0 0
      %7594 = vmatpush2.bf16.msra.mxu0 0
      %7595 = vmatprep.mubr.bf16.mxu0 0
      %7596 = vmatmul.mubr.bf16.gmra.mxu0 %v7561
      %v7597 = vpop.f32.mrf.mxu0
      %v7598 = vadd.f32 0.0, %v7597
      %v7599 = vpop.f32.mrf.mxu0
      %v7600 = vadd.f32 0.0, %v7599
      %v7601 = vpop.f32.mrf.mxu0
      %v7602 = vpop.f32.mrf.mxu0
      %7603 = vdwg.mxu0
      %v7604 = vpack.c.bf16 %v7598, %v7598
      %v7605 = vpack.c.bf16 %v7600, %v7600
      %v7606 = vld [vmem:[%s10] sm:$0xff]
      %v7607 = vld [vmem:[%s10 + $0x8] sm:$0xff]
      %v7608 = vld [vmem:[%s10 + $0x10] sm:$0xff]
      %v7609 = vld [vmem:[%s10 + $0x18] sm:$0xff]
      %v7610 = vld [vmem:[%s10 + $0x20] sm:$0xff]
      %v7611 = vld [vmem:[%s10 + $0x28] sm:$0xff]
      %v7612 = vld [vmem:[%s10 + $0x30] sm:$0xff]
      %v7613 = vld [vmem:[%s10 + $0x38] sm:$0xff]
      %v7614 = vld [vmem:[%s10 + $0x40] sm:$0xff]
      %v7615 = vld [vmem:[%s10 + $0x48] sm:$0xff]
      %v7616 = vld [vmem:[%s10 + $0x50] sm:$0xff]
      %v7617 = vld [vmem:[%s10 + $0x58] sm:$0xff]
      %v7618 = vld [vmem:[%s10 + $0x60] sm:$0xff]
      %v7619 = vld [vmem:[%s10 + $0x68] sm:$0xff]
      %v7620 = vld [vmem:[%s10 + $0x70] sm:$0xff]
      %v7621 = vld [vmem:[%s10 + $0x78] sm:$0xff]
      %v7622 = vld [vmem:[%s10 + $0x80] sm:$0xff]
      %v7623 = vld [vmem:[%s10 + $0x88] sm:$0xff]
      %v7624 = vld [vmem:[%s10 + $0x90] sm:$0xff]
      %v7625 = vld [vmem:[%s10 + $0x98] sm:$0xff]
      %v7626 = vld [vmem:[%s10 + $0xa0] sm:$0xff]
      %v7627 = vld [vmem:[%s10 + $0xa8] sm:$0xff]
      %v7628 = vld [vmem:[%s10 + $0xb0] sm:$0xff]
      %v7629 = vld [vmem:[%s10 + $0xb8] sm:$0xff]
      %v7630 = vld [vmem:[%s10 + $0xc0] sm:$0xff]
      %v7631 = vld [vmem:[%s10 + $0xc8] sm:$0xff]
      %v7632 = vld [vmem:[%s10 + $0xd0] sm:$0xff]
      %v7633 = vld [vmem:[%s10 + $0xd8] sm:$0xff]
      %v7634 = vld [vmem:[%s10 + $0xe0] sm:$0xff]
      %v7635 = vld [vmem:[%s10 + $0xe8] sm:$0xff]
      %v7636 = vld [vmem:[%s10 + $0xf0] sm:$0xff]
      %v7637 = vld [vmem:[%s10 + $0xf8] sm:$0xff]
      %v7638 = vld [vmem:[%s10 + $0x100] sm:$0xff]
      %v7639 = vld [vmem:[%s10 + $0x108] sm:$0xff]
      %v7640 = vld [vmem:[%s10 + $0x110] sm:$0xff]
      %v7641 = vld [vmem:[%s10 + $0x118] sm:$0xff]
      %v7642 = vld [vmem:[%s10 + $0x120] sm:$0xff]
      %v7643 = vld [vmem:[%s10 + $0x128] sm:$0xff]
      %v7644 = vld [vmem:[%s10 + $0x130] sm:$0xff]
      %v7645 = vld [vmem:[%s10 + $0x138] sm:$0xff]
      %v7646 = vld [vmem:[%s10 + $0x140] sm:$0xff]
      %v7647 = vld [vmem:[%s10 + $0x148] sm:$0xff]
      %v7648 = vld [vmem:[%s10 + $0x150] sm:$0xff]
      %v7649 = vld [vmem:[%s10 + $0x158] sm:$0xff]
      %v7650 = vld [vmem:[%s10 + $0x160] sm:$0xff]
      %v7651 = vld [vmem:[%s10 + $0x168] sm:$0xff]
      %v7652 = vld [vmem:[%s10 + $0x170] sm:$0xff]
      %v7653 = vld [vmem:[%s10 + $0x178] sm:$0xff]
      %v7654 = vld [vmem:[%s10 + $0x180] sm:$0xff]
      %v7655 = vld [vmem:[%s10 + $0x188] sm:$0xff]
      %v7656 = vld [vmem:[%s10 + $0x190] sm:$0xff]
      %v7657 = vld [vmem:[%s10 + $0x198] sm:$0xff]
      %v7658 = vld [vmem:[%s10 + $0x1a0] sm:$0xff]
      %v7659 = vld [vmem:[%s10 + $0x1a8] sm:$0xff]
      %v7660 = vld [vmem:[%s10 + $0x1b0] sm:$0xff]
      %v7661 = vld [vmem:[%s10 + $0x1b8] sm:$0xff]
      %v7662 = vld [vmem:[%s10 + $0x1c0] sm:$0xff]
      %v7663 = vld [vmem:[%s10 + $0x1c8] sm:$0xff]
      %v7664 = vld [vmem:[%s10 + $0x1d0] sm:$0xff]
      %v7665 = vld [vmem:[%s10 + $0x1d8] sm:$0xff]
      %v7666 = vld [vmem:[%s10 + $0x1e0] sm:$0xff]
      %v7667 = vld [vmem:[%s10 + $0x1e8] sm:$0xff]
      %v7668 = vld [vmem:[%s10 + $0x1f0] sm:$0xff]
      %v7669 = vld [vmem:[%s10 + $0x1f8] sm:$0xff]
      %v7670 = vld [vmem:[%s10 + $0x200] sm:$0xff]
      %v7671 = vld [vmem:[%s10 + $0x208] sm:$0xff]
      %v7672 = vld [vmem:[%s10 + $0x210] sm:$0xff]
      %v7673 = vld [vmem:[%s10 + $0x218] sm:$0xff]
      %v7674 = vld [vmem:[%s10 + $0x220] sm:$0xff]
      %v7675 = vld [vmem:[%s10 + $0x228] sm:$0xff]
      %v7676 = vld [vmem:[%s10 + $0x230] sm:$0xff]
      %v7677 = vld [vmem:[%s10 + $0x238] sm:$0xff]
      %v7678 = vld [vmem:[%s10 + $0x240] sm:$0xff]
      %v7679 = vld [vmem:[%s10 + $0x248] sm:$0xff]
      %v7680 = vld [vmem:[%s10 + $0x250] sm:$0xff]
      %v7681 = vld [vmem:[%s10 + $0x258] sm:$0xff]
      %v7682 = vld [vmem:[%s10 + $0x260] sm:$0xff]
      %v7683 = vld [vmem:[%s10 + $0x268] sm:$0xff]
      %v7684 = vld [vmem:[%s10 + $0x270] sm:$0xff]
      %v7685 = vld [vmem:[%s10 + $0x278] sm:$0xff]
      %v7686 = vld [vmem:[%s10 + $0x280] sm:$0xff]
      %v7687 = vld [vmem:[%s10 + $0x288] sm:$0xff]
      %v7688 = vld [vmem:[%s10 + $0x290] sm:$0xff]
      %v7689 = vld [vmem:[%s10 + $0x298] sm:$0xff]
      %v7690 = vld [vmem:[%s10 + $0x2a0] sm:$0xff]
      %v7691 = vld [vmem:[%s10 + $0x2a8] sm:$0xff]
      %v7692 = vld [vmem:[%s10 + $0x2b0] sm:$0xff]
      %v7693 = vld [vmem:[%s10 + $0x2b8] sm:$0xff]
      %v7694 = vld [vmem:[%s10 + $0x2c0] sm:$0xff]
      %v7695 = vld [vmem:[%s10 + $0x2c8] sm:$0xff]
      %v7696 = vld [vmem:[%s10 + $0x2d0] sm:$0xff]
      %v7697 = vld [vmem:[%s10 + $0x2d8] sm:$0xff]
      %v7698 = vld [vmem:[%s10 + $0x2e0] sm:$0xff]
      %v7699 = vld [vmem:[%s10 + $0x2e8] sm:$0xff]
      %v7700 = vld [vmem:[%s10 + $0x2f0] sm:$0xff]
      %v7701 = vld [vmem:[%s10 + $0x2f8] sm:$0xff]
      %v7702 = vld [vmem:[%s10 + $0x300] sm:$0xff]
      %v7703 = vld [vmem:[%s10 + $0x308] sm:$0xff]
      %v7704 = vld [vmem:[%s10 + $0x310] sm:$0xff]
      %v7705 = vld [vmem:[%s10 + $0x318] sm:$0xff]
      %v7706 = vld [vmem:[%s10 + $0x320] sm:$0xff]
      %v7707 = vld [vmem:[%s10 + $0x328] sm:$0xff]
      %v7708 = vld [vmem:[%s10 + $0x330] sm:$0xff]
      %v7709 = vld [vmem:[%s10 + $0x338] sm:$0xff]
      %v7710 = vld [vmem:[%s10 + $0x340] sm:$0xff]
      %v7711 = vld [vmem:[%s10 + $0x348] sm:$0xff]
      %v7712 = vld [vmem:[%s10 + $0x350] sm:$0xff]
      %v7713 = vld [vmem:[%s10 + $0x358] sm:$0xff]
      %v7714 = vld [vmem:[%s10 + $0x360] sm:$0xff]
      %v7715 = vld [vmem:[%s10 + $0x368] sm:$0xff]
      %v7716 = vld [vmem:[%s10 + $0x370] sm:$0xff]
      %v7717 = vld [vmem:[%s10 + $0x378] sm:$0xff]
      %v7718 = vld [vmem:[%s10 + $0x380] sm:$0xff]
      %v7719 = vld [vmem:[%s10 + $0x388] sm:$0xff]
      %v7720 = vld [vmem:[%s10 + $0x390] sm:$0xff]
      %v7721 = vld [vmem:[%s10 + $0x398] sm:$0xff]
      %v7722 = vld [vmem:[%s10 + $0x3a0] sm:$0xff]
      %v7723 = vld [vmem:[%s10 + $0x3a8] sm:$0xff]
      %v7724 = vld [vmem:[%s10 + $0x3b0] sm:$0xff]
      %v7725 = vld [vmem:[%s10 + $0x3b8] sm:$0xff]
      %v7726 = vld [vmem:[%s10 + $0x3c0] sm:$0xff]
      %v7727 = vld [vmem:[%s10 + $0x3c8] sm:$0xff]
      %v7728 = vld [vmem:[%s10 + $0x3d0] sm:$0xff]
      %v7729 = vld [vmem:[%s10 + $0x3d8] sm:$0xff]
      %v7730 = vld [vmem:[%s10 + $0x3e0] sm:$0xff]
      %v7731 = vld [vmem:[%s10 + $0x3e8] sm:$0xff]
      %v7732 = vld [vmem:[%s10 + $0x3f0] sm:$0xff]
      %v7733 = vld [vmem:[%s10 + $0x3f8] sm:$0xff]
      %v7734 = vld [vmem:[%s10 + $0x400] sm:$0xff]
      %v7735 = vld [vmem:[%s10 + $0x408] sm:$0xff]
      %v7736 = vld [vmem:[%s10 + $0x410] sm:$0xff]
      %v7737 = vld [vmem:[%s10 + $0x418] sm:$0xff]
      %v7738 = vld [vmem:[%s10 + $0x420] sm:$0xff]
      %v7739 = vld [vmem:[%s10 + $0x428] sm:$0xff]
      %v7740 = vld [vmem:[%s10 + $0x430] sm:$0xff]
      %v7741 = vld [vmem:[%s10 + $0x438] sm:$0xff]
      %v7742 = vld [vmem:[%s10 + $0x440] sm:$0xff]
      %v7743 = vld [vmem:[%s10 + $0x448] sm:$0xff]
      %v7744 = vld [vmem:[%s10 + $0x450] sm:$0xff]
      %v7745 = vld [vmem:[%s10 + $0x458] sm:$0xff]
      %v7746 = vld [vmem:[%s10 + $0x460] sm:$0xff]
      %v7747 = vld [vmem:[%s10 + $0x468] sm:$0xff]
      %v7748 = vld [vmem:[%s10 + $0x470] sm:$0xff]
      %v7749 = vld [vmem:[%s10 + $0x478] sm:$0xff]
      %v7750 = vld [vmem:[%s10 + $0x480] sm:$0xff]
      %v7751 = vld [vmem:[%s10 + $0x488] sm:$0xff]
      %v7752 = vld [vmem:[%s10 + $0x490] sm:$0xff]
      %v7753 = vld [vmem:[%s10 + $0x498] sm:$0xff]
      %v7754 = vld [vmem:[%s10 + $0x4a0] sm:$0xff]
      %v7755 = vld [vmem:[%s10 + $0x4a8] sm:$0xff]
      %v7756 = vld [vmem:[%s10 + $0x4b0] sm:$0xff]
      %v7757 = vld [vmem:[%s10 + $0x4b8] sm:$0xff]
      %v7758 = vld [vmem:[%s10 + $0x4c0] sm:$0xff]
      %v7759 = vld [vmem:[%s10 + $0x4c8] sm:$0xff]
      %v7760 = vld [vmem:[%s10 + $0x4d0] sm:$0xff]
      %v7761 = vld [vmem:[%s10 + $0x4d8] sm:$0xff]
      %v7762 = vld [vmem:[%s10 + $0x4e0] sm:$0xff]
      %v7763 = vld [vmem:[%s10 + $0x4e8] sm:$0xff]
      %v7764 = vld [vmem:[%s10 + $0x4f0] sm:$0xff]
      %v7765 = vld [vmem:[%s10 + $0x4f8] sm:$0xff]
      %v7766 = vld [vmem:[%s10 + $0x500] sm:$0xff]
      %v7767 = vld [vmem:[%s10 + $0x508] sm:$0xff]
      %v7768 = vld [vmem:[%s10 + $0x510] sm:$0xff]
      %v7769 = vld [vmem:[%s10 + $0x518] sm:$0xff]
      %v7770 = vld [vmem:[%s10 + $0x520] sm:$0xff]
      %v7771 = vld [vmem:[%s10 + $0x528] sm:$0xff]
      %v7772 = vld [vmem:[%s10 + $0x530] sm:$0xff]
      %v7773 = vld [vmem:[%s10 + $0x538] sm:$0xff]
      %v7774 = vld [vmem:[%s10 + $0x540] sm:$0xff]
      %v7775 = vld [vmem:[%s10 + $0x548] sm:$0xff]
      %v7776 = vld [vmem:[%s10 + $0x550] sm:$0xff]
      %v7777 = vld [vmem:[%s10 + $0x558] sm:$0xff]
      %v7778 = vld [vmem:[%s10 + $0x560] sm:$0xff]
      %v7779 = vld [vmem:[%s10 + $0x568] sm:$0xff]
      %v7780 = vld [vmem:[%s10 + $0x570] sm:$0xff]
      %v7781 = vld [vmem:[%s10 + $0x578] sm:$0xff]
      %v7782 = vld [vmem:[%s10 + $0x580] sm:$0xff]
      %v7783 = vld [vmem:[%s10 + $0x588] sm:$0xff]
      %v7784 = vld [vmem:[%s10 + $0x590] sm:$0xff]
      %v7785 = vld [vmem:[%s10 + $0x598] sm:$0xff]
      %v7786 = vld [vmem:[%s10 + $0x5a0] sm:$0xff]
      %v7787 = vld [vmem:[%s10 + $0x5a8] sm:$0xff]
      %v7788 = vld [vmem:[%s10 + $0x5b0] sm:$0xff]
      %v7789 = vld [vmem:[%s10 + $0x5b8] sm:$0xff]
      %v7790 = vld [vmem:[%s10 + $0x5c0] sm:$0xff]
      %v7791 = vld [vmem:[%s10 + $0x5c8] sm:$0xff]
      %v7792 = vld [vmem:[%s10 + $0x5d0] sm:$0xff]
      %v7793 = vld [vmem:[%s10 + $0x5d8] sm:$0xff]
      %v7794 = vld [vmem:[%s10 + $0x5e0] sm:$0xff]
      %v7795 = vld [vmem:[%s10 + $0x5e8] sm:$0xff]
      %v7796 = vld [vmem:[%s10 + $0x5f0] sm:$0xff]
      %v7797 = vld [vmem:[%s10 + $0x5f8] sm:$0xff]
      %v7798 = vld [vmem:[%s10 + $0x600] sm:$0xff]
      %v7799 = vld [vmem:[%s10 + $0x608] sm:$0xff]
      %v7800 = vld [vmem:[%s10 + $0x610] sm:$0xff]
      %v7801 = vld [vmem:[%s10 + $0x618] sm:$0xff]
      %v7802 = vld [vmem:[%s10 + $0x620] sm:$0xff]
      %v7803 = vld [vmem:[%s10 + $0x628] sm:$0xff]
      %v7804 = vld [vmem:[%s10 + $0x630] sm:$0xff]
      %v7805 = vld [vmem:[%s10 + $0x638] sm:$0xff]
      %v7806 = vld [vmem:[%s10 + $0x640] sm:$0xff]
      %v7807 = vld [vmem:[%s10 + $0x648] sm:$0xff]
      %v7808 = vld [vmem:[%s10 + $0x650] sm:$0xff]
      %v7809 = vld [vmem:[%s10 + $0x658] sm:$0xff]
      %v7810 = vld [vmem:[%s10 + $0x660] sm:$0xff]
      %v7811 = vld [vmem:[%s10 + $0x668] sm:$0xff]
      %v7812 = vld [vmem:[%s10 + $0x670] sm:$0xff]
      %v7813 = vld [vmem:[%s10 + $0x678] sm:$0xff]
      %v7814 = vld [vmem:[%s10 + $0x680] sm:$0xff]
      %v7815 = vld [vmem:[%s10 + $0x688] sm:$0xff]
      %v7816 = vld [vmem:[%s10 + $0x690] sm:$0xff]
      %v7817 = vld [vmem:[%s10 + $0x698] sm:$0xff]
      %v7818 = vld [vmem:[%s10 + $0x6a0] sm:$0xff]
      %v7819 = vld [vmem:[%s10 + $0x6a8] sm:$0xff]
      %v7820 = vld [vmem:[%s10 + $0x6b0] sm:$0xff]
      %v7821 = vld [vmem:[%s10 + $0x6b8] sm:$0xff]
      %v7822 = vld [vmem:[%s10 + $0x6c0] sm:$0xff]
      %v7823 = vld [vmem:[%s10 + $0x6c8] sm:$0xff]
      %v7824 = vld [vmem:[%s10 + $0x6d0] sm:$0xff]
      %v7825 = vld [vmem:[%s10 + $0x6d8] sm:$0xff]
      %v7826 = vld [vmem:[%s10 + $0x6e0] sm:$0xff]
      %v7827 = vld [vmem:[%s10 + $0x6e8] sm:$0xff]
      %v7828 = vld [vmem:[%s10 + $0x6f0] sm:$0xff]
      %v7829 = vld [vmem:[%s10 + $0x6f8] sm:$0xff]
      %v7830 = vld [vmem:[%s10 + $0x700] sm:$0xff]
      %v7831 = vld [vmem:[%s10 + $0x708] sm:$0xff]
      %v7832 = vld [vmem:[%s10 + $0x710] sm:$0xff]
      %v7833 = vld [vmem:[%s10 + $0x718] sm:$0xff]
      %v7834 = vld [vmem:[%s10 + $0x720] sm:$0xff]
      %v7835 = vld [vmem:[%s10 + $0x728] sm:$0xff]
      %v7836 = vld [vmem:[%s10 + $0x730] sm:$0xff]
      %v7837 = vld [vmem:[%s10 + $0x738] sm:$0xff]
      %v7838 = vld [vmem:[%s10 + $0x740] sm:$0xff]
      %v7839 = vld [vmem:[%s10 + $0x748] sm:$0xff]
      %v7840 = vld [vmem:[%s10 + $0x750] sm:$0xff]
      %v7841 = vld [vmem:[%s10 + $0x758] sm:$0xff]
      %v7842 = vld [vmem:[%s10 + $0x760] sm:$0xff]
      %v7843 = vld [vmem:[%s10 + $0x768] sm:$0xff]
      %v7844 = vld [vmem:[%s10 + $0x770] sm:$0xff]
      %v7845 = vld [vmem:[%s10 + $0x778] sm:$0xff]
      %v7846 = vld [vmem:[%s10 + $0x780] sm:$0xff]
      %v7847 = vld [vmem:[%s10 + $0x788] sm:$0xff]
      %v7848 = vld [vmem:[%s10 + $0x790] sm:$0xff]
      %v7849 = vld [vmem:[%s10 + $0x798] sm:$0xff]
      %v7850 = vld [vmem:[%s10 + $0x7a0] sm:$0xff]
      %v7851 = vld [vmem:[%s10 + $0x7a8] sm:$0xff]
      %v7852 = vld [vmem:[%s10 + $0x7b0] sm:$0xff]
      %v7853 = vld [vmem:[%s10 + $0x7b8] sm:$0xff]
      %v7854 = vld [vmem:[%s10 + $0x7c0] sm:$0xff]
      %v7855 = vld [vmem:[%s10 + $0x7c8] sm:$0xff]
      %v7856 = vld [vmem:[%s10 + $0x7d0] sm:$0xff]
      %v7857 = vld [vmem:[%s10 + $0x7d8] sm:$0xff]
      %v7858 = vld [vmem:[%s10 + $0x7e0] sm:$0xff]
      %v7859 = vld [vmem:[%s10 + $0x7e8] sm:$0xff]
      %v7860 = vld [vmem:[%s10 + $0x7f0] sm:$0xff]
      %v7861 = vld [vmem:[%s10 + $0x7f8] sm:$0xff]
      %v7862 = vld [vmem:[%s10 + $0x800] sm:$0xff]
      %v7863 = vld [vmem:[%s10 + $0x808] sm:$0xff]
      %v7864 = vld [vmem:[%s10 + $0x810] sm:$0xff]
      %v7865 = vld [vmem:[%s10 + $0x818] sm:$0xff]
      %v7866 = vld [vmem:[%s10 + $0x820] sm:$0xff]
      %v7867 = vld [vmem:[%s10 + $0x828] sm:$0xff]
      %v7868 = vld [vmem:[%s10 + $0x830] sm:$0xff]
      %v7869 = vld [vmem:[%s10 + $0x838] sm:$0xff]
      %v7870 = vld [vmem:[%s10 + $0x840] sm:$0xff]
      %v7871 = vld [vmem:[%s10 + $0x848] sm:$0xff]
      %v7872 = vld [vmem:[%s10 + $0x850] sm:$0xff]
      %v7873 = vld [vmem:[%s10 + $0x858] sm:$0xff]
      %v7874 = vld [vmem:[%s10 + $0x860] sm:$0xff]
      %v7875 = vld [vmem:[%s10 + $0x868] sm:$0xff]
      %v7876 = vld [vmem:[%s10 + $0x870] sm:$0xff]
      %v7877 = vld [vmem:[%s10 + $0x878] sm:$0xff]
      %v7878 = vld [vmem:[%s10 + $0x880] sm:$0xff]
      %v7879 = vld [vmem:[%s10 + $0x888] sm:$0xff]
      %v7880 = vld [vmem:[%s10 + $0x890] sm:$0xff]
      %v7881 = vld [vmem:[%s10 + $0x898] sm:$0xff]
      %v7882 = vld [vmem:[%s10 + $0x8a0] sm:$0xff]
      %v7883 = vld [vmem:[%s10 + $0x8a8] sm:$0xff]
      %v7884 = vld [vmem:[%s10 + $0x8b0] sm:$0xff]
      %v7885 = vld [vmem:[%s10 + $0x8b8] sm:$0xff]
      %v7886 = vld [vmem:[%s10 + $0x8c0] sm:$0xff]
      %v7887 = vld [vmem:[%s10 + $0x8c8] sm:$0xff]
      %v7888 = vld [vmem:[%s10 + $0x8d0] sm:$0xff]
      %v7889 = vld [vmem:[%s10 + $0x8d8] sm:$0xff]
      %v7890 = vld [vmem:[%s10 + $0x8e0] sm:$0xff]
      %v7891 = vld [vmem:[%s10 + $0x8e8] sm:$0xff]
      %v7892 = vld [vmem:[%s10 + $0x8f0] sm:$0xff]
      %v7893 = vld [vmem:[%s10 + $0x8f8] sm:$0xff]
      %v7894 = vld [vmem:[%s10 + $0x900] sm:$0xff]
      %v7895 = vld [vmem:[%s10 + $0x908] sm:$0xff]
      %v7896 = vld [vmem:[%s10 + $0x910] sm:$0xff]
      %v7897 = vld [vmem:[%s10 + $0x918] sm:$0xff]
      %v7898 = vld [vmem:[%s10 + $0x920] sm:$0xff]
      %v7899 = vld [vmem:[%s10 + $0x928] sm:$0xff]
      %v7900 = vld [vmem:[%s10 + $0x930] sm:$0xff]
      %v7901 = vld [vmem:[%s10 + $0x938] sm:$0xff]
      %v7902 = vld [vmem:[%s10 + $0x940] sm:$0xff]
      %v7903 = vld [vmem:[%s10 + $0x948] sm:$0xff]
      %v7904 = vld [vmem:[%s10 + $0x950] sm:$0xff]
      %v7905 = vld [vmem:[%s10 + $0x958] sm:$0xff]
      %v7906 = vld [vmem:[%s10 + $0x960] sm:$0xff]
      %v7907 = vld [vmem:[%s10 + $0x968] sm:$0xff]
      %v7908 = vld [vmem:[%s10 + $0x970] sm:$0xff]
      %v7909 = vld [vmem:[%s10 + $0x978] sm:$0xff]
      %v7910 = vld [vmem:[%s10 + $0x980] sm:$0xff]
      %v7911 = vld [vmem:[%s10 + $0x988] sm:$0xff]
      %v7912 = vld [vmem:[%s10 + $0x990] sm:$0xff]
      %v7913 = vld [vmem:[%s10 + $0x998] sm:$0xff]
      %v7914 = vld [vmem:[%s10 + $0x9a0] sm:$0xff]
      %v7915 = vld [vmem:[%s10 + $0x9a8] sm:$0xff]
      %v7916 = vld [vmem:[%s10 + $0x9b0] sm:$0xff]
      %v7917 = vld [vmem:[%s10 + $0x9b8] sm:$0xff]
      %v7918 = vld [vmem:[%s10 + $0x9c0] sm:$0xff]
      %v7919 = vld [vmem:[%s10 + $0x9c8] sm:$0xff]
      %v7920 = vld [vmem:[%s10 + $0x9d0] sm:$0xff]
      %v7921 = vld [vmem:[%s10 + $0x9d8] sm:$0xff]
      %v7922 = vld [vmem:[%s10 + $0x9e0] sm:$0xff]
      %v7923 = vld [vmem:[%s10 + $0x9e8] sm:$0xff]
      %v7924 = vld [vmem:[%s10 + $0x9f0] sm:$0xff]
      %v7925 = vld [vmem:[%s10 + $0x9f8] sm:$0xff]
      %v7926 = vld [vmem:[%s10 + $0xa00] sm:$0xff]
      %v7927 = vld [vmem:[%s10 + $0xa08] sm:$0xff]
      %v7928 = vld [vmem:[%s10 + $0xa10] sm:$0xff]
      %v7929 = vld [vmem:[%s10 + $0xa18] sm:$0xff]
      %v7930 = vld [vmem:[%s10 + $0xa20] sm:$0xff]
      %v7931 = vld [vmem:[%s10 + $0xa28] sm:$0xff]
      %v7932 = vld [vmem:[%s10 + $0xa30] sm:$0xff]
      %v7933 = vld [vmem:[%s10 + $0xa38] sm:$0xff]
      %v7934 = vld [vmem:[%s10 + $0xa40] sm:$0xff]
      %v7935 = vld [vmem:[%s10 + $0xa48] sm:$0xff]
      %v7936 = vld [vmem:[%s10 + $0xa50] sm:$0xff]
      %v7937 = vld [vmem:[%s10 + $0xa58] sm:$0xff]
      %v7938 = vld [vmem:[%s10 + $0xa60] sm:$0xff]
      %v7939 = vld [vmem:[%s10 + $0xa68] sm:$0xff]
      %v7940 = vld [vmem:[%s10 + $0xa70] sm:$0xff]
      %v7941 = vld [vmem:[%s10 + $0xa78] sm:$0xff]
      %v7942 = vld [vmem:[%s10 + $0xa80] sm:$0xff]
      %v7943 = vld [vmem:[%s10 + $0xa88] sm:$0xff]
      %v7944 = vld [vmem:[%s10 + $0xa90] sm:$0xff]
      %v7945 = vld [vmem:[%s10 + $0xa98] sm:$0xff]
      %v7946 = vld [vmem:[%s10 + $0xaa0] sm:$0xff]
      %v7947 = vld [vmem:[%s10 + $0xaa8] sm:$0xff]
      %v7948 = vld [vmem:[%s10 + $0xab0] sm:$0xff]
      %v7949 = vld [vmem:[%s10 + $0xab8] sm:$0xff]
      %v7950 = vld [vmem:[%s10 + $0xac0] sm:$0xff]
      %v7951 = vld [vmem:[%s10 + $0xac8] sm:$0xff]
      %v7952 = vld [vmem:[%s10 + $0xad0] sm:$0xff]
      %v7953 = vld [vmem:[%s10 + $0xad8] sm:$0xff]
      %v7954 = vld [vmem:[%s10 + $0xae0] sm:$0xff]
      %v7955 = vld [vmem:[%s10 + $0xae8] sm:$0xff]
      %v7956 = vld [vmem:[%s10 + $0xaf0] sm:$0xff]
      %v7957 = vld [vmem:[%s10 + $0xaf8] sm:$0xff]
      %v7958 = vld [vmem:[%s10 + $0xb00] sm:$0xff]
      %v7959 = vld [vmem:[%s10 + $0xb08] sm:$0xff]
      %v7960 = vld [vmem:[%s10 + $0xb10] sm:$0xff]
      %v7961 = vld [vmem:[%s10 + $0xb18] sm:$0xff]
      %v7962 = vld [vmem:[%s10 + $0xb20] sm:$0xff]
      %v7963 = vld [vmem:[%s10 + $0xb28] sm:$0xff]
      %v7964 = vld [vmem:[%s10 + $0xb30] sm:$0xff]
      %v7965 = vld [vmem:[%s10 + $0xb38] sm:$0xff]
      %v7966 = vld [vmem:[%s10 + $0xb40] sm:$0xff]
      %v7967 = vld [vmem:[%s10 + $0xb48] sm:$0xff]
      %v7968 = vld [vmem:[%s10 + $0xb50] sm:$0xff]
      %v7969 = vld [vmem:[%s10 + $0xb58] sm:$0xff]
      %v7970 = vld [vmem:[%s10 + $0xb60] sm:$0xff]
      %v7971 = vld [vmem:[%s10 + $0xb68] sm:$0xff]
      %v7972 = vld [vmem:[%s10 + $0xb70] sm:$0xff]
      %v7973 = vld [vmem:[%s10 + $0xb78] sm:$0xff]
      %v7974 = vld [vmem:[%s10 + $0xb80] sm:$0xff]
      %v7975 = vld [vmem:[%s10 + $0xb88] sm:$0xff]
      %v7976 = vld [vmem:[%s10 + $0xb90] sm:$0xff]
      %v7977 = vld [vmem:[%s10 + $0xb98] sm:$0xff]
      %v7978 = vld [vmem:[%s10 + $0xba0] sm:$0xff]
      %v7979 = vld [vmem:[%s10 + $0xba8] sm:$0xff]
      %v7980 = vld [vmem:[%s10 + $0xbb0] sm:$0xff]
      %v7981 = vld [vmem:[%s10 + $0xbb8] sm:$0xff]
      %v7982 = vld [vmem:[%s10 + $0xbc0] sm:$0xff]
      %v7983 = vld [vmem:[%s10 + $0xbc8] sm:$0xff]
      %v7984 = vld [vmem:[%s10 + $0xbd0] sm:$0xff]
      %v7985 = vld [vmem:[%s10 + $0xbd8] sm:$0xff]
      %v7986 = vld [vmem:[%s10 + $0xbe0] sm:$0xff]
      %v7987 = vld [vmem:[%s10 + $0xbe8] sm:$0xff]
      %v7988 = vld [vmem:[%s10 + $0xbf0] sm:$0xff]
      %v7989 = vld [vmem:[%s10 + $0xbf8] sm:$0xff]
      %v7990 = vld [vmem:[%s11] sm:$0xff]
      %v8375 = vunpack.c.l.b16 %v7606
      %v8376 = vunpack.c.h.b16 %v7606
      %v8377 = vunpack.c.l.b16 %v7607
      %v8378 = vunpack.c.h.b16 %v7607
      %v8379 = vunpack.c.l.b16 %v7608
      %v8380 = vunpack.c.h.b16 %v7608
      %v8381 = vunpack.c.l.b16 %v7609
      %v8382 = vunpack.c.h.b16 %v7609
      %v8383 = vunpack.c.l.b16 %v7610
      %v8384 = vunpack.c.h.b16 %v7610
      %v8385 = vunpack.c.l.b16 %v7611
      %v8386 = vunpack.c.h.b16 %v7611
      %v8387 = vunpack.c.l.b16 %v7612
      %v8388 = vunpack.c.h.b16 %v7612
      %v8389 = vunpack.c.l.b16 %v7613
      %v8390 = vunpack.c.h.b16 %v7613
      %v8391 = vunpack.c.l.b16 %v7614
      %v8392 = vunpack.c.h.b16 %v7614
      %v8393 = vunpack.c.l.b16 %v7615
      %v8394 = vunpack.c.h.b16 %v7615
      %v8395 = vunpack.c.l.b16 %v7616
      %v8396 = vunpack.c.h.b16 %v7616
      %v8397 = vunpack.c.l.b16 %v7617
      %v8398 = vunpack.c.h.b16 %v7617
      %v8399 = vunpack.c.l.b16 %v7618
      %v8400 = vunpack.c.h.b16 %v7618
      %v8401 = vunpack.c.l.b16 %v7619
      %v8402 = vunpack.c.h.b16 %v7619
      %v8403 = vunpack.c.l.b16 %v7620
      %v8404 = vunpack.c.h.b16 %v7620
      %v8405 = vunpack.c.l.b16 %v7621
      %v8406 = vunpack.c.h.b16 %v7621
      %v8407 = vunpack.c.l.b16 %v7622
      %v8408 = vunpack.c.h.b16 %v7622
      %v8409 = vunpack.c.l.b16 %v7623
      %v8410 = vunpack.c.h.b16 %v7623
      %v8411 = vunpack.c.l.b16 %v7624
      %v8412 = vunpack.c.h.b16 %v7624
      %v8413 = vunpack.c.l.b16 %v7625
      %v8414 = vunpack.c.h.b16 %v7625
      %v8415 = vunpack.c.l.b16 %v7626
      %v8416 = vunpack.c.h.b16 %v7626
      %v8417 = vunpack.c.l.b16 %v7627
      %v8418 = vunpack.c.h.b16 %v7627
      %v8419 = vunpack.c.l.b16 %v7628
      %v8420 = vunpack.c.h.b16 %v7628
      %v8421 = vunpack.c.l.b16 %v7629
      %v8422 = vunpack.c.h.b16 %v7629
      %v8423 = vunpack.c.l.b16 %v7630
      %v8424 = vunpack.c.h.b16 %v7630
      %v8425 = vunpack.c.l.b16 %v7631
      %v8426 = vunpack.c.h.b16 %v7631
      %v8427 = vunpack.c.l.b16 %v7632
      %v8428 = vunpack.c.h.b16 %v7632
      %v8429 = vunpack.c.l.b16 %v7633
      %v8430 = vunpack.c.h.b16 %v7633
      %v8431 = vunpack.c.l.b16 %v7634
      %v8432 = vunpack.c.h.b16 %v7634
      %v8433 = vunpack.c.l.b16 %v7635
      %v8434 = vunpack.c.h.b16 %v7635
      %v8435 = vunpack.c.l.b16 %v7636
      %v8436 = vunpack.c.h.b16 %v7636
      %v8437 = vunpack.c.l.b16 %v7637
      %v8438 = vunpack.c.h.b16 %v7637
      %v8439 = vunpack.c.l.b16 %v7638
      %v8440 = vunpack.c.h.b16 %v7638
      %v8441 = vunpack.c.l.b16 %v7639
      %v8442 = vunpack.c.h.b16 %v7639
      %v8443 = vunpack.c.l.b16 %v7640
      %v8444 = vunpack.c.h.b16 %v7640
      %v8445 = vunpack.c.l.b16 %v7641
      %v8446 = vunpack.c.h.b16 %v7641
      %v8447 = vunpack.c.l.b16 %v7642
      %v8448 = vunpack.c.h.b16 %v7642
      %v8449 = vunpack.c.l.b16 %v7643
      %v8450 = vunpack.c.h.b16 %v7643
      %v8451 = vunpack.c.l.b16 %v7644
      %v8452 = vunpack.c.h.b16 %v7644
      %v8453 = vunpack.c.l.b16 %v7645
      %v8454 = vunpack.c.h.b16 %v7645
      %v8455 = vunpack.c.l.b16 %v7646
      %v8456 = vunpack.c.h.b16 %v7646
      %v8457 = vunpack.c.l.b16 %v7647
      %v8458 = vunpack.c.h.b16 %v7647
      %v8459 = vunpack.c.l.b16 %v7648
      %v8460 = vunpack.c.h.b16 %v7648
      %v8461 = vunpack.c.l.b16 %v7649
      %v8462 = vunpack.c.h.b16 %v7649
      %v8463 = vunpack.c.l.b16 %v7650
      %v8464 = vunpack.c.h.b16 %v7650
      %v8465 = vunpack.c.l.b16 %v7651
      %v8466 = vunpack.c.h.b16 %v7651
      %v8467 = vunpack.c.l.b16 %v7652
      %v8468 = vunpack.c.h.b16 %v7652
      %v8469 = vunpack.c.l.b16 %v7653
      %v8470 = vunpack.c.h.b16 %v7653
      %v8471 = vunpack.c.l.b16 %v7654
      %v8472 = vunpack.c.h.b16 %v7654
      %v8473 = vunpack.c.l.b16 %v7655
      %v8474 = vunpack.c.h.b16 %v7655
      %v8475 = vunpack.c.l.b16 %v7656
      %v8476 = vunpack.c.h.b16 %v7656
      %v8477 = vunpack.c.l.b16 %v7657
      %v8478 = vunpack.c.h.b16 %v7657
      %v8479 = vunpack.c.l.b16 %v7658
      %v8480 = vunpack.c.h.b16 %v7658
      %v8481 = vunpack.c.l.b16 %v7659
      %v8482 = vunpack.c.h.b16 %v7659
      %v8483 = vunpack.c.l.b16 %v7660
      %v8484 = vunpack.c.h.b16 %v7660
      %v8485 = vunpack.c.l.b16 %v7661
      %v8486 = vunpack.c.h.b16 %v7661
      %v8487 = vunpack.c.l.b16 %v7662
      %v8488 = vunpack.c.h.b16 %v7662
      %v8489 = vunpack.c.l.b16 %v7663
      %v8490 = vunpack.c.h.b16 %v7663
      %v8491 = vunpack.c.l.b16 %v7664
      %v8492 = vunpack.c.h.b16 %v7664
      %v8493 = vunpack.c.l.b16 %v7665
      %v8494 = vunpack.c.h.b16 %v7665
      %v8495 = vunpack.c.l.b16 %v7666
      %v8496 = vunpack.c.h.b16 %v7666
      %v8497 = vunpack.c.l.b16 %v7667
      %v8498 = vunpack.c.h.b16 %v7667
      %v8499 = vunpack.c.l.b16 %v7668
      %v8500 = vunpack.c.h.b16 %v7668
      %v8501 = vunpack.c.l.b16 %v7669
      %v8502 = vunpack.c.h.b16 %v7669
      %v8503 = vunpack.c.l.b16 %v7670
      %v8504 = vunpack.c.h.b16 %v7670
      %v8505 = vunpack.c.l.b16 %v7671
      %v8506 = vunpack.c.h.b16 %v7671
      %v8507 = vunpack.c.l.b16 %v7672
      %v8508 = vunpack.c.h.b16 %v7672
      %v8509 = vunpack.c.l.b16 %v7673
      %v8510 = vunpack.c.h.b16 %v7673
      %v8511 = vunpack.c.l.b16 %v7674
      %v8512 = vunpack.c.h.b16 %v7674
      %v8513 = vunpack.c.l.b16 %v7675
      %v8514 = vunpack.c.h.b16 %v7675
      %v8515 = vunpack.c.l.b16 %v7676
      %v8516 = vunpack.c.h.b16 %v7676
      %v8517 = vunpack.c.l.b16 %v7677
      %v8518 = vunpack.c.h.b16 %v7677
      %v8519 = vunpack.c.l.b16 %v7678
      %v8520 = vunpack.c.h.b16 %v7678
      %v8521 = vunpack.c.l.b16 %v7679
      %v8522 = vunpack.c.h.b16 %v7679
      %v8523 = vunpack.c.l.b16 %v7680
      %v8524 = vunpack.c.h.b16 %v7680
      %v8525 = vunpack.c.l.b16 %v7681
      %v8526 = vunpack.c.h.b16 %v7681
      %v8527 = vunpack.c.l.b16 %v7682
      %v8528 = vunpack.c.h.b16 %v7682
      %v8529 = vunpack.c.l.b16 %v7683
      %v8530 = vunpack.c.h.b16 %v7683
      %v8531 = vunpack.c.l.b16 %v7684
      %v8532 = vunpack.c.h.b16 %v7684
      %v8533 = vunpack.c.l.b16 %v7685
      %v8534 = vunpack.c.h.b16 %v7685
      %v8535 = vunpack.c.l.b16 %v7686
      %v8536 = vunpack.c.h.b16 %v7686
      %v8537 = vunpack.c.l.b16 %v7687
      %v8538 = vunpack.c.h.b16 %v7687
      %v8539 = vunpack.c.l.b16 %v7688
      %v8540 = vunpack.c.h.b16 %v7688
      %v8541 = vunpack.c.l.b16 %v7689
      %v8542 = vunpack.c.h.b16 %v7689
      %v8543 = vunpack.c.l.b16 %v7690
      %v8544 = vunpack.c.h.b16 %v7690
      %v8545 = vunpack.c.l.b16 %v7691
      %v8546 = vunpack.c.h.b16 %v7691
      %v8547 = vunpack.c.l.b16 %v7692
      %v8548 = vunpack.c.h.b16 %v7692
      %v8549 = vunpack.c.l.b16 %v7693
      %v8550 = vunpack.c.h.b16 %v7693
      %v8551 = vunpack.c.l.b16 %v7694
      %v8552 = vunpack.c.h.b16 %v7694
      %v8553 = vunpack.c.l.b16 %v7695
      %v8554 = vunpack.c.h.b16 %v7695
      %v8555 = vunpack.c.l.b16 %v7696
      %v8556 = vunpack.c.h.b16 %v7696
      %v8557 = vunpack.c.l.b16 %v7697
      %v8558 = vunpack.c.h.b16 %v7697
      %v8559 = vunpack.c.l.b16 %v7698
      %v8560 = vunpack.c.h.b16 %v7698
      %v8561 = vunpack.c.l.b16 %v7699
      %v8562 = vunpack.c.h.b16 %v7699
      %v8563 = vunpack.c.l.b16 %v7700
      %v8564 = vunpack.c.h.b16 %v7700
      %v8565 = vunpack.c.l.b16 %v7701
      %v8566 = vunpack.c.h.b16 %v7701
      %v8567 = vunpack.c.l.b16 %v7702
      %v8568 = vunpack.c.h.b16 %v7702
      %v8569 = vunpack.c.l.b16 %v7703
      %v8570 = vunpack.c.h.b16 %v7703
      %v8571 = vunpack.c.l.b16 %v7704
      %v8572 = vunpack.c.h.b16 %v7704
      %v8573 = vunpack.c.l.b16 %v7705
      %v8574 = vunpack.c.h.b16 %v7705
      %v8575 = vunpack.c.l.b16 %v7706
      %v8576 = vunpack.c.h.b16 %v7706
      %v8577 = vunpack.c.l.b16 %v7707
      %v8578 = vunpack.c.h.b16 %v7707
      %v8579 = vunpack.c.l.b16 %v7708
      %v8580 = vunpack.c.h.b16 %v7708
      %v8581 = vunpack.c.l.b16 %v7709
      %v8582 = vunpack.c.h.b16 %v7709
      %v8583 = vunpack.c.l.b16 %v7710
      %v8584 = vunpack.c.h.b16 %v7710
      %v8585 = vunpack.c.l.b16 %v7711
      %v8586 = vunpack.c.h.b16 %v7711
      %v8587 = vunpack.c.l.b16 %v7712
      %v8588 = vunpack.c.h.b16 %v7712
      %v8589 = vunpack.c.l.b16 %v7713
      %v8590 = vunpack.c.h.b16 %v7713
      %v8591 = vunpack.c.l.b16 %v7714
      %v8592 = vunpack.c.h.b16 %v7714
      %v8593 = vunpack.c.l.b16 %v7715
      %v8594 = vunpack.c.h.b16 %v7715
      %v8595 = vunpack.c.l.b16 %v7716
      %v8596 = vunpack.c.h.b16 %v7716
      %v8597 = vunpack.c.l.b16 %v7717
      %v8598 = vunpack.c.h.b16 %v7717
      %v8599 = vunpack.c.l.b16 %v7718
      %v8600 = vunpack.c.h.b16 %v7718
      %v8601 = vunpack.c.l.b16 %v7719
      %v8602 = vunpack.c.h.b16 %v7719
      %v8603 = vunpack.c.l.b16 %v7720
      %v8604 = vunpack.c.h.b16 %v7720
      %v8605 = vunpack.c.l.b16 %v7721
      %v8606 = vunpack.c.h.b16 %v7721
      %v8607 = vunpack.c.l.b16 %v7722
      %v8608 = vunpack.c.h.b16 %v7722
      %v8609 = vunpack.c.l.b16 %v7723
      %v8610 = vunpack.c.h.b16 %v7723
      %v8611 = vunpack.c.l.b16 %v7724
      %v8612 = vunpack.c.h.b16 %v7724
      %v8613 = vunpack.c.l.b16 %v7725
      %v8614 = vunpack.c.h.b16 %v7725
      %v8615 = vunpack.c.l.b16 %v7726
      %v8616 = vunpack.c.h.b16 %v7726
      %v8617 = vunpack.c.l.b16 %v7727
      %v8618 = vunpack.c.h.b16 %v7727
      %v8619 = vunpack.c.l.b16 %v7728
      %v8620 = vunpack.c.h.b16 %v7728
      %v8621 = vunpack.c.l.b16 %v7729
      %v8622 = vunpack.c.h.b16 %v7729
      %v8623 = vunpack.c.l.b16 %v7730
      %v8624 = vunpack.c.h.b16 %v7730
      %v8625 = vunpack.c.l.b16 %v7731
      %v8626 = vunpack.c.h.b16 %v7731
      %v8627 = vunpack.c.l.b16 %v7732
      %v8628 = vunpack.c.h.b16 %v7732
      %v8629 = vunpack.c.l.b16 %v7733
      %v8630 = vunpack.c.h.b16 %v7733
      %v8631 = vunpack.c.l.b16 %v7734
      %v8632 = vunpack.c.h.b16 %v7734
      %v8633 = vunpack.c.l.b16 %v7735
      %v8634 = vunpack.c.h.b16 %v7735
      %v8635 = vunpack.c.l.b16 %v7736
      %v8636 = vunpack.c.h.b16 %v7736
      %v8637 = vunpack.c.l.b16 %v7737
      %v8638 = vunpack.c.h.b16 %v7737
      %v8639 = vunpack.c.l.b16 %v7738
      %v8640 = vunpack.c.h.b16 %v7738
      %v8641 = vunpack.c.l.b16 %v7739
      %v8642 = vunpack.c.h.b16 %v7739
      %v8643 = vunpack.c.l.b16 %v7740
      %v8644 = vunpack.c.h.b16 %v7740
      %v8645 = vunpack.c.l.b16 %v7741
      %v8646 = vunpack.c.h.b16 %v7741
      %v8647 = vunpack.c.l.b16 %v7742
      %v8648 = vunpack.c.h.b16 %v7742
      %v8649 = vunpack.c.l.b16 %v7743
      %v8650 = vunpack.c.h.b16 %v7743
      %v8651 = vunpack.c.l.b16 %v7744
      %v8652 = vunpack.c.h.b16 %v7744
      %v8653 = vunpack.c.l.b16 %v7745
      %v8654 = vunpack.c.h.b16 %v7745
      %v8655 = vunpack.c.l.b16 %v7746
      %v8656 = vunpack.c.h.b16 %v7746
      %v8657 = vunpack.c.l.b16 %v7747
      %v8658 = vunpack.c.h.b16 %v7747
      %v8659 = vunpack.c.l.b16 %v7748
      %v8660 = vunpack.c.h.b16 %v7748
      %v8661 = vunpack.c.l.b16 %v7749
      %v8662 = vunpack.c.h.b16 %v7749
      %v8663 = vunpack.c.l.b16 %v7750
      %v8664 = vunpack.c.h.b16 %v7750
      %v8665 = vunpack.c.l.b16 %v7751
      %v8666 = vunpack.c.h.b16 %v7751
      %v8667 = vunpack.c.l.b16 %v7752
      %v8668 = vunpack.c.h.b16 %v7752
      %v8669 = vunpack.c.l.b16 %v7753
      %v8670 = vunpack.c.h.b16 %v7753
      %v8671 = vunpack.c.l.b16 %v7754
      %v8672 = vunpack.c.h.b16 %v7754
      %v8673 = vunpack.c.l.b16 %v7755
      %v8674 = vunpack.c.h.b16 %v7755
      %v8675 = vunpack.c.l.b16 %v7756
      %v8676 = vunpack.c.h.b16 %v7756
      %v8677 = vunpack.c.l.b16 %v7757
      %v8678 = vunpack.c.h.b16 %v7757
      %v8679 = vunpack.c.l.b16 %v7758
      %v8680 = vunpack.c.h.b16 %v7758
      %v8681 = vunpack.c.l.b16 %v7759
      %v8682 = vunpack.c.h.b16 %v7759
      %v8683 = vunpack.c.l.b16 %v7760
      %v8684 = vunpack.c.h.b16 %v7760
      %v8685 = vunpack.c.l.b16 %v7761
      %v8686 = vunpack.c.h.b16 %v7761
      %v8687 = vunpack.c.l.b16 %v7762
      %v8688 = vunpack.c.h.b16 %v7762
      %v8689 = vunpack.c.l.b16 %v7763
      %v8690 = vunpack.c.h.b16 %v7763
      %v8691 = vunpack.c.l.b16 %v7764
      %v8692 = vunpack.c.h.b16 %v7764
      %v8693 = vunpack.c.l.b16 %v7765
      %v8694 = vunpack.c.h.b16 %v7765
      %v8695 = vunpack.c.l.b16 %v7766
      %v8696 = vunpack.c.h.b16 %v7766
      %v8697 = vunpack.c.l.b16 %v7767
      %v8698 = vunpack.c.h.b16 %v7767
      %v8699 = vunpack.c.l.b16 %v7768
      %v8700 = vunpack.c.h.b16 %v7768
      %v8701 = vunpack.c.l.b16 %v7769
      %v8702 = vunpack.c.h.b16 %v7769
      %v8703 = vunpack.c.l.b16 %v7770
      %v8704 = vunpack.c.h.b16 %v7770
      %v8705 = vunpack.c.l.b16 %v7771
      %v8706 = vunpack.c.h.b16 %v7771
      %v8707 = vunpack.c.l.b16 %v7772
      %v8708 = vunpack.c.h.b16 %v7772
      %v8709 = vunpack.c.l.b16 %v7773
      %v8710 = vunpack.c.h.b16 %v7773
      %v8711 = vunpack.c.l.b16 %v7774
      %v8712 = vunpack.c.h.b16 %v7774
      %v8713 = vunpack.c.l.b16 %v7775
      %v8714 = vunpack.c.h.b16 %v7775
      %v8715 = vunpack.c.l.b16 %v7776
      %v8716 = vunpack.c.h.b16 %v7776
      %v8717 = vunpack.c.l.b16 %v7777
      %v8718 = vunpack.c.h.b16 %v7777
      %v8719 = vunpack.c.l.b16 %v7778
      %v8720 = vunpack.c.h.b16 %v7778
      %v8721 = vunpack.c.l.b16 %v7779
      %v8722 = vunpack.c.h.b16 %v7779
      %v8723 = vunpack.c.l.b16 %v7780
      %v8724 = vunpack.c.h.b16 %v7780
      %v8725 = vunpack.c.l.b16 %v7781
      %v8726 = vunpack.c.h.b16 %v7781
      %v8727 = vunpack.c.l.b16 %v7782
      %v8728 = vunpack.c.h.b16 %v7782
      %v8729 = vunpack.c.l.b16 %v7783
      %v8730 = vunpack.c.h.b16 %v7783
      %v8731 = vunpack.c.l.b16 %v7784
      %v8732 = vunpack.c.h.b16 %v7784
      %v8733 = vunpack.c.l.b16 %v7785
      %v8734 = vunpack.c.h.b16 %v7785
      %v8735 = vunpack.c.l.b16 %v7786
      %v8736 = vunpack.c.h.b16 %v7786
      %v8737 = vunpack.c.l.b16 %v7787
      %v8738 = vunpack.c.h.b16 %v7787
      %v8739 = vunpack.c.l.b16 %v7788
      %v8740 = vunpack.c.h.b16 %v7788
      %v8741 = vunpack.c.l.b16 %v7789
      %v8742 = vunpack.c.h.b16 %v7789
      %v8743 = vunpack.c.l.b16 %v7790
      %v8744 = vunpack.c.h.b16 %v7790
      %v8745 = vunpack.c.l.b16 %v7791
      %v8746 = vunpack.c.h.b16 %v7791
      %v8747 = vunpack.c.l.b16 %v7792
      %v8748 = vunpack.c.h.b16 %v7792
      %v8749 = vunpack.c.l.b16 %v7793
      %v8750 = vunpack.c.h.b16 %v7793
      %v8751 = vunpack.c.l.b16 %v7794
      %v8752 = vunpack.c.h.b16 %v7794
      %v8753 = vunpack.c.l.b16 %v7795
      %v8754 = vunpack.c.h.b16 %v7795
      %v8755 = vunpack.c.l.b16 %v7796
      %v8756 = vunpack.c.h.b16 %v7796
      %v8757 = vunpack.c.l.b16 %v7797
      %v8758 = vunpack.c.h.b16 %v7797
      %v8759 = vunpack.c.l.b16 %v7798
      %v8760 = vunpack.c.h.b16 %v7798
      %v8761 = vunpack.c.l.b16 %v7799
      %v8762 = vunpack.c.h.b16 %v7799
      %v8763 = vunpack.c.l.b16 %v7800
      %v8764 = vunpack.c.h.b16 %v7800
      %v8765 = vunpack.c.l.b16 %v7801
      %v8766 = vunpack.c.h.b16 %v7801
      %v8767 = vunpack.c.l.b16 %v7802
      %v8768 = vunpack.c.h.b16 %v7802
      %v8769 = vunpack.c.l.b16 %v7803
      %v8770 = vunpack.c.h.b16 %v7803
      %v8771 = vunpack.c.l.b16 %v7804
      %v8772 = vunpack.c.h.b16 %v7804
      %v8773 = vunpack.c.l.b16 %v7805
      %v8774 = vunpack.c.h.b16 %v7805
      %v8775 = vunpack.c.l.b16 %v7806
      %v8776 = vunpack.c.h.b16 %v7806
      %v8777 = vunpack.c.l.b16 %v7807
      %v8778 = vunpack.c.h.b16 %v7807
      %v8779 = vunpack.c.l.b16 %v7808
      %v8780 = vunpack.c.h.b16 %v7808
      %v8781 = vunpack.c.l.b16 %v7809
      %v8782 = vunpack.c.h.b16 %v7809
      %v8783 = vunpack.c.l.b16 %v7810
      %v8784 = vunpack.c.h.b16 %v7810
      %v8785 = vunpack.c.l.b16 %v7811
      %v8786 = vunpack.c.h.b16 %v7811
      %v8787 = vunpack.c.l.b16 %v7812
      %v8788 = vunpack.c.h.b16 %v7812
      %v8789 = vunpack.c.l.b16 %v7813
      %v8790 = vunpack.c.h.b16 %v7813
      %v8791 = vunpack.c.l.b16 %v7814
      %v8792 = vunpack.c.h.b16 %v7814
      %v8793 = vunpack.c.l.b16 %v7815
      %v8794 = vunpack.c.h.b16 %v7815
      %v8795 = vunpack.c.l.b16 %v7816
      %v8796 = vunpack.c.h.b16 %v7816
      %v8797 = vunpack.c.l.b16 %v7817
      %v8798 = vunpack.c.h.b16 %v7817
      %v8799 = vunpack.c.l.b16 %v7818
      %v8800 = vunpack.c.h.b16 %v7818
      %v8801 = vunpack.c.l.b16 %v7819
      %v8802 = vunpack.c.h.b16 %v7819
      %v8803 = vunpack.c.l.b16 %v7820
      %v8804 = vunpack.c.h.b16 %v7820
      %v8805 = vunpack.c.l.b16 %v7821
      %v8806 = vunpack.c.h.b16 %v7821
      %v8807 = vunpack.c.l.b16 %v7822
      %v8808 = vunpack.c.h.b16 %v7822
      %v8809 = vunpack.c.l.b16 %v7823
      %v8810 = vunpack.c.h.b16 %v7823
      %v8811 = vunpack.c.l.b16 %v7824
      %v8812 = vunpack.c.h.b16 %v7824
      %v8813 = vunpack.c.l.b16 %v7825
      %v8814 = vunpack.c.h.b16 %v7825
      %v8815 = vunpack.c.l.b16 %v7826
      %v8816 = vunpack.c.h.b16 %v7826
      %v8817 = vunpack.c.l.b16 %v7827
      %v8818 = vunpack.c.h.b16 %v7827
      %v8819 = vunpack.c.l.b16 %v7828
      %v8820 = vunpack.c.h.b16 %v7828
      %v8821 = vunpack.c.l.b16 %v7829
      %v8822 = vunpack.c.h.b16 %v7829
      %v8823 = vunpack.c.l.b16 %v7830
      %v8824 = vunpack.c.h.b16 %v7830
      %v8825 = vunpack.c.l.b16 %v7831
      %v8826 = vunpack.c.h.b16 %v7831
      %v8827 = vunpack.c.l.b16 %v7832
      %v8828 = vunpack.c.h.b16 %v7832
      %v8829 = vunpack.c.l.b16 %v7833
      %v8830 = vunpack.c.h.b16 %v7833
      %v8831 = vunpack.c.l.b16 %v7834
      %v8832 = vunpack.c.h.b16 %v7834
      %v8833 = vunpack.c.l.b16 %v7835
      %v8834 = vunpack.c.h.b16 %v7835
      %v8835 = vunpack.c.l.b16 %v7836
      %v8836 = vunpack.c.h.b16 %v7836
      %v8837 = vunpack.c.l.b16 %v7837
      %v8838 = vunpack.c.h.b16 %v7837
      %v8839 = vunpack.c.l.b16 %v7838
      %v8840 = vunpack.c.h.b16 %v7838
      %v8841 = vunpack.c.l.b16 %v7839
      %v8842 = vunpack.c.h.b16 %v7839
      %v8843 = vunpack.c.l.b16 %v7840
      %v8844 = vunpack.c.h.b16 %v7840
      %v8845 = vunpack.c.l.b16 %v7841
      %v8846 = vunpack.c.h.b16 %v7841
      %v8847 = vunpack.c.l.b16 %v7842
      %v8848 = vunpack.c.h.b16 %v7842
      %v8849 = vunpack.c.l.b16 %v7843
      %v8850 = vunpack.c.h.b16 %v7843
      %v8851 = vunpack.c.l.b16 %v7844
      %v8852 = vunpack.c.h.b16 %v7844
      %v8853 = vunpack.c.l.b16 %v7845
      %v8854 = vunpack.c.h.b16 %v7845
      %v8855 = vunpack.c.l.b16 %v7846
      %v8856 = vunpack.c.h.b16 %v7846
      %v8857 = vunpack.c.l.b16 %v7847
      %v8858 = vunpack.c.h.b16 %v7847
      %v8859 = vunpack.c.l.b16 %v7848
      %v8860 = vunpack.c.h.b16 %v7848
      %v8861 = vunpack.c.l.b16 %v7849
      %v8862 = vunpack.c.h.b16 %v7849
      %v8863 = vunpack.c.l.b16 %v7850
      %v8864 = vunpack.c.h.b16 %v7850
      %v8865 = vunpack.c.l.b16 %v7851
      %v8866 = vunpack.c.h.b16 %v7851
      %v8867 = vunpack.c.l.b16 %v7852
      %v8868 = vunpack.c.h.b16 %v7852
      %v8869 = vunpack.c.l.b16 %v7853
      %v8870 = vunpack.c.h.b16 %v7853
      %v8871 = vunpack.c.l.b16 %v7854
      %v8872 = vunpack.c.h.b16 %v7854
      %v8873 = vunpack.c.l.b16 %v7855
      %v8874 = vunpack.c.h.b16 %v7855
      %v8875 = vunpack.c.l.b16 %v7856
      %v8876 = vunpack.c.h.b16 %v7856
      %v8877 = vunpack.c.l.b16 %v7857
      %v8878 = vunpack.c.h.b16 %v7857
      %v8879 = vunpack.c.l.b16 %v7858
      %v8880 = vunpack.c.h.b16 %v7858
      %v8881 = vunpack.c.l.b16 %v7859
      %v8882 = vunpack.c.h.b16 %v7859
      %v8883 = vunpack.c.l.b16 %v7860
      %v8884 = vunpack.c.h.b16 %v7860
      %v8885 = vunpack.c.l.b16 %v7861
      %v8886 = vunpack.c.h.b16 %v7861
      %v8887 = vunpack.c.l.b16 %v7862
      %v8888 = vunpack.c.h.b16 %v7862
      %v8889 = vunpack.c.l.b16 %v7863
      %v8890 = vunpack.c.h.b16 %v7863
      %v8891 = vunpack.c.l.b16 %v7864
      %v8892 = vunpack.c.h.b16 %v7864
      %v8893 = vunpack.c.l.b16 %v7865
      %v8894 = vunpack.c.h.b16 %v7865
      %v8895 = vunpack.c.l.b16 %v7866
      %v8896 = vunpack.c.h.b16 %v7866
      %v8897 = vunpack.c.l.b16 %v7867
      %v8898 = vunpack.c.h.b16 %v7867
      %v8899 = vunpack.c.l.b16 %v7868
      %v8900 = vunpack.c.h.b16 %v7868
      %v8901 = vunpack.c.l.b16 %v7869
      %v8902 = vunpack.c.h.b16 %v7869
      %v8903 = vunpack.c.l.b16 %v7870
      %v8904 = vunpack.c.h.b16 %v7870
      %v8905 = vunpack.c.l.b16 %v7871
      %v8906 = vunpack.c.h.b16 %v7871
      %v8907 = vunpack.c.l.b16 %v7872
      %v8908 = vunpack.c.h.b16 %v7872
      %v8909 = vunpack.c.l.b16 %v7873
      %v8910 = vunpack.c.h.b16 %v7873
      %v8911 = vunpack.c.l.b16 %v7874
      %v8912 = vunpack.c.h.b16 %v7874
      %v8913 = vunpack.c.l.b16 %v7875
      %v8914 = vunpack.c.h.b16 %v7875
      %v8915 = vunpack.c.l.b16 %v7876
      %v8916 = vunpack.c.h.b16 %v7876
      %v8917 = vunpack.c.l.b16 %v7877
      %v8918 = vunpack.c.h.b16 %v7877
      %v8919 = vunpack.c.l.b16 %v7878
      %v8920 = vunpack.c.h.b16 %v7878
      %v8921 = vunpack.c.l.b16 %v7879
      %v8922 = vunpack.c.h.b16 %v7879
      %v8923 = vunpack.c.l.b16 %v7880
      %v8924 = vunpack.c.h.b16 %v7880
      %v8925 = vunpack.c.l.b16 %v7881
      %v8926 = vunpack.c.h.b16 %v7881
      %v8927 = vunpack.c.l.b16 %v7882
      %v8928 = vunpack.c.h.b16 %v7882
      %v8929 = vunpack.c.l.b16 %v7883
      %v8930 = vunpack.c.h.b16 %v7883
      %v8931 = vunpack.c.l.b16 %v7884
      %v8932 = vunpack.c.h.b16 %v7884
      %v8933 = vunpack.c.l.b16 %v7885
      %v8934 = vunpack.c.h.b16 %v7885
      %v8935 = vunpack.c.l.b16 %v7886
      %v8936 = vunpack.c.h.b16 %v7886
      %v8937 = vunpack.c.l.b16 %v7887
      %v8938 = vunpack.c.h.b16 %v7887
      %v8939 = vunpack.c.l.b16 %v7888
      %v8940 = vunpack.c.h.b16 %v7888
      %v8941 = vunpack.c.l.b16 %v7889
      %v8942 = vunpack.c.h.b16 %v7889
      %v8943 = vunpack.c.l.b16 %v7890
      %v8944 = vunpack.c.h.b16 %v7890
      %v8945 = vunpack.c.l.b16 %v7891
      %v8946 = vunpack.c.h.b16 %v7891
      %v8947 = vunpack.c.l.b16 %v7892
      %v8948 = vunpack.c.h.b16 %v7892
      %v8949 = vunpack.c.l.b16 %v7893
      %v8950 = vunpack.c.h.b16 %v7893
      %v8951 = vunpack.c.l.b16 %v7894
      %v8952 = vunpack.c.h.b16 %v7894
      %v8953 = vunpack.c.l.b16 %v7895
      %v8954 = vunpack.c.h.b16 %v7895
      %v8955 = vunpack.c.l.b16 %v7896
      %v8956 = vunpack.c.h.b16 %v7896
      %v8957 = vunpack.c.l.b16 %v7897
      %v8958 = vunpack.c.h.b16 %v7897
      %v8959 = vunpack.c.l.b16 %v7898
      %v8960 = vunpack.c.h.b16 %v7898
      %v8961 = vunpack.c.l.b16 %v7899
      %v8962 = vunpack.c.h.b16 %v7899
      %v8963 = vunpack.c.l.b16 %v7900
      %v8964 = vunpack.c.h.b16 %v7900
      %v8965 = vunpack.c.l.b16 %v7901
      %v8966 = vunpack.c.h.b16 %v7901
      %v8967 = vunpack.c.l.b16 %v7902
      %v8968 = vunpack.c.h.b16 %v7902
      %v8969 = vunpack.c.l.b16 %v7903
      %v8970 = vunpack.c.h.b16 %v7903
      %v8971 = vunpack.c.l.b16 %v7904
      %v8972 = vunpack.c.h.b16 %v7904
      %v8973 = vunpack.c.l.b16 %v7905
      %v8974 = vunpack.c.h.b16 %v7905
      %v8975 = vunpack.c.l.b16 %v7906
      %v8976 = vunpack.c.h.b16 %v7906
      %v8977 = vunpack.c.l.b16 %v7907
      %v8978 = vunpack.c.h.b16 %v7907
      %v8979 = vunpack.c.l.b16 %v7908
      %v8980 = vunpack.c.h.b16 %v7908
      %v8981 = vunpack.c.l.b16 %v7909
      %v8982 = vunpack.c.h.b16 %v7909
      %v8983 = vunpack.c.l.b16 %v7910
      %v8984 = vunpack.c.h.b16 %v7910
      %v8985 = vunpack.c.l.b16 %v7911
      %v8986 = vunpack.c.h.b16 %v7911
      %v8987 = vunpack.c.l.b16 %v7912
      %v8988 = vunpack.c.h.b16 %v7912
      %v8989 = vunpack.c.l.b16 %v7913
      %v8990 = vunpack.c.h.b16 %v7913
      %v8991 = vunpack.c.l.b16 %v7914
      %v8992 = vunpack.c.h.b16 %v7914
      %v8993 = vunpack.c.l.b16 %v7915
      %v8994 = vunpack.c.h.b16 %v7915
      %v8995 = vunpack.c.l.b16 %v7916
      %v8996 = vunpack.c.h.b16 %v7916
      %v8997 = vunpack.c.l.b16 %v7917
      %v8998 = vunpack.c.h.b16 %v7917
      %v8999 = vunpack.c.l.b16 %v7918
      %v9000 = vunpack.c.h.b16 %v7918
      %v9001 = vunpack.c.l.b16 %v7919
      %v9002 = vunpack.c.h.b16 %v7919
      %v9003 = vunpack.c.l.b16 %v7920
      %v9004 = vunpack.c.h.b16 %v7920
      %v9005 = vunpack.c.l.b16 %v7921
      %v9006 = vunpack.c.h.b16 %v7921
      %v9007 = vunpack.c.l.b16 %v7922
      %v9008 = vunpack.c.h.b16 %v7922
      %v9009 = vunpack.c.l.b16 %v7923
      %v9010 = vunpack.c.h.b16 %v7923
      %v9011 = vunpack.c.l.b16 %v7924
      %v9012 = vunpack.c.h.b16 %v7924
      %v9013 = vunpack.c.l.b16 %v7925
      %v9014 = vunpack.c.h.b16 %v7925
      %v9015 = vunpack.c.l.b16 %v7926
      %v9016 = vunpack.c.h.b16 %v7926
      %v9017 = vunpack.c.l.b16 %v7927
      %v9018 = vunpack.c.h.b16 %v7927
      %v9019 = vunpack.c.l.b16 %v7928
      %v9020 = vunpack.c.h.b16 %v7928
      %v9021 = vunpack.c.l.b16 %v7929
      %v9022 = vunpack.c.h.b16 %v7929
      %v9023 = vunpack.c.l.b16 %v7930
      %v9024 = vunpack.c.h.b16 %v7930
      %v9025 = vunpack.c.l.b16 %v7931
      %v9026 = vunpack.c.h.b16 %v7931
      %v9027 = vunpack.c.l.b16 %v7932
      %v9028 = vunpack.c.h.b16 %v7932
      %v9029 = vunpack.c.l.b16 %v7933
      %v9030 = vunpack.c.h.b16 %v7933
      %v9031 = vunpack.c.l.b16 %v7934
      %v9032 = vunpack.c.h.b16 %v7934
      %v9033 = vunpack.c.l.b16 %v7935
      %v9034 = vunpack.c.h.b16 %v7935
      %v9035 = vunpack.c.l.b16 %v7936
      %v9036 = vunpack.c.h.b16 %v7936
      %v9037 = vunpack.c.l.b16 %v7937
      %v9038 = vunpack.c.h.b16 %v7937
      %v9039 = vunpack.c.l.b16 %v7938
      %v9040 = vunpack.c.h.b16 %v7938
      %v9041 = vunpack.c.l.b16 %v7939
      %v9042 = vunpack.c.h.b16 %v7939
      %v9043 = vunpack.c.l.b16 %v7940
      %v9044 = vunpack.c.h.b16 %v7940
      %v9045 = vunpack.c.l.b16 %v7941
      %v9046 = vunpack.c.h.b16 %v7941
      %v9047 = vunpack.c.l.b16 %v7942
      %v9048 = vunpack.c.h.b16 %v7942
      %v9049 = vunpack.c.l.b16 %v7943
      %v9050 = vunpack.c.h.b16 %v7943
      %v9051 = vunpack.c.l.b16 %v7944
      %v9052 = vunpack.c.h.b16 %v7944
      %v9053 = vunpack.c.l.b16 %v7945
      %v9054 = vunpack.c.h.b16 %v7945
      %v9055 = vunpack.c.l.b16 %v7946
      %v9056 = vunpack.c.h.b16 %v7946
      %v9057 = vunpack.c.l.b16 %v7947
      %v9058 = vunpack.c.h.b16 %v7947
      %v9059 = vunpack.c.l.b16 %v7948
      %v9060 = vunpack.c.h.b16 %v7948
      %v9061 = vunpack.c.l.b16 %v7949
      %v9062 = vunpack.c.h.b16 %v7949
      %v9063 = vunpack.c.l.b16 %v7950
      %v9064 = vunpack.c.h.b16 %v7950
      %v9065 = vunpack.c.l.b16 %v7951
      %v9066 = vunpack.c.h.b16 %v7951
      %v9067 = vunpack.c.l.b16 %v7952
      %v9068 = vunpack.c.h.b16 %v7952
      %v9069 = vunpack.c.l.b16 %v7953
      %v9070 = vunpack.c.h.b16 %v7953
      %v9071 = vunpack.c.l.b16 %v7954
      %v9072 = vunpack.c.h.b16 %v7954
      %v9073 = vunpack.c.l.b16 %v7955
      %v9074 = vunpack.c.h.b16 %v7955
      %v9075 = vunpack.c.l.b16 %v7956
      %v9076 = vunpack.c.h.b16 %v7956
      %v9077 = vunpack.c.l.b16 %v7957
      %v9078 = vunpack.c.h.b16 %v7957
      %v9079 = vunpack.c.l.b16 %v7958
      %v9080 = vunpack.c.h.b16 %v7958
      %v9081 = vunpack.c.l.b16 %v7959
      %v9082 = vunpack.c.h.b16 %v7959
      %v9083 = vunpack.c.l.b16 %v7960
      %v9084 = vunpack.c.h.b16 %v7960
      %v9085 = vunpack.c.l.b16 %v7961
      %v9086 = vunpack.c.h.b16 %v7961
      %v9087 = vunpack.c.l.b16 %v7962
      %v9088 = vunpack.c.h.b16 %v7962
      %v9089 = vunpack.c.l.b16 %v7963
      %v9090 = vunpack.c.h.b16 %v7963
      %v9091 = vunpack.c.l.b16 %v7964
      %v9092 = vunpack.c.h.b16 %v7964
      %v9093 = vunpack.c.l.b16 %v7965
      %v9094 = vunpack.c.h.b16 %v7965
      %v9095 = vunpack.c.l.b16 %v7966
      %v9096 = vunpack.c.h.b16 %v7966
      %v9097 = vunpack.c.l.b16 %v7967
      %v9098 = vunpack.c.h.b16 %v7967
      %v9099 = vunpack.c.l.b16 %v7968
      %v9100 = vunpack.c.h.b16 %v7968
      %v9101 = vunpack.c.l.b16 %v7969
      %v9102 = vunpack.c.h.b16 %v7969
      %v9103 = vunpack.c.l.b16 %v7970
      %v9104 = vunpack.c.h.b16 %v7970
      %v9105 = vunpack.c.l.b16 %v7971
      %v9106 = vunpack.c.h.b16 %v7971
      %v9107 = vunpack.c.l.b16 %v7972
      %v9108 = vunpack.c.h.b16 %v7972
      %v9109 = vunpack.c.l.b16 %v7973
      %v9110 = vunpack.c.h.b16 %v7973
      %v9111 = vunpack.c.l.b16 %v7974
      %v9112 = vunpack.c.h.b16 %v7974
      %v9113 = vunpack.c.l.b16 %v7975
      %v9114 = vunpack.c.h.b16 %v7975
      %v9115 = vunpack.c.l.b16 %v7976
      %v9116 = vunpack.c.h.b16 %v7976
      %v9117 = vunpack.c.l.b16 %v7977
      %v9118 = vunpack.c.h.b16 %v7977
      %v9119 = vunpack.c.l.b16 %v7978
      %v9120 = vunpack.c.h.b16 %v7978
      %v9121 = vunpack.c.l.b16 %v7979
      %v9122 = vunpack.c.h.b16 %v7979
      %v9123 = vunpack.c.l.b16 %v7980
      %v9124 = vunpack.c.h.b16 %v7980
      %v9125 = vunpack.c.l.b16 %v7981
      %v9126 = vunpack.c.h.b16 %v7981
      %v9127 = vunpack.c.l.b16 %v7982
      %v9128 = vunpack.c.h.b16 %v7982
      %v9129 = vunpack.c.l.b16 %v7983
      %v9130 = vunpack.c.h.b16 %v7983
      %v9131 = vunpack.c.l.b16 %v7984
      %v9132 = vunpack.c.h.b16 %v7984
      %v9133 = vunpack.c.l.b16 %v7985
      %v9134 = vunpack.c.h.b16 %v7985
      %v9135 = vunpack.c.l.b16 %v7986
      %v9136 = vunpack.c.h.b16 %v7986
      %v9137 = vunpack.c.l.b16 %v7987
      %v9138 = vunpack.c.h.b16 %v7987
      %v9139 = vunpack.c.l.b16 %v7988
      %v9140 = vunpack.c.h.b16 %v7988
      %v9141 = vunpack.c.l.b16 %v7989
      %v9142 = vunpack.c.h.b16 %v7989
      %v9143 = vpack.c.b16 %v8383, %v8375
      %v9144 = vpack.c.b16 %v8384, %v8376
      %v9145 = vpack.c.b16 %v8385, %v8377
      %v9146 = vpack.c.b16 %v8386, %v8378
      %v9147 = vpack.c.b16 %v8387, %v8379
      %v9148 = vpack.c.b16 %v8388, %v8380
      %v9149 = vpack.c.b16 %v8389, %v8381
      %v9150 = vpack.c.b16 %v8390, %v8382
      %v9151 = vpack.c.b16 %v8399, %v8391
      %v9152 = vpack.c.b16 %v8400, %v8392
      %v9153 = vpack.c.b16 %v8401, %v8393
      %v9154 = vpack.c.b16 %v8402, %v8394
      %v9155 = vpack.c.b16 %v8403, %v8395
      %v9156 = vpack.c.b16 %v8404, %v8396
      %v9157 = vpack.c.b16 %v8405, %v8397
      %v9158 = vpack.c.b16 %v8406, %v8398
      %v9159 = vpack.c.b16 %v8415, %v8407
      %v9160 = vpack.c.b16 %v8416, %v8408
      %v9161 = vpack.c.b16 %v8417, %v8409
      %v9162 = vpack.c.b16 %v8418, %v8410
      %v9163 = vpack.c.b16 %v8419, %v8411
      %v9164 = vpack.c.b16 %v8420, %v8412
      %v9165 = vpack.c.b16 %v8421, %v8413
      %v9166 = vpack.c.b16 %v8422, %v8414
      %v9167 = vpack.c.b16 %v8431, %v8423
      %v9168 = vpack.c.b16 %v8432, %v8424
      %v9169 = vpack.c.b16 %v8433, %v8425
      %v9170 = vpack.c.b16 %v8434, %v8426
      %v9171 = vpack.c.b16 %v8435, %v8427
      %v9172 = vpack.c.b16 %v8436, %v8428
      %v9173 = vpack.c.b16 %v8437, %v8429
      %v9174 = vpack.c.b16 %v8438, %v8430
      %v9175 = vpack.c.b16 %v8447, %v8439
      %v9176 = vpack.c.b16 %v8448, %v8440
      %v9177 = vpack.c.b16 %v8449, %v8441
      %v9178 = vpack.c.b16 %v8450, %v8442
      %v9179 = vpack.c.b16 %v8451, %v8443
      %v9180 = vpack.c.b16 %v8452, %v8444
      %v9181 = vpack.c.b16 %v8453, %v8445
      %v9182 = vpack.c.b16 %v8454, %v8446
      %v9183 = vpack.c.b16 %v8463, %v8455
      %v9184 = vpack.c.b16 %v8464, %v8456
      %v9185 = vpack.c.b16 %v8465, %v8457
      %v9186 = vpack.c.b16 %v8466, %v8458
      %v9187 = vpack.c.b16 %v8467, %v8459
      %v9188 = vpack.c.b16 %v8468, %v8460
      %v9189 = vpack.c.b16 %v8469, %v8461
      %v9190 = vpack.c.b16 %v8470, %v8462
      %v9191 = vpack.c.b16 %v8479, %v8471
      %v9192 = vpack.c.b16 %v8480, %v8472
      %v9193 = vpack.c.b16 %v8481, %v8473
      %v9194 = vpack.c.b16 %v8482, %v8474
      %v9195 = vpack.c.b16 %v8483, %v8475
      %v9196 = vpack.c.b16 %v8484, %v8476
      %v9197 = vpack.c.b16 %v8485, %v8477
      %v9198 = vpack.c.b16 %v8486, %v8478
      %v9199 = vpack.c.b16 %v8495, %v8487
      %v9200 = vpack.c.b16 %v8496, %v8488
      %v9201 = vpack.c.b16 %v8497, %v8489
      %v9202 = vpack.c.b16 %v8498, %v8490
      %v9203 = vpack.c.b16 %v8499, %v8491
      %v9204 = vpack.c.b16 %v8500, %v8492
      %v9205 = vpack.c.b16 %v8501, %v8493
      %v9206 = vpack.c.b16 %v8502, %v8494
      %v9207 = vpack.c.b16 %v8511, %v8503
      %v9208 = vpack.c.b16 %v8512, %v8504
      %v9209 = vpack.c.b16 %v8513, %v8505
      %v9210 = vpack.c.b16 %v8514, %v8506
      %v9211 = vpack.c.b16 %v8515, %v8507
      %v9212 = vpack.c.b16 %v8516, %v8508
      %v9213 = vpack.c.b16 %v8517, %v8509
      %v9214 = vpack.c.b16 %v8518, %v8510
      %v9215 = vpack.c.b16 %v8527, %v8519
      %v9216 = vpack.c.b16 %v8528, %v8520
      %v9217 = vpack.c.b16 %v8529, %v8521
      %v9218 = vpack.c.b16 %v8530, %v8522
      %v9219 = vpack.c.b16 %v8531, %v8523
      %v9220 = vpack.c.b16 %v8532, %v8524
      %v9221 = vpack.c.b16 %v8533, %v8525
      %v9222 = vpack.c.b16 %v8534, %v8526
      %v9223 = vpack.c.b16 %v8543, %v8535
      %v9224 = vpack.c.b16 %v8544, %v8536
      %v9225 = vpack.c.b16 %v8545, %v8537
      %v9226 = vpack.c.b16 %v8546, %v8538
      %v9227 = vpack.c.b16 %v8547, %v8539
      %v9228 = vpack.c.b16 %v8548, %v8540
      %v9229 = vpack.c.b16 %v8549, %v8541
      %v9230 = vpack.c.b16 %v8550, %v8542
      %v9231 = vpack.c.b16 %v8559, %v8551
      %v9232 = vpack.c.b16 %v8560, %v8552
      %v9233 = vpack.c.b16 %v8561, %v8553
      %v9234 = vpack.c.b16 %v8562, %v8554
      %v9235 = vpack.c.b16 %v8563, %v8555
      %v9236 = vpack.c.b16 %v8564, %v8556
      %v9237 = vpack.c.b16 %v8565, %v8557
      %v9238 = vpack.c.b16 %v8566, %v8558
      %v9239 = vpack.c.b16 %v8575, %v8567
      %v9240 = vpack.c.b16 %v8576, %v8568
      %v9241 = vpack.c.b16 %v8577, %v8569
      %v9242 = vpack.c.b16 %v8578, %v8570
      %v9243 = vpack.c.b16 %v8579, %v8571
      %v9244 = vpack.c.b16 %v8580, %v8572
      %v9245 = vpack.c.b16 %v8581, %v8573
      %v9246 = vpack.c.b16 %v8582, %v8574
      %v9247 = vpack.c.b16 %v8591, %v8583
      %v9248 = vpack.c.b16 %v8592, %v8584
      %v9249 = vpack.c.b16 %v8593, %v8585
      %v9250 = vpack.c.b16 %v8594, %v8586
      %v9251 = vpack.c.b16 %v8595, %v8587
      %v9252 = vpack.c.b16 %v8596, %v8588
      %v9253 = vpack.c.b16 %v8597, %v8589
      %v9254 = vpack.c.b16 %v8598, %v8590
      %v9255 = vpack.c.b16 %v8607, %v8599
      %v9256 = vpack.c.b16 %v8608, %v8600
      %v9257 = vpack.c.b16 %v8609, %v8601
      %v9258 = vpack.c.b16 %v8610, %v8602
      %v9259 = vpack.c.b16 %v8611, %v8603
      %v9260 = vpack.c.b16 %v8612, %v8604
      %v9261 = vpack.c.b16 %v8613, %v8605
      %v9262 = vpack.c.b16 %v8614, %v8606
      %v9263 = vpack.c.b16 %v8623, %v8615
      %v9264 = vpack.c.b16 %v8624, %v8616
      %v9265 = vpack.c.b16 %v8625, %v8617
      %v9266 = vpack.c.b16 %v8626, %v8618
      %v9267 = vpack.c.b16 %v8627, %v8619
      %v9268 = vpack.c.b16 %v8628, %v8620
      %v9269 = vpack.c.b16 %v8629, %v8621
      %v9270 = vpack.c.b16 %v8630, %v8622
      %v9271 = vpack.c.b16 %v8639, %v8631
      %v9272 = vpack.c.b16 %v8640, %v8632
      %v9273 = vpack.c.b16 %v8641, %v8633
      %v9274 = vpack.c.b16 %v8642, %v8634
      %v9275 = vpack.c.b16 %v8643, %v8635
      %v9276 = vpack.c.b16 %v8644, %v8636
      %v9277 = vpack.c.b16 %v8645, %v8637
      %v9278 = vpack.c.b16 %v8646, %v8638
      %v9279 = vpack.c.b16 %v8655, %v8647
      %v9280 = vpack.c.b16 %v8656, %v8648
      %v9281 = vpack.c.b16 %v8657, %v8649
      %v9282 = vpack.c.b16 %v8658, %v8650
      %v9283 = vpack.c.b16 %v8659, %v8651
      %v9284 = vpack.c.b16 %v8660, %v8652
      %v9285 = vpack.c.b16 %v8661, %v8653
      %v9286 = vpack.c.b16 %v8662, %v8654
      %v9287 = vpack.c.b16 %v8671, %v8663
      %v9288 = vpack.c.b16 %v8672, %v8664
      %v9289 = vpack.c.b16 %v8673, %v8665
      %v9290 = vpack.c.b16 %v8674, %v8666
      %v9291 = vpack.c.b16 %v8675, %v8667
      %v9292 = vpack.c.b16 %v8676, %v8668
      %v9293 = vpack.c.b16 %v8677, %v8669
      %v9294 = vpack.c.b16 %v8678, %v8670
      %v9295 = vpack.c.b16 %v8687, %v8679
      %v9296 = vpack.c.b16 %v8688, %v8680
      %v9297 = vpack.c.b16 %v8689, %v8681
      %v9298 = vpack.c.b16 %v8690, %v8682
      %v9299 = vpack.c.b16 %v8691, %v8683
      %v9300 = vpack.c.b16 %v8692, %v8684
      %v9301 = vpack.c.b16 %v8693, %v8685
      %v9302 = vpack.c.b16 %v8694, %v8686
      %v9303 = vpack.c.b16 %v8703, %v8695
      %v9304 = vpack.c.b16 %v8704, %v8696
      %v9305 = vpack.c.b16 %v8705, %v8697
      %v9306 = vpack.c.b16 %v8706, %v8698
      %v9307 = vpack.c.b16 %v8707, %v8699
      %v9308 = vpack.c.b16 %v8708, %v8700
      %v9309 = vpack.c.b16 %v8709, %v8701
      %v9310 = vpack.c.b16 %v8710, %v8702
      %v9311 = vpack.c.b16 %v8719, %v8711
      %v9312 = vpack.c.b16 %v8720, %v8712
      %v9313 = vpack.c.b16 %v8721, %v8713
      %v9314 = vpack.c.b16 %v8722, %v8714
      %v9315 = vpack.c.b16 %v8723, %v8715
      %v9316 = vpack.c.b16 %v8724, %v8716
      %v9317 = vpack.c.b16 %v8725, %v8717
      %v9318 = vpack.c.b16 %v8726, %v8718
      %v9319 = vpack.c.b16 %v8735, %v8727
      %v9320 = vpack.c.b16 %v8736, %v8728
      %v9321 = vpack.c.b16 %v8737, %v8729
      %v9322 = vpack.c.b16 %v8738, %v8730
      %v9323 = vpack.c.b16 %v8739, %v8731
      %v9324 = vpack.c.b16 %v8740, %v8732
      %v9325 = vpack.c.b16 %v8741, %v8733
      %v9326 = vpack.c.b16 %v8742, %v8734
      %v9327 = vpack.c.b16 %v8751, %v8743
      %v9328 = vpack.c.b16 %v8752, %v8744
      %v9329 = vpack.c.b16 %v8753, %v8745
      %v9330 = vpack.c.b16 %v8754, %v8746
      %v9331 = vpack.c.b16 %v8755, %v8747
      %v9332 = vpack.c.b16 %v8756, %v8748
      %v9333 = vpack.c.b16 %v8757, %v8749
      %v9334 = vpack.c.b16 %v8758, %v8750
      %v9335 = vpack.c.b16 %v8767, %v8759
      %v9336 = vpack.c.b16 %v8768, %v8760
      %v9337 = vpack.c.b16 %v8769, %v8761
      %v9338 = vpack.c.b16 %v8770, %v8762
      %v9339 = vpack.c.b16 %v8771, %v8763
      %v9340 = vpack.c.b16 %v8772, %v8764
      %v9341 = vpack.c.b16 %v8773, %v8765
      %v9342 = vpack.c.b16 %v8774, %v8766
      %v9343 = vpack.c.b16 %v8783, %v8775
      %v9344 = vpack.c.b16 %v8784, %v8776
      %v9345 = vpack.c.b16 %v8785, %v8777
      %v9346 = vpack.c.b16 %v8786, %v8778
      %v9347 = vpack.c.b16 %v8787, %v8779
      %v9348 = vpack.c.b16 %v8788, %v8780
      %v9349 = vpack.c.b16 %v8789, %v8781
      %v9350 = vpack.c.b16 %v8790, %v8782
      %v9351 = vpack.c.b16 %v8799, %v8791
      %v9352 = vpack.c.b16 %v8800, %v8792
      %v9353 = vpack.c.b16 %v8801, %v8793
      %v9354 = vpack.c.b16 %v8802, %v8794
      %v9355 = vpack.c.b16 %v8803, %v8795
      %v9356 = vpack.c.b16 %v8804, %v8796
      %v9357 = vpack.c.b16 %v8805, %v8797
      %v9358 = vpack.c.b16 %v8806, %v8798
      %v9359 = vpack.c.b16 %v8815, %v8807
      %v9360 = vpack.c.b16 %v8816, %v8808
      %v9361 = vpack.c.b16 %v8817, %v8809
      %v9362 = vpack.c.b16 %v8818, %v8810
      %v9363 = vpack.c.b16 %v8819, %v8811
      %v9364 = vpack.c.b16 %v8820, %v8812
      %v9365 = vpack.c.b16 %v8821, %v8813
      %v9366 = vpack.c.b16 %v8822, %v8814
      %v9367 = vpack.c.b16 %v8831, %v8823
      %v9368 = vpack.c.b16 %v8832, %v8824
      %v9369 = vpack.c.b16 %v8833, %v8825
      %v9370 = vpack.c.b16 %v8834, %v8826
      %v9371 = vpack.c.b16 %v8835, %v8827
      %v9372 = vpack.c.b16 %v8836, %v8828
      %v9373 = vpack.c.b16 %v8837, %v8829
      %v9374 = vpack.c.b16 %v8838, %v8830
      %v9375 = vpack.c.b16 %v8847, %v8839
      %v9376 = vpack.c.b16 %v8848, %v8840
      %v9377 = vpack.c.b16 %v8849, %v8841
      %v9378 = vpack.c.b16 %v8850, %v8842
      %v9379 = vpack.c.b16 %v8851, %v8843
      %v9380 = vpack.c.b16 %v8852, %v8844
      %v9381 = vpack.c.b16 %v8853, %v8845
      %v9382 = vpack.c.b16 %v8854, %v8846
      %v9383 = vpack.c.b16 %v8863, %v8855
      %v9384 = vpack.c.b16 %v8864, %v8856
      %v9385 = vpack.c.b16 %v8865, %v8857
      %v9386 = vpack.c.b16 %v8866, %v8858
      %v9387 = vpack.c.b16 %v8867, %v8859
      %v9388 = vpack.c.b16 %v8868, %v8860
      %v9389 = vpack.c.b16 %v8869, %v8861
      %v9390 = vpack.c.b16 %v8870, %v8862
      %v9391 = vpack.c.b16 %v8879, %v8871
      %v9392 = vpack.c.b16 %v8880, %v8872
      %v9393 = vpack.c.b16 %v8881, %v8873
      %v9394 = vpack.c.b16 %v8882, %v8874
      %v9395 = vpack.c.b16 %v8883, %v8875
      %v9396 = vpack.c.b16 %v8884, %v8876
      %v9397 = vpack.c.b16 %v8885, %v8877
      %v9398 = vpack.c.b16 %v8886, %v8878
      %v9399 = vpack.c.b16 %v8895, %v8887
      %v9400 = vpack.c.b16 %v8896, %v8888
      %v9401 = vpack.c.b16 %v8897, %v8889
      %v9402 = vpack.c.b16 %v8898, %v8890
      %v9403 = vpack.c.b16 %v8899, %v8891
      %v9404 = vpack.c.b16 %v8900, %v8892
      %v9405 = vpack.c.b16 %v8901, %v8893
      %v9406 = vpack.c.b16 %v8902, %v8894
      %v9407 = vpack.c.b16 %v8911, %v8903
      %v9408 = vpack.c.b16 %v8912, %v8904
      %v9409 = vpack.c.b16 %v8913, %v8905
      %v9410 = vpack.c.b16 %v8914, %v8906
      %v9411 = vpack.c.b16 %v8915, %v8907
      %v9412 = vpack.c.b16 %v8916, %v8908
      %v9413 = vpack.c.b16 %v8917, %v8909
      %v9414 = vpack.c.b16 %v8918, %v8910
      %v9415 = vpack.c.b16 %v8927, %v8919
      %v9416 = vpack.c.b16 %v8928, %v8920
      %v9417 = vpack.c.b16 %v8929, %v8921
      %v9418 = vpack.c.b16 %v8930, %v8922
      %v9419 = vpack.c.b16 %v8931, %v8923
      %v9420 = vpack.c.b16 %v8932, %v8924
      %v9421 = vpack.c.b16 %v8933, %v8925
      %v9422 = vpack.c.b16 %v8934, %v8926
      %v9423 = vpack.c.b16 %v8943, %v8935
      %v9424 = vpack.c.b16 %v8944, %v8936
      %v9425 = vpack.c.b16 %v8945, %v8937
      %v9426 = vpack.c.b16 %v8946, %v8938
      %v9427 = vpack.c.b16 %v8947, %v8939
      %v9428 = vpack.c.b16 %v8948, %v8940
      %v9429 = vpack.c.b16 %v8949, %v8941
      %v9430 = vpack.c.b16 %v8950, %v8942
      %v9431 = vpack.c.b16 %v8959, %v8951
      %v9432 = vpack.c.b16 %v8960, %v8952
      %v9433 = vpack.c.b16 %v8961, %v8953
      %v9434 = vpack.c.b16 %v8962, %v8954
      %v9435 = vpack.c.b16 %v8963, %v8955
      %v9436 = vpack.c.b16 %v8964, %v8956
      %v9437 = vpack.c.b16 %v8965, %v8957
      %v9438 = vpack.c.b16 %v8966, %v8958
      %v9439 = vpack.c.b16 %v8975, %v8967
      %v9440 = vpack.c.b16 %v8976, %v8968
      %v9441 = vpack.c.b16 %v8977, %v8969
      %v9442 = vpack.c.b16 %v8978, %v8970
      %v9443 = vpack.c.b16 %v8979, %v8971
      %v9444 = vpack.c.b16 %v8980, %v8972
      %v9445 = vpack.c.b16 %v8981, %v8973
      %v9446 = vpack.c.b16 %v8982, %v8974
      %v9447 = vpack.c.b16 %v8991, %v8983
      %v9448 = vpack.c.b16 %v8992, %v8984
      %v9449 = vpack.c.b16 %v8993, %v8985
      %v9450 = vpack.c.b16 %v8994, %v8986
      %v9451 = vpack.c.b16 %v8995, %v8987
      %v9452 = vpack.c.b16 %v8996, %v8988
      %v9453 = vpack.c.b16 %v8997, %v8989
      %v9454 = vpack.c.b16 %v8998, %v8990
      %v9455 = vpack.c.b16 %v9007, %v8999
      %v9456 = vpack.c.b16 %v9008, %v9000
      %v9457 = vpack.c.b16 %v9009, %v9001
      %v9458 = vpack.c.b16 %v9010, %v9002
      %v9459 = vpack.c.b16 %v9011, %v9003
      %v9460 = vpack.c.b16 %v9012, %v9004
      %v9461 = vpack.c.b16 %v9013, %v9005
      %v9462 = vpack.c.b16 %v9014, %v9006
      %v9463 = vpack.c.b16 %v9023, %v9015
      %v9464 = vpack.c.b16 %v9024, %v9016
      %v9465 = vpack.c.b16 %v9025, %v9017
      %v9466 = vpack.c.b16 %v9026, %v9018
      %v9467 = vpack.c.b16 %v9027, %v9019
      %v9468 = vpack.c.b16 %v9028, %v9020
      %v9469 = vpack.c.b16 %v9029, %v9021
      %v9470 = vpack.c.b16 %v9030, %v9022
      %v9471 = vpack.c.b16 %v9039, %v9031
      %v9472 = vpack.c.b16 %v9040, %v9032
      %v9473 = vpack.c.b16 %v9041, %v9033
      %v9474 = vpack.c.b16 %v9042, %v9034
      %v9475 = vpack.c.b16 %v9043, %v9035
      %v9476 = vpack.c.b16 %v9044, %v9036
      %v9477 = vpack.c.b16 %v9045, %v9037
      %v9478 = vpack.c.b16 %v9046, %v9038
      %v9479 = vpack.c.b16 %v9055, %v9047
      %v9480 = vpack.c.b16 %v9056, %v9048
      %v9481 = vpack.c.b16 %v9057, %v9049
      %v9482 = vpack.c.b16 %v9058, %v9050
      %v9483 = vpack.c.b16 %v9059, %v9051
      %v9484 = vpack.c.b16 %v9060, %v9052
      %v9485 = vpack.c.b16 %v9061, %v9053
      %v9486 = vpack.c.b16 %v9062, %v9054
      %v9487 = vpack.c.b16 %v9071, %v9063
      %v9488 = vpack.c.b16 %v9072, %v9064
      %v9489 = vpack.c.b16 %v9073, %v9065
      %v9490 = vpack.c.b16 %v9074, %v9066
      %v9491 = vpack.c.b16 %v9075, %v9067
      %v9492 = vpack.c.b16 %v9076, %v9068
      %v9493 = vpack.c.b16 %v9077, %v9069
      %v9494 = vpack.c.b16 %v9078, %v9070
      %v9495 = vpack.c.b16 %v9087, %v9079
      %v9496 = vpack.c.b16 %v9088, %v9080
      %v9497 = vpack.c.b16 %v9089, %v9081
      %v9498 = vpack.c.b16 %v9090, %v9082
      %v9499 = vpack.c.b16 %v9091, %v9083
      %v9500 = vpack.c.b16 %v9092, %v9084
      %v9501 = vpack.c.b16 %v9093, %v9085
      %v9502 = vpack.c.b16 %v9094, %v9086
      %v9503 = vpack.c.b16 %v9103, %v9095
      %v9504 = vpack.c.b16 %v9104, %v9096
      %v9505 = vpack.c.b16 %v9105, %v9097
      %v9506 = vpack.c.b16 %v9106, %v9098
      %v9507 = vpack.c.b16 %v9107, %v9099
      %v9508 = vpack.c.b16 %v9108, %v9100
      %v9509 = vpack.c.b16 %v9109, %v9101
      %v9510 = vpack.c.b16 %v9110, %v9102
      %v9511 = vpack.c.b16 %v9119, %v9111
      %v9512 = vpack.c.b16 %v9120, %v9112
      %v9513 = vpack.c.b16 %v9121, %v9113
      %v9514 = vpack.c.b16 %v9122, %v9114
      %v9515 = vpack.c.b16 %v9123, %v9115
      %v9516 = vpack.c.b16 %v9124, %v9116
      %v9517 = vpack.c.b16 %v9125, %v9117
      %v9518 = vpack.c.b16 %v9126, %v9118
      %v9519 = vpack.c.b16 %v9135, %v9127
      %v9520 = vpack.c.b16 %v9136, %v9128
      %v9521 = vpack.c.b16 %v9137, %v9129
      %v9522 = vpack.c.b16 %v9138, %v9130
      %v9523 = vpack.c.b16 %v9139, %v9131
      %v9524 = vpack.c.b16 %v9140, %v9132
      %v9525 = vpack.c.b16 %v9141, %v9133
      %v9526 = vpack.c.b16 %v9142, %v9134
      %v9912 = vlaneseq
      %v9913 = vshrl.u32 %v9912, 7
      %v9914 = vsub.s32 0, %v9913
      %v9915 = vrot.slane %v7990, %v9914
      %v9916 = vlaneseq
      %v9917 = vshrl.u32 %v9916, 7
      %v9918 = vsub.s32 1, %v9917
      %v9919 = vrot.slane %v7990, %v9918
      %v9920 = vlaneseq
      %v9921 = vshrl.u32 %v9920, 7
      %v9922 = vsub.s32 2, %v9921
      %v9923 = vrot.slane %v7990, %v9922
      %v9924 = vlaneseq
      %v9925 = vshrl.u32 %v9924, 7
      %v9926 = vsub.s32 3, %v9925
      %v9927 = vrot.slane %v7990, %v9926
      %v9928 = vlaneseq
      %v9929 = vshrl.u32 %v9928, 7
      %v9930 = vsub.s32 4, %v9929
      %v9931 = vrot.slane %v7990, %v9930
      %v9932 = vlaneseq
      %v9933 = vshrl.u32 %v9932, 7
      %v9934 = vsub.s32 5, %v9933
      %v9935 = vrot.slane %v7990, %v9934
      %v9936 = vlaneseq
      %v9937 = vshrl.u32 %v9936, 7
      %v9938 = vsub.s32 6, %v9937
      %v9939 = vrot.slane %v7990, %v9938
      %v9940 = vlaneseq
      %v9941 = vshrl.u32 %v9940, 7
      %v9942 = vsub.s32 7, %v9941
      %v9943 = vrot.slane %v7990, %v9942
      %9952 = vmatprep.subr.bf16.mxu0 %v9200
      %9953 = vmatpush1.bf16.msra.mxu0 %v9199
      %9954 = vmatprep.subr.bf16.mxu0 %v9192
      %9955 = vmatpush1.bf16.msra.mxu0 %v9191
      %9956 = vmatprep.subr.bf16.mxu0 %v9184
      %9957 = vmatpush1.bf16.msra.mxu0 %v9183
      %9958 = vmatprep.subr.bf16.mxu0 %v9176
      %9959 = vmatpush1.bf16.msra.mxu0 %v9175
      %9960 = vmatprep.subr.bf16.mxu0 %v9168
      %9961 = vmatpush1.bf16.msra.mxu0 %v9167
      %9962 = vmatprep.subr.bf16.mxu0 %v9160
      %9963 = vmatpush1.bf16.msra.mxu0 %v9159
      %9964 = vmatprep.subr.bf16.mxu0 %v9152
      %9965 = vmatpush1.bf16.msra.mxu0 %v9151
      %9966 = vmatprep.subr.bf16.mxu0 %v9144
      %9967 = vmatpush1.bf16.msra.mxu0 %v9143
      %9968 = vmatprep.subr.bf16.mxu0 %v9264
      %9969 = vmatpush2.bf16.msra.mxu0 %v9263
      %9970 = vmatprep.subr.bf16.mxu0 %v9256
      %9971 = vmatpush2.bf16.msra.mxu0 %v9255
      %9972 = vmatprep.subr.bf16.mxu0 %v9248
      %9973 = vmatpush2.bf16.msra.mxu0 %v9247
      %9974 = vmatprep.subr.bf16.mxu0 %v9240
      %9975 = vmatpush2.bf16.msra.mxu0 %v9239
      %9976 = vmatprep.subr.bf16.mxu0 %v9232
      %9977 = vmatpush2.bf16.msra.mxu0 %v9231
      %9978 = vmatprep.subr.bf16.mxu0 %v9224
      %9979 = vmatpush2.bf16.msra.mxu0 %v9223
      %9980 = vmatprep.subr.bf16.mxu0 %v9216
      %9981 = vmatpush2.bf16.msra.mxu0 %v9215
      %9982 = vmatprep.subr.bf16.mxu0 %v9208
      %9983 = vmatpush2.bf16.msra.mxu0 %v9207
      %9984 = vmatprep.mubr.bf16.mxu0 %v7509
      %9985 = vmatmul.mubr.bf16.gmra.mxu0 %v7508
      %v9986 = vpop.f32.mrf.mxu0
      %v9987 = vadd.f32 %v9915, %v9986
      %v9988 = vpop.f32.mrf.mxu0
      %v9989 = vadd.f32 %v9919, %v9988
      %v9990 = vpop.f32.mrf.mxu0
      %v9991 = vpop.f32.mrf.mxu0
      %9992 = vdwg.mxu0
      %9993 = vmatprep.subr.bf16.mxu0 %v9328
      %9994 = vmatpush1.bf16.msra.mxu0 %v9327
      %9995 = vmatprep.subr.bf16.mxu0 %v9320
      %9996 = vmatpush1.bf16.msra.mxu0 %v9319
      %9997 = vmatprep.subr.bf16.mxu0 %v9312
      %9998 = vmatpush1.bf16.msra.mxu0 %v9311
      %9999 = vmatprep.subr.bf16.mxu0 %v9304
      %10000 = vmatpush1.bf16.msra.mxu0 %v9303
      %10001 = vmatprep.subr.bf16.mxu0 %v9296
      %10002 = vmatpush1.bf16.msra.mxu0 %v9295
      %10003 = vmatprep.subr.bf16.mxu0 %v9288
      %10004 = vmatpush1.bf16.msra.mxu0 %v9287
      %10005 = vmatprep.subr.bf16.mxu0 %v9280
      %10006 = vmatpush1.bf16.msra.mxu0 %v9279
      %10007 = vmatprep.subr.bf16.mxu0 %v9272
      %10008 = vmatpush1.bf16.msra.mxu0 %v9271
      %10009 = vmatprep.subr.bf16.mxu0 %v9392
      %10010 = vmatpush2.bf16.msra.mxu0 %v9391
      %10011 = vmatprep.subr.bf16.mxu0 %v9384
      %10012 = vmatpush2.bf16.msra.mxu0 %v9383
      %10013 = vmatprep.subr.bf16.mxu0 %v9376
      %10014 = vmatpush2.bf16.msra.mxu0 %v9375
      %10015 = vmatprep.subr.bf16.mxu0 %v9368
      %10016 = vmatpush2.bf16.msra.mxu0 %v9367
      %10017 = vmatprep.subr.bf16.mxu0 %v9360
      %10018 = vmatpush2.bf16.msra.mxu0 %v9359
      %10019 = vmatprep.subr.bf16.mxu0 %v9352
      %10020 = vmatpush2.bf16.msra.mxu0 %v9351
      %10021 = vmatprep.subr.bf16.mxu0 %v9344
      %10022 = vmatpush2.bf16.msra.mxu0 %v9343
      %10023 = vmatprep.subr.bf16.mxu0 %v9336
      %10024 = vmatpush2.bf16.msra.mxu0 %v9335
      %10025 = vmatprep.mubr.bf16.mxu0 %v7557
      %10026 = vmatmul.mubr.bf16.gmra.mxu0 %v7556
      %v10027 = vpop.f32.mrf.mxu0
      %v10028 = vadd.f32 %v9987, %v10027
      %v10029 = vpop.f32.mrf.mxu0
      %v10030 = vadd.f32 %v9989, %v10029
      %v10031 = vpop.f32.mrf.mxu0
      %v10032 = vpop.f32.mrf.mxu0
      %10033 = vdwg.mxu0
      %10034 = vmatprep.subr.bf16.mxu0 %v9456
      %10035 = vmatpush1.bf16.msra.mxu0 %v9455
      %10036 = vmatprep.subr.bf16.mxu0 %v9448
      %10037 = vmatpush1.bf16.msra.mxu0 %v9447
      %10038 = vmatprep.subr.bf16.mxu0 %v9440
      %10039 = vmatpush1.bf16.msra.mxu0 %v9439
      %10040 = vmatprep.subr.bf16.mxu0 %v9432
      %10041 = vmatpush1.bf16.msra.mxu0 %v9431
      %10042 = vmatprep.subr.bf16.mxu0 %v9424
      %10043 = vmatpush1.bf16.msra.mxu0 %v9423
      %10044 = vmatprep.subr.bf16.mxu0 %v9416
      %10045 = vmatpush1.bf16.msra.mxu0 %v9415
      %10046 = vmatprep.subr.bf16.mxu0 %v9408
      %10047 = vmatpush1.bf16.msra.mxu0 %v9407
      %10048 = vmatprep.subr.bf16.mxu0 %v9400
      %10049 = vmatpush1.bf16.msra.mxu0 %v9399
      %10050 = vmatprep.subr.bf16.mxu0 %v9520
      %10051 = vmatpush2.bf16.msra.mxu0 %v9519
      %10052 = vmatprep.subr.bf16.mxu0 %v9512
      %10053 = vmatpush2.bf16.msra.mxu0 %v9511
      %10054 = vmatprep.subr.bf16.mxu0 %v9504
      %10055 = vmatpush2.bf16.msra.mxu0 %v9503
      %10056 = vmatprep.subr.bf16.mxu0 %v9496
      %10057 = vmatpush2.bf16.msra.mxu0 %v9495
      %10058 = vmatprep.subr.bf16.mxu0 %v9488
      %10059 = vmatpush2.bf16.msra.mxu0 %v9487
      %10060 = vmatprep.subr.bf16.mxu0 %v9480
      %10061 = vmatpush2.bf16.msra.mxu0 %v9479
      %10062 = vmatprep.subr.bf16.mxu0 %v9472
      %10063 = vmatpush2.bf16.msra.mxu0 %v9471
      %10064 = vmatprep.subr.bf16.mxu0 %v9464
      %10065 = vmatpush2.bf16.msra.mxu0 %v9463
      %10066 = vmatprep.mubr.bf16.mxu0 %v7605
      %10067 = vmatmul.mubr.bf16.gmra.mxu0 %v7604
      %v10068 = vpop.f32.mrf.mxu0
      %v10069 = vadd.f32 %v10028, %v10068
      %v10070 = vpop.f32.mrf.mxu0
      %v10071 = vadd.f32 %v10030, %v10070
      %v10072 = vpop.f32.mrf.mxu0
      %v10073 = vpop.f32.mrf.mxu0
      %10074 = vdwg.mxu0
      %10075 = vmatprep.subr.bf16.mxu0 %v9202
      %10076 = vmatpush1.bf16.msra.mxu0 %v9201
      %10077 = vmatprep.subr.bf16.mxu0 %v9194
      %10078 = vmatpush1.bf16.msra.mxu0 %v9193
      %10079 = vmatprep.subr.bf16.mxu0 %v9186
      %10080 = vmatpush1.bf16.msra.mxu0 %v9185
      %10081 = vmatprep.subr.bf16.mxu0 %v9178
      %10082 = vmatpush1.bf16.msra.mxu0 %v9177
      %10083 = vmatprep.subr.bf16.mxu0 %v9170
      %10084 = vmatpush1.bf16.msra.mxu0 %v9169
      %10085 = vmatprep.subr.bf16.mxu0 %v9162
      %10086 = vmatpush1.bf16.msra.mxu0 %v9161
      %10087 = vmatprep.subr.bf16.mxu0 %v9154
      %10088 = vmatpush1.bf16.msra.mxu0 %v9153
      %10089 = vmatprep.subr.bf16.mxu0 %v9146
      %10090 = vmatpush1.bf16.msra.mxu0 %v9145
      %10091 = vmatprep.subr.bf16.mxu0 %v9266
      %10092 = vmatpush2.bf16.msra.mxu0 %v9265
      %10093 = vmatprep.subr.bf16.mxu0 %v9258
      %10094 = vmatpush2.bf16.msra.mxu0 %v9257
      %10095 = vmatprep.subr.bf16.mxu0 %v9250
      %10096 = vmatpush2.bf16.msra.mxu0 %v9249
      %10097 = vmatprep.subr.bf16.mxu0 %v9242
      %10098 = vmatpush2.bf16.msra.mxu0 %v9241
      %10099 = vmatprep.subr.bf16.mxu0 %v9234
      %10100 = vmatpush2.bf16.msra.mxu0 %v9233
      %10101 = vmatprep.subr.bf16.mxu0 %v9226
      %10102 = vmatpush2.bf16.msra.mxu0 %v9225
      %10103 = vmatprep.subr.bf16.mxu0 %v9218
      %10104 = vmatpush2.bf16.msra.mxu0 %v9217
      %10105 = vmatprep.subr.bf16.mxu0 %v9210
      %10106 = vmatpush2.bf16.msra.mxu0 %v9209
      %10107 = vmatprep.mubr.bf16.mxu0 %v7509
      %10108 = vmatmul.mubr.bf16.gmra.mxu0 %v7508
      %v10109 = vpop.f32.mrf.mxu0
      %v10110 = vadd.f32 %v9923, %v10109
      %v10111 = vpop.f32.mrf.mxu0
      %v10112 = vadd.f32 %v9927, %v10111
      %v10113 = vpop.f32.mrf.mxu0
      %v10114 = vpop.f32.mrf.mxu0
      %10115 = vdwg.mxu0
      %10116 = vmatprep.subr.bf16.mxu0 %v9330
      %10117 = vmatpush1.bf16.msra.mxu0 %v9329
      %10118 = vmatprep.subr.bf16.mxu0 %v9322
      %10119 = vmatpush1.bf16.msra.mxu0 %v9321
      %10120 = vmatprep.subr.bf16.mxu0 %v9314
      %10121 = vmatpush1.bf16.msra.mxu0 %v9313
      %10122 = vmatprep.subr.bf16.mxu0 %v9306
      %10123 = vmatpush1.bf16.msra.mxu0 %v9305
      %10124 = vmatprep.subr.bf16.mxu0 %v9298
      %10125 = vmatpush1.bf16.msra.mxu0 %v9297
      %10126 = vmatprep.subr.bf16.mxu0 %v9290
      %10127 = vmatpush1.bf16.msra.mxu0 %v9289
      %10128 = vmatprep.subr.bf16.mxu0 %v9282
      %10129 = vmatpush1.bf16.msra.mxu0 %v9281
      %10130 = vmatprep.subr.bf16.mxu0 %v9274
      %10131 = vmatpush1.bf16.msra.mxu0 %v9273
      %10132 = vmatprep.subr.bf16.mxu0 %v9394
      %10133 = vmatpush2.bf16.msra.mxu0 %v9393
      %10134 = vmatprep.subr.bf16.mxu0 %v9386
      %10135 = vmatpush2.bf16.msra.mxu0 %v9385
      %10136 = vmatprep.subr.bf16.mxu0 %v9378
      %10137 = vmatpush2.bf16.msra.mxu0 %v9377
      %10138 = vmatprep.subr.bf16.mxu0 %v9370
      %10139 = vmatpush2.bf16.msra.mxu0 %v9369
      %10140 = vmatprep.subr.bf16.mxu0 %v9362
      %10141 = vmatpush2.bf16.msra.mxu0 %v9361
      %10142 = vmatprep.subr.bf16.mxu0 %v9354
      %10143 = vmatpush2.bf16.msra.mxu0 %v9353
      %10144 = vmatprep.subr.bf16.mxu0 %v9346
      %10145 = vmatpush2.bf16.msra.mxu0 %v9345
      %10146 = vmatprep.subr.bf16.mxu0 %v9338
      %10147 = vmatpush2.bf16.msra.mxu0 %v9337
      %10148 = vmatprep.mubr.bf16.mxu0 %v7557
      %10149 = vmatmul.mubr.bf16.gmra.mxu0 %v7556
      %v10150 = vpop.f32.mrf.mxu0
      %v10151 = vadd.f32 %v10110, %v10150
      %v10152 = vpop.f32.mrf.mxu0
      %v10153 = vadd.f32 %v10112, %v10152
      %v10154 = vpop.f32.mrf.mxu0
      %v10155 = vpop.f32.mrf.mxu0
      %10156 = vdwg.mxu0
      %10157 = vmatprep.subr.bf16.mxu0 %v9458
      %10158 = vmatpush1.bf16.msra.mxu0 %v9457
      %10159 = vmatprep.subr.bf16.mxu0 %v9450
      %10160 = vmatpush1.bf16.msra.mxu0 %v9449
      %10161 = vmatprep.subr.bf16.mxu0 %v9442
      %10162 = vmatpush1.bf16.msra.mxu0 %v9441
      %10163 = vmatprep.subr.bf16.mxu0 %v9434
      %10164 = vmatpush1.bf16.msra.mxu0 %v9433
      %10165 = vmatprep.subr.bf16.mxu0 %v9426
      %10166 = vmatpush1.bf16.msra.mxu0 %v9425
      %10167 = vmatprep.subr.bf16.mxu0 %v9418
      %10168 = vmatpush1.bf16.msra.mxu0 %v9417
      %10169 = vmatprep.subr.bf16.mxu0 %v9410
      %10170 = vmatpush1.bf16.msra.mxu0 %v9409
      %10171 = vmatprep.subr.bf16.mxu0 %v9402
      %10172 = vmatpush1.bf16.msra.mxu0 %v9401
      %10173 = vmatprep.subr.bf16.mxu0 %v9522
      %10174 = vmatpush2.bf16.msra.mxu0 %v9521
      %10175 = vmatprep.subr.bf16.mxu0 %v9514
      %10176 = vmatpush2.bf16.msra.mxu0 %v9513
      %10177 = vmatprep.subr.bf16.mxu0 %v9506
      %10178 = vmatpush2.bf16.msra.mxu0 %v9505
      %10179 = vmatprep.subr.bf16.mxu0 %v9498
      %10180 = vmatpush2.bf16.msra.mxu0 %v9497
      %10181 = vmatprep.subr.bf16.mxu0 %v9490
      %10182 = vmatpush2.bf16.msra.mxu0 %v9489
      %10183 = vmatprep.subr.bf16.mxu0 %v9482
      %10184 = vmatpush2.bf16.msra.mxu0 %v9481
      %10185 = vmatprep.subr.bf16.mxu0 %v9474
      %10186 = vmatpush2.bf16.msra.mxu0 %v9473
      %10187 = vmatprep.subr.bf16.mxu0 %v9466
      %10188 = vmatpush2.bf16.msra.mxu0 %v9465
      %10189 = vmatprep.mubr.bf16.mxu0 %v7605
      %10190 = vmatmul.mubr.bf16.gmra.mxu0 %v7604
      %v10191 = vpop.f32.mrf.mxu0
      %v10192 = vadd.f32 %v10151, %v10191
      %v10193 = vpop.f32.mrf.mxu0
      %v10194 = vadd.f32 %v10153, %v10193
      %v10195 = vpop.f32.mrf.mxu0
      %v10196 = vpop.f32.mrf.mxu0
      %10197 = vdwg.mxu0
      %10198 = vmatprep.subr.bf16.mxu0 %v9204
      %10199 = vmatpush1.bf16.msra.mxu0 %v9203
      %10200 = vmatprep.subr.bf16.mxu0 %v9196
      %10201 = vmatpush1.bf16.msra.mxu0 %v9195
      %10202 = vmatprep.subr.bf16.mxu0 %v9188
      %10203 = vmatpush1.bf16.msra.mxu0 %v9187
      %10204 = vmatprep.subr.bf16.mxu0 %v9180
      %10205 = vmatpush1.bf16.msra.mxu0 %v9179
      %10206 = vmatprep.subr.bf16.mxu0 %v9172
      %10207 = vmatpush1.bf16.msra.mxu0 %v9171
      %10208 = vmatprep.subr.bf16.mxu0 %v9164
      %10209 = vmatpush1.bf16.msra.mxu0 %v9163
      %10210 = vmatprep.subr.bf16.mxu0 %v9156
      %10211 = vmatpush1.bf16.msra.mxu0 %v9155
      %10212 = vmatprep.subr.bf16.mxu0 %v9148
      %10213 = vmatpush1.bf16.msra.mxu0 %v9147
      %10214 = vmatprep.subr.bf16.mxu0 %v9268
      %10215 = vmatpush2.bf16.msra.mxu0 %v9267
      %10216 = vmatprep.subr.bf16.mxu0 %v9260
      %10217 = vmatpush2.bf16.msra.mxu0 %v9259
      %10218 = vmatprep.subr.bf16.mxu0 %v9252
      %10219 = vmatpush2.bf16.msra.mxu0 %v9251
      %10220 = vmatprep.subr.bf16.mxu0 %v9244
      %10221 = vmatpush2.bf16.msra.mxu0 %v9243
      %10222 = vmatprep.subr.bf16.mxu0 %v9236
      %10223 = vmatpush2.bf16.msra.mxu0 %v9235
      %10224 = vmatprep.subr.bf16.mxu0 %v9228
      %10225 = vmatpush2.bf16.msra.mxu0 %v9227
      %10226 = vmatprep.subr.bf16.mxu0 %v9220
      %10227 = vmatpush2.bf16.msra.mxu0 %v9219
      %10228 = vmatprep.subr.bf16.mxu0 %v9212
      %10229 = vmatpush2.bf16.msra.mxu0 %v9211
      %10230 = vmatprep.mubr.bf16.mxu0 %v7509
      %10231 = vmatmul.mubr.bf16.gmra.mxu0 %v7508
      %v10232 = vpop.f32.mrf.mxu0
      %v10233 = vadd.f32 %v9931, %v10232
      %v10234 = vpop.f32.mrf.mxu0
      %v10235 = vadd.f32 %v9935, %v10234
      %v10236 = vpop.f32.mrf.mxu0
      %v10237 = vpop.f32.mrf.mxu0
      %10238 = vdwg.mxu0
      %10239 = vmatprep.subr.bf16.mxu0 %v9332
      %10240 = vmatpush1.bf16.msra.mxu0 %v9331
      %10241 = vmatprep.subr.bf16.mxu0 %v9324
      %10242 = vmatpush1.bf16.msra.mxu0 %v9323
      %10243 = vmatprep.subr.bf16.mxu0 %v9316
      %10244 = vmatpush1.bf16.msra.mxu0 %v9315
      %10245 = vmatprep.subr.bf16.mxu0 %v9308
      %10246 = vmatpush1.bf16.msra.mxu0 %v9307
      %10247 = vmatprep.subr.bf16.mxu0 %v9300
      %10248 = vmatpush1.bf16.msra.mxu0 %v9299
      %10249 = vmatprep.subr.bf16.mxu0 %v9292
      %10250 = vmatpush1.bf16.msra.mxu0 %v9291
      %10251 = vmatprep.subr.bf16.mxu0 %v9284
      %10252 = vmatpush1.bf16.msra.mxu0 %v9283
      %10253 = vmatprep.subr.bf16.mxu0 %v9276
      %10254 = vmatpush1.bf16.msra.mxu0 %v9275
      %10255 = vmatprep.subr.bf16.mxu0 %v9396
      %10256 = vmatpush2.bf16.msra.mxu0 %v9395
      %10257 = vmatprep.subr.bf16.mxu0 %v9388
      %10258 = vmatpush2.bf16.msra.mxu0 %v9387
      %10259 = vmatprep.subr.bf16.mxu0 %v9380
      %10260 = vmatpush2.bf16.msra.mxu0 %v9379
      %10261 = vmatprep.subr.bf16.mxu0 %v9372
      %10262 = vmatpush2.bf16.msra.mxu0 %v9371
      %10263 = vmatprep.subr.bf16.mxu0 %v9364
      %10264 = vmatpush2.bf16.msra.mxu0 %v9363
      %10265 = vmatprep.subr.bf16.mxu0 %v9356
      %10266 = vmatpush2.bf16.msra.mxu0 %v9355
      %10267 = vmatprep.subr.bf16.mxu0 %v9348
      %10268 = vmatpush2.bf16.msra.mxu0 %v9347
      %10269 = vmatprep.subr.bf16.mxu0 %v9340
      %10270 = vmatpush2.bf16.msra.mxu0 %v9339
      %10271 = vmatprep.mubr.bf16.mxu0 %v7557
      %10272 = vmatmul.mubr.bf16.gmra.mxu0 %v7556
      %v10273 = vpop.f32.mrf.mxu0
      %v10274 = vadd.f32 %v10233, %v10273
      %v10275 = vpop.f32.mrf.mxu0
      %v10276 = vadd.f32 %v10235, %v10275
      %v10277 = vpop.f32.mrf.mxu0
      %v10278 = vpop.f32.mrf.mxu0
      %10279 = vdwg.mxu0
      %10280 = vmatprep.subr.bf16.mxu0 %v9460
      %10281 = vmatpush1.bf16.msra.mxu0 %v9459
      %10282 = vmatprep.subr.bf16.mxu0 %v9452
      %10283 = vmatpush1.bf16.msra.mxu0 %v9451
      %10284 = vmatprep.subr.bf16.mxu0 %v9444
      %10285 = vmatpush1.bf16.msra.mxu0 %v9443
      %10286 = vmatprep.subr.bf16.mxu0 %v9436
      %10287 = vmatpush1.bf16.msra.mxu0 %v9435
      %10288 = vmatprep.subr.bf16.mxu0 %v9428
      %10289 = vmatpush1.bf16.msra.mxu0 %v9427
      %10290 = vmatprep.subr.bf16.mxu0 %v9420
      %10291 = vmatpush1.bf16.msra.mxu0 %v9419
      %10292 = vmatprep.subr.bf16.mxu0 %v9412
      %10293 = vmatpush1.bf16.msra.mxu0 %v9411
      %10294 = vmatprep.subr.bf16.mxu0 %v9404
      %10295 = vmatpush1.bf16.msra.mxu0 %v9403
      %10296 = vmatprep.subr.bf16.mxu0 %v9524
      %10297 = vmatpush2.bf16.msra.mxu0 %v9523
      %10298 = vmatprep.subr.bf16.mxu0 %v9516
      %10299 = vmatpush2.bf16.msra.mxu0 %v9515
      %10300 = vmatprep.subr.bf16.mxu0 %v9508
      %10301 = vmatpush2.bf16.msra.mxu0 %v9507
      %10302 = vmatprep.subr.bf16.mxu0 %v9500
      %10303 = vmatpush2.bf16.msra.mxu0 %v9499
      %10304 = vmatprep.subr.bf16.mxu0 %v9492
      %10305 = vmatpush2.bf16.msra.mxu0 %v9491
      %10306 = vmatprep.subr.bf16.mxu0 %v9484
      %10307 = vmatpush2.bf16.msra.mxu0 %v9483
      %10308 = vmatprep.subr.bf16.mxu0 %v9476
      %10309 = vmatpush2.bf16.msra.mxu0 %v9475
      %10310 = vmatprep.subr.bf16.mxu0 %v9468
      %10311 = vmatpush2.bf16.msra.mxu0 %v9467
      %10312 = vmatprep.mubr.bf16.mxu0 %v7605
      %10313 = vmatmul.mubr.bf16.gmra.mxu0 %v7604
      %v10314 = vpop.f32.mrf.mxu0
      %v10315 = vadd.f32 %v10274, %v10314
      %v10316 = vpop.f32.mrf.mxu0
      %v10317 = vadd.f32 %v10276, %v10316
      %v10318 = vpop.f32.mrf.mxu0
      %v10319 = vpop.f32.mrf.mxu0
      %10320 = vdwg.mxu0
      %10321 = vmatprep.subr.bf16.mxu0 %v9206
      %10322 = vmatpush1.bf16.msra.mxu0 %v9205
      %10323 = vmatprep.subr.bf16.mxu0 %v9198
      %10324 = vmatpush1.bf16.msra.mxu0 %v9197
      %10325 = vmatprep.subr.bf16.mxu0 %v9190
      %10326 = vmatpush1.bf16.msra.mxu0 %v9189
      %10327 = vmatprep.subr.bf16.mxu0 %v9182
      %10328 = vmatpush1.bf16.msra.mxu0 %v9181
      %10329 = vmatprep.subr.bf16.mxu0 %v9174
      %10330 = vmatpush1.bf16.msra.mxu0 %v9173
      %10331 = vmatprep.subr.bf16.mxu0 %v9166
      %10332 = vmatpush1.bf16.msra.mxu0 %v9165
      %10333 = vmatprep.subr.bf16.mxu0 %v9158
      %10334 = vmatpush1.bf16.msra.mxu0 %v9157
      %10335 = vmatprep.subr.bf16.mxu0 %v9150
      %10336 = vmatpush1.bf16.msra.mxu0 %v9149
      %10337 = vmatprep.subr.bf16.mxu0 %v9270
      %10338 = vmatpush2.bf16.msra.mxu0 %v9269
      %10339 = vmatprep.subr.bf16.mxu0 %v9262
      %10340 = vmatpush2.bf16.msra.mxu0 %v9261
      %10341 = vmatprep.subr.bf16.mxu0 %v9254
      %10342 = vmatpush2.bf16.msra.mxu0 %v9253
      %10343 = vmatprep.subr.bf16.mxu0 %v9246
      %10344 = vmatpush2.bf16.msra.mxu0 %v9245
      %10345 = vmatprep.subr.bf16.mxu0 %v9238
      %10346 = vmatpush2.bf16.msra.mxu0 %v9237
      %10347 = vmatprep.subr.bf16.mxu0 %v9230
      %10348 = vmatpush2.bf16.msra.mxu0 %v9229
      %10349 = vmatprep.subr.bf16.mxu0 %v9222
      %10350 = vmatpush2.bf16.msra.mxu0 %v9221
      %10351 = vmatprep.subr.bf16.mxu0 %v9214
      %10352 = vmatpush2.bf16.msra.mxu0 %v9213
      %10353 = vmatprep.mubr.bf16.mxu0 %v7509
      %10354 = vmatmul.mubr.bf16.gmra.mxu0 %v7508
      %v10355 = vpop.f32.mrf.mxu0
      %v10356 = vadd.f32 %v9939, %v10355
      %v10357 = vpop.f32.mrf.mxu0
      %v10358 = vadd.f32 %v9943, %v10357
      %v10359 = vpop.f32.mrf.mxu0
      %v10360 = vpop.f32.mrf.mxu0
      %10361 = vdwg.mxu0
      %10362 = vmatprep.subr.bf16.mxu0 %v9334
      %10363 = vmatpush1.bf16.msra.mxu0 %v9333
      %10364 = vmatprep.subr.bf16.mxu0 %v9326
      %10365 = vmatpush1.bf16.msra.mxu0 %v9325
      %10366 = vmatprep.subr.bf16.mxu0 %v9318
      %10367 = vmatpush1.bf16.msra.mxu0 %v9317
      %10368 = vmatprep.subr.bf16.mxu0 %v9310
      %10369 = vmatpush1.bf16.msra.mxu0 %v9309
      %10370 = vmatprep.subr.bf16.mxu0 %v9302
      %10371 = vmatpush1.bf16.msra.mxu0 %v9301
      %10372 = vmatprep.subr.bf16.mxu0 %v9294
      %10373 = vmatpush1.bf16.msra.mxu0 %v9293
      %10374 = vmatprep.subr.bf16.mxu0 %v9286
      %10375 = vmatpush1.bf16.msra.mxu0 %v9285
      %10376 = vmatprep.subr.bf16.mxu0 %v9278
      %10377 = vmatpush1.bf16.msra.mxu0 %v9277
      %10378 = vmatprep.subr.bf16.mxu0 %v9398
      %10379 = vmatpush2.bf16.msra.mxu0 %v9397
      %10380 = vmatprep.subr.bf16.mxu0 %v9390
      %10381 = vmatpush2.bf16.msra.mxu0 %v9389
      %10382 = vmatprep.subr.bf16.mxu0 %v9382
      %10383 = vmatpush2.bf16.msra.mxu0 %v9381
      %10384 = vmatprep.subr.bf16.mxu0 %v9374
      %10385 = vmatpush2.bf16.msra.mxu0 %v9373
      %10386 = vmatprep.subr.bf16.mxu0 %v9366
      %10387 = vmatpush2.bf16.msra.mxu0 %v9365
      %10388 = vmatprep.subr.bf16.mxu0 %v9358
      %10389 = vmatpush2.bf16.msra.mxu0 %v9357
      %10390 = vmatprep.subr.bf16.mxu0 %v9350
      %10391 = vmatpush2.bf16.msra.mxu0 %v9349
      %10392 = vmatprep.subr.bf16.mxu0 %v9342
      %10393 = vmatpush2.bf16.msra.mxu0 %v9341
      %10394 = vmatprep.mubr.bf16.mxu0 %v7557
      %10395 = vmatmul.mubr.bf16.gmra.mxu0 %v7556
      %v10396 = vpop.f32.mrf.mxu0
      %v10397 = vadd.f32 %v10356, %v10396
      %v10398 = vpop.f32.mrf.mxu0
      %v10399 = vadd.f32 %v10358, %v10398
      %v10400 = vpop.f32.mrf.mxu0
      %v10401 = vpop.f32.mrf.mxu0
      %10402 = vdwg.mxu0
      %10403 = vmatprep.subr.bf16.mxu0 %v9462
      %10404 = vmatpush1.bf16.msra.mxu0 %v9461
      %10405 = vmatprep.subr.bf16.mxu0 %v9454
      %10406 = vmatpush1.bf16.msra.mxu0 %v9453
      %10407 = vmatprep.subr.bf16.mxu0 %v9446
      %10408 = vmatpush1.bf16.msra.mxu0 %v9445
      %10409 = vmatprep.subr.bf16.mxu0 %v9438
      %10410 = vmatpush1.bf16.msra.mxu0 %v9437
      %10411 = vmatprep.subr.bf16.mxu0 %v9430
      %10412 = vmatpush1.bf16.msra.mxu0 %v9429
      %10413 = vmatprep.subr.bf16.mxu0 %v9422
      %10414 = vmatpush1.bf16.msra.mxu0 %v9421
      %10415 = vmatprep.subr.bf16.mxu0 %v9414
      %10416 = vmatpush1.bf16.msra.mxu0 %v9413
      %10417 = vmatprep.subr.bf16.mxu0 %v9406
      %10418 = vmatpush1.bf16.msra.mxu0 %v9405
      %10419 = vmatprep.subr.bf16.mxu0 %v9526
      %10420 = vmatpush2.bf16.msra.mxu0 %v9525
      %10421 = vmatprep.subr.bf16.mxu0 %v9518
      %10422 = vmatpush2.bf16.msra.mxu0 %v9517
      %10423 = vmatprep.subr.bf16.mxu0 %v9510
      %10424 = vmatpush2.bf16.msra.mxu0 %v9509
      %10425 = vmatprep.subr.bf16.mxu0 %v9502
      %10426 = vmatpush2.bf16.msra.mxu0 %v9501
      %10427 = vmatprep.subr.bf16.mxu0 %v9494
      %10428 = vmatpush2.bf16.msra.mxu0 %v9493
      %10429 = vmatprep.subr.bf16.mxu0 %v9486
      %10430 = vmatpush2.bf16.msra.mxu0 %v9485
      %10431 = vmatprep.subr.bf16.mxu0 %v9478
      %10432 = vmatpush2.bf16.msra.mxu0 %v9477
      %10433 = vmatprep.subr.bf16.mxu0 %v9470
      %10434 = vmatpush2.bf16.msra.mxu0 %v9469
      %10435 = vmatprep.mubr.bf16.mxu0 %v7605
      %10436 = vmatmul.mubr.bf16.gmra.mxu0 %v7604
      %v10437 = vpop.f32.mrf.mxu0
      %v10438 = vadd.f32 %v10397, %v10437
      %v10439 = vpop.f32.mrf.mxu0
      %v10440 = vadd.f32 %v10399, %v10439
      %v10441 = vpop.f32.mrf.mxu0
      %v10442 = vpop.f32.mrf.mxu0
      %10443 = vdwg.mxu0
      %v10444 = vld [vmem:[%s12] sm:$0xff]
      %v10445 = vld [vmem:[%s13] sm:$0xff]
      %v10446 = vsel %vm7458, %v10069, 0.0
      %v10447 = vsel %vm7458, %v10071, 0.0
      %v10448 = vadd.f32 %v10446, %v10447
      %v10449 = vsel %vm7458, %v10192, 0.0
      %v10450 = vadd.f32 %v10448, %v10449
      %v10451 = vsel %vm7458, %v10194, 0.0
      %v10452 = vadd.f32 %v10450, %v10451
      %10453 = vadd.xlane.f32.xlu0 %v10452
      %v10454 = vpop.xlane.xlu0 %10453
      %v10455 = vrcp.pop 512.0
      %v10456 = vmul.f32 %v10454, %v10455
      %v10457 = vsub.f32 %v10069, %v10456
      %v10458 = vsub.f32 %v10071, %v10456
      %v10459 = vsub.f32 %v10192, %v10456
      %v10460 = vsub.f32 %v10194, %v10456
      %v10461 = vmul.f32 %v10457, %v10457
      %v10462 = vmul.f32 %v10458, %v10458
      %v10463 = vmul.f32 %v10459, %v10459
      %v10464 = vmul.f32 %v10460, %v10460
      %v10465 = vsel %vm7458, %v10461, 0.0
      %v10466 = vsel %vm7458, %v10462, 0.0
      %v10467 = vadd.f32 %v10465, %v10466
      %v10468 = vsel %vm7458, %v10463, 0.0
      %v10469 = vadd.f32 %v10467, %v10468
      %v10470 = vsel %vm7458, %v10464, 0.0
      %v10471 = vadd.f32 %v10469, %v10470
      %10472 = vadd.xlane.f32.xlu0 %v10471
      %v10473 = vpop.xlane.xlu0 %10472
      %v10474 = vmul.f32 %v10473, %v10455
      %v10475 = vadd.f32 %v10474, 1e-05
      %v10476 = vrsqrt.pop %v10475
      %v10477 = vmul.f32 %v10457, %v10476
      %v10478 = vmul.f32 %v10458, %v10476
      %v10479 = vmul.f32 %v10459, %v10476
      %v10480 = vmul.f32 %v10460, %v10476
      %v10482 = vlaneseq
      %v10483 = vshrl.u32 %v10482, 7
      %v10484 = vsub.s32 0, %v10483
      %v10485 = vrot.slane %v10444, %v10484
      %v10486 = vlaneseq
      %v10487 = vshrl.u32 %v10486, 7
      %v10488 = vsub.s32 1, %v10487
      %v10489 = vrot.slane %v10444, %v10488
      %v10490 = vlaneseq
      %v10491 = vshrl.u32 %v10490, 7
      %v10492 = vsub.s32 2, %v10491
      %v10493 = vrot.slane %v10444, %v10492
      %v10494 = vlaneseq
      %v10495 = vshrl.u32 %v10494, 7
      %v10496 = vsub.s32 3, %v10495
      %v10497 = vrot.slane %v10444, %v10496
      %v10502 = vmul.f32 %v10477, %v10485
      %v10503 = vmul.f32 %v10478, %v10489
      %v10504 = vmul.f32 %v10479, %v10493
      %v10505 = vmul.f32 %v10480, %v10497
      %v10507 = vlaneseq
      %v10508 = vshrl.u32 %v10507, 7
      %v10509 = vsub.s32 0, %v10508
      %v10510 = vrot.slane %v10445, %v10509
      %v10511 = vlaneseq
      %v10512 = vshrl.u32 %v10511, 7
      %v10513 = vsub.s32 1, %v10512
      %v10514 = vrot.slane %v10445, %v10513
      %v10515 = vlaneseq
      %v10516 = vshrl.u32 %v10515, 7
      %v10517 = vsub.s32 2, %v10516
      %v10518 = vrot.slane %v10445, %v10517
      %v10519 = vlaneseq
      %v10520 = vshrl.u32 %v10519, 7
      %v10521 = vsub.s32 3, %v10520
      %v10522 = vrot.slane %v10445, %v10521
      %v10527 = vadd.f32 %v10502, %v10510
      %v10528 = vadd.f32 %v10503, %v10514
      %v10529 = vadd.f32 %v10504, %v10518
      %v10530 = vadd.f32 %v10505, %v10522
      %v10531 = vmax.f32 %v10527, 0.0
      %v10532 = vmax.f32 %v10528, 0.0
      %v10533 = vmax.f32 %v10529, 0.0
      %v10534 = vmax.f32 %v10530, 0.0
      %v10535 = vsel %vm7458, %v10315, 0.0
      %v10536 = vsel %vm7458, %v10317, 0.0
      %v10537 = vadd.f32 %v10535, %v10536
      %v10538 = vsel %vm7458, %v10438, 0.0
      %v10539 = vadd.f32 %v10537, %v10538
      %v10540 = vsel %vm7458, %v10440, 0.0
      %v10541 = vadd.f32 %v10539, %v10540
      %10542 = vadd.xlane.f32.xlu0 %v10541
      %v10543 = vpop.xlane.xlu0 %10542
      %v10544 = vmul.f32 %v10543, %v10455
      %v10545 = vsub.f32 %v10315, %v10544
      %v10546 = vsub.f32 %v10317, %v10544
      %v10547 = vsub.f32 %v10438, %v10544
      %v10548 = vsub.f32 %v10440, %v10544
      %v10549 = vmul.f32 %v10545, %v10545
      %v10550 = vmul.f32 %v10546, %v10546
      %v10551 = vmul.f32 %v10547, %v10547
      %v10552 = vmul.f32 %v10548, %v10548
      %v10553 = vsel %vm7458, %v10549, 0.0
      %v10554 = vsel %vm7458, %v10550, 0.0
      %v10555 = vadd.f32 %v10553, %v10554
      %v10556 = vsel %vm7458, %v10551, 0.0
      %v10557 = vadd.f32 %v10555, %v10556
      %v10558 = vsel %vm7458, %v10552, 0.0
      %v10559 = vadd.f32 %v10557, %v10558
      %10560 = vadd.xlane.f32.xlu0 %v10559
      %v10561 = vpop.xlane.xlu0 %10560
      %v10562 = vmul.f32 %v10561, %v10455
      %v10563 = vadd.f32 %v10562, 1e-05
      %v10564 = vrsqrt.pop %v10563
      %v10565 = vmul.f32 %v10545, %v10564
      %v10566 = vmul.f32 %v10546, %v10564
      %v10567 = vmul.f32 %v10547, %v10564
      %v10568 = vmul.f32 %v10548, %v10564
      %v10569 = vlaneseq
      %v10570 = vshrl.u32 %v10569, 7
      %v10571 = vsub.s32 4, %v10570
      %v10572 = vrot.slane %v10444, %v10571
      %v10573 = vlaneseq
      %v10574 = vshrl.u32 %v10573, 7
      %v10575 = vsub.s32 5, %v10574
      %v10576 = vrot.slane %v10444, %v10575
      %v10577 = vlaneseq
      %v10578 = vshrl.u32 %v10577, 7
      %v10579 = vsub.s32 6, %v10578
      %v10580 = vrot.slane %v10444, %v10579
      %v10581 = vlaneseq
      %v10582 = vshrl.u32 %v10581, 7
      %v10583 = vsub.s32 7, %v10582
      %v10584 = vrot.slane %v10444, %v10583
      %v10589 = vmul.f32 %v10565, %v10572
      %v10590 = vmul.f32 %v10566, %v10576
      %v10591 = vmul.f32 %v10567, %v10580
      %v10592 = vmul.f32 %v10568, %v10584
      %v10593 = vlaneseq
      %v10594 = vshrl.u32 %v10593, 7
      %v10595 = vsub.s32 4, %v10594
      %v10596 = vrot.slane %v10445, %v10595
      %v10597 = vlaneseq
      %v10598 = vshrl.u32 %v10597, 7
      %v10599 = vsub.s32 5, %v10598
      %v10600 = vrot.slane %v10445, %v10599
      %v10601 = vlaneseq
      %v10602 = vshrl.u32 %v10601, 7
      %v10603 = vsub.s32 6, %v10602
      %v10604 = vrot.slane %v10445, %v10603
      %v10605 = vlaneseq
      %v10606 = vshrl.u32 %v10605, 7
      %v10607 = vsub.s32 7, %v10606
      %v10608 = vrot.slane %v10445, %v10607
      %v10613 = vadd.f32 %v10589, %v10596
      %v10614 = vadd.f32 %v10590, %v10600
      %v10615 = vadd.f32 %v10591, %v10604
      %v10616 = vadd.f32 %v10592, %v10608
      %v10617 = vmax.f32 %v10613, 0.0
      %v10618 = vmax.f32 %v10614, 0.0
      %v10619 = vmax.f32 %v10615, 0.0
      %v10620 = vmax.f32 %v10616, 0.0
      %v10621 = vpack.c.bf16 %v10531, %v10531
      %v10622 = vpack.c.bf16 %v10532, %v10532
      %v10623 = vpack.c.bf16 %v10533, %v10533
      %v10624 = vpack.c.bf16 %v10534, %v10534
      %v10625 = vpack.c.bf16 %v10617, %v10617
      %v10626 = vpack.c.bf16 %v10618, %v10618
      %v10627 = vpack.c.bf16 %v10619, %v10619
      %v10628 = vpack.c.bf16 %v10620, %v10620
      %v10629 = vld [vmem:[%s14] sm:$0xf]
      %v10630 = vld [vmem:[%s14 + $0x4] sm:$0xf]
      %v10631 = vld [vmem:[%s14 + $0x8] sm:$0xf]
      %v10632 = vld [vmem:[%s14 + $0xc] sm:$0xf]
      %v10633 = vld [vmem:[%s14 + $0x10] sm:$0xf]
      %v10634 = vld [vmem:[%s14 + $0x14] sm:$0xf]
      %v10635 = vld [vmem:[%s14 + $0x18] sm:$0xf]
      %v10636 = vld [vmem:[%s14 + $0x1c] sm:$0xf]
      %v10637 = vld [vmem:[%s14 + $0x20] sm:$0xf]
      %v10638 = vld [vmem:[%s14 + $0x24] sm:$0xf]
      %v10639 = vld [vmem:[%s14 + $0x28] sm:$0xf]
      %v10640 = vld [vmem:[%s14 + $0x2c] sm:$0xf]
      %v10641 = vld [vmem:[%s14 + $0x30] sm:$0xf]
      %v10642 = vld [vmem:[%s14 + $0x34] sm:$0xf]
      %v10643 = vld [vmem:[%s14 + $0x38] sm:$0xf]
      %v10644 = vld [vmem:[%s14 + $0x3c] sm:$0xf]
      %v10645 = vld [vmem:[%s14 + $0x40] sm:$0xf]
      %v10646 = vld [vmem:[%s14 + $0x44] sm:$0xf]
      %v10647 = vld [vmem:[%s14 + $0x48] sm:$0xf]
      %v10648 = vld [vmem:[%s14 + $0x4c] sm:$0xf]
      %v10649 = vld [vmem:[%s14 + $0x50] sm:$0xf]
      %v10650 = vld [vmem:[%s14 + $0x54] sm:$0xf]
      %v10651 = vld [vmem:[%s14 + $0x58] sm:$0xf]
      %v10652 = vld [vmem:[%s14 + $0x5c] sm:$0xf]
      %v10653 = vld [vmem:[%s14 + $0x60] sm:$0xf]
      %v10654 = vld [vmem:[%s14 + $0x64] sm:$0xf]
      %v10655 = vld [vmem:[%s14 + $0x68] sm:$0xf]
      %v10656 = vld [vmem:[%s14 + $0x6c] sm:$0xf]
      %v10657 = vld [vmem:[%s14 + $0x70] sm:$0xf]
      %v10658 = vld [vmem:[%s14 + $0x74] sm:$0xf]
      %v10659 = vld [vmem:[%s14 + $0x78] sm:$0xf]
      %v10660 = vld [vmem:[%s14 + $0x7c] sm:$0xf]
      %v10661 = vld [vmem:[%s14 + $0x80] sm:$0xf]
      %v10662 = vld [vmem:[%s14 + $0x84] sm:$0xf]
      %v10663 = vld [vmem:[%s14 + $0x88] sm:$0xf]
      %v10664 = vld [vmem:[%s14 + $0x8c] sm:$0xf]
      %v10665 = vld [vmem:[%s14 + $0x90] sm:$0xf]
      %v10666 = vld [vmem:[%s14 + $0x94] sm:$0xf]
      %v10667 = vld [vmem:[%s14 + $0x98] sm:$0xf]
      %v10668 = vld [vmem:[%s14 + $0x9c] sm:$0xf]
      %v10669 = vld [vmem:[%s14 + $0xa0] sm:$0xf]
      %v10670 = vld [vmem:[%s14 + $0xa4] sm:$0xf]
      %v10671 = vld [vmem:[%s14 + $0xa8] sm:$0xf]
      %v10672 = vld [vmem:[%s14 + $0xac] sm:$0xf]
      %v10673 = vld [vmem:[%s14 + $0xb0] sm:$0xf]
      %v10674 = vld [vmem:[%s14 + $0xb4] sm:$0xf]
      %v10675 = vld [vmem:[%s14 + $0xb8] sm:$0xf]
      %v10676 = vld [vmem:[%s14 + $0xbc] sm:$0xf]
      %v10677 = vld [vmem:[%s14 + $0xc0] sm:$0xf]
      %v10678 = vld [vmem:[%s14 + $0xc4] sm:$0xf]
      %v10679 = vld [vmem:[%s14 + $0xc8] sm:$0xf]
      %v10680 = vld [vmem:[%s14 + $0xcc] sm:$0xf]
      %v10681 = vld [vmem:[%s14 + $0xd0] sm:$0xf]
      %v10682 = vld [vmem:[%s14 + $0xd4] sm:$0xf]
      %v10683 = vld [vmem:[%s14 + $0xd8] sm:$0xf]
      %v10684 = vld [vmem:[%s14 + $0xdc] sm:$0xf]
      %v10685 = vld [vmem:[%s14 + $0xe0] sm:$0xf]
      %v10686 = vld [vmem:[%s14 + $0xe4] sm:$0xf]
      %v10687 = vld [vmem:[%s14 + $0xe8] sm:$0xf]
      %v10688 = vld [vmem:[%s14 + $0xec] sm:$0xf]
      %v10689 = vld [vmem:[%s14 + $0xf0] sm:$0xf]
      %v10690 = vld [vmem:[%s14 + $0xf4] sm:$0xf]
      %v10691 = vld [vmem:[%s14 + $0xf8] sm:$0xf]
      %v10692 = vld [vmem:[%s14 + $0xfc] sm:$0xf]
      %v10693 = vld [vmem:[%s14 + $0x100] sm:$0xf]
      %v10694 = vld [vmem:[%s14 + $0x104] sm:$0xf]
      %v10695 = vld [vmem:[%s14 + $0x108] sm:$0xf]
      %v10696 = vld [vmem:[%s14 + $0x10c] sm:$0xf]
      %v10697 = vld [vmem:[%s14 + $0x110] sm:$0xf]
      %v10698 = vld [vmem:[%s14 + $0x114] sm:$0xf]
      %v10699 = vld [vmem:[%s14 + $0x118] sm:$0xf]
      %v10700 = vld [vmem:[%s14 + $0x11c] sm:$0xf]
      %v10701 = vld [vmem:[%s14 + $0x120] sm:$0xf]
      %v10702 = vld [vmem:[%s14 + $0x124] sm:$0xf]
      %v10703 = vld [vmem:[%s14 + $0x128] sm:$0xf]
      %v10704 = vld [vmem:[%s14 + $0x12c] sm:$0xf]
      %v10705 = vld [vmem:[%s14 + $0x130] sm:$0xf]
      %v10706 = vld [vmem:[%s14 + $0x134] sm:$0xf]
      %v10707 = vld [vmem:[%s14 + $0x138] sm:$0xf]
      %v10708 = vld [vmem:[%s14 + $0x13c] sm:$0xf]
      %v10709 = vld [vmem:[%s14 + $0x140] sm:$0xf]
      %v10710 = vld [vmem:[%s14 + $0x144] sm:$0xf]
      %v10711 = vld [vmem:[%s14 + $0x148] sm:$0xf]
      %v10712 = vld [vmem:[%s14 + $0x14c] sm:$0xf]
      %v10713 = vld [vmem:[%s14 + $0x150] sm:$0xf]
      %v10714 = vld [vmem:[%s14 + $0x154] sm:$0xf]
      %v10715 = vld [vmem:[%s14 + $0x158] sm:$0xf]
      %v10716 = vld [vmem:[%s14 + $0x15c] sm:$0xf]
      %v10717 = vld [vmem:[%s14 + $0x160] sm:$0xf]
      %v10718 = vld [vmem:[%s14 + $0x164] sm:$0xf]
      %v10719 = vld [vmem:[%s14 + $0x168] sm:$0xf]
      %v10720 = vld [vmem:[%s14 + $0x16c] sm:$0xf]
      %v10721 = vld [vmem:[%s14 + $0x170] sm:$0xf]
      %v10722 = vld [vmem:[%s14 + $0x174] sm:$0xf]
      %v10723 = vld [vmem:[%s14 + $0x178] sm:$0xf]
      %v10724 = vld [vmem:[%s14 + $0x17c] sm:$0xf]
      %v10725 = vld [vmem:[%s14 + $0x180] sm:$0xf]
      %v10726 = vld [vmem:[%s14 + $0x184] sm:$0xf]
      %v10727 = vld [vmem:[%s14 + $0x188] sm:$0xf]
      %v10728 = vld [vmem:[%s14 + $0x18c] sm:$0xf]
      %v10729 = vld [vmem:[%s14 + $0x190] sm:$0xf]
      %v10730 = vld [vmem:[%s14 + $0x194] sm:$0xf]
      %v10731 = vld [vmem:[%s14 + $0x198] sm:$0xf]
      %v10732 = vld [vmem:[%s14 + $0x19c] sm:$0xf]
      %v10733 = vld [vmem:[%s14 + $0x1a0] sm:$0xf]
      %v10734 = vld [vmem:[%s14 + $0x1a4] sm:$0xf]
      %v10735 = vld [vmem:[%s14 + $0x1a8] sm:$0xf]
      %v10736 = vld [vmem:[%s14 + $0x1ac] sm:$0xf]
      %v10737 = vld [vmem:[%s14 + $0x1b0] sm:$0xf]
      %v10738 = vld [vmem:[%s14 + $0x1b4] sm:$0xf]
      %v10739 = vld [vmem:[%s14 + $0x1b8] sm:$0xf]
      %v10740 = vld [vmem:[%s14 + $0x1bc] sm:$0xf]
      %v10741 = vld [vmem:[%s14 + $0x1c0] sm:$0xf]
      %v10742 = vld [vmem:[%s14 + $0x1c4] sm:$0xf]
      %v10743 = vld [vmem:[%s14 + $0x1c8] sm:$0xf]
      %v10744 = vld [vmem:[%s14 + $0x1cc] sm:$0xf]
      %v10745 = vld [vmem:[%s14 + $0x1d0] sm:$0xf]
      %v10746 = vld [vmem:[%s14 + $0x1d4] sm:$0xf]
      %v10747 = vld [vmem:[%s14 + $0x1d8] sm:$0xf]
      %v10748 = vld [vmem:[%s14 + $0x1dc] sm:$0xf]
      %v10749 = vld [vmem:[%s14 + $0x1e0] sm:$0xf]
      %v10750 = vld [vmem:[%s14 + $0x1e4] sm:$0xf]
      %v10751 = vld [vmem:[%s14 + $0x1e8] sm:$0xf]
      %v10752 = vld [vmem:[%s14 + $0x1ec] sm:$0xf]
      %v10753 = vld [vmem:[%s14 + $0x1f0] sm:$0xf]
      %v10754 = vld [vmem:[%s14 + $0x1f4] sm:$0xf]
      %v10755 = vld [vmem:[%s14 + $0x1f8] sm:$0xf]
      %v10756 = vld [vmem:[%s14 + $0x1fc] sm:$0xf]
      %v10757 = vld [vmem:[%s15] sm:$0x1]
      %v10886 = vunpack.c.l.b16 %v10629
      %v10887 = vunpack.c.l.b16 %v10630
      %v10888 = vunpack.c.l.b16 %v10631
      %v10889 = vunpack.c.l.b16 %v10632
      %v10890 = vunpack.c.l.b16 %v10633
      %v10891 = vunpack.c.l.b16 %v10634
      %v10892 = vunpack.c.l.b16 %v10635
      %v10893 = vunpack.c.l.b16 %v10636
      %v10894 = vunpack.c.l.b16 %v10637
      %v10895 = vunpack.c.l.b16 %v10638
      %v10896 = vunpack.c.l.b16 %v10639
      %v10897 = vunpack.c.l.b16 %v10640
      %v10898 = vunpack.c.l.b16 %v10641
      %v10899 = vunpack.c.l.b16 %v10642
      %v10900 = vunpack.c.l.b16 %v10643
      %v10901 = vunpack.c.l.b16 %v10644
      %v10902 = vunpack.c.l.b16 %v10645
      %v10903 = vunpack.c.l.b16 %v10646
      %v10904 = vunpack.c.l.b16 %v10647
      %v10905 = vunpack.c.l.b16 %v10648
      %v10906 = vunpack.c.l.b16 %v10649
      %v10907 = vunpack.c.l.b16 %v10650
      %v10908 = vunpack.c.l.b16 %v10651
      %v10909 = vunpack.c.l.b16 %v10652
      %v10910 = vunpack.c.l.b16 %v10653
      %v10911 = vunpack.c.l.b16 %v10654
      %v10912 = vunpack.c.l.b16 %v10655
      %v10913 = vunpack.c.l.b16 %v10656
      %v10914 = vunpack.c.l.b16 %v10657
      %v10915 = vunpack.c.l.b16 %v10658
      %v10916 = vunpack.c.l.b16 %v10659
      %v10917 = vunpack.c.l.b16 %v10660
      %v10918 = vunpack.c.l.b16 %v10661
      %v10919 = vunpack.c.l.b16 %v10662
      %v10920 = vunpack.c.l.b16 %v10663
      %v10921 = vunpack.c.l.b16 %v10664
      %v10922 = vunpack.c.l.b16 %v10665
      %v10923 = vunpack.c.l.b16 %v10666
      %v10924 = vunpack.c.l.b16 %v10667
      %v10925 = vunpack.c.l.b16 %v10668
      %v10926 = vunpack.c.l.b16 %v10669
      %v10927 = vunpack.c.l.b16 %v10670
      %v10928 = vunpack.c.l.b16 %v10671
      %v10929 = vunpack.c.l.b16 %v10672
      %v10930 = vunpack.c.l.b16 %v10673
      %v10931 = vunpack.c.l.b16 %v10674
      %v10932 = vunpack.c.l.b16 %v10675
      %v10933 = vunpack.c.l.b16 %v10676
      %v10934 = vunpack.c.l.b16 %v10677
      %v10935 = vunpack.c.l.b16 %v10678
      %v10936 = vunpack.c.l.b16 %v10679
      %v10937 = vunpack.c.l.b16 %v10680
      %v10938 = vunpack.c.l.b16 %v10681
      %v10939 = vunpack.c.l.b16 %v10682
      %v10940 = vunpack.c.l.b16 %v10683
      %v10941 = vunpack.c.l.b16 %v10684
      %v10942 = vunpack.c.l.b16 %v10685
      %v10943 = vunpack.c.l.b16 %v10686
      %v10944 = vunpack.c.l.b16 %v10687
      %v10945 = vunpack.c.l.b16 %v10688
      %v10946 = vunpack.c.l.b16 %v10689
      %v10947 = vunpack.c.l.b16 %v10690
      %v10948 = vunpack.c.l.b16 %v10691
      %v10949 = vunpack.c.l.b16 %v10692
      %v10950 = vunpack.c.l.b16 %v10693
      %v10951 = vunpack.c.l.b16 %v10694
      %v10952 = vunpack.c.l.b16 %v10695
      %v10953 = vunpack.c.l.b16 %v10696
      %v10954 = vunpack.c.l.b16 %v10697
      %v10955 = vunpack.c.l.b16 %v10698
      %v10956 = vunpack.c.l.b16 %v10699
      %v10957 = vunpack.c.l.b16 %v10700
      %v10958 = vunpack.c.l.b16 %v10701
      %v10959 = vunpack.c.l.b16 %v10702
      %v10960 = vunpack.c.l.b16 %v10703
      %v10961 = vunpack.c.l.b16 %v10704
      %v10962 = vunpack.c.l.b16 %v10705
      %v10963 = vunpack.c.l.b16 %v10706
      %v10964 = vunpack.c.l.b16 %v10707
      %v10965 = vunpack.c.l.b16 %v10708
      %v10966 = vunpack.c.l.b16 %v10709
      %v10967 = vunpack.c.l.b16 %v10710
      %v10968 = vunpack.c.l.b16 %v10711
      %v10969 = vunpack.c.l.b16 %v10712
      %v10970 = vunpack.c.l.b16 %v10713
      %v10971 = vunpack.c.l.b16 %v10714
      %v10972 = vunpack.c.l.b16 %v10715
      %v10973 = vunpack.c.l.b16 %v10716
      %v10974 = vunpack.c.l.b16 %v10717
      %v10975 = vunpack.c.l.b16 %v10718
      %v10976 = vunpack.c.l.b16 %v10719
      %v10977 = vunpack.c.l.b16 %v10720
      %v10978 = vunpack.c.l.b16 %v10721
      %v10979 = vunpack.c.l.b16 %v10722
      %v10980 = vunpack.c.l.b16 %v10723
      %v10981 = vunpack.c.l.b16 %v10724
      %v10982 = vunpack.c.l.b16 %v10725
      %v10983 = vunpack.c.l.b16 %v10726
      %v10984 = vunpack.c.l.b16 %v10727
      %v10985 = vunpack.c.l.b16 %v10728
      %v10986 = vunpack.c.l.b16 %v10729
      %v10987 = vunpack.c.l.b16 %v10730
      %v10988 = vunpack.c.l.b16 %v10731
      %v10989 = vunpack.c.l.b16 %v10732
      %v10990 = vunpack.c.l.b16 %v10733
      %v10991 = vunpack.c.l.b16 %v10734
      %v10992 = vunpack.c.l.b16 %v10735
      %v10993 = vunpack.c.l.b16 %v10736
      %v10994 = vunpack.c.l.b16 %v10737
      %v10995 = vunpack.c.l.b16 %v10738
      %v10996 = vunpack.c.l.b16 %v10739
      %v10997 = vunpack.c.l.b16 %v10740
      %v10998 = vunpack.c.l.b16 %v10741
      %v10999 = vunpack.c.l.b16 %v10742
      %v11000 = vunpack.c.l.b16 %v10743
      %v11001 = vunpack.c.l.b16 %v10744
      %v11002 = vunpack.c.l.b16 %v10745
      %v11003 = vunpack.c.l.b16 %v10746
      %v11004 = vunpack.c.l.b16 %v10747
      %v11005 = vunpack.c.l.b16 %v10748
      %v11006 = vunpack.c.l.b16 %v10749
      %v11007 = vunpack.c.l.b16 %v10750
      %v11008 = vunpack.c.l.b16 %v10751
      %v11009 = vunpack.c.l.b16 %v10752
      %v11010 = vunpack.c.l.b16 %v10753
      %v11011 = vunpack.c.l.b16 %v10754
      %v11012 = vunpack.c.l.b16 %v10755
      %v11013 = vunpack.c.l.b16 %v10756
      %v11014 = vpack.c.b16 %v10887, %v10886
      %v11015 = vpack.c.b16 %v10889, %v10888
      %v11016 = vpack.c.b16 %v10891, %v10890
      %v11017 = vpack.c.b16 %v10893, %v10892
      %v11018 = vpack.c.b16 %v10895, %v10894
      %v11019 = vpack.c.b16 %v10897, %v10896
      %v11020 = vpack.c.b16 %v10899, %v10898
      %v11021 = vpack.c.b16 %v10901, %v10900
      %v11022 = vpack.c.b16 %v10903, %v10902
      %v11023 = vpack.c.b16 %v10905, %v10904
      %v11024 = vpack.c.b16 %v10907, %v10906
      %v11025 = vpack.c.b16 %v10909, %v10908
      %v11026 = vpack.c.b16 %v10911, %v10910
      %v11027 = vpack.c.b16 %v10913, %v10912
      %v11028 = vpack.c.b16 %v10915, %v10914
      %v11029 = vpack.c.b16 %v10917, %v10916
      %v11030 = vpack.c.b16 %v10919, %v10918
      %v11031 = vpack.c.b16 %v10921, %v10920
      %v11032 = vpack.c.b16 %v10923, %v10922
      %v11033 = vpack.c.b16 %v10925, %v10924
      %v11034 = vpack.c.b16 %v10927, %v10926
      %v11035 = vpack.c.b16 %v10929, %v10928
      %v11036 = vpack.c.b16 %v10931, %v10930
      %v11037 = vpack.c.b16 %v10933, %v10932
      %v11038 = vpack.c.b16 %v10935, %v10934
      %v11039 = vpack.c.b16 %v10937, %v10936
      %v11040 = vpack.c.b16 %v10939, %v10938
      %v11041 = vpack.c.b16 %v10941, %v10940
      %v11042 = vpack.c.b16 %v10943, %v10942
      %v11043 = vpack.c.b16 %v10945, %v10944
      %v11044 = vpack.c.b16 %v10947, %v10946
      %v11045 = vpack.c.b16 %v10949, %v10948
      %v11046 = vpack.c.b16 %v10951, %v10950
      %v11047 = vpack.c.b16 %v10953, %v10952
      %v11048 = vpack.c.b16 %v10955, %v10954
      %v11049 = vpack.c.b16 %v10957, %v10956
      %v11050 = vpack.c.b16 %v10959, %v10958
      %v11051 = vpack.c.b16 %v10961, %v10960
      %v11052 = vpack.c.b16 %v10963, %v10962
      %v11053 = vpack.c.b16 %v10965, %v10964
      %v11054 = vpack.c.b16 %v10967, %v10966
      %v11055 = vpack.c.b16 %v10969, %v10968
      %v11056 = vpack.c.b16 %v10971, %v10970
      %v11057 = vpack.c.b16 %v10973, %v10972
      %v11058 = vpack.c.b16 %v10975, %v10974
      %v11059 = vpack.c.b16 %v10977, %v10976
      %v11060 = vpack.c.b16 %v10979, %v10978
      %v11061 = vpack.c.b16 %v10981, %v10980
      %v11062 = vpack.c.b16 %v10983, %v10982
      %v11063 = vpack.c.b16 %v10985, %v10984
      %v11064 = vpack.c.b16 %v10987, %v10986
      %v11065 = vpack.c.b16 %v10989, %v10988
      %v11066 = vpack.c.b16 %v10991, %v10990
      %v11067 = vpack.c.b16 %v10993, %v10992
      %v11068 = vpack.c.b16 %v10995, %v10994
      %v11069 = vpack.c.b16 %v10997, %v10996
      %v11070 = vpack.c.b16 %v10999, %v10998
      %v11071 = vpack.c.b16 %v11001, %v11000
      %v11072 = vpack.c.b16 %v11003, %v11002
      %v11073 = vpack.c.b16 %v11005, %v11004
      %v11074 = vpack.c.b16 %v11007, %v11006
      %v11075 = vpack.c.b16 %v11009, %v11008
      %v11076 = vpack.c.b16 %v11011, %v11010
      %v11077 = vpack.c.b16 %v11013, %v11012
      %11142 = vmatprep.subr.bf16.mxu0 0
      %11143 = vmatpush1.bf16.msra.mxu0 %v11021
      %11144 = vmatprep.subr.bf16.mxu0 0
      %11145 = vmatpush1.bf16.msra.mxu0 %v11020
      %11146 = vmatprep.subr.bf16.mxu0 0
      %11147 = vmatpush1.bf16.msra.mxu0 %v11019
      %11148 = vmatprep.subr.bf16.mxu0 0
      %11149 = vmatpush1.bf16.msra.mxu0 %v11018
      %11150 = vmatprep.subr.bf16.mxu0 0
      %11151 = vmatpush1.bf16.msra.mxu0 %v11017
      %11152 = vmatprep.subr.bf16.mxu0 0
      %11153 = vmatpush1.bf16.msra.mxu0 %v11016
      %11154 = vmatprep.subr.bf16.mxu0 0
      %11155 = vmatpush1.bf16.msra.mxu0 %v11015
      %11156 = vmatprep.subr.bf16.mxu0 0
      %11157 = vmatpush1.bf16.msra.mxu0 %v11014
      %11158 = vmatprep.subr.bf16.mxu0 0
      %11159 = vmatpush2.bf16.msra.mxu0 %v11029
      %11160 = vmatprep.subr.bf16.mxu0 0
      %11161 = vmatpush2.bf16.msra.mxu0 %v11028
      %11162 = vmatprep.subr.bf16.mxu0 0
      %11163 = vmatpush2.bf16.msra.mxu0 %v11027
      %11164 = vmatprep.subr.bf16.mxu0 0
      %11165 = vmatpush2.bf16.msra.mxu0 %v11026
      %11166 = vmatprep.subr.bf16.mxu0 0
      %11167 = vmatpush2.bf16.msra.mxu0 %v11025
      %11168 = vmatprep.subr.bf16.mxu0 0
      %11169 = vmatpush2.bf16.msra.mxu0 %v11024
      %11170 = vmatprep.subr.bf16.mxu0 0
      %11171 = vmatpush2.bf16.msra.mxu0 %v11023
      %11172 = vmatprep.subr.bf16.mxu0 0
      %11173 = vmatpush2.bf16.msra.mxu0 %v11022
      %11174 = vmatprep.mubr.bf16.mxu0 %v10622
      %11175 = vmatmul.mubr.bf16.gmra.mxu0 %v10621
      %v11176 = vpop.f32.mrf.mxu0
      %v11177 = vadd.f32 %v10757, %v11176
      %v11178 = vpop.f32.mrf.mxu0
      %v11179 = vpop.f32.mrf.mxu0
      %v11180 = vpop.f32.mrf.mxu0
      %11181 = vdwg.mxu0
      %11182 = vmatprep.subr.bf16.mxu0 0
      %11183 = vmatpush1.bf16.msra.mxu0 %v11037
      %11184 = vmatprep.subr.bf16.mxu0 0
      %11185 = vmatpush1.bf16.msra.mxu0 %v11036
      %11186 = vmatprep.subr.bf16.mxu0 0
      %11187 = vmatpush1.bf16.msra.mxu0 %v11035
      %11188 = vmatprep.subr.bf16.mxu0 0
      %11189 = vmatpush1.bf16.msra.mxu0 %v11034
      %11190 = vmatprep.subr.bf16.mxu0 0
      %11191 = vmatpush1.bf16.msra.mxu0 %v11033
      %11192 = vmatprep.subr.bf16.mxu0 0
      %11193 = vmatpush1.bf16.msra.mxu0 %v11032
      %11194 = vmatprep.subr.bf16.mxu0 0
      %11195 = vmatpush1.bf16.msra.mxu0 %v11031
      %11196 = vmatprep.subr.bf16.mxu0 0
      %11197 = vmatpush1.bf16.msra.mxu0 %v11030
      %11198 = vmatprep.subr.bf16.mxu0 0
      %11199 = vmatpush2.bf16.msra.mxu0 %v11045
      %11200 = vmatprep.subr.bf16.mxu0 0
      %11201 = vmatpush2.bf16.msra.mxu0 %v11044
      %11202 = vmatprep.subr.bf16.mxu0 0
      %11203 = vmatpush2.bf16.msra.mxu0 %v11043
      %11204 = vmatprep.subr.bf16.mxu0 0
      %11205 = vmatpush2.bf16.msra.mxu0 %v11042
      %11206 = vmatprep.subr.bf16.mxu0 0
      %11207 = vmatpush2.bf16.msra.mxu0 %v11041
      %11208 = vmatprep.subr.bf16.mxu0 0
      %11209 = vmatpush2.bf16.msra.mxu0 %v11040
      %11210 = vmatprep.subr.bf16.mxu0 0
      %11211 = vmatpush2.bf16.msra.mxu0 %v11039
      %11212 = vmatprep.subr.bf16.mxu0 0
      %11213 = vmatpush2.bf16.msra.mxu0 %v11038
      %11214 = vmatprep.mubr.bf16.mxu0 %v10624
      %11215 = vmatmul.mubr.bf16.gmra.mxu0 %v10623
      %v11216 = vpop.f32.mrf.mxu0
      %v11217 = vadd.f32 %v11177, %v11216
      %v11218 = vpop.f32.mrf.mxu0
      %v11219 = vpop.f32.mrf.mxu0
      %v11220 = vpop.f32.mrf.mxu0
      %11221 = vdwg.mxu0
      %11222 = vmatprep.subr.bf16.mxu0 0
      %11223 = vmatpush1.bf16.msra.mxu0 %v11053
      %11224 = vmatprep.subr.bf16.mxu0 0
      %11225 = vmatpush1.bf16.msra.mxu0 %v11052
      %11226 = vmatprep.subr.bf16.mxu0 0
      %11227 = vmatpush1.bf16.msra.mxu0 %v11051
      %11228 = vmatprep.subr.bf16.mxu0 0
      %11229 = vmatpush1.bf16.msra.mxu0 %v11050
      %11230 = vmatprep.subr.bf16.mxu0 0
      %11231 = vmatpush1.bf16.msra.mxu0 %v11049
      %11232 = vmatprep.subr.bf16.mxu0 0
      %11233 = vmatpush1.bf16.msra.mxu0 %v11048
      %11234 = vmatprep.subr.bf16.mxu0 0
      %11235 = vmatpush1.bf16.msra.mxu0 %v11047
      %11236 = vmatprep.subr.bf16.mxu0 0
      %11237 = vmatpush1.bf16.msra.mxu0 %v11046
      %11238 = vmatprep.subr.bf16.mxu0 0
      %11239 = vmatpush2.bf16.msra.mxu0 %v11061
      %11240 = vmatprep.subr.bf16.mxu0 0
      %11241 = vmatpush2.bf16.msra.mxu0 %v11060
      %11242 = vmatprep.subr.bf16.mxu0 0
      %11243 = vmatpush2.bf16.msra.mxu0 %v11059
      %11244 = vmatprep.subr.bf16.mxu0 0
      %11245 = vmatpush2.bf16.msra.mxu0 %v11058
      %11246 = vmatprep.subr.bf16.mxu0 0
      %11247 = vmatpush2.bf16.msra.mxu0 %v11057
      %11248 = vmatprep.subr.bf16.mxu0 0
      %11249 = vmatpush2.bf16.msra.mxu0 %v11056
      %11250 = vmatprep.subr.bf16.mxu0 0
      %11251 = vmatpush2.bf16.msra.mxu0 %v11055
      %11252 = vmatprep.subr.bf16.mxu0 0
      %11253 = vmatpush2.bf16.msra.mxu0 %v11054
      %11254 = vmatprep.mubr.bf16.mxu0 %v10626
      %11255 = vmatmul.mubr.bf16.gmra.mxu0 %v10625
      %v11256 = vpop.f32.mrf.mxu0
      %v11257 = vadd.f32 %v11217, %v11256
      %v11258 = vpop.f32.mrf.mxu0
      %v11259 = vpop.f32.mrf.mxu0
      %v11260 = vpop.f32.mrf.mxu0
      %11261 = vdwg.mxu0
      %11262 = vmatprep.subr.bf16.mxu0 0
      %11263 = vmatpush1.bf16.msra.mxu0 %v11069
      %11264 = vmatprep.subr.bf16.mxu0 0
      %11265 = vmatpush1.bf16.msra.mxu0 %v11068
      %11266 = vmatprep.subr.bf16.mxu0 0
      %11267 = vmatpush1.bf16.msra.mxu0 %v11067
      %11268 = vmatprep.subr.bf16.mxu0 0
      %11269 = vmatpush1.bf16.msra.mxu0 %v11066
      %11270 = vmatprep.subr.bf16.mxu0 0
      %11271 = vmatpush1.bf16.msra.mxu0 %v11065
      %11272 = vmatprep.subr.bf16.mxu0 0
      %11273 = vmatpush1.bf16.msra.mxu0 %v11064
      %11274 = vmatprep.subr.bf16.mxu0 0
      %11275 = vmatpush1.bf16.msra.mxu0 %v11063
      %11276 = vmatprep.subr.bf16.mxu0 0
      %11277 = vmatpush1.bf16.msra.mxu0 %v11062
      %11278 = vmatprep.subr.bf16.mxu0 0
      %11279 = vmatpush2.bf16.msra.mxu0 %v11077
      %11280 = vmatprep.subr.bf16.mxu0 0
      %11281 = vmatpush2.bf16.msra.mxu0 %v11076
      %11282 = vmatprep.subr.bf16.mxu0 0
      %11283 = vmatpush2.bf16.msra.mxu0 %v11075
      %11284 = vmatprep.subr.bf16.mxu0 0
      %11285 = vmatpush2.bf16.msra.mxu0 %v11074
      %11286 = vmatprep.subr.bf16.mxu0 0
      %11287 = vmatpush2.bf16.msra.mxu0 %v11073
      %11288 = vmatprep.subr.bf16.mxu0 0
      %11289 = vmatpush2.bf16.msra.mxu0 %v11072
      %11290 = vmatprep.subr.bf16.mxu0 0
      %11291 = vmatpush2.bf16.msra.mxu0 %v11071
      %11292 = vmatprep.subr.bf16.mxu0 0
      %11293 = vmatpush2.bf16.msra.mxu0 %v11070
      %11294 = vmatprep.mubr.bf16.mxu0 %v10628
      %11295 = vmatmul.mubr.bf16.gmra.mxu0 %v10627
      %v11296 = vpop.f32.mrf.mxu0
      %v11297 = vadd.f32 %v11257, %v11296
      %v11298 = vpop.f32.mrf.mxu0
      %v11299 = vpop.f32.mrf.mxu0
      %v11300 = vpop.f32.mrf.mxu0
      %11301 = vdwg.mxu0
      %11302 = vst [vmem:[%s517] sm:$0x1] %v11297
      %p11303 = scmp.lt.s32.totalorder %s27, 1
      %s11304 = scalar_select %p11303, %s27, 1
      %s11305 = scalar_lea.vmem %s16, %s11304
      // Predicated region
      $region85: #{duel_cnn_forward.1} parent=83 // pred_check
        %p11306 = pneg %p386
      $region86: #{duel_cnn_forward.1} parent=83 // pred_check_branch
        %11308 = sbr.rel (%p11306) target = $region88
      $region87: #{duel_cnn_forward.1} parent=83 // pred_region
        _
      $region88: #{duel_cnn_forward.1} parent=83 // pred_fallthru
        _
    $region84: #{duel_cnn_forward.1} parent=5 // pred_fallthru
      _
    %p11309 = scmp.le.s32.totalorder 2, %s22
    // Predicated region
    $region89: #{duel_cnn_forward.1} parent=5 // pred_check
      %p11310 = pneg %p11309
    $region90: #{duel_cnn_forward.1} parent=5 // pred_check_branch
      %11312 = sbr.rel (%p11310) target = $region92
    $region91: #{duel_cnn_forward.1} parent=5 // pred_region
      %s11313 = ssub.s32 %s22, 2
      // Predicated region
      $region93: #{duel_cnn_forward.1} parent=91 // pred_check
        %p11314 = pneg %p392
      $region94: #{duel_cnn_forward.1} parent=91 // pred_check_branch
        %11316 = sbr.rel (%p11314) target = $region96
      $region95: #{duel_cnn_forward.1} parent=91 // pred_region
        %p11317 = scmp.lt.s32.totalorder %s28, 1
        %s11318 = scalar_select %p11317, %s28, 1
        %s11319 = scalar_lea.vmem %s16, %s11318
      $region96: #{duel_cnn_forward.1} parent=91 // pred_fallthru
        _
    $region92: #{duel_cnn_forward.1} parent=5 // pred_fallthru
      _
  $region6: #{duel_cnn_forward.1} parent=0 // loop_footer
    %s26 = sadd.s32 1, %s22
  $region7: #{duel_cnn_forward.1} parent=0 // loop_footer_branch
    %21 = sbr.rel target = $region3
  $region8: #{duel_cnn_forward.1} parent=0 // loop_exit
    _

</llo_original>
